<compile_context>
chip_gen: v7x
topology: tpu7x:2x2x1
jax: 0.10.0
libtpu: 0.0.40
codegen_flags: <defaults>
</compile_context>

<pallas_src>
import functools

import jax
import jax.numpy as jnp
from jax.experimental import pallas as pl
from jax.experimental.pallas import tpu as pltpu

_BN_EPS = 1e-5
_LANE = 128


# ------------------------------ sizing helpers --------------------------------

def _round_up(x, m):
    return (x + m - 1) // m * m


def _vmem_budget_bytes():
    kind = ""
    try:
        kind = jax.devices()[0].device_kind.lower()
    except Exception:
        pass
    if "v5 lite" in kind or "v5e" in kind or "v5lite" in kind:
        return 12 * 1024 * 1024          # stay well inside v5e's smaller scoped VMEM
    return 24 * 1024 * 1024              # v6e / v7x (v7x: 64 MiB physical / 32 scoped)


_VMEM_BUDGET = _vmem_budget_bytes()
_VMEM_LIMIT = 32 * 1024 * 1024           # <= physical VMEM on every generation

_ROW_TILES = (1024, 512, 256, 128, 64, 32, 16, 8)


def _pick_row_tile(rows, fixed_bytes, per_row_bytes):
    cap = _round_up(max(rows, 8), 8)
    for tr in _ROW_TILES:
        if tr <= cap and fixed_bytes + tr * per_row_bytes <= _VMEM_BUDGET:
            return tr
    return 8


def _pick_div_tile(rp, per_row_bytes):
    for tr in _ROW_TILES:
        if rp % tr == 0 and tr * per_row_bytes <= _VMEM_BUDGET:
            return tr
    return 8


def _divisors_desc(n):
    return [d for d in range(n, 0, -1) if n % d == 0]


def _pick_h_tile(h, w, coutp, fixed_bytes):
    def extra(th):
        # f32 accumulator scratch + double-buffered bf16 output tile
        return th * w * coutp * 4 + 2 * th * w * coutp * 2
    # prefer modest tiles (<= 8 output rows): accumulator stays in VMEM scratch and
    # the pipeline / megacore get several steps per image
    for th in _divisors_desc(h):
        if th <= 8 and (th * w) % 8 == 0 and fixed_bytes + extra(th) <= _VMEM_BUDGET:
            return th
    for th in _divisors_desc(h):
        if ((th * w) % 8 == 0 or th == h) and fixed_bytes + extra(th) <= _VMEM_BUDGET:
            return th
    return h


def _pad_cols(a, target):
    if a.shape[-1] == target:
        return a
    return jnp.pad(a, [(0, 0)] * (a.ndim - 1) + [(0, target - a.shape[-1])])


def _pad_mat(a, rows, cols):
    return jnp.pad(a, ((0, rows - a.shape[0]), (0, cols - a.shape[1])))


def _pad_vec(v, target):
    return v if v.shape[0] == target else jnp.pad(v, (0, target - v.shape[0]))


# ------------------------------ Pallas kernels --------------------------------

def _matmul_stats_kernel(*refs, pre_bn_relu, block_rows, true_rows):
    """y = act(x) @ W (bf16 MXU, f32 acc) + per-tile channel sum / sum-of-squares.

    When pre_bn_relu, x is the previous layer's raw (pre-BN) output and (a, b)
    its BN affine: act = relu(x*a + b).  Padded rows are masked to zero so the
    *global* batch statistics stay exact.
    """
    if pre_bn_relu:
        x_ref, w_ref, a_ref, b_ref, y_ref, psum_ref, psq_ref = refs
        act = jnp.maximum(x_ref[...].astype(jnp.float32) * a_ref[...] + b_ref[...], 0.0)
        row = (pl.program_id(0) * block_rows
               + jax.lax.broadcasted_iota(jnp.int32, (block_rows, 1), 0))
        act = jnp.where(row < true_rows, act, 0.0)
        x = act.astype(jnp.bfloat16)
    else:
        x_ref, w_ref, y_ref, psum_ref, psq_ref = refs
        x = x_ref[...]
    y = jnp.dot(x, w_ref[...], preferred_element_type=jnp.float32)
    y_ref[...] = y.astype(y_ref.dtype)
    psum_ref[0] = jnp.sum(y, axis=0, keepdims=True)
    psq_ref[0] = jnp.sum(y * y, axis=0, keepdims=True)


def _conv3x3_bn_relu_stats_kernel(x_ref, w_ref, a_ref, b_ref,
                                  y_ref, psum_ref, psq_ref, acc_ref,
                                  *, th, h, w):
    """relu(bn1(.)) fused into a 3x3 / stride-1 / pad-1 conv of one row tile.

    x_ref : (1, H+2, W+2, Cin) bf16 -- raw conv1 output, spatially zero padded;
            constant block index per image => DMA'd to VMEM once per image.
    w_ref : (9, Cin, Cout) bf16      a_ref/b_ref : (1, Cin) f32 bn1 affine
    y_ref : (1, th*W, Cout) bf16     psum/psq   : (1, 1, Cout) f32
    acc_ref: VMEM scratch (th*W, Cout) f32
    """
    t = pl.program_id(1)
    row0 = pl.multiple_of(t * th, th)
    slab = x_ref[0, pl.ds(row0, th + 2)]                        # (th+2, W+2, Cin) bf16
    act = jnp.maximum(slab.astype(jnp.float32) * a_ref[...] + b_ref[...], 0.0)
    # halo mask: the spatial zero-padding must stay zero *after* bn1+relu1
    r_idx = jax.lax.broadcasted_iota(jnp.int32, (th + 2, w + 2, 1), 0) + row0
    c_idx = jax.lax.broadcasted_iota(jnp.int32, (th + 2, w + 2, 1), 1)
    valid = (r_idx >= 1) & (r_idx <= h) & (c_idx >= 1) & (c_idx <= w)
    act = jnp.where(valid, act, 0.0).astype(jnp.bfloat16)

    cin = act.shape[-1]
    for kk in range(9):                                         # unrolled at trace time
        di, dj = kk // 3, kk % 3
        patch = act[di:di + th, dj:dj + w, :].reshape(th * w, cin)
        contrib = jnp.dot(patch, w_ref[kk], preferred_element_type=jnp.float32)
        if kk == 0:
            acc_ref[...] = contrib
        else:
            acc_ref[...] += contrib
    acc = acc_ref[...]
    y_ref[0] = acc.astype(y_ref.dtype)
    psum_ref[0] = jnp.sum(acc, axis=0, keepdims=True)
    psq_ref[0] = jnp.sum(acc * acc, axis=0, keepdims=True)


def _bn_act_kernel(y_ref, a_ref, b_ref, o_ref, *, relu):
    y = y_ref[...].astype(jnp.float32) * a_ref[...] + b_ref[...]
    if relu:
        y = jnp.maximum(y, 0.0)
    o_ref[...] = y.astype(o_ref.dtype)


def _bn_act_residual_kernel(y_ref, a_ref, b_ref, yr_ref, ar_ref, br_ref, o_ref,
                            *, relu):
    y = y_ref[...].astype(jnp.float32) * a_ref[...] + b_ref[...]
    if relu:
        y = jnp.maximum(y, 0.0)
    res = yr_ref[...].astype(jnp.float32) * ar_ref[...] + br_ref[...]
    o_ref[...] = (y + res).astype(o_ref.dtype)


# --------------------------------- wrappers -----------------------------------

def fused_matmul_stats(x_rows, w, *, pre_affine=None, out_dtype=jnp.bfloat16):
    """Row-tiled pass-1 matmul with a VMEM-resident weight.

    x_rows: [R, K]  (bf16, or raw pre-BN values if pre_affine is given)
    w:      [K, C]  bf16 (fetched from HBM once; constant block index)
    Returns (y_padded [Rp, C] out_dtype, channel_sum [C] f32, channel_sumsq [C] f32).
    """
    r, k = x_rows.shape
    c = w.shape[1]
    fixed = 2 * k * c * 2                                    # resident bf16 weight (2 bufs)
    per_row = 2 * (k * x_rows.dtype.itemsize + c * jnp.dtype(out_dtype).itemsize)
    tr = _pick_row_tile(r, fixed, per_row)
    rp = _round_up(r, tr)
    nr = rp // tr
    xp = x_rows if rp == r else jnp.pad(x_rows, ((0, rp - r), (0, 0)))

    kernel = functools.partial(_matmul_stats_kernel,
                               pre_bn_relu=pre_affine is not None,
                               block_rows=tr, true_rows=r)
    in_specs = [pl.BlockSpec((tr, k), lambda i: (i, 0)),
                pl.BlockSpec((k, c), lambda i: (0, 0))]      # resident weight
    args = [xp, w]
    if pre_affine is not None:
        a, b = pre_affine
        in_specs += [pl.BlockSpec((1, k), lambda i: (0, 0)),
                     pl.BlockSpec((1, k), lambda i: (0, 0))]
        args += [a, b]

    y, psum, psq = pl.pallas_call(
        kernel,
        grid=(nr,),
        in_specs=in_specs,
        out_specs=[pl.BlockSpec((tr, c), lambda i: (i, 0)),
                   pl.BlockSpec((1, 1, c), lambda i: (i, 0, 0)),
                   pl.BlockSpec((1, 1, c), lambda i: (i, 0, 0))],
        out_shape=[jax.ShapeDtypeStruct((rp, c), out_dtype),
                   jax.ShapeDtypeStruct((nr, 1, c), jnp.float32),
                   jax.ShapeDtypeStruct((nr, 1, c), jnp.float32)],
        compiler_params=pltpu.CompilerParams(
            dimension_semantics=("parallel",),
            vmem_limit_bytes=_VMEM_LIMIT),
    )(*args)
    return y, jnp.sum(psum[:, 0, :], axis=0), jnp.sum(psq[:, 0, :], axis=0)


def conv3x3_bn_relu_stats(y1_halo, a1, b1, w2_flat, *, h, w):
    """Fused bn1+relu1 -> 3x3 conv (stride 1, pad 1), no im2col materialization.

    y1_halo: [N, H+2, W+2, Cin] bf16 (raw conv1 output, spatially zero padded)
    w2_flat: [9, Cin, Cout] bf16
    Returns (y_rows [N*H*W, Cout] bf16, channel_sum, channel_sumsq).
    """
    n, hp2, wp2, cinp = y1_halo.shape
    coutp = w2_flat.shape[2]
    fixed = 2 * hp2 * wp2 * cinp * 2 + 2 * 9 * cinp * coutp * 2
    th = _pick_h_tile(h, w, coutp, fixed)
    nt = h // th
    kernel = functools.partial(_conv3x3_bn_relu_stats_kernel, th=th, h=h, w=w)
    y, psum, psq = pl.pallas_call(
        kernel,
        grid=(n, nt),
        in_specs=[pl.BlockSpec((1, hp2, wp2, cinp), lambda i, t: (i, 0, 0, 0)),
                  pl.BlockSpec((9, cinp, coutp), lambda i, t: (0, 0, 0)),
                  pl.BlockSpec((1, cinp), lambda i, t: (0, 0)),
                  pl.BlockSpec((1, cinp), lambda i, t: (0, 0))],
        out_specs=[pl.BlockSpec((1, th * w, coutp), lambda i, t: (i, t, 0)),
                   pl.BlockSpec((1, 1, coutp), lambda i, t: (i * nt + t, 0, 0)),
                   pl.BlockSpec((1, 1, coutp), lambda i, t: (i * nt + t, 0, 0))],
        out_shape=[jax.ShapeDtypeStruct((n, h * w, coutp), jnp.bfloat16),
                   jax.ShapeDtypeStruct((n * nt, 1, coutp), jnp.float32),
                   jax.ShapeDtypeStruct((n * nt, 1, coutp), jnp.float32)],
        scratch_shapes=[pltpu.VMEM((th * w, coutp), jnp.float32)],
        compiler_params=pltpu.CompilerParams(
            dimension_semantics=("parallel", "parallel"),
            vmem_limit_bytes=_VMEM_LIMIT),
    )(y1_halo, w2_flat, a1, b1)
    return (y.reshape(n * h * w, coutp),
            jnp.sum(psum[:, 0, :], axis=0),
            jnp.sum(psq[:, 0, :], axis=0))


def bn_act(y_pad, a, b, *, relu, out_dtype, residual=None):
    """Pass 2: out = [relu](y*a+b) [+ (yr*ar+br)], row-tiled, lane-dense."""
    rp, c = y_pad.shape
    res_bytes = 0 if residual is None else residual[0].dtype.itemsize * c
    per_row = 2 * (y_pad.dtype.itemsize * c + jnp.dtype(out_dtype).itemsize * c
                   + res_bytes)
    tr = _pick_div_tile(rp, per_row)
    nr = rp // tr
    row_spec = pl.BlockSpec((tr, c), lambda i: (i, 0))
    vec_spec = lambda: pl.BlockSpec((1, c), lambda i: (0, 0))
    if residual is None:
        kernel = functools.partial(_bn_act_kernel, relu=relu)
        in_specs = [row_spec, vec_spec(), vec_spec()]
        args = (y_pad, a, b)
    else:
        yr, ar, br = residual
        kernel = functools.partial(_bn_act_residual_kernel, relu=relu)
        in_specs = [row_spec, vec_spec(), vec_spec(),
                    row_spec, vec_spec(), vec_spec()]
        args = (y_pad, a, b, yr, ar, br)
    return pl.pallas_call(
        kernel,
        grid=(nr,),
        in_specs=in_specs,
        out_specs=row_spec,
        out_shape=jax.ShapeDtypeStruct((rp, c), out_dtype),
        compiler_params=pltpu.CompilerParams(
            dimension_semantics=("parallel",),
            vmem_limit_bytes=_VMEM_LIMIT),
    )(*args)


def _bn_affine(channel_sum, channel_sumsq, count, gamma, beta):
    """Fold global training-mode BN stats into a per-channel affine (a, b)."""
    # TODO(synk): for very large N*H*W switch to mean-shifted / Welford combine to
    # avoid E[y^2]-E[y]^2 cancellation; fine at these scales in f32.
    mean = channel_sum / count
    var = jnp.maximum(channel_sumsq / count - mean * mean, 0.0)   # biased var
    a = gamma * jax.lax.rsqrt(var + _BN_EPS)
    b = beta - mean * a
    return (a.reshape(1, -1).astype(jnp.float32),
            b.reshape(1, -1).astype(jnp.float32))


# ------------------------------- Bottleneck ------------------------------------

def init_bottleneck_params(key, in_places, places, expansion=4, downsampling=False):
    """Deterministic synthetic parameters (shapes match nn.Conv2d / BatchNorm2d)."""
    out_c = places * expansion
    ks = jax.random.split(key, 12)
    p = {
        "w1": 0.1 * jax.random.normal(ks[0], (in_places, places), jnp.float32),
        "b1": 0.05 * jax.random.normal(ks[1], (places,), jnp.float32),
        "g1": 1.0 + 0.1 * jax.random.normal(ks[2], (places,), jnp.float32),
        "be1": 0.1 * jax.random.normal(ks[3], (places,), jnp.float32),
        "w2": 0.1 * jax.random.normal(ks[4], (3, 3, places, places), jnp.float32),
        "b2": 0.05 * jax.random.normal(ks[5], (places,), jnp.float32),
        "g2": 1.0 + 0.1 * jax.random.normal(ks[6], (places,), jnp.float32),
        "be2": 0.1 * jax.random.normal(ks[7], (places,), jnp.float32),
        "w3": 0.1 * jax.random.normal(ks[8], (places, out_c), jnp.float32),
        "b3": 0.05 * jax.random.normal(ks[9], (out_c,), jnp.float32),
        "g3": 1.0 + 0.1 * jax.random.normal(ks[10], (out_c,), jnp.float32),
        "be3": 0.1 * jax.random.normal(ks[11], (out_c,), jnp.float32),
    }
    if downsampling:
        kd = jax.random.split(jax.random.fold_in(key, 123), 2)
        limit = (6.0 / (in_places + out_c)) ** 0.5               # xavier-uniform-ish
        p["wd"] = jax.random.uniform(kd[0], (in_places, out_c), jnp.float32,
                                     minval=-limit, maxval=limit)
        p["bd"] = 0.05 * jax.random.normal(kd[1], (out_c,), jnp.float32)
        p["gd"] = jnp.ones((out_c,), jnp.float32)
        p["bed"] = jnp.zeros((out_c,), jnp.float32)
    return p


def bottleneck_forward(x_nchw, params, *, expansion=4, downsampling=False, stride=1):
    x = jnp.transpose(x_nchw, (0, 2, 3, 1)).astype(jnp.float32)   # NHWC
    n, h, w, cin = x.shape
    places = params["w1"].shape[1]
    out_c = places * expansion
    ho = (h - 1) // stride + 1
    wo = (w - 1) // stride + 1
    r1, r3 = n * h * w, n * ho * wo

    cin_p = _round_up(cin, _LANE)
    c1_p = _round_up(places, _LANE)
    co_p = _round_up(out_c, _LANE)

    # lane-dense channel padding (zeros) for activations / weights / BN params
    xp = _pad_cols(x, cin_p)                                       # f32 (residual path)
    x_rows = xp.reshape(r1, cin_p)
    w1 = _pad_mat(params["w1"], cin_p, c1_p).astype(jnp.bfloat16)
    w2 = jnp.pad(params["w2"].reshape(9, places, places),
                 ((0, 0), (0, c1_p - places), (0, c1_p - places))).astype(jnp.bfloat16)
    w3 = _pad_mat(params["w3"], c1_p, co_p).astype(jnp.bfloat16)
    g1, be1 = _pad_vec(params["g1"], c1_p), _pad_vec(params["be1"], c1_p)
    g2, be2 = _pad_vec(params["g2"], c1_p), _pad_vec(params["be2"], c1_p)
    g3, be3 = _pad_vec(params["g3"], co_p), _pad_vec(params["be3"], co_p)

    # ---- conv1 (1x1): matmul + BN stats in one pass (conv bias cancelled by BN)
    y1, s1, ss1 = fused_matmul_stats(x_rows.astype(jnp.bfloat16), w1)
    a1, b1 = _bn_affine(s1, ss1, r1, g1, be1)

    # ---- conv2 (3x3, pad 1): bn1 + relu1 fused into the conv kernel ------------
    if stride == 1:
        y1_img = y1[:r1].reshape(n, h, w, c1_p)
        y1_halo = jnp.pad(y1_img, ((0, 0), (1, 1), (1, 1), (0, 0)))
        y2, s2, ss2 = conv3x3_bn_relu_stats(y1_halo, a1, b1, w2, h=h, w=w)
    else:
        # TODO(synk): strided (stride>1) variant of the fused shifted-window kernel;
        # fall back to a separate bn1 pass + im2col matmul for now.
        act1 = bn_act(y1, a1, b1, relu=True, out_dtype=jnp.bfloat16)[:r1]
        act1 = act1.reshape(n, h, w, c1_p)
        xp2 = jnp.pad(act1, ((0, 0), (1, 1), (1, 1), (0, 0)))
        patches = [xp2[:, di:di + stride * (ho - 1) + 1:stride,
                          dj:dj + stride * (wo - 1) + 1:stride, :]
                   for di in range(3) for dj in range(3)]
        cols = jnp.concatenate(patches, axis=-1).reshape(r3, 9 * c1_p)
        y2, s2, ss2 = fused_matmul_stats(cols, w2.reshape(9 * c1_p, c1_p))
        y2 = y2[:r3]
    a2, b2 = _bn_affine(s2, ss2, r3, g2, be2)

    # ---- conv3 (1x1): bn2 + relu2 fused into the matmul input ------------------
    y3, s3, ss3 = fused_matmul_stats(y2, w3, pre_affine=(a2, b2))
    a3, b3 = _bn_affine(s3, ss3, r3, g3, be3)
    rp3 = y3.shape[0]

    # ---- residual branch (its BN folded into the final kernel) -----------------
    if downsampling:
        wd = _pad_mat(params["wd"], cin_p, co_p).astype(jnp.bfloat16)
        gd, bed = _pad_vec(params["gd"], co_p), _pad_vec(params["bed"], co_p)
        xs = xp[:, ::stride, ::stride, :].reshape(r3, cin_p)
        yd, sd, ssd = fused_matmul_stats(xs.astype(jnp.bfloat16), wd)
        ad, bd = _bn_affine(sd, ssd, r3, gd, bed)
        if yd.shape[0] >= rp3:
            yd = yd[:rp3]
        else:
            yd = jnp.pad(yd, ((0, rp3 - yd.shape[0]), (0, 0)))
        residual = (yd, ad, bd)
    else:
        assert cin == out_c and stride == 1, "identity residual shape mismatch"
        xr = x_rows if rp3 == r1 else jnp.pad(x_rows, ((0, rp3 - r1), (0, 0)))
        residual = (xr, jnp.ones((1, co_p), jnp.float32),       # raw residual stays f32
                    jnp.zeros((1, co_p), jnp.float32))

    # ---- out = relu3(bn3(conv3)) + residual  (ReLU before add, none after) -----
    out = bn_act(y3, a3, b3, relu=True, out_dtype=jnp.float32, residual=residual)
    out = out[:r3, :out_c].reshape(n, ho, wo, out_c)
    return jnp.transpose(out, (0, 3, 1, 2))                       # back to NCHW


# ------------------------ pure-JAX reference (for checking) --------------------

def _bn_ref(y, gamma, beta):
    mu = jnp.mean(y, axis=(0, 1, 2), keepdims=True)
    var = jnp.mean(jnp.square(y - mu), axis=(0, 1, 2), keepdims=True)
    return (y - mu) * jax.lax.rsqrt(var + _BN_EPS) * gamma + beta


def bottleneck_reference(x_nchw, params, *, expansion=4, downsampling=False, stride=1):
    x = jnp.transpose(x_nchw, (0, 2, 3, 1)).astype(jnp.float32)

    def conv(v, wt, b, s, p):
        y = jax.lax.conv_general_dilated(v, wt, (s, s), [(p, p), (p, p)],
                                         dimension_numbers=("NHWC", "HWIO", "NHWC"))
        return y + b

    t = jax.nn.relu(_bn_ref(conv(x, params["w1"][None, None], params["b1"], 1, 0),
                            params["g1"], params["be1"]))
    t = jax.nn.relu(_bn_ref(conv(t, params["w2"], params["b2"], stride, 1),
                            params["g2"], params["be2"]))
    t = jax.nn.relu(_bn_ref(conv(t, params["w3"][None, None], params["b3"], 1, 0),
                            params["g3"], params["be3"]))
    if downsampling:
        res = _bn_ref(conv(x, params["wd"][None, None], params["bd"], stride, 0),
                      params["gd"], params["bed"])
    else:
        res = x
    return jnp.transpose(t + res, (0, 3, 1, 2))


# ------------------------------------ main --------------------------------------

if __name__ == "__main__":
    key = jax.random.PRNGKey(0)
    in_places, places, expansion, stride = 4, 4, 4, 1
    downsampling = True   # residual channels must match places*expansion

    kx, kp = jax.random.split(key)
    x = jax.random.normal(kx, (2, in_places, 16, 16), jnp.float32)   # NCHW
    params = init_bottleneck_params(kp, in_places, places, expansion, downsampling)

    fwd = jax.jit(functools.partial(bottleneck_forward, expansion=expansion,
                                    downsampling=downsampling, stride=stride))
    out = jax.block_until_ready(fwd(x, params))

    assert out.shape == (2, places * expansion, 16, 16), out.shape
    assert bool(jnp.all(jnp.isfinite(out)))

    # numerical check against a pure-JAX reference (loose tol: bf16 matmuls/storage)
    ref = bottleneck_reference(x, params, expansion=expansion,
                               downsampling=downsampling, stride=stride)
    err = float(jnp.max(jnp.abs(out - ref)))
    assert err < 0.3, f"max abs err vs reference: {err}"

    print("KERNEL_OK")
</pallas_src>

<mosaic_0001>
module attributes {stable_mosaic.version = 11 : i64} {
  func.func @_matmul_stats_kernel(%arg0: i32, %arg1: memref<512x128xbf16, #tpu.memory_space<vmem>>, %arg2: memref<128x128xbf16, #tpu.memory_space<vmem>>, %arg3: memref<512x128xbf16, #tpu.memory_space<vmem>>, %arg4: memref<1x1x128xf32, #tpu.memory_space<vmem>>, %arg5: memref<1x1x128xf32, #tpu.memory_space<vmem>>) attributes {dimension_semantics = [#tpu.dimension_semantics<parallel>], iteration_bounds = array<i64: 1>, scalar_prefetch = 0 : i64, scratch_operands = 0 : i64, tpu.core_type = #tpu.core_type<tc>, window_params = [{transform_indices = @transform_0, window_bounds = array<i64: 512, 128>}, {pipeline_mode = #tpu.pipeline_mode<synchronous>, transform_indices = @transform_1, window_bounds = array<i64: 128, 128>}, {transform_indices = @transform_2, window_bounds = array<i64: 512, 128>}, {transform_indices = @transform_3, window_bounds = array<i64: 1, 1, 128>}, {transform_indices = @transform_4, window_bounds = array<i64: 1, 1, 128>}]} {
    %c0 = arith.constant 0 : index
    %c0_0 = arith.constant 0 : index
    %0 = vector.load %arg1[%c0, %c0_0] : memref<512x128xbf16, #tpu.memory_space<vmem>>, vector<512x128xbf16>
    %c0_1 = arith.constant 0 : index
    %c0_2 = arith.constant 0 : index
    %1 = vector.load %arg2[%c0_1, %c0_2] : memref<128x128xbf16, #tpu.memory_space<vmem>>, vector<128x128xbf16>
    %cst = arith.constant dense<0.000000e+00> : vector<512x128xf32>
    %2 = tpu.matmul %0, %1, %cst {dimension_numbers = #tpu.dot_dimension_numbers<[1], [0], [0], [1], [0, 0, 1, 1], [], []>} : vector<512x128xbf16>, vector<128x128xbf16>, vector<512x128xf32> -> vector<512x128xf32>
    %3 = arith.truncf %2 : vector<512x128xf32> to vector<512x128xbf16>
    %c0_3 = arith.constant 0 : index
    %c0_4 = arith.constant 0 : index
    %4 = vector.load %arg3[%c0_3, %c0_4] : memref<512x128xbf16, #tpu.memory_space<vmem>>, vector<512x128xbf16>
    tpu.vector_store %arg3[%c0_3, %c0_4], %3 {strides = array<i32>} : memref<512x128xbf16, #tpu.memory_space<vmem>>, vector<512x128xbf16>,
    %cst_5 = arith.constant dense<0.000000e+00> : vector<128xf32>
    %5 = vector.multi_reduction <add>, %2, %cst_5 [0] : vector<512x128xf32> to vector<128xf32>
    %6 = vector.shape_cast %5 : vector<128xf32> to vector<1x128xf32>
    %c0_6 = arith.constant 0 : index
    %c0_7 = arith.constant 0 : index
    %c0_8 = arith.constant 0 : index
    %7 = vector.load %arg4[%c0_6, %c0_7, %c0_8] : memref<1x1x128xf32, #tpu.memory_space<vmem>>, vector<1x1x128xf32>
    %8 = vector.shape_cast %7 : vector<1x1x128xf32> to vector<1x128xf32>
    %9 = vector.shape_cast %6 : vector<1x128xf32> to vector<1x1x128xf32>
    tpu.vector_store %arg4[%c0_6, %c0_7, %c0_8], %9 {strides = array<i32>} : memref<1x1x128xf32, #tpu.memory_space<vmem>>, vector<1x1x128xf32>,
    %10 = arith.mulf %2, %2 : vector<512x128xf32>
    %cst_9 = arith.constant dense<0.000000e+00> : vector<128xf32>
    %11 = vector.multi_reduction <add>, %10, %cst_9 [0] : vector<512x128xf32> to vector<128xf32>
    %12 = vector.shape_cast %11 : vector<128xf32> to vector<1x128xf32>
    %c0_10 = arith.constant 0 : index
    %c0_11 = arith.constant 0 : index
    %c0_12 = arith.constant 0 : index
    %13 = vector.load %arg5[%c0_10, %c0_11, %c0_12] : memref<1x1x128xf32, #tpu.memory_space<vmem>>, vector<1x1x128xf32>
    %14 = vector.shape_cast %13 : vector<1x1x128xf32> to vector<1x128xf32>
    %15 = vector.shape_cast %12 : vector<1x128xf32> to vector<1x1x128xf32>
    tpu.vector_store %arg5[%c0_10, %c0_11, %c0_12], %15 {strides = array<i32>} : memref<1x1x128xf32, #tpu.memory_space<vmem>>, vector<1x1x128xf32>,
    return
  }
  func.func @transform_0(%arg0: i32) -> (i32, i32) {
    %c0_i32 = arith.constant 0 : i32
    %c0_i32_0 = arith.constant 0 : i32
    return %arg0, %c0_i32 : i32, i32
  }
  func.func @transform_1(%arg0: i32) -> (i32, i32) {
    %c0_i32 = arith.constant 0 : i32
    %c0_i32_0 = arith.constant 0 : i32
    %c0_i32_1 = arith.constant 0 : i32
    return %c0_i32, %c0_i32_0 : i32, i32
  }
  func.func @transform_2(%arg0: i32) -> (i32, i32) {
    %c0_i32 = arith.constant 0 : i32
    %c0_i32_0 = arith.constant 0 : i32
    return %arg0, %c0_i32 : i32, i32
  }
  func.func @transform_3(%arg0: i32) -> (i32, i32, i32) {
    %c0_i32 = arith.constant 0 : i32
    %c0_i32_0 = arith.constant 0 : i32
    %c0_i32_1 = arith.constant 0 : i32
    return %arg0, %c0_i32, %c0_i32_0 : i32, i32, i32
  }
  func.func @transform_4(%arg0: i32) -> (i32, i32, i32) {
    %c0_i32 = arith.constant 0 : i32
    %c0_i32_0 = arith.constant 0 : i32
    %c0_i32_1 = arith.constant 0 : i32
    return %arg0, %c0_i32, %c0_i32_0 : i32, i32, i32
  }
}

module attributes {stable_mosaic.version = 11 : i64} {
  func.func @_conv3x3_bn_relu_stats_kernel(%arg0: i32, %arg1: i32, %arg2: memref<1x18x18x128xbf16, #tpu.memory_space<vmem>>, %arg3: memref<9x128x128xbf16, #tpu.memory_space<vmem>>, %arg4: memref<1x128xf32, #tpu.memory_space<vmem>>, %arg5: memref<1x128xf32, #tpu.memory_space<vmem>>, %arg6: memref<1x128x128xbf16, #tpu.memory_space<vmem>>, %arg7: memref<1x1x128xf32, #tpu.memory_space<vmem>>, %arg8: memref<1x1x128xf32, #tpu.memory_space<vmem>>, %arg9: memref<128x128xf32, #tpu.memory_space<vmem>>) attributes {dimension_semantics = [#tpu.dimension_semantics<parallel>, #tpu.dimension_semantics<parallel>], iteration_bounds = array<i64: 2, 2>, scalar_prefetch = 0 : i64, scratch_operands = 1 : i64, tpu.core_type = #tpu.core_type<tc>, window_params = [{transform_indices = @transform_0, window_bounds = array<i64: 1, 18, 18, 128>}, {pipeline_mode = #tpu.pipeline_mode<synchronous>, transform_indices = @transform_1, window_bounds = array<i64: 9, 128, 128>}, {pipeline_mode = #tpu.pipeline_mode<synchronous>, transform_indices = @transform_2, window_bounds = array<i64: 1, 128>}, {pipeline_mode = #tpu.pipeline_mode<synchronous>, transform_indices = @transform_3, window_bounds = array<i64: 1, 128>}, {transform_indices = @transform_4, window_bounds = array<i64: 1, 128, 128>}, {transform_indices = @transform_5, window_bounds = array<i64: 1, 1, 128>}, {transform_indices = @transform_6, window_bounds = array<i64: 1, 1, 128>}]} {
    %c8_i32 = arith.constant 8 : i32
    %0 = arith.muli %arg1, %c8_i32 : i32
    %1 = tpu.assume_multiple %0, 8 : i32
    %c0 = arith.constant 0 : index
    %2 = arith.index_cast %1 : i32 to index
    %c0_0 = arith.constant 0 : index
    %c0_1 = arith.constant 0 : index
    %3 = vector.load %arg2[%c0, %2, %c0_0, %c0_1] : memref<1x18x18x128xbf16, #tpu.memory_space<vmem>>, vector<1x10x18x128xbf16>
    %4 = vector.shape_cast %3 : vector<1x10x18x128xbf16> to vector<10x18x128xbf16>
    %5 = arith.extf %4 : vector<10x18x128xbf16> to vector<10x18x128xf32>
    %c0_2 = arith.constant 0 : index
    %c0_3 = arith.constant 0 : index
    %6 = vector.load %arg4[%c0_2, %c0_3] : memref<1x128xf32, #tpu.memory_space<vmem>>, vector<1x128xf32>
    %7 = vector.shape_cast %6 : vector<1x128xf32> to vector<1x1x128xf32>
    %8 = vector.broadcast %7 : vector<1x1x128xf32> to vector<10x18x128xf32>
    %9 = arith.mulf %5, %8 : vector<10x18x128xf32>
    %c0_4 = arith.constant 0 : index
    %c0_5 = arith.constant 0 : index
    %10 = vector.load %arg5[%c0_4, %c0_5] : memref<1x128xf32, #tpu.memory_space<vmem>>, vector<1x128xf32>
    %11 = vector.shape_cast %10 : vector<1x128xf32> to vector<1x1x128xf32>
    %12 = vector.broadcast %11 : vector<1x1x128xf32> to vector<10x18x128xf32>
    %13 = arith.addf %9, %12 : vector<10x18x128xf32>
    %cst = arith.constant 0.000000e+00 : f32
    %14 = vector.broadcast %cst : f32 to vector<10x18x128xf32>
    %15 = arith.maximumf %13, %14 : vector<10x18x128xf32>
    %16 = tpu.iota {dimensions = array<i32: 0>} : vector<10x18x1xi32>
    %17 = vector.broadcast %1 : i32 to vector<10x18x1xi32>
    %18 = arith.addi %16, %17 : vector<10x18x1xi32>
    %19 = tpu.iota {dimensions = array<i32: 1>} : vector<10x18x1xi32>
    %c1_i32 = arith.constant 1 : i32
    %20 = vector.broadcast %c1_i32 : i32 to vector<10x18x1xi32>
    %21 = arith.cmpi sge, %18, %20 : vector<10x18x1xi32>
    %c16_i32 = arith.constant 16 : i32
    %22 = vector.broadcast %c16_i32 : i32 to vector<10x18x1xi32>
    %23 = arith.cmpi sle, %18, %22 : vector<10x18x1xi32>
    %24 = arith.andi %21, %23 : vector<10x18x1xi1>
    %c1_i32_6 = arith.constant 1 : i32
    %25 = vector.broadcast %c1_i32_6 : i32 to vector<10x18x1xi32>
    %26 = arith.cmpi sge, %19, %25 : vector<10x18x1xi32>
    %27 = arith.andi %24, %26 : vector<10x18x1xi1>
    %c16_i32_7 = arith.constant 16 : i32
    %28 = vector.broadcast %c16_i32_7 : i32 to vector<10x18x1xi32>
    %29 = arith.cmpi sle, %19, %28 : vector<10x18x1xi32>
    %30 = arith.andi %27, %29 : vector<10x18x1xi1>
    %cst_8 = arith.constant 0.000000e+00 : f32
    %31 = vector.shape_cast %30 : vector<10x18x1xi1> to vector<10x18x1xi1>
    %32 = vector.broadcast %31 : vector<10x18x1xi1> to vector<10x18x128xi1>
    %33 = vector.broadcast %cst_8 : f32 to vector<10x18x128xf32>
    %34 = arith.select %32, %15, %33 : vector<10x18x128xi1>, vector<10x18x128xf32>
    %35 = arith.truncf %34 : vector<10x18x128xf32> to vector<10x18x128xbf16>
    %36 = vector.extract_strided_slice %35 {offsets = [0, 0, 0], sizes = [8, 16, 128], strides = [1, 1, 1]} : vector<10x18x128xbf16> to vector<8x16x128xbf16>
    %37 = vector.shape_cast %36 : vector<8x16x128xbf16> to vector<128x128xbf16>
    %c0_9 = arith.constant 0 : index
    %c0_10 = arith.constant 0 : index
    %c0_11 = arith.constant 0 : index
    %38 = vector.load %arg3[%c0_9, %c0_10, %c0_11] : memref<9x128x128xbf16, #tpu.memory_space<vmem>>, vector<1x128x128xbf16>
    %39 = vector.shape_cast %38 : vector<1x128x128xbf16> to vector<128x128xbf16>
    %cst_12 = arith.constant dense<0.000000e+00> : vector<128x128xf32>
    %40 = tpu.matmul %37, %39, %cst_12 {dimension_numbers = #tpu.dot_dimension_numbers<[1], [0], [0], [1], [0, 0, 1, 1], [], []>} : vector<128x128xbf16>, vector<128x128xbf16>, vector<128x128xf32> -> vector<128x128xf32>
    %c0_13 = arith.constant 0 : index
    %c0_14 = arith.constant 0 : index
    %41 = vector.load %arg9[%c0_13, %c0_14] : memref<128x128xf32, #tpu.memory_space<vmem>>, vector<128x128xf32>
    tpu.vector_store %arg9[%c0_13, %c0_14], %40 {strides = array<i32>} : memref<128x128xf32, #tpu.memory_space<vmem>>, vector<128x128xf32>,
    %42 = vector.extract_strided_slice %35 {offsets = [0, 1, 0], sizes = [8, 16, 128], strides = [1, 1, 1]} : vector<10x18x128xbf16> to vector<8x16x128xbf16>
    %43 = vector.shape_cast %42 : vector<8x16x128xbf16> to vector<128x128xbf16>
    %c1 = arith.constant 1 : index
    %c0_15 = arith.constant 0 : index
    %c0_16 = arith.constant 0 : index
    %44 = vector.load %arg3[%c1, %c0_15, %c0_16] : memref<9x128x128xbf16, #tpu.memory_space<vmem>>, vector<1x128x128xbf16>
    %45 = vector.shape_cast %44 : vector<1x128x128xbf16> to vector<128x128xbf16>
    %cst_17 = arith.constant dense<0.000000e+00> : vector<128x128xf32>
    %46 = tpu.matmul %43, %45, %cst_17 {dimension_numbers = #tpu.dot_dimension_numbers<[1], [0], [0], [1], [0, 0, 1, 1], [], []>} : vector<128x128xbf16>, vector<128x128xbf16>, vector<128x128xf32> -> vector<128x128xf32>
    %c0_18 = arith.constant 0 : index
    %c0_19 = arith.constant 0 : index
    %47 = vector.load %arg9[%c0_18, %c0_19] : memref<128x128xf32, #tpu.memory_space<vmem>>, vector<128x128xf32>
    %48 = arith.addf %47, %46 : vector<128x128xf32>
    %c0_20 = arith.constant 0 : index
    %c0_21 = arith.constant 0 : index
    %49 = vector.load %arg9[%c0_20, %c0_21] : memref<128x128xf32, #tpu.memory_space<vmem>>, vector<128x128xf32>
    tpu.vector_store %arg9[%c0_20, %c0_21], %48 {strides = array<i32>} : memref<128x128xf32, #tpu.memory_space<vmem>>, vector<128x128xf32>,
    %50 = vector.extract_strided_slice %35 {offsets = [0, 2, 0], sizes = [8, 16, 128], strides = [1, 1, 1]} : vector<10x18x128xbf16> to vector<8x16x128xbf16>
    %51 = vector.shape_cast %50 : vector<8x16x128xbf16> to vector<128x128xbf16>
    %c2 = arith.constant 2 : index
    %c0_22 = arith.constant 0 : index
    %c0_23 = arith.constant 0 : index
    %52 = vector.load %arg3[%c2, %c0_22, %c0_23] : memref<9x128x128xbf16, #tpu.memory_space<vmem>>, vector<1x128x128xbf16>
    %53 = vector.shape_cast %52 : vector<1x128x128xbf16> to vector<128x128xbf16>
    %cst_24 = arith.constant dense<0.000000e+00> : vector<128x128xf32>
    %54 = tpu.matmul %51, %53, %cst_24 {dimension_numbers = #tpu.dot_dimension_numbers<[1], [0], [0], [1], [0, 0, 1, 1], [], []>} : vector<128x128xbf16>, vector<128x128xbf16>, vector<128x128xf32> -> vector<128x128xf32>
    %c0_25 = arith.constant 0 : index
    %c0_26 = arith.constant 0 : index
    %55 = vector.load %arg9[%c0_25, %c0_26] : memref<128x128xf32, #tpu.memory_space<vmem>>, vector<128x128xf32>
    %56 = arith.addf %55, %54 : vector<128x128xf32>
    %c0_27 = arith.constant 0 : index
    %c0_28 = arith.constant 0 : index
    %57 = vector.load %arg9[%c0_27, %c0_28] : memref<128x128xf32, #tpu.memory_space<vmem>>, vector<128x128xf32>
    tpu.vector_store %arg9[%c0_27, %c0_28], %56 {strides = array<i32>} : memref<128x128xf32, #tpu.memory_space<vmem>>, vector<128x128xf32>,
    %58 = vector.extract_strided_slice %35 {offsets = [1, 0, 0], sizes = [8, 16, 128], strides = [1, 1, 1]} : vector<10x18x128xbf16> to vector<8x16x128xbf16>
    %59 = vector.shape_cast %58 : vector<8x16x128xbf16> to vector<128x128xbf16>
    %c3 = arith.constant 3 : index
    %c0_29 = arith.constant 0 : index
    %c0_30 = arith.constant 0 : index
    %60 = vector.load %arg3[%c3, %c0_29, %c0_30] : memref<9x128x128xbf16, #tpu.memory_space<vmem>>, vector<1x128x128xbf16>
    %61 = vector.shape_cast %60 : vector<1x128x128xbf16> to vector<128x128xbf16>
    %cst_31 = arith.constant dense<0.000000e+00> : vector<128x128xf32>
    %62 = tpu.matmul %59, %61, %cst_31 {dimension_numbers = #tpu.dot_dimension_numbers<[1], [0], [0], [1], [0, 0, 1, 1], [], []>} : vector<128x128xbf16>, vector<128x128xbf16>, vector<128x128xf32> -> vector<128x128xf32>
    %c0_32 = arith.constant 0 : index
    %c0_33 = arith.constant 0 : index
    %63 = vector.load %arg9[%c0_32, %c0_33] : memref<128x128xf32, #tpu.memory_space<vmem>>, vector<128x128xf32>
    %64 = arith.addf %63, %62 : vector<128x128xf32>
    %c0_34 = arith.constant 0 : index
    %c0_35 = arith.constant 0 : index
    %65 = vector.load %arg9[%c0_34, %c0_35] : memref<128x128xf32, #tpu.memory_space<vmem>>, vector<128x128xf32>
    tpu.vector_store %arg9[%c0_34, %c0_35], %64 {strides = array<i32>} : memref<128x128xf32, #tpu.memory_space<vmem>>, vector<128x128xf32>,
    %66 = vector.extract_strided_slice %35 {offsets = [1, 1, 0], sizes = [8, 16, 128], strides = [1, 1, 1]} : vector<10x18x128xbf16> to vector<8x16x128xbf16>
    %67 = vector.shape_cast %66 : vector<8x16x128xbf16> to vector<128x128xbf16>
    %c4 = arith.constant 4 : index
    %c0_36 = arith.constant 0 : index
    %c0_37 = arith.constant 0 : index
    %68 = vector.load %arg3[%c4, %c0_36, %c0_37] : memref<9x128x128xbf16, #tpu.memory_space<vmem>>, vector<1x128x128xbf16>
    %69 = vector.shape_cast %68 : vector<1x128x128xbf16> to vector<128x128xbf16>
    %cst_38 = arith.constant dense<0.000000e+00> : vector<128x128xf32>
    %70 = tpu.matmul %67, %69, %cst_38 {dimension_numbers = #tpu.dot_dimension_numbers<[1], [0], [0], [1], [0, 0, 1, 1], [], []>} : vector<128x128xbf16>, vector<128x128xbf16>, vector<128x128xf32> -> vector<128x128xf32>
    %c0_39 = arith.constant 0 : index
    %c0_40 = arith.constant 0 : index
    %71 = vector.load %arg9[%c0_39, %c0_40] : memref<128x128xf32, #tpu.memory_space<vmem>>, vector<128x128xf32>
    %72 = arith.addf %71, %70 : vector<128x128xf32>
    %c0_41 = arith.constant 0 : index
    %c0_42 = arith.constant 0 : index
    %73 = vector.load %arg9[%c0_41, %c0_42] : memref<128x128xf32, #tpu.memory_space<vmem>>, vector<128x128xf32>
    tpu.vector_store %arg9[%c0_41, %c0_42], %72 {strides = array<i32>} : memref<128x128xf32, #tpu.memory_space<vmem>>, vector<128x128xf32>,
    %74 = vector.extract_strided_slice %35 {offsets = [1, 2, 0], sizes = [8, 16, 128], strides = [1, 1, 1]} : vector<10x18x128xbf16> to vector<8x16x128xbf16>
    %75 = vector.shape_cast %74 : vector<8x16x128xbf16> to vector<128x128xbf16>
    %c5 = arith.constant 5 : index
    %c0_43 = arith.constant 0 : index
    %c0_44 = arith.constant 0 : index
    %76 = vector.load %arg3[%c5, %c0_43, %c0_44] : memref<9x128x128xbf16, #tpu.memory_space<vmem>>, vector<1x128x128xbf16>
    %77 = vector.shape_cast %76 : vector<1x128x128xbf16> to vector<128x128xbf16>
    %cst_45 = arith.constant dense<0.000000e+00> : vector<128x128xf32>
    %78 = tpu.matmul %75, %77, %cst_45 {dimension_numbers = #tpu.dot_dimension_numbers<[1], [0], [0], [1], [0, 0, 1, 1], [], []>} : vector<128x128xbf16>, vector<128x128xbf16>, vector<128x128xf32> -> vector<128x128xf32>
    %c0_46 = arith.constant 0 : index
    %c0_47 = arith.constant 0 : index
    %79 = vector.load %arg9[%c0_46, %c0_47] : memref<128x128xf32, #tpu.memory_space<vmem>>, vector<128x128xf32>
    %80 = arith.addf %79, %78 : vector<128x128xf32>
    %c0_48 = arith.constant 0 : index
    %c0_49 = arith.constant 0 : index
    %81 = vector.load %arg9[%c0_48, %c0_49] : memref<128x128xf32, #tpu.memory_space<vmem>>, vector<128x128xf32>
    tpu.vector_store %arg9[%c0_48, %c0_49], %80 {strides = array<i32>} : memref<128x128xf32, #tpu.memory_space<vmem>>, vector<128x128xf32>,
    %82 = vector.extract_strided_slice %35 {offsets = [2, 0, 0], sizes = [8, 16, 128], strides = [1, 1, 1]} : vector<10x18x128xbf16> to vector<8x16x128xbf16>
    %83 = vector.shape_cast %82 : vector<8x16x128xbf16> to vector<128x128xbf16>
    %c6 = arith.constant 6 : index
    %c0_50 = arith.constant 0 : index
    %c0_51 = arith.constant 0 : index
    %84 = vector.load %arg3[%c6, %c0_50, %c0_51] : memref<9x128x128xbf16, #tpu.memory_space<vmem>>, vector<1x128x128xbf16>
    %85 = vector.shape_cast %84 : vector<1x128x128xbf16> to vector<128x128xbf16>
    %cst_52 = arith.constant dense<0.000000e+00> : vector<128x128xf32>
    %86 = tpu.matmul %83, %85, %cst_52 {dimension_numbers = #tpu.dot_dimension_numbers<[1], [0], [0], [1], [0, 0, 1, 1], [], []>} : vector<128x128xbf16>, vector<128x128xbf16>, vector<128x128xf32> -> vector<128x128xf32>
    %c0_53 = arith.constant 0 : index
    %c0_54 = arith.constant 0 : index
    %87 = vector.load %arg9[%c0_53, %c0_54] : memref<128x128xf32, #tpu.memory_space<vmem>>, vector<128x128xf32>
    %88 = arith.addf %87, %86 : vector<128x128xf32>
    %c0_55 = arith.constant 0 : index
    %c0_56 = arith.constant 0 : index
    %89 = vector.load %arg9[%c0_55, %c0_56] : memref<128x128xf32, #tpu.memory_space<vmem>>, vector<128x128xf32>
    tpu.vector_store %arg9[%c0_55, %c0_56], %88 {strides = array<i32>} : memref<128x128xf32, #tpu.memory_space<vmem>>, vector<128x128xf32>,
    %90 = vector.extract_strided_slice %35 {offsets = [2, 1, 0], sizes = [8, 16, 128], strides = [1, 1, 1]} : vector<10x18x128xbf16> to vector<8x16x128xbf16>
    %91 = vector.shape_cast %90 : vector<8x16x128xbf16> to vector<128x128xbf16>
    %c7 = arith.constant 7 : index
    %c0_57 = arith.constant 0 : index
    %c0_58 = arith.constant 0 : index
    %92 = vector.load %arg3[%c7, %c0_57, %c0_58] : memref<9x128x128xbf16, #tpu.memory_space<vmem>>, vector<1x128x128xbf16>
    %93 = vector.shape_cast %92 : vector<1x128x128xbf16> to vector<128x128xbf16>
    %cst_59 = arith.constant dense<0.000000e+00> : vector<128x128xf32>
    %94 = tpu.matmul %91, %93, %cst_59 {dimension_numbers = #tpu.dot_dimension_numbers<[1], [0], [0], [1], [0, 0, 1, 1], [], []>} : vector<128x128xbf16>, vector<128x128xbf16>, vector<128x128xf32> -> vector<128x128xf32>
    %c0_60 = arith.constant 0 : index
    %c0_61 = arith.constant 0 : index
    %95 = vector.load %arg9[%c0_60, %c0_61] : memref<128x128xf32, #tpu.memory_space<vmem>>, vector<128x128xf32>
    %96 = arith.addf %95, %94 : vector<128x128xf32>
    %c0_62 = arith.constant 0 : index
    %c0_63 = arith.constant 0 : index
    %97 = vector.load %arg9[%c0_62, %c0_63] : memref<128x128xf32, #tpu.memory_space<vmem>>, vector<128x128xf32>
    tpu.vector_store %arg9[%c0_62, %c0_63], %96 {strides = array<i32>} : memref<128x128xf32, #tpu.memory_space<vmem>>, vector<128x128xf32>,
    %98 = vector.extract_strided_slice %35 {offsets = [2, 2, 0], sizes = [8, 16, 128], strides = [1, 1, 1]} : vector<10x18x128xbf16> to vector<8x16x128xbf16>
    %99 = vector.shape_cast %98 : vector<8x16x128xbf16> to vector<128x128xbf16>
    %c8 = arith.constant 8 : index
    %c0_64 = arith.constant 0 : index
    %c0_65 = arith.constant 0 : index
    %100 = vector.load %arg3[%c8, %c0_64, %c0_65] : memref<9x128x128xbf16, #tpu.memory_space<vmem>>, vector<1x128x128xbf16>
    %101 = vector.shape_cast %100 : vector<1x128x128xbf16> to vector<128x128xbf16>
    %cst_66 = arith.constant dense<0.000000e+00> : vector<128x128xf32>
    %102 = tpu.matmul %99, %101, %cst_66 {dimension_numbers = #tpu.dot_dimension_numbers<[1], [0], [0], [1], [0, 0, 1, 1], [], []>} : vector<128x128xbf16>, vector<128x128xbf16>, vector<128x128xf32> -> vector<128x128xf32>
    %c0_67 = arith.constant 0 : index
    %c0_68 = arith.constant 0 : index
    %103 = vector.load %arg9[%c0_67, %c0_68] : memref<128x128xf32, #tpu.memory_space<vmem>>, vector<128x128xf32>
    %104 = arith.addf %103, %102 : vector<128x128xf32>
    %c0_69 = arith.constant 0 : index
    %c0_70 = arith.constant 0 : index
    %105 = vector.load %arg9[%c0_69, %c0_70] : memref<128x128xf32, #tpu.memory_space<vmem>>, vector<128x128xf32>
    tpu.vector_store %arg9[%c0_69, %c0_70], %104 {strides = array<i32>} : memref<128x128xf32, #tpu.memory_space<vmem>>, vector<128x128xf32>,
    %c0_71 = arith.constant 0 : index
    %c0_72 = arith.constant 0 : index
    %106 = vector.load %arg9[%c0_71, %c0_72] : memref<128x128xf32, #tpu.memory_space<vmem>>, vector<128x128xf32>
    %107 = arith.truncf %106 : vector<128x128xf32> to vector<128x128xbf16>
    %c0_73 = arith.constant 0 : index
    %c0_74 = arith.constant 0 : index
    %c0_75 = arith.constant 0 : index
    %108 = vector.load %arg6[%c0_73, %c0_74, %c0_75] : memref<1x128x128xbf16, #tpu.memory_space<vmem>>, vector<1x128x128xbf16>
    %109 = vector.shape_cast %108 : vector<1x128x128xbf16> to vector<128x128xbf16>
    %110 = vector.shape_cast %107 : vector<128x128xbf16> to vector<1x128x128xbf16>
    tpu.vector_store %arg6[%c0_73, %c0_74, %c0_75], %110 {strides = array<i32>} : memref<1x128x128xbf16, #tpu.memory_space<vmem>>, vector<1x128x128xbf16>,
    %cst_76 = arith.constant dense<0.000000e+00> : vector<128xf32>
    %111 = vector.multi_reduction <add>, %106, %cst_76 [0] : vector<128x128xf32> to vector<128xf32>
    %112 = vector.shape_cast %111 : vector<128xf32> to vector<1x128xf32>
    %c0_77 = arith.constant 0 : index
    %c0_78 = arith.constant 0 : index
    %c0_79 = arith.constant 0 : index
    %113 = vector.load %arg7[%c0_77, %c0_78, %c0_79] : memref<1x1x128xf32, #tpu.memory_space<vmem>>, vector<1x1x128xf32>
    %114 = vector.shape_cast %113 : vector<1x1x128xf32> to vector<1x128xf32>
    %115 = vector.shape_cast %112 : vector<1x128xf32> to vector<1x1x128xf32>
    tpu.vector_store %arg7[%c0_77, %c0_78, %c0_79], %115 {strides = array<i32>} : memref<1x1x128xf32, #tpu.memory_space<vmem>>, vector<1x1x128xf32>,
    %116 = arith.mulf %106, %106 : vector<128x128xf32>
    %cst_80 = arith.constant dense<0.000000e+00> : vector<128xf32>
    %117 = vector.multi_reduction <add>, %116, %cst_80 [0] : vector<128x128xf32> to vector<128xf32>
    %118 = vector.shape_cast %117 : vector<128xf32> to vector<1x128xf32>
    %c0_81 = arith.constant 0 : index
    %c0_82 = arith.constant 0 : index
    %c0_83 = arith.constant 0 : index
    %119 = vector.load %arg8[%c0_81, %c0_82, %c0_83] : memref<1x1x128xf32, #tpu.memory_space<vmem>>, vector<1x1x128xf32>
    %120 = vector.shape_cast %119 : vector<1x1x128xf32> to vector<1x128xf32>
    %121 = vector.shape_cast %118 : vector<1x128xf32> to vector<1x1x128xf32>
    tpu.vector_store %arg8[%c0_81, %c0_82, %c0_83], %121 {strides = array<i32>} : memref<1x1x128xf32, #tpu.memory_space<vmem>>, vector<1x1x128xf32>,
    return
  }
  func.func @transform_0(%arg0: i32, %arg1: i32) -> (i32, i32, i32, i32) {
    %c0_i32 = arith.constant 0 : i32
    %c0_i32_0 = arith.constant 0 : i32
    %c0_i32_1 = arith.constant 0 : i32
    %c0_i32_2 = arith.constant 0 : i32
    return %arg0, %c0_i32, %c0_i32_0, %c0_i32_1 : i32, i32, i32, i32
  }
  func.func @transform_1(%arg0: i32, %arg1: i32) -> (i32, i32, i32) {
    %c0_i32 = arith.constant 0 : i32
    %c0_i32_0 = arith.constant 0 : i32
    %c0_i32_1 = arith.constant 0 : i32
    %c0_i32_2 = arith.constant 0 : i32
    return %c0_i32, %c0_i32_0, %c0_i32_1 : i32, i32, i32
  }
  func.func @transform_2(%arg0: i32, %arg1: i32) -> (i32, i32) {
    %c0_i32 = arith.constant 0 : i32
    %c0_i32_0 = arith.constant 0 : i32
    %c0_i32_1 = arith.constant 0 : i32
    return %c0_i32, %c0_i32_0 : i32, i32
  }
  func.func @transform_3(%arg0: i32, %arg1: i32) -> (i32, i32) {
    %c0_i32 = arith.constant 0 : i32
    %c0_i32_0 = arith.constant 0 : i32
    %c0_i32_1 = arith.constant 0 : i32
    return %c0_i32, %c0_i32_0 : i32, i32
  }
  func.func @transform_4(%arg0: i32, %arg1: i32) -> (i32, i32, i32) {
    %c0_i32 = arith.constant 0 : i32
    %c0_i32_0 = arith.constant 0 : i32
    return %arg0, %arg1, %c0_i32 : i32, i32, i32
  }
  func.func @transform_5(%arg0: i32, %arg1: i32) -> (i32, i32, i32) {
    %c2_i32 = arith.constant 2 : i32
    %0 = arith.muli %arg0, %c2_i32 : i32
    %1 = arith.addi %0, %arg1 : i32
    %c0_i32 = arith.constant 0 : i32
    %c0_i32_0 = arith.constant 0 : i32
    %c0_i32_1 = arith.constant 0 : i32
    return %1, %c0_i32, %c0_i32_0 : i32, i32, i32
  }
  func.func @transform_6(%arg0: i32, %arg1: i32) -> (i32, i32, i32) {
    %c2_i32 = arith.constant 2 : i32
    %0 = arith.muli %arg0, %c2_i32 : i32
    %1 = arith.addi %0, %arg1 : i32
    %c0_i32 = arith.constant 0 : i32
    %c0_i32_0 = arith.constant 0 : i32
    %c0_i32_1 = arith.constant 0 : i32
    return %1, %c0_i32, %c0_i32_0 : i32, i32, i32
  }
}

module attributes {stable_mosaic.version = 11 : i64} {
  func.func @_matmul_stats_kernel(%arg0: i32, %arg1: memref<512x128xbf16, #tpu.memory_space<vmem>>, %arg2: memref<128x128xbf16, #tpu.memory_space<vmem>>, %arg3: memref<1x128xf32, #tpu.memory_space<vmem>>, %arg4: memref<1x128xf32, #tpu.memory_space<vmem>>, %arg5: memref<512x128xbf16, #tpu.memory_space<vmem>>, %arg6: memref<1x1x128xf32, #tpu.memory_space<vmem>>, %arg7: memref<1x1x128xf32, #tpu.memory_space<vmem>>) attributes {dimension_semantics = [#tpu.dimension_semantics<parallel>], iteration_bounds = array<i64: 1>, scalar_prefetch = 0 : i64, scratch_operands = 0 : i64, tpu.core_type = #tpu.core_type<tc>, window_params = [{transform_indices = @transform_0, window_bounds = array<i64: 512, 128>}, {pipeline_mode = #tpu.pipeline_mode<synchronous>, transform_indices = @transform_1, window_bounds = array<i64: 128, 128>}, {pipeline_mode = #tpu.pipeline_mode<synchronous>, transform_indices = @transform_2, window_bounds = array<i64: 1, 128>}, {pipeline_mode = #tpu.pipeline_mode<synchronous>, transform_indices = @transform_3, window_bounds = array<i64: 1, 128>}, {transform_indices = @transform_4, window_bounds = array<i64: 512, 128>}, {transform_indices = @transform_5, window_bounds = array<i64: 1, 1, 128>}, {transform_indices = @transform_6, window_bounds = array<i64: 1, 1, 128>}]} {
    %c0 = arith.constant 0 : index
    %c0_0 = arith.constant 0 : index
    %0 = vector.load %arg1[%c0, %c0_0] : memref<512x128xbf16, #tpu.memory_space<vmem>>, vector<512x128xbf16>
    %1 = arith.extf %0 : vector<512x128xbf16> to vector<512x128xf32>
    %c0_1 = arith.constant 0 : index
    %c0_2 = arith.constant 0 : index
    %2 = vector.load %arg3[%c0_1, %c0_2] : memref<1x128xf32, #tpu.memory_space<vmem>>, vector<1x128xf32>
    %3 = vector.broadcast %2 : vector<1x128xf32> to vector<512x128xf32>
    %4 = arith.mulf %1, %3 : vector<512x128xf32>
    %c0_3 = arith.constant 0 : index
    %c0_4 = arith.constant 0 : index
    %5 = vector.load %arg4[%c0_3, %c0_4] : memref<1x128xf32, #tpu.memory_space<vmem>>, vector<1x128xf32>
    %6 = vector.broadcast %5 : vector<1x128xf32> to vector<512x128xf32>
    %7 = arith.addf %4, %6 : vector<512x128xf32>
    %cst = arith.constant 0.000000e+00 : f32
    %8 = vector.broadcast %cst : f32 to vector<512x128xf32>
    %9 = arith.maximumf %7, %8 : vector<512x128xf32>
    %c512_i32 = arith.constant 512 : i32
    %10 = arith.muli %arg0, %c512_i32 : i32
    %11 = tpu.iota {dimensions = array<i32: 0>} : vector<512x1xi32>
    %12 = vector.broadcast %10 : i32 to vector<512x1xi32>
    %13 = arith.addi %12, %11 : vector<512x1xi32>
    %c512_i32_5 = arith.constant 512 : i32
    %14 = vector.broadcast %c512_i32_5 : i32 to vector<512x1xi32>
    %15 = arith.cmpi slt, %13, %14 : vector<512x1xi32>
    %cst_6 = arith.constant 0.000000e+00 : f32
    %16 = vector.shape_cast %15 : vector<512x1xi1> to vector<512x1xi1>
    %17 = vector.broadcast %16 : vector<512x1xi1> to vector<512x128xi1>
    %18 = vector.broadcast %cst_6 : f32 to vector<512x128xf32>
    %19 = arith.select %17, %9, %18 : vector<512x128xi1>, vector<512x128xf32>
    %20 = arith.truncf %19 : vector<512x128xf32> to vector<512x128xbf16>
    %c0_7 = arith.constant 0 : index
    %c0_8 = arith.constant 0 : index
    %21 = vector.load %arg2[%c0_7, %c0_8] : memref<128x128xbf16, #tpu.memory_space<vmem>>, vector<128x128xbf16>
    %cst_9 = arith.constant dense<0.000000e+00> : vector<512x128xf32>
    %22 = tpu.matmul %20, %21, %cst_9 {dimension_numbers = #tpu.dot_dimension_numbers<[1], [0], [0], [1], [0, 0, 1, 1], [], []>} : vector<512x128xbf16>, vector<128x128xbf16>, vector<512x128xf32> -> vector<512x128xf32>
    %23 = arith.truncf %22 : vector<512x128xf32> to vector<512x128xbf16>
    %c0_10 = arith.constant 0 : index
    %c0_11 = arith.constant 0 : index
    %24 = vector.load %arg5[%c0_10, %c0_11] : memref<512x128xbf16, #tpu.memory_space<vmem>>, vector<512x128xbf16>
    tpu.vector_store %arg5[%c0_10, %c0_11], %23 {strides = array<i32>} : memref<512x128xbf16, #tpu.memory_space<vmem>>, vector<512x128xbf16>,
    %cst_12 = arith.constant dense<0.000000e+00> : vector<128xf32>
    %25 = vector.multi_reduction <add>, %22, %cst_12 [0] : vector<512x128xf32> to vector<128xf32>
    %26 = vector.shape_cast %25 : vector<128xf32> to vector<1x128xf32>
    %c0_13 = arith.constant 0 : index
    %c0_14 = arith.constant 0 : index
    %c0_15 = arith.constant 0 : index
    %27 = vector.load %arg6[%c0_13, %c0_14, %c0_15] : memref<1x1x128xf32, #tpu.memory_space<vmem>>, vector<1x1x128xf32>
    %28 = vector.shape_cast %27 : vector<1x1x128xf32> to vector<1x128xf32>
    %29 = vector.shape_cast %26 : vector<1x128xf32> to vector<1x1x128xf32>
    tpu.vector_store %arg6[%c0_13, %c0_14, %c0_15], %29 {strides = array<i32>} : memref<1x1x128xf32, #tpu.memory_space<vmem>>, vector<1x1x128xf32>,
    %30 = arith.mulf %22, %22 : vector<512x128xf32>
    %cst_16 = arith.constant dense<0.000000e+00> : vector<128xf32>
    %31 = vector.multi_reduction <add>, %30, %cst_16 [0] : vector<512x128xf32> to vector<128xf32>
    %32 = vector.shape_cast %31 : vector<128xf32> to vector<1x128xf32>
    %c0_17 = arith.constant 0 : index
    %c0_18 = arith.constant 0 : index
    %c0_19 = arith.constant 0 : index
    %33 = vector.load %arg7[%c0_17, %c0_18, %c0_19] : memref<1x1x128xf32, #tpu.memory_space<vmem>>, vector<1x1x128xf32>
    %34 = vector.shape_cast %33 : vector<1x1x128xf32> to vector<1x128xf32>
    %35 = vector.shape_cast %32 : vector<1x128xf32> to vector<1x1x128xf32>
    tpu.vector_store %arg7[%c0_17, %c0_18, %c0_19], %35 {strides = array<i32>} : memref<1x1x128xf32, #tpu.memory_space<vmem>>, vector<1x1x128xf32>,
    return
  }
  func.func @transform_0(%arg0: i32) -> (i32, i32) {
    %c0_i32 = arith.constant 0 : i32
    %c0_i32_0 = arith.constant 0 : i32
    return %arg0, %c0_i32 : i32, i32
  }
  func.func @transform_1(%arg0: i32) -> (i32, i32) {
    %c0_i32 = arith.constant 0 : i32
    %c0_i32_0 = arith.constant 0 : i32
    %c0_i32_1 = arith.constant 0 : i32
    return %c0_i32, %c0_i32_0 : i32, i32
  }
  func.func @transform_2(%arg0: i32) -> (i32, i32) {
    %c0_i32 = arith.constant 0 : i32
    %c0_i32_0 = arith.constant 0 : i32
    %c0_i32_1 = arith.constant 0 : i32
    return %c0_i32, %c0_i32_0 : i32, i32
  }
  func.func @transform_3(%arg0: i32) -> (i32, i32) {
    %c0_i32 = arith.constant 0 : i32
    %c0_i32_0 = arith.constant 0 : i32
    %c0_i32_1 = arith.constant 0 : i32
    return %c0_i32, %c0_i32_0 : i32, i32
  }
  func.func @transform_4(%arg0: i32) -> (i32, i32) {
    %c0_i32 = arith.constant 0 : i32
    %c0_i32_0 = arith.constant 0 : i32
    return %arg0, %c0_i32 : i32, i32
  }
  func.func @transform_5(%arg0: i32) -> (i32, i32, i32) {
    %c0_i32 = arith.constant 0 : i32
    %c0_i32_0 = arith.constant 0 : i32
    %c0_i32_1 = arith.constant 0 : i32
    return %arg0, %c0_i32, %c0_i32_0 : i32, i32, i32
  }
  func.func @transform_6(%arg0: i32) -> (i32, i32, i32) {
    %c0_i32 = arith.constant 0 : i32
    %c0_i32_0 = arith.constant 0 : i32
    %c0_i32_1 = arith.constant 0 : i32
    return %arg0, %c0_i32, %c0_i32_0 : i32, i32, i32
  }
}

module attributes {stable_mosaic.version = 11 : i64} {
  func.func @_bn_act_residual_kernel(%arg0: i32, %arg1: memref<512x128xbf16, #tpu.memory_space<vmem>>, %arg2: memref<1x128xf32, #tpu.memory_space<vmem>>, %arg3: memref<1x128xf32, #tpu.memory_space<vmem>>, %arg4: memref<512x128xbf16, #tpu.memory_space<vmem>>, %arg5: memref<1x128xf32, #tpu.memory_space<vmem>>, %arg6: memref<1x128xf32, #tpu.memory_space<vmem>>, %arg7: memref<512x128xf32, #tpu.memory_space<vmem>>) attributes {dimension_semantics = [#tpu.dimension_semantics<parallel>], iteration_bounds = array<i64: 1>, scalar_prefetch = 0 : i64, scratch_operands = 0 : i64, tpu.core_type = #tpu.core_type<tc>, window_params = [{transform_indices = @transform_0, window_bounds = array<i64: 512, 128>}, {pipeline_mode = #tpu.pipeline_mode<synchronous>, transform_indices = @transform_1, window_bounds = array<i64: 1, 128>}, {pipeline_mode = #tpu.pipeline_mode<synchronous>, transform_indices = @transform_2, window_bounds = array<i64: 1, 128>}, {transform_indices = @transform_3, window_bounds = array<i64: 512, 128>}, {pipeline_mode = #tpu.pipeline_mode<synchronous>, transform_indices = @transform_4, window_bounds = array<i64: 1, 128>}, {pipeline_mode = #tpu.pipeline_mode<synchronous>, transform_indices = @transform_5, window_bounds = array<i64: 1, 128>}, {transform_indices = @transform_6, window_bounds = array<i64: 512, 128>}]} {
    %c0 = arith.constant 0 : index
    %c0_0 = arith.constant 0 : index
    %0 = vector.load %arg1[%c0, %c0_0] : memref<512x128xbf16, #tpu.memory_space<vmem>>, vector<512x128xbf16>
    %1 = arith.extf %0 : vector<512x128xbf16> to vector<512x128xf32>
    %c0_1 = arith.constant 0 : index
    %c0_2 = arith.constant 0 : index
    %2 = vector.load %arg2[%c0_1, %c0_2] : memref<1x128xf32, #tpu.memory_space<vmem>>, vector<1x128xf32>
    %3 = vector.broadcast %2 : vector<1x128xf32> to vector<512x128xf32>
    %4 = arith.mulf %1, %3 : vector<512x128xf32>
    %c0_3 = arith.constant 0 : index
    %c0_4 = arith.constant 0 : index
    %5 = vector.load %arg3[%c0_3, %c0_4] : memref<1x128xf32, #tpu.memory_space<vmem>>, vector<1x128xf32>
    %6 = vector.broadcast %5 : vector<1x128xf32> to vector<512x128xf32>
    %7 = arith.addf %4, %6 : vector<512x128xf32>
    %cst = arith.constant 0.000000e+00 : f32
    %8 = vector.broadcast %cst : f32 to vector<512x128xf32>
    %9 = arith.maximumf %7, %8 : vector<512x128xf32>
    %c0_5 = arith.constant 0 : index
    %c0_6 = arith.constant 0 : index
    %10 = vector.load %arg4[%c0_5, %c0_6] : memref<512x128xbf16, #tpu.memory_space<vmem>>, vector<512x128xbf16>
    %11 = arith.extf %10 : vector<512x128xbf16> to vector<512x128xf32>
    %c0_7 = arith.constant 0 : index
    %c0_8 = arith.constant 0 : index
    %12 = vector.load %arg5[%c0_7, %c0_8] : memref<1x128xf32, #tpu.memory_space<vmem>>, vector<1x128xf32>
    %13 = vector.broadcast %12 : vector<1x128xf32> to vector<512x128xf32>
    %14 = arith.mulf %11, %13 : vector<512x128xf32>
    %c0_9 = arith.constant 0 : index
    %c0_10 = arith.constant 0 : index
    %15 = vector.load %arg6[%c0_9, %c0_10] : memref<1x128xf32, #tpu.memory_space<vmem>>, vector<1x128xf32>
    %16 = vector.broadcast %15 : vector<1x128xf32> to vector<512x128xf32>
    %17 = arith.addf %14, %16 : vector<512x128xf32>
    %18 = arith.addf %9, %17 : vector<512x128xf32>
    %c0_11 = arith.constant 0 : index
    %c0_12 = arith.constant 0 : index
    %19 = vector.load %arg7[%c0_11, %c0_12] : memref<512x128xf32, #tpu.memory_space<vmem>>, vector<512x128xf32>
    tpu.vector_store %arg7[%c0_11, %c0_12], %18 {strides = array<i32>} : memref<512x128xf32, #tpu.memory_space<vmem>>, vector<512x128xf32>,
    return
  }
  func.func @transform_0(%arg0: i32) -> (i32, i32) {
    %c0_i32 = arith.constant 0 : i32
    %c0_i32_0 = arith.constant 0 : i32
    return %arg0, %c0_i32 : i32, i32
  }
  func.func @transform_1(%arg0: i32) -> (i32, i32) {
    %c0_i32 = arith.constant 0 : i32
    %c0_i32_0 = arith.constant 0 : i32
    %c0_i32_1 = arith.constant 0 : i32
    return %c0_i32, %c0_i32_0 : i32, i32
  }
  func.func @transform_2(%arg0: i32) -> (i32, i32) {
    %c0_i32 = arith.constant 0 : i32
    %c0_i32_0 = arith.constant 0 : i32
    %c0_i32_1 = arith.constant 0 : i32
    return %c0_i32, %c0_i32_0 : i32, i32
  }
  func.func @transform_3(%arg0: i32) -> (i32, i32) {
    %c0_i32 = arith.constant 0 : i32
    %c0_i32_0 = arith.constant 0 : i32
    return %arg0, %c0_i32 : i32, i32
  }
  func.func @transform_4(%arg0: i32) -> (i32, i32) {
    %c0_i32 = arith.constant 0 : i32
    %c0_i32_0 = arith.constant 0 : i32
    %c0_i32_1 = arith.constant 0 : i32
    return %c0_i32, %c0_i32_0 : i32, i32
  }
  func.func @transform_5(%arg0: i32) -> (i32, i32) {
    %c0_i32 = arith.constant 0 : i32
    %c0_i32_0 = arith.constant 0 : i32
    %c0_i32_1 = arith.constant 0 : i32
    return %c0_i32, %c0_i32_0 : i32, i32
  }
  func.func @transform_6(%arg0: i32) -> (i32, i32) {
    %c0_i32 = arith.constant 0 : i32
    %c0_i32_0 = arith.constant 0 : i32
    return %arg0, %c0_i32 : i32, i32
  }
}

</mosaic_0001>

<llo_original>
// kernel: bottleneck_forward.5
$region0: #{bottleneck_forward.5}
  #allocation0 [shape = 'u32[]', space=smem, size = 0x4, offset = 0x4, fixed_abs, tag = 'smem constant byte address 0x4 - core index']
  #allocation1 [shape = 'u32[144,128]{1,0:T(1,128)}', space=vmem, size = 0x12000, scoped, tag = 'internal scratch']
  %s0 = inlined_call_operand.vmem [shape: bf16[512,128], index: 0, kind: input, shape index: {}]
  %s1 = inlined_call_operand.vmem [shape: bf16[128,128], index: 1, kind: input, shape index: {}]
  %s2 = inlined_call_operand.vmem [shape: bf16[512,128], index: 2, kind: output, shape index: {0}]
  %s3 = inlined_call_operand.vmem [shape: f32[1,1,128], index: 3, kind: output, shape index: {1}]
  %s4 = inlined_call_operand.vmem [shape: f32[1,1,128], index: 4, kind: output, shape index: {2}]
  %5 = xla_tuple %s2, %s3, %s4
  %s6 = sld [smem:[#allocation0]]
  $region34: #{bottleneck_forward.5} parent=0
    _
  %s8 = ssub.s32 1, %s6
  %s9 = scalar_select 0, %s8, %s6
  // Predicated region
  $region2: #{bottleneck_forward.5} parent=0 // pred_check
    _
  $region3: #{bottleneck_forward.5} parent=0 // pred_check_branch
    %11 = sbr.rel (0) target = $region5
  $region4: #{bottleneck_forward.5} parent=0 // pred_region
    _
  $region5: #{bottleneck_forward.5} parent=0 // pred_fallthru
    _
  // Predicated region
  $region6: #{bottleneck_forward.5} parent=0 // pred_check
    _
  $region7: #{bottleneck_forward.5} parent=0 // pred_check_branch
    %13 = sbr.rel (0) target = $region9
  $region8: #{bottleneck_forward.5} parent=0 // pred_region
    _
  $region9: #{bottleneck_forward.5} parent=0 // pred_fallthru
    _
  %v15 = vld [vmem:[%s0] sm:$0xf]
  %v16 = vld [vmem:[%s0 + $0x4] sm:$0xf]
  %v17 = vld [vmem:[%s0 + $0x8] sm:$0xf]
  %v18 = vld [vmem:[%s0 + $0xc] sm:$0xf]
  %v19 = vld [vmem:[%s0 + $0x10] sm:$0xf]
  %v20 = vld [vmem:[%s0 + $0x14] sm:$0xf]
  %v21 = vld [vmem:[%s0 + $0x18] sm:$0xf]
  %v22 = vld [vmem:[%s0 + $0x1c] sm:$0xf]
  %v23 = vld [vmem:[%s0 + $0x20] sm:$0xf]
  %v24 = vld [vmem:[%s0 + $0x24] sm:$0xf]
  %v25 = vld [vmem:[%s0 + $0x28] sm:$0xf]
  %v26 = vld [vmem:[%s0 + $0x2c] sm:$0xf]
  %v27 = vld [vmem:[%s0 + $0x30] sm:$0xf]
  %v28 = vld [vmem:[%s0 + $0x34] sm:$0xf]
  %v29 = vld [vmem:[%s0 + $0x38] sm:$0xf]
  %v30 = vld [vmem:[%s0 + $0x3c] sm:$0xf]
  %v31 = vld [vmem:[%s0 + $0x40] sm:$0xf]
  %v32 = vld [vmem:[%s0 + $0x44] sm:$0xf]
  %v33 = vld [vmem:[%s0 + $0x48] sm:$0xf]
  %v34 = vld [vmem:[%s0 + $0x4c] sm:$0xf]
  %v35 = vld [vmem:[%s0 + $0x50] sm:$0xf]
  %v36 = vld [vmem:[%s0 + $0x54] sm:$0xf]
  %v37 = vld [vmem:[%s0 + $0x58] sm:$0xf]
  %v38 = vld [vmem:[%s0 + $0x5c] sm:$0xf]
  %v39 = vld [vmem:[%s0 + $0x60] sm:$0xf]
  %v40 = vld [vmem:[%s0 + $0x64] sm:$0xf]
  %v41 = vld [vmem:[%s0 + $0x68] sm:$0xf]
  %v42 = vld [vmem:[%s0 + $0x6c] sm:$0xf]
  %v43 = vld [vmem:[%s0 + $0x70] sm:$0xf]
  %v44 = vld [vmem:[%s0 + $0x74] sm:$0xf]
  %v45 = vld [vmem:[%s0 + $0x78] sm:$0xf]
  %v46 = vld [vmem:[%s0 + $0x7c] sm:$0xf]
  %v47 = vld [vmem:[%s0 + $0x80] sm:$0xf]
  %v48 = vld [vmem:[%s0 + $0x84] sm:$0xf]
  %v49 = vld [vmem:[%s0 + $0x88] sm:$0xf]
  %v50 = vld [vmem:[%s0 + $0x8c] sm:$0xf]
  %v51 = vld [vmem:[%s0 + $0x90] sm:$0xf]
  %v52 = vld [vmem:[%s0 + $0x94] sm:$0xf]
  %v53 = vld [vmem:[%s0 + $0x98] sm:$0xf]
  %v54 = vld [vmem:[%s0 + $0x9c] sm:$0xf]
  %v55 = vld [vmem:[%s0 + $0xa0] sm:$0xf]
  %v56 = vld [vmem:[%s0 + $0xa4] sm:$0xf]
  %v57 = vld [vmem:[%s0 + $0xa8] sm:$0xf]
  %v58 = vld [vmem:[%s0 + $0xac] sm:$0xf]
  %v59 = vld [vmem:[%s0 + $0xb0] sm:$0xf]
  %v60 = vld [vmem:[%s0 + $0xb4] sm:$0xf]
  %v61 = vld [vmem:[%s0 + $0xb8] sm:$0xf]
  %v62 = vld [vmem:[%s0 + $0xbc] sm:$0xf]
  %v63 = vld [vmem:[%s0 + $0xc0] sm:$0xf]
  %v64 = vld [vmem:[%s0 + $0xc4] sm:$0xf]
  %v65 = vld [vmem:[%s0 + $0xc8] sm:$0xf]
  %v66 = vld [vmem:[%s0 + $0xcc] sm:$0xf]
  %v67 = vld [vmem:[%s0 + $0xd0] sm:$0xf]
  %v68 = vld [vmem:[%s0 + $0xd4] sm:$0xf]
  %v69 = vld [vmem:[%s0 + $0xd8] sm:$0xf]
  %v70 = vld [vmem:[%s0 + $0xdc] sm:$0xf]
  %v71 = vld [vmem:[%s0 + $0xe0] sm:$0xf]
  %v72 = vld [vmem:[%s0 + $0xe4] sm:$0xf]
  %v73 = vld [vmem:[%s0 + $0xe8] sm:$0xf]
  %v74 = vld [vmem:[%s0 + $0xec] sm:$0xf]
  %v75 = vld [vmem:[%s0 + $0xf0] sm:$0xf]
  %v76 = vld [vmem:[%s0 + $0xf4] sm:$0xf]
  %v77 = vld [vmem:[%s0 + $0xf8] sm:$0xf]
  %v78 = vld [vmem:[%s0 + $0xfc] sm:$0xf]
  %v79 = vld [vmem:[%s1] sm:$0xf]
  %v80 = vld [vmem:[%s1 + $0x4] sm:$0xf]
  %v81 = vld [vmem:[%s1 + $0x8] sm:$0xf]
  %v82 = vld [vmem:[%s1 + $0xc] sm:$0xf]
  %v83 = vld [vmem:[%s1 + $0x10] sm:$0xf]
  %v84 = vld [vmem:[%s1 + $0x14] sm:$0xf]
  %v85 = vld [vmem:[%s1 + $0x18] sm:$0xf]
  %v86 = vld [vmem:[%s1 + $0x1c] sm:$0xf]
  %v87 = vld [vmem:[%s1 + $0x20] sm:$0xf]
  %v88 = vld [vmem:[%s1 + $0x24] sm:$0xf]
  %v89 = vld [vmem:[%s1 + $0x28] sm:$0xf]
  %v90 = vld [vmem:[%s1 + $0x2c] sm:$0xf]
  %v91 = vld [vmem:[%s1 + $0x30] sm:$0xf]
  %v92 = vld [vmem:[%s1 + $0x34] sm:$0xf]
  %v93 = vld [vmem:[%s1 + $0x38] sm:$0xf]
  %v94 = vld [vmem:[%s1 + $0x3c] sm:$0xf]
  %v159 = vunpack.c.l.b16 %v15
  %v160 = vunpack.c.l.b16 %v16
  %v161 = vunpack.c.l.b16 %v17
  %v162 = vunpack.c.l.b16 %v18
  %v163 = vunpack.c.l.b16 %v19
  %v164 = vunpack.c.l.b16 %v20
  %v165 = vunpack.c.l.b16 %v21
  %v166 = vunpack.c.l.b16 %v22
  %v167 = vunpack.c.l.b16 %v23
  %v168 = vunpack.c.l.b16 %v24
  %v169 = vunpack.c.l.b16 %v25
  %v170 = vunpack.c.l.b16 %v26
  %v171 = vunpack.c.l.b16 %v27
  %v172 = vunpack.c.l.b16 %v28
  %v173 = vunpack.c.l.b16 %v29
  %v174 = vunpack.c.l.b16 %v30
  %v175 = vunpack.c.l.b16 %v31
  %v176 = vunpack.c.l.b16 %v32
  %v177 = vunpack.c.l.b16 %v33
  %v178 = vunpack.c.l.b16 %v34
  %v179 = vunpack.c.l.b16 %v35
  %v180 = vunpack.c.l.b16 %v36
  %v181 = vunpack.c.l.b16 %v37
  %v182 = vunpack.c.l.b16 %v38
  %v183 = vunpack.c.l.b16 %v39
  %v184 = vunpack.c.l.b16 %v40
  %v185 = vunpack.c.l.b16 %v41
  %v186 = vunpack.c.l.b16 %v42
  %v187 = vunpack.c.l.b16 %v43
  %v188 = vunpack.c.l.b16 %v44
  %v189 = vunpack.c.l.b16 %v45
  %v190 = vunpack.c.l.b16 %v46
  %v191 = vunpack.c.l.b16 %v47
  %v192 = vunpack.c.l.b16 %v48
  %v193 = vunpack.c.l.b16 %v49
  %v194 = vunpack.c.l.b16 %v50
  %v195 = vunpack.c.l.b16 %v51
  %v196 = vunpack.c.l.b16 %v52
  %v197 = vunpack.c.l.b16 %v53
  %v198 = vunpack.c.l.b16 %v54
  %v199 = vunpack.c.l.b16 %v55
  %v200 = vunpack.c.l.b16 %v56
  %v201 = vunpack.c.l.b16 %v57
  %v202 = vunpack.c.l.b16 %v58
  %v203 = vunpack.c.l.b16 %v59
  %v204 = vunpack.c.l.b16 %v60
  %v205 = vunpack.c.l.b16 %v61
  %v206 = vunpack.c.l.b16 %v62
  %v207 = vunpack.c.l.b16 %v63
  %v208 = vunpack.c.l.b16 %v64
  %v209 = vunpack.c.l.b16 %v65
  %v210 = vunpack.c.l.b16 %v66
  %v211 = vunpack.c.l.b16 %v67
  %v212 = vunpack.c.l.b16 %v68
  %v213 = vunpack.c.l.b16 %v69
  %v214 = vunpack.c.l.b16 %v70
  %v215 = vunpack.c.l.b16 %v71
  %v216 = vunpack.c.l.b16 %v72
  %v217 = vunpack.c.l.b16 %v73
  %v218 = vunpack.c.l.b16 %v74
  %v219 = vunpack.c.l.b16 %v75
  %v220 = vunpack.c.l.b16 %v76
  %v221 = vunpack.c.l.b16 %v77
  %v222 = vunpack.c.l.b16 %v78
  %v223 = vpack.c.b16 %v160, %v159
  %v224 = vpack.c.b16 %v162, %v161
  %v225 = vpack.c.b16 %v164, %v163
  %v226 = vpack.c.b16 %v166, %v165
  %v227 = vpack.c.b16 %v168, %v167
  %v228 = vpack.c.b16 %v170, %v169
  %v229 = vpack.c.b16 %v172, %v171
  %v230 = vpack.c.b16 %v174, %v173
  %v231 = vpack.c.b16 %v176, %v175
  %v232 = vpack.c.b16 %v178, %v177
  %v233 = vpack.c.b16 %v180, %v179
  %v234 = vpack.c.b16 %v182, %v181
  %v235 = vpack.c.b16 %v184, %v183
  %v236 = vpack.c.b16 %v186, %v185
  %v237 = vpack.c.b16 %v188, %v187
  %v238 = vpack.c.b16 %v190, %v189
  %v239 = vpack.c.b16 %v192, %v191
  %v240 = vpack.c.b16 %v194, %v193
  %v241 = vpack.c.b16 %v196, %v195
  %v242 = vpack.c.b16 %v198, %v197
  %v243 = vpack.c.b16 %v200, %v199
  %v244 = vpack.c.b16 %v202, %v201
  %v245 = vpack.c.b16 %v204, %v203
  %v246 = vpack.c.b16 %v206, %v205
  %v247 = vpack.c.b16 %v208, %v207
  %v248 = vpack.c.b16 %v210, %v209
  %v249 = vpack.c.b16 %v212, %v211
  %v250 = vpack.c.b16 %v214, %v213
  %v251 = vpack.c.b16 %v216, %v215
  %v252 = vpack.c.b16 %v218, %v217
  %v253 = vpack.c.b16 %v220, %v219
  %v254 = vpack.c.b16 %v222, %v221
  %v303 = vunpack.c.l.b16 %v79
  %v304 = vunpack.c.l.b16 %v80
  %v305 = vunpack.c.l.b16 %v81
  %v306 = vunpack.c.l.b16 %v82
  %v307 = vunpack.c.l.b16 %v83
  %v308 = vunpack.c.l.b16 %v84
  %v309 = vunpack.c.l.b16 %v85
  %v310 = vunpack.c.l.b16 %v86
  %v311 = vunpack.c.l.b16 %v87
  %v312 = vunpack.c.l.b16 %v88
  %v313 = vunpack.c.l.b16 %v89
  %v314 = vunpack.c.l.b16 %v90
  %v315 = vunpack.c.l.b16 %v91
  %v316 = vunpack.c.l.b16 %v92
  %v317 = vunpack.c.l.b16 %v93
  %v318 = vunpack.c.l.b16 %v94
  %v319 = vpack.c.b16 %v304, %v303
  %v320 = vpack.c.b16 %v306, %v305
  %v321 = vpack.c.b16 %v308, %v307
  %v322 = vpack.c.b16 %v310, %v309
  %v323 = vpack.c.b16 %v312, %v311
  %v324 = vpack.c.b16 %v314, %v313
  %v325 = vpack.c.b16 %v316, %v315
  %v326 = vpack.c.b16 %v318, %v317
  %335 = vmatprep.subr.bf16.mxu0 0
  %336 = vmatpush1.bf16.msra.mxu0 %v319
  %337 = vmatprep.subr.bf16.mxu0 0
  %338 = vmatpush1.bf16.msra.mxu0 %v320
  %339 = vmatprep.subr.bf16.mxu0 0
  %340 = vmatpush1.bf16.msra.mxu0 %v321
  %341 = vmatprep.subr.bf16.mxu0 0
  %342 = vmatpush1.bf16.msra.mxu0 %v322
  %343 = vmatprep.subr.bf16.mxu0 0
  %344 = vmatpush1.bf16.msra.mxu0 %v323
  %345 = vmatprep.subr.bf16.mxu0 0
  %346 = vmatpush1.bf16.msra.mxu0 %v324
  %347 = vmatprep.subr.bf16.mxu0 0
  %348 = vmatpush1.bf16.msra.mxu0 %v325
  %349 = vmatprep.subr.bf16.mxu0 0
  %350 = vmatpush1.bf16.msra.mxu0 %v326
  %351 = vmatprep.subr.bf16.mxu0 0
  %352 = vmatpush1.bf16.msra.mxu0 0
  %353 = vmatprep.subr.bf16.mxu0 0
  %354 = vmatpush1.bf16.msra.mxu0 0
  %355 = vmatprep.subr.bf16.mxu0 0
  %356 = vmatpush1.bf16.msra.mxu0 0
  %357 = vmatprep.subr.bf16.mxu0 0
  %358 = vmatpush1.bf16.msra.mxu0 0
  %359 = vmatprep.subr.bf16.mxu0 0
  %360 = vmatpush1.bf16.msra.mxu0 0
  %361 = vmatprep.subr.bf16.mxu0 0
  %362 = vmatpush1.bf16.msra.mxu0 0
  %363 = vmatprep.subr.bf16.mxu0 0
  %364 = vmatpush1.bf16.msra.mxu0 0
  %365 = vmatprep.subr.bf16.mxu0 0
  %366 = vmatpush1.bf16.msra.mxu0 0
  %367 = vmatprep.mubr.bf16.mxu0 0
  %368 = vmatmul.mubr.bf16.gmra.mrb[0].mxu0 %v223
  %v369 = vpop.f32.mrb[0].mxu0
  %v370 = vadd.f32 0.0, %v369
  %v371 = vpop.f32.mrb[0].mxu0
  %v372 = vpop.f32.mrb[0].mxu0
  %v373 = vadd.f32 0.0, %v372
  %v374 = vpop.f32.mrb[0].mxu0
  %375 = vmatprep.mubr.bf16.mxu0 0
  %376 = vmatmul.mubr.bf16.gmra.mrb[0].mxu0 %v224
  %v377 = vpop.f32.mrb[0].mxu0
  %v378 = vadd.f32 0.0, %v377
  %v379 = vpop.f32.mrb[0].mxu0
  %v380 = vpop.f32.mrb[0].mxu0
  %v381 = vadd.f32 0.0, %v380
  %v382 = vpop.f32.mrb[0].mxu0
  %383 = vmatprep.mubr.bf16.mxu0 0
  %384 = vmatmul.mubr.bf16.gmra.mrb[0].mxu0 %v225
  %v385 = vpop.f32.mrb[0].mxu0
  %v386 = vadd.f32 0.0, %v385
  %v387 = vpop.f32.mrb[0].mxu0
  %v388 = vpop.f32.mrb[0].mxu0
  %v389 = vadd.f32 0.0, %v388
  %v390 = vpop.f32.mrb[0].mxu0
  %391 = vmatprep.mubr.bf16.mxu0 0
  %392 = vmatmul.mubr.bf16.gmra.mrb[0].mxu0 %v226
  %v393 = vpop.f32.mrb[0].mxu0
  %v394 = vadd.f32 0.0, %v393
  %v395 = vpop.f32.mrb[0].mxu0
  %v396 = vpop.f32.mrb[0].mxu0
  %v397 = vadd.f32 0.0, %v396
  %v398 = vpop.f32.mrb[0].mxu0
  %399 = vmatprep.mubr.bf16.mxu0 0
  %400 = vmatmul.mubr.bf16.gmra.mrb[0].mxu0 %v227
  %v401 = vpop.f32.mrb[0].mxu0
  %v402 = vadd.f32 0.0, %v401
  %v403 = vpop.f32.mrb[0].mxu0
  %v404 = vpop.f32.mrb[0].mxu0
  %v405 = vadd.f32 0.0, %v404
  %v406 = vpop.f32.mrb[0].mxu0
  %407 = vmatprep.mubr.bf16.mxu0 0
  %408 = vmatmul.mubr.bf16.gmra.mrb[0].mxu0 %v228
  %v409 = vpop.f32.mrb[0].mxu0
  %v410 = vadd.f32 0.0, %v409
  %v411 = vpop.f32.mrb[0].mxu0
  %v412 = vpop.f32.mrb[0].mxu0
  %v413 = vadd.f32 0.0, %v412
  %v414 = vpop.f32.mrb[0].mxu0
  %415 = vmatprep.mubr.bf16.mxu0 0
  %416 = vmatmul.mubr.bf16.gmra.mrb[0].mxu0 %v229
  %v417 = vpop.f32.mrb[0].mxu0
  %v418 = vadd.f32 0.0, %v417
  %v419 = vpop.f32.mrb[0].mxu0
  %v420 = vpop.f32.mrb[0].mxu0
  %v421 = vadd.f32 0.0, %v420
  %v422 = vpop.f32.mrb[0].mxu0
  %423 = vmatprep.mubr.bf16.mxu0 0
  %424 = vmatmul.mubr.bf16.gmra.mrb[0].mxu0 %v230
  %v425 = vpop.f32.mrb[0].mxu0
  %v426 = vadd.f32 0.0, %v425
  %v427 = vpop.f32.mrb[0].mxu0
  %v428 = vpop.f32.mrb[0].mxu0
  %v429 = vadd.f32 0.0, %v428
  %v430 = vpop.f32.mrb[0].mxu0
  %431 = vmatprep.mubr.bf16.mxu0 0
  %432 = vmatmul.mubr.bf16.gmra.mrb[0].mxu0 %v231
  %v433 = vpop.f32.mrb[0].mxu0
  %v434 = vadd.f32 0.0, %v433
  %v435 = vpop.f32.mrb[0].mxu0
  %v436 = vpop.f32.mrb[0].mxu0
  %v437 = vadd.f32 0.0, %v436
  %v438 = vpop.f32.mrb[0].mxu0
  %439 = vmatprep.mubr.bf16.mxu0 0
  %440 = vmatmul.mubr.bf16.gmra.mrb[0].mxu0 %v232
  %v441 = vpop.f32.mrb[0].mxu0
  %v442 = vadd.f32 0.0, %v441
  %v443 = vpop.f32.mrb[0].mxu0
  %v444 = vpop.f32.mrb[0].mxu0
  %v445 = vadd.f32 0.0, %v444
  %v446 = vpop.f32.mrb[0].mxu0
  %447 = vmatprep.mubr.bf16.mxu0 0
  %448 = vmatmul.mubr.bf16.gmra.mrb[0].mxu0 %v233
  %v449 = vpop.f32.mrb[0].mxu0
  %v450 = vadd.f32 0.0, %v449
  %v451 = vpop.f32.mrb[0].mxu0
  %v452 = vpop.f32.mrb[0].mxu0
  %v453 = vadd.f32 0.0, %v452
  %v454 = vpop.f32.mrb[0].mxu0
  %455 = vmatprep.mubr.bf16.mxu0 0
  %456 = vmatmul.mubr.bf16.gmra.mrb[0].mxu0 %v234
  %v457 = vpop.f32.mrb[0].mxu0
  %v458 = vadd.f32 0.0, %v457
  %v459 = vpop.f32.mrb[0].mxu0
  %v460 = vpop.f32.mrb[0].mxu0
  %v461 = vadd.f32 0.0, %v460
  %v462 = vpop.f32.mrb[0].mxu0
  %463 = vmatprep.mubr.bf16.mxu0 0
  %464 = vmatmul.mubr.bf16.gmra.mrb[0].mxu0 %v235
  %v465 = vpop.f32.mrb[0].mxu0
  %v466 = vadd.f32 0.0, %v465
  %v467 = vpop.f32.mrb[0].mxu0
  %v468 = vpop.f32.mrb[0].mxu0
  %v469 = vadd.f32 0.0, %v468
  %v470 = vpop.f32.mrb[0].mxu0
  %471 = vmatprep.mubr.bf16.mxu0 0
  %472 = vmatmul.mubr.bf16.gmra.mrb[0].mxu0 %v236
  %v473 = vpop.f32.mrb[0].mxu0
  %v474 = vadd.f32 0.0, %v473
  %v475 = vpop.f32.mrb[0].mxu0
  %v476 = vpop.f32.mrb[0].mxu0
  %v477 = vadd.f32 0.0, %v476
  %v478 = vpop.f32.mrb[0].mxu0
  %479 = vmatprep.mubr.bf16.mxu0 0
  %480 = vmatmul.mubr.bf16.gmra.mrb[0].mxu0 %v237
  %v481 = vpop.f32.mrb[0].mxu0
  %v482 = vadd.f32 0.0, %v481
  %v483 = vpop.f32.mrb[0].mxu0
  %v484 = vpop.f32.mrb[0].mxu0
  %v485 = vadd.f32 0.0, %v484
  %v486 = vpop.f32.mrb[0].mxu0
  %487 = vmatprep.mubr.bf16.mxu0 0
  %488 = vmatmul.mubr.bf16.gmra.mrb[0].mxu0 %v238
  %v489 = vpop.f32.mrb[0].mxu0
  %v490 = vadd.f32 0.0, %v489
  %v491 = vpop.f32.mrb[0].mxu0
  %v492 = vpop.f32.mrb[0].mxu0
  %v493 = vadd.f32 0.0, %v492
  %v494 = vpop.f32.mrb[0].mxu0
  %495 = vmatprep.mubr.bf16.mxu0 0
  %496 = vmatmul.mubr.bf16.gmra.mrb[0].mxu0 %v239
  %v497 = vpop.f32.mrb[0].mxu0
  %v498 = vadd.f32 0.0, %v497
  %v499 = vpop.f32.mrb[0].mxu0
  %v500 = vpop.f32.mrb[0].mxu0
  %v501 = vadd.f32 0.0, %v500
  %v502 = vpop.f32.mrb[0].mxu0
  %503 = vmatprep.mubr.bf16.mxu0 0
  %504 = vmatmul.mubr.bf16.gmra.mrb[0].mxu0 %v240
  %v505 = vpop.f32.mrb[0].mxu0
  %v506 = vadd.f32 0.0, %v505
  %v507 = vpop.f32.mrb[0].mxu0
  %v508 = vpop.f32.mrb[0].mxu0
  %v509 = vadd.f32 0.0, %v508
  %v510 = vpop.f32.mrb[0].mxu0
  %511 = vmatprep.mubr.bf16.mxu0 0
  %512 = vmatmul.mubr.bf16.gmra.mrb[0].mxu0 %v241
  %v513 = vpop.f32.mrb[0].mxu0
  %v514 = vadd.f32 0.0, %v513
  %v515 = vpop.f32.mrb[0].mxu0
  %v516 = vpop.f32.mrb[0].mxu0
  %v517 = vadd.f32 0.0, %v516
  %v518 = vpop.f32.mrb[0].mxu0
  %519 = vmatprep.mubr.bf16.mxu0 0
  %520 = vmatmul.mubr.bf16.gmra.mrb[0].mxu0 %v242
  %v521 = vpop.f32.mrb[0].mxu0
  %v522 = vadd.f32 0.0, %v521
  %v523 = vpop.f32.mrb[0].mxu0
  %v524 = vpop.f32.mrb[0].mxu0
  %v525 = vadd.f32 0.0, %v524
  %v526 = vpop.f32.mrb[0].mxu0
  %527 = vmatprep.mubr.bf16.mxu0 0
  %528 = vmatmul.mubr.bf16.gmra.mrb[0].mxu0 %v243
  %v529 = vpop.f32.mrb[0].mxu0
  %v530 = vadd.f32 0.0, %v529
  %v531 = vpop.f32.mrb[0].mxu0
  %v532 = vpop.f32.mrb[0].mxu0
  %v533 = vadd.f32 0.0, %v532
  %v534 = vpop.f32.mrb[0].mxu0
  %535 = vmatprep.mubr.bf16.mxu0 0
  %536 = vmatmul.mubr.bf16.gmra.mrb[0].mxu0 %v244
  %v537 = vpop.f32.mrb[0].mxu0
  %v538 = vadd.f32 0.0, %v537
  %v539 = vpop.f32.mrb[0].mxu0
  %v540 = vpop.f32.mrb[0].mxu0
  %v541 = vadd.f32 0.0, %v540
  %v542 = vpop.f32.mrb[0].mxu0
  %543 = vmatprep.mubr.bf16.mxu0 0
  %544 = vmatmul.mubr.bf16.gmra.mrb[0].mxu0 %v245
  %v545 = vpop.f32.mrb[0].mxu0
  %v546 = vadd.f32 0.0, %v545
  %v547 = vpop.f32.mrb[0].mxu0
  %v548 = vpop.f32.mrb[0].mxu0
  %v549 = vadd.f32 0.0, %v548
  %v550 = vpop.f32.mrb[0].mxu0
  %551 = vmatprep.mubr.bf16.mxu0 0
  %552 = vmatmul.mubr.bf16.gmra.mrb[0].mxu0 %v246
  %v553 = vpop.f32.mrb[0].mxu0
  %v554 = vadd.f32 0.0, %v553
  %v555 = vpop.f32.mrb[0].mxu0
  %v556 = vpop.f32.mrb[0].mxu0
  %v557 = vadd.f32 0.0, %v556
  %v558 = vpop.f32.mrb[0].mxu0
  %559 = vmatprep.mubr.bf16.mxu0 0
  %560 = vmatmul.mubr.bf16.gmra.mrb[0].mxu0 %v247
  %v561 = vpop.f32.mrb[0].mxu0
  %v562 = vadd.f32 0.0, %v561
  %v563 = vpop.f32.mrb[0].mxu0
  %v564 = vpop.f32.mrb[0].mxu0
  %v565 = vadd.f32 0.0, %v564
  %v566 = vpop.f32.mrb[0].mxu0
  %567 = vmatprep.mubr.bf16.mxu0 0
  %568 = vmatmul.mubr.bf16.gmra.mrb[0].mxu0 %v248
  %v569 = vpop.f32.mrb[0].mxu0
  %v570 = vadd.f32 0.0, %v569
  %v571 = vpop.f32.mrb[0].mxu0
  %v572 = vpop.f32.mrb[0].mxu0
  %v573 = vadd.f32 0.0, %v572
  %v574 = vpop.f32.mrb[0].mxu0
  %575 = vmatprep.mubr.bf16.mxu0 0
  %576 = vmatmul.mubr.bf16.gmra.mrb[0].mxu0 %v249
  %v577 = vpop.f32.mrb[0].mxu0
  %v578 = vadd.f32 0.0, %v577
  %v579 = vpop.f32.mrb[0].mxu0
  %v580 = vpop.f32.mrb[0].mxu0
  %v581 = vadd.f32 0.0, %v580
  %v582 = vpop.f32.mrb[0].mxu0
  %583 = vmatprep.mubr.bf16.mxu0 0
  %584 = vmatmul.mubr.bf16.gmra.mrb[0].mxu0 %v250
  %v585 = vpop.f32.mrb[0].mxu0
  %v586 = vadd.f32 0.0, %v585
  %v587 = vpop.f32.mrb[0].mxu0
  %v588 = vpop.f32.mrb[0].mxu0
  %v589 = vadd.f32 0.0, %v588
  %v590 = vpop.f32.mrb[0].mxu0
  %591 = vmatprep.mubr.bf16.mxu0 0
  %592 = vmatmul.mubr.bf16.gmra.mrb[0].mxu0 %v251
  %v593 = vpop.f32.mrb[0].mxu0
  %v594 = vadd.f32 0.0, %v593
  %v595 = vpop.f32.mrb[0].mxu0
  %v596 = vpop.f32.mrb[0].mxu0
  %v597 = vadd.f32 0.0, %v596
  %v598 = vpop.f32.mrb[0].mxu0
  %599 = vmatprep.mubr.bf16.mxu0 0
  %600 = vmatmul.mubr.bf16.gmra.mrb[0].mxu0 %v252
  %v601 = vpop.f32.mrb[0].mxu0
  %v602 = vadd.f32 0.0, %v601
  %v603 = vpop.f32.mrb[0].mxu0
  %v604 = vpop.f32.mrb[0].mxu0
  %v605 = vadd.f32 0.0, %v604
  %v606 = vpop.f32.mrb[0].mxu0
  %607 = vmatprep.mubr.bf16.mxu0 0
  %608 = vmatmul.mubr.bf16.gmra.mrb[0].mxu0 %v253
  %v609 = vpop.f32.mrb[0].mxu0
  %v610 = vadd.f32 0.0, %v609
  %v611 = vpop.f32.mrb[0].mxu0
  %v612 = vpop.f32.mrb[0].mxu0
  %v613 = vadd.f32 0.0, %v612
  %v614 = vpop.f32.mrb[0].mxu0
  %615 = vmatprep.mubr.bf16.mxu0 0
  %616 = vmatmul.mubr.bf16.gmra.mrb[0].mxu0 %v254
  %v617 = vpop.f32.mrb[0].mxu0
  %v618 = vadd.f32 0.0, %v617
  %v619 = vpop.f32.mrb[0].mxu0
  %v620 = vpop.f32.mrb[0].mxu0
  %v621 = vadd.f32 0.0, %v620
  %v622 = vpop.f32.mrb[0].mxu0
  %623 = vdwg.mxu0
  %v624 = vpack.c.bf16 %v373, %v370
  %v625 = vpack.c.bf16 %v381, %v378
  %v626 = vpack.c.bf16 %v389, %v386
  %v627 = vpack.c.bf16 %v397, %v394
  %v628 = vpack.c.bf16 %v405, %v402
  %v629 = vpack.c.bf16 %v413, %v410
  %v630 = vpack.c.bf16 %v421, %v418
  %v631 = vpack.c.bf16 %v429, %v426
  %v632 = vpack.c.bf16 %v437, %v434
  %v633 = vpack.c.bf16 %v445, %v442
  %v634 = vpack.c.bf16 %v453, %v450
  %v635 = vpack.c.bf16 %v461, %v458
  %v636 = vpack.c.bf16 %v469, %v466
  %v637 = vpack.c.bf16 %v477, %v474
  %v638 = vpack.c.bf16 %v485, %v482
  %v639 = vpack.c.bf16 %v493, %v490
  %v640 = vpack.c.bf16 %v501, %v498
  %v641 = vpack.c.bf16 %v509, %v506
  %v642 = vpack.c.bf16 %v517, %v514
  %v643 = vpack.c.bf16 %v525, %v522
  %v644 = vpack.c.bf16 %v533, %v530
  %v645 = vpack.c.bf16 %v541, %v538
  %v646 = vpack.c.bf16 %v549, %v546
  %v647 = vpack.c.bf16 %v557, %v554
  %v648 = vpack.c.bf16 %v565, %v562
  %v649 = vpack.c.bf16 %v573, %v570
  %v650 = vpack.c.bf16 %v581, %v578
  %v651 = vpack.c.bf16 %v589, %v586
  %v652 = vpack.c.bf16 %v597, %v594
  %v653 = vpack.c.bf16 %v605, %v602
  %v654 = vpack.c.bf16 %v613, %v610
  %v655 = vpack.c.bf16 %v621, %v618
  %v688 = vunpack.c.l.b16 %v624
  %v689 = vunpack.c.h.b16 %v624
  %v690 = vunpack.c.l.b16 %v625
  %v691 = vunpack.c.h.b16 %v625
  %v692 = vunpack.c.l.b16 %v626
  %v693 = vunpack.c.h.b16 %v626
  %v694 = vunpack.c.l.b16 %v627
  %v695 = vunpack.c.h.b16 %v627
  %v696 = vunpack.c.l.b16 %v628
  %v697 = vunpack.c.h.b16 %v628
  %v698 = vunpack.c.l.b16 %v629
  %v699 = vunpack.c.h.b16 %v629
  %v700 = vunpack.c.l.b16 %v630
  %v701 = vunpack.c.h.b16 %v630
  %v702 = vunpack.c.l.b16 %v631
  %v703 = vunpack.c.h.b16 %v631
  %v704 = vunpack.c.l.b16 %v632
  %v705 = vunpack.c.h.b16 %v632
  %v706 = vunpack.c.l.b16 %v633
  %v707 = vunpack.c.h.b16 %v633
  %v708 = vunpack.c.l.b16 %v634
  %v709 = vunpack.c.h.b16 %v634
  %v710 = vunpack.c.l.b16 %v635
  %v711 = vunpack.c.h.b16 %v635
  %v712 = vunpack.c.l.b16 %v636
  %v713 = vunpack.c.h.b16 %v636
  %v714 = vunpack.c.l.b16 %v637
  %v715 = vunpack.c.h.b16 %v637
  %v716 = vunpack.c.l.b16 %v638
  %v717 = vunpack.c.h.b16 %v638
  %v718 = vunpack.c.l.b16 %v639
  %v719 = vunpack.c.h.b16 %v639
  %v720 = vunpack.c.l.b16 %v640
  %v721 = vunpack.c.h.b16 %v640
  %v722 = vunpack.c.l.b16 %v641
  %v723 = vunpack.c.h.b16 %v641
  %v724 = vunpack.c.l.b16 %v642
  %v725 = vunpack.c.h.b16 %v642
  %v726 = vunpack.c.l.b16 %v643
  %v727 = vunpack.c.h.b16 %v643
  %v728 = vunpack.c.l.b16 %v644
  %v729 = vunpack.c.h.b16 %v644
  %v730 = vunpack.c.l.b16 %v645
  %v731 = vunpack.c.h.b16 %v645
  %v732 = vunpack.c.l.b16 %v646
  %v733 = vunpack.c.h.b16 %v646
  %v734 = vunpack.c.l.b16 %v647
  %v735 = vunpack.c.h.b16 %v647
  %v736 = vunpack.c.l.b16 %v648
  %v737 = vunpack.c.h.b16 %v648
  %v738 = vunpack.c.l.b16 %v649
  %v739 = vunpack.c.h.b16 %v649
  %v740 = vunpack.c.l.b16 %v650
  %v741 = vunpack.c.h.b16 %v650
  %v742 = vunpack.c.l.b16 %v651
  %v743 = vunpack.c.h.b16 %v651
  %v744 = vunpack.c.l.b16 %v652
  %v745 = vunpack.c.h.b16 %v652
  %v746 = vunpack.c.l.b16 %v653
  %v747 = vunpack.c.h.b16 %v653
  %v748 = vunpack.c.l.b16 %v654
  %v749 = vunpack.c.h.b16 %v654
  %v750 = vunpack.c.l.b16 %v655
  %v751 = vunpack.c.h.b16 %v655
  %v752 = vpack.c.b16 %v688, %v688
  %v753 = vpack.c.b16 %v689, %v689
  %v754 = vpack.c.b16 %v690, %v690
  %v755 = vpack.c.b16 %v691, %v691
  %v756 = vpack.c.b16 %v692, %v692
  %v757 = vpack.c.b16 %v693, %v693
  %v758 = vpack.c.b16 %v694, %v694
  %v759 = vpack.c.b16 %v695, %v695
  %v760 = vpack.c.b16 %v696, %v696
  %v761 = vpack.c.b16 %v697, %v697
  %v762 = vpack.c.b16 %v698, %v698
  %v763 = vpack.c.b16 %v699, %v699
  %v764 = vpack.c.b16 %v700, %v700
  %v765 = vpack.c.b16 %v701, %v701
  %v766 = vpack.c.b16 %v702, %v702
  %v767 = vpack.c.b16 %v703, %v703
  %v768 = vpack.c.b16 %v704, %v704
  %v769 = vpack.c.b16 %v705, %v705
  %v770 = vpack.c.b16 %v706, %v706
  %v771 = vpack.c.b16 %v707, %v707
  %v772 = vpack.c.b16 %v708, %v708
  %v773 = vpack.c.b16 %v709, %v709
  %v774 = vpack.c.b16 %v710, %v710
  %v775 = vpack.c.b16 %v711, %v711
  %v776 = vpack.c.b16 %v712, %v712
  %v777 = vpack.c.b16 %v713, %v713
  %v778 = vpack.c.b16 %v714, %v714
  %v779 = vpack.c.b16 %v715, %v715
  %v780 = vpack.c.b16 %v716, %v716
  %v781 = vpack.c.b16 %v717, %v717
  %v782 = vpack.c.b16 %v718, %v718
  %v783 = vpack.c.b16 %v719, %v719
  %v784 = vpack.c.b16 %v720, %v720
  %v785 = vpack.c.b16 %v721, %v721
  %v786 = vpack.c.b16 %v722, %v722
  %v787 = vpack.c.b16 %v723, %v723
  %v788 = vpack.c.b16 %v724, %v724
  %v789 = vpack.c.b16 %v725, %v725
  %v790 = vpack.c.b16 %v726, %v726
  %v791 = vpack.c.b16 %v727, %v727
  %v792 = vpack.c.b16 %v728, %v728
  %v793 = vpack.c.b16 %v729, %v729
  %v794 = vpack.c.b16 %v730, %v730
  %v795 = vpack.c.b16 %v731, %v731
  %v796 = vpack.c.b16 %v732, %v732
  %v797 = vpack.c.b16 %v733, %v733
  %v798 = vpack.c.b16 %v734, %v734
  %v799 = vpack.c.b16 %v735, %v735
  %v800 = vpack.c.b16 %v736, %v736
  %v801 = vpack.c.b16 %v737, %v737
  %v802 = vpack.c.b16 %v738, %v738
  %v803 = vpack.c.b16 %v739, %v739
  %v804 = vpack.c.b16 %v740, %v740
  %v805 = vpack.c.b16 %v741, %v741
  %v806 = vpack.c.b16 %v742, %v742
  %v807 = vpack.c.b16 %v743, %v743
  %v808 = vpack.c.b16 %v744, %v744
  %v809 = vpack.c.b16 %v745, %v745
  %v810 = vpack.c.b16 %v746, %v746
  %v811 = vpack.c.b16 %v747, %v747
  %v812 = vpack.c.b16 %v748, %v748
  %v813 = vpack.c.b16 %v749, %v749
  %v814 = vpack.c.b16 %v750, %v750
  %v815 = vpack.c.b16 %v751, %v751
  %880 = vst [vmem:[%s2] sm:$0xf] %v752
  %881 = vst [vmem:[%s2 + $0x4] sm:$0xf] %v753
  %882 = vst [vmem:[%s2 + $0x8] sm:$0xf] %v754
  %883 = vst [vmem:[%s2 + $0xc] sm:$0xf] %v755
  %884 = vst [vmem:[%s2 + $0x10] sm:$0xf] %v756
  %885 = vst [vmem:[%s2 + $0x14] sm:$0xf] %v757
  %886 = vst [vmem:[%s2 + $0x18] sm:$0xf] %v758
  %887 = vst [vmem:[%s2 + $0x1c] sm:$0xf] %v759
  %888 = vst [vmem:[%s2 + $0x20] sm:$0xf] %v760
  %889 = vst [vmem:[%s2 + $0x24] sm:$0xf] %v761
  %890 = vst [vmem:[%s2 + $0x28] sm:$0xf] %v762
  %891 = vst [vmem:[%s2 + $0x2c] sm:$0xf] %v763
  %892 = vst [vmem:[%s2 + $0x30] sm:$0xf] %v764
  %893 = vst [vmem:[%s2 + $0x34] sm:$0xf] %v765
  %894 = vst [vmem:[%s2 + $0x38] sm:$0xf] %v766
  %895 = vst [vmem:[%s2 + $0x3c] sm:$0xf] %v767
  %896 = vst [vmem:[%s2 + $0x40] sm:$0xf] %v768
  %897 = vst [vmem:[%s2 + $0x44] sm:$0xf] %v769
  %898 = vst [vmem:[%s2 + $0x48] sm:$0xf] %v770
  %899 = vst [vmem:[%s2 + $0x4c] sm:$0xf] %v771
  %900 = vst [vmem:[%s2 + $0x50] sm:$0xf] %v772
  %901 = vst [vmem:[%s2 + $0x54] sm:$0xf] %v773
  %902 = vst [vmem:[%s2 + $0x58] sm:$0xf] %v774
  %903 = vst [vmem:[%s2 + $0x5c] sm:$0xf] %v775
  %904 = vst [vmem:[%s2 + $0x60] sm:$0xf] %v776
  %905 = vst [vmem:[%s2 + $0x64] sm:$0xf] %v777
  %906 = vst [vmem:[%s2 + $0x68] sm:$0xf] %v778
  %907 = vst [vmem:[%s2 + $0x6c] sm:$0xf] %v779
  %908 = vst [vmem:[%s2 + $0x70] sm:$0xf] %v780
  %909 = vst [vmem:[%s2 + $0x74] sm:$0xf] %v781
  %910 = vst [vmem:[%s2 + $0x78] sm:$0xf] %v782
  %911 = vst [vmem:[%s2 + $0x7c] sm:$0xf] %v783
  %912 = vst [vmem:[%s2 + $0x80] sm:$0xf] %v784
  %913 = vst [vmem:[%s2 + $0x84] sm:$0xf] %v785
  %914 = vst [vmem:[%s2 + $0x88] sm:$0xf] %v786
  %915 = vst [vmem:[%s2 + $0x8c] sm:$0xf] %v787
  %916 = vst [vmem:[%s2 + $0x90] sm:$0xf] %v788
  %917 = vst [vmem:[%s2 + $0x94] sm:$0xf] %v789
  %918 = vst [vmem:[%s2 + $0x98] sm:$0xf] %v790
  %919 = vst [vmem:[%s2 + $0x9c] sm:$0xf] %v791
  %920 = vst [vmem:[%s2 + $0xa0] sm:$0xf] %v792
  %921 = vst [vmem:[%s2 + $0xa4] sm:$0xf] %v793
  %922 = vst [vmem:[%s2 + $0xa8] sm:$0xf] %v794
  %923 = vst [vmem:[%s2 + $0xac] sm:$0xf] %v795
  %924 = vst [vmem:[%s2 + $0xb0] sm:$0xf] %v796
  %925 = vst [vmem:[%s2 + $0xb4] sm:$0xf] %v797
  %926 = vst [vmem:[%s2 + $0xb8] sm:$0xf] %v798
  %927 = vst [vmem:[%s2 + $0xbc] sm:$0xf] %v799
  %928 = vst [vmem:[%s2 + $0xc0] sm:$0xf] %v800
  %929 = vst [vmem:[%s2 + $0xc4] sm:$0xf] %v801
  %930 = vst [vmem:[%s2 + $0xc8] sm:$0xf] %v802
  %931 = vst [vmem:[%s2 + $0xcc] sm:$0xf] %v803
  %932 = vst [vmem:[%s2 + $0xd0] sm:$0xf] %v804
  %933 = vst [vmem:[%s2 + $0xd4] sm:$0xf] %v805
  %934 = vst [vmem:[%s2 + $0xd8] sm:$0xf] %v806
  %935 = vst [vmem:[%s2 + $0xdc] sm:$0xf] %v807
  %936 = vst [vmem:[%s2 + $0xe0] sm:$0xf] %v808
  %937 = vst [vmem:[%s2 + $0xe4] sm:$0xf] %v809
  %938 = vst [vmem:[%s2 + $0xe8] sm:$0xf] %v810
  %939 = vst [vmem:[%s2 + $0xec] sm:$0xf] %v811
  %940 = vst [vmem:[%s2 + $0xf0] sm:$0xf] %v812
  %941 = vst [vmem:[%s2 + $0xf4] sm:$0xf] %v813
  %942 = vst [vmem:[%s2 + $0xf8] sm:$0xf] %v814
  %943 = vst [vmem:[%s2 + $0xfc] sm:$0xf] %v815
  %v944 = vadd.f32 %v370, %v373
  %v945 = vadd.f32 %v944, %v378
  %v946 = vadd.f32 %v945, %v381
  %v947 = vadd.f32 %v946, %v386
  %v948 = vadd.f32 %v947, %v389
  %v949 = vadd.f32 %v948, %v394
  %v950 = vadd.f32 %v949, %v397
  %v951 = vadd.f32 %v950, %v402
  %v952 = vadd.f32 %v951, %v405
  %v953 = vadd.f32 %v952, %v410
  %v954 = vadd.f32 %v953, %v413
  %v955 = vadd.f32 %v954, %v418
  %v956 = vadd.f32 %v955, %v421
  %v957 = vadd.f32 %v956, %v426
  %v958 = vadd.f32 %v957, %v429
  %v959 = vadd.f32 %v958, %v434
  %v960 = vadd.f32 %v959, %v437
  %v961 = vadd.f32 %v960, %v442
  %v962 = vadd.f32 %v961, %v445
  %v963 = vadd.f32 %v962, %v450
  %v964 = vadd.f32 %v963, %v453
  %v965 = vadd.f32 %v964, %v458
  %v966 = vadd.f32 %v965, %v461
  %v967 = vadd.f32 %v966, %v466
  %v968 = vadd.f32 %v967, %v469
  %v969 = vadd.f32 %v968, %v474
  %v970 = vadd.f32 %v969, %v477
  %v971 = vadd.f32 %v970, %v482
  %v972 = vadd.f32 %v971, %v485
  %v973 = vadd.f32 %v972, %v490
  %v974 = vadd.f32 %v973, %v493
  %v975 = vadd.f32 %v974, %v498
  %v976 = vadd.f32 %v975, %v501
  %v977 = vadd.f32 %v976, %v506
  %v978 = vadd.f32 %v977, %v509
  %v979 = vadd.f32 %v978, %v514
  %v980 = vadd.f32 %v979, %v517
  %v981 = vadd.f32 %v980, %v522
  %v982 = vadd.f32 %v981, %v525
  %v983 = vadd.f32 %v982, %v530
  %v984 = vadd.f32 %v983, %v533
  %v985 = vadd.f32 %v984, %v538
  %v986 = vadd.f32 %v985, %v541
  %v987 = vadd.f32 %v986, %v546
  %v988 = vadd.f32 %v987, %v549
  %v989 = vadd.f32 %v988, %v554
  %v990 = vadd.f32 %v989, %v557
  %v991 = vadd.f32 %v990, %v562
  %v992 = vadd.f32 %v991, %v565
  %v993 = vadd.f32 %v992, %v570
  %v994 = vadd.f32 %v993, %v573
  %v995 = vadd.f32 %v994, %v578
  %v996 = vadd.f32 %v995, %v581
  %v997 = vadd.f32 %v996, %v586
  %v998 = vadd.f32 %v997, %v589
  %v999 = vadd.f32 %v998, %v594
  %v1000 = vadd.f32 %v999, %v597
  %v1001 = vadd.f32 %v1000, %v602
  %v1002 = vadd.f32 %v1001, %v605
  %v1003 = vadd.f32 %v1002, %v610
  %v1004 = vadd.f32 %v1003, %v613
  %v1005 = vadd.f32 %v1004, %v618
  %v1006 = vadd.f32 %v1005, %v621
  %v1007 = vrot.slane %v1006, 4
  %v1008 = vadd.f32 %v1006, %v1007
  %v1009 = vrot.slane %v1008, 2
  %v1010 = vadd.f32 %v1008, %v1009
  %v1011 = vrot.slane %v1010, 1
  %v1012 = vadd.f32 %v1010, %v1011
  %1013 = vst [vmem:[%s3] sm:$0x1] %v1012
  %v1014 = vmul.f32 %v370, %v370
  %v1015 = vmul.f32 %v373, %v373
  %v1016 = vmul.f32 %v378, %v378
  %v1017 = vmul.f32 %v381, %v381
  %v1018 = vmul.f32 %v386, %v386
  %v1019 = vmul.f32 %v389, %v389
  %v1020 = vmul.f32 %v394, %v394
  %v1021 = vmul.f32 %v397, %v397
  %v1022 = vmul.f32 %v402, %v402
  %v1023 = vmul.f32 %v405, %v405
  %v1024 = vmul.f32 %v410, %v410
  %v1025 = vmul.f32 %v413, %v413
  %v1026 = vmul.f32 %v418, %v418
  %v1027 = vmul.f32 %v421, %v421
  %v1028 = vmul.f32 %v426, %v426
  %v1029 = vmul.f32 %v429, %v429
  %v1030 = vmul.f32 %v434, %v434
  %v1031 = vmul.f32 %v437, %v437
  %v1032 = vmul.f32 %v442, %v442
  %v1033 = vmul.f32 %v445, %v445
  %v1034 = vmul.f32 %v450, %v450
  %v1035 = vmul.f32 %v453, %v453
  %v1036 = vmul.f32 %v458, %v458
  %v1037 = vmul.f32 %v461, %v461
  %v1038 = vmul.f32 %v466, %v466
  %v1039 = vmul.f32 %v469, %v469
  %v1040 = vmul.f32 %v474, %v474
  %v1041 = vmul.f32 %v477, %v477
  %v1042 = vmul.f32 %v482, %v482
  %v1043 = vmul.f32 %v485, %v485
  %v1044 = vmul.f32 %v490, %v490
  %v1045 = vmul.f32 %v493, %v493
  %v1046 = vmul.f32 %v498, %v498
  %v1047 = vmul.f32 %v501, %v501
  %v1048 = vmul.f32 %v506, %v506
  %v1049 = vmul.f32 %v509, %v509
  %v1050 = vmul.f32 %v514, %v514
  %v1051 = vmul.f32 %v517, %v517
  %v1052 = vmul.f32 %v522, %v522
  %v1053 = vmul.f32 %v525, %v525
  %v1054 = vmul.f32 %v530, %v530
  %v1055 = vmul.f32 %v533, %v533
  %v1056 = vmul.f32 %v538, %v538
  %v1057 = vmul.f32 %v541, %v541
  %v1058 = vmul.f32 %v546, %v546
  %v1059 = vmul.f32 %v549, %v549
  %v1060 = vmul.f32 %v554, %v554
  %v1061 = vmul.f32 %v557, %v557
  %v1062 = vmul.f32 %v562, %v562
  %v1063 = vmul.f32 %v565, %v565
  %v1064 = vmul.f32 %v570, %v570
  %v1065 = vmul.f32 %v573, %v573
  %v1066 = vmul.f32 %v578, %v578
  %v1067 = vmul.f32 %v581, %v581
  %v1068 = vmul.f32 %v586, %v586
  %v1069 = vmul.f32 %v589, %v589
  %v1070 = vmul.f32 %v594, %v594
  %v1071 = vmul.f32 %v597, %v597
  %v1072 = vmul.f32 %v602, %v602
  %v1073 = vmul.f32 %v605, %v605
  %v1074 = vmul.f32 %v610, %v610
  %v1075 = vmul.f32 %v613, %v613
  %v1076 = vmul.f32 %v618, %v618
  %v1077 = vmul.f32 %v621, %v621
  %v1078 = vadd.f32 %v1014, %v1015
  %v1079 = vadd.f32 %v1078, %v1016
  %v1080 = vadd.f32 %v1079, %v1017
  %v1081 = vadd.f32 %v1080, %v1018
  %v1082 = vadd.f32 %v1081, %v1019
  %v1083 = vadd.f32 %v1082, %v1020
  %v1084 = vadd.f32 %v1083, %v1021
  %v1085 = vadd.f32 %v1084, %v1022
  %v1086 = vadd.f32 %v1085, %v1023
  %v1087 = vadd.f32 %v1086, %v1024
  %v1088 = vadd.f32 %v1087, %v1025
  %v1089 = vadd.f32 %v1088, %v1026
  %v1090 = vadd.f32 %v1089, %v1027
  %v1091 = vadd.f32 %v1090, %v1028
  %v1092 = vadd.f32 %v1091, %v1029
  %v1093 = vadd.f32 %v1092, %v1030
  %v1094 = vadd.f32 %v1093, %v1031
  %v1095 = vadd.f32 %v1094, %v1032
  %v1096 = vadd.f32 %v1095, %v1033
  %v1097 = vadd.f32 %v1096, %v1034
  %v1098 = vadd.f32 %v1097, %v1035
  %v1099 = vadd.f32 %v1098, %v1036
  %v1100 = vadd.f32 %v1099, %v1037
  %v1101 = vadd.f32 %v1100, %v1038
  %v1102 = vadd.f32 %v1101, %v1039
  %v1103 = vadd.f32 %v1102, %v1040
  %v1104 = vadd.f32 %v1103, %v1041
  %v1105 = vadd.f32 %v1104, %v1042
  %v1106 = vadd.f32 %v1105, %v1043
  %v1107 = vadd.f32 %v1106, %v1044
  %v1108 = vadd.f32 %v1107, %v1045
  %v1109 = vadd.f32 %v1108, %v1046
  %v1110 = vadd.f32 %v1109, %v1047
  %v1111 = vadd.f32 %v1110, %v1048
  %v1112 = vadd.f32 %v1111, %v1049
  %v1113 = vadd.f32 %v1112, %v1050
  %v1114 = vadd.f32 %v1113, %v1051
  %v1115 = vadd.f32 %v1114, %v1052
  %v1116 = vadd.f32 %v1115, %v1053
  %v1117 = vadd.f32 %v1116, %v1054
  %v1118 = vadd.f32 %v1117, %v1055
  %v1119 = vadd.f32 %v1118, %v1056
  %v1120 = vadd.f32 %v1119, %v1057
  %v1121 = vadd.f32 %v1120, %v1058
  %v1122 = vadd.f32 %v1121, %v1059
  %v1123 = vadd.f32 %v1122, %v1060
  %v1124 = vadd.f32 %v1123, %v1061
  %v1125 = vadd.f32 %v1124, %v1062
  %v1126 = vadd.f32 %v1125, %v1063
  %v1127 = vadd.f32 %v1126, %v1064
  %v1128 = vadd.f32 %v1127, %v1065
  %v1129 = vadd.f32 %v1128, %v1066
  %v1130 = vadd.f32 %v1129, %v1067
  %v1131 = vadd.f32 %v1130, %v1068
  %v1132 = vadd.f32 %v1131, %v1069
  %v1133 = vadd.f32 %v1132, %v1070
  %v1134 = vadd.f32 %v1133, %v1071
  %v1135 = vadd.f32 %v1134, %v1072
  %v1136 = vadd.f32 %v1135, %v1073
  %v1137 = vadd.f32 %v1136, %v1074
  %v1138 = vadd.f32 %v1137, %v1075
  %v1139 = vadd.f32 %v1138, %v1076
  %v1140 = vadd.f32 %v1139, %v1077
  %v1141 = vrot.slane %v1140, 4
  %v1142 = vadd.f32 %v1140, %v1141
  %v1143 = vrot.slane %v1142, 2
  %v1144 = vadd.f32 %v1142, %v1143
  %v1145 = vrot.slane %v1144, 1
  %v1146 = vadd.f32 %v1144, %v1145
  %1147 = vst [vmem:[%s4] sm:$0x1] %v1146
  // Predicated region
  $region10: #{bottleneck_forward.5} parent=0 // pred_check
    _
  $region11: #{bottleneck_forward.5} parent=0 // pred_check_branch
    %1149 = sbr.rel (0) target = $region13
  $region12: #{bottleneck_forward.5} parent=0 // pred_region
    _
  $region13: #{bottleneck_forward.5} parent=0 // pred_fallthru
    _
  // Predicated region
  $region14: #{bottleneck_forward.5} parent=0 // pred_check
    _
  $region15: #{bottleneck_forward.5} parent=0 // pred_check_branch
    %1151 = sbr.rel (0) target = $region17
  $region16: #{bottleneck_forward.5} parent=0 // pred_region
    _
  $region17: #{bottleneck_forward.5} parent=0 // pred_fallthru
    _
  // Predicated region
  $region18: #{bottleneck_forward.5} parent=0 // pred_check
    _
  $region19: #{bottleneck_forward.5} parent=0 // pred_check_branch
    %1153 = sbr.rel (0) target = $region21
  $region20: #{bottleneck_forward.5} parent=0 // pred_region
    _
  $region21: #{bottleneck_forward.5} parent=0 // pred_fallthru
    _
  // Predicated region
  $region22: #{bottleneck_forward.5} parent=0 // pred_check
    _
  $region23: #{bottleneck_forward.5} parent=0 // pred_check_branch
    %1155 = sbr.rel (0) target = $region25
  $region24: #{bottleneck_forward.5} parent=0 // pred_region
    _
  $region25: #{bottleneck_forward.5} parent=0 // pred_fallthru
    _
  // Predicated region
  $region26: #{bottleneck_forward.5} parent=0 // pred_check
    _
  $region27: #{bottleneck_forward.5} parent=0 // pred_check_branch
    %1157 = sbr.rel (0) target = $region29
  $region28: #{bottleneck_forward.5} parent=0 // pred_region
    _
  $region29: #{bottleneck_forward.5} parent=0 // pred_fallthru
    _
  // Predicated region
  $region30: #{bottleneck_forward.5} parent=0 // pred_check
    _
  $region31: #{bottleneck_forward.5} parent=0 // pred_check_branch
    %1159 = sbr.rel (0) target = $region33
  $region32: #{bottleneck_forward.5} parent=0 // pred_region
    _
  $region33: #{bottleneck_forward.5} parent=0 // pred_fallthru
    _

// kernel: bottleneck_forward.9
$region0: #{bottleneck_forward.9}
  #allocation0 [shape = 'u32[]', space=smem, size = 0x4, offset = 0x4, fixed_abs, tag = 'smem constant byte address 0x4 - core index']
  #allocation1 [shape = 'u32[144,128]{1,0:T(1,128)}', space=vmem, size = 0x12000, scoped, tag = 'internal scratch']
  %s0 = inlined_call_operand.vmem [shape: bf16[512,128], index: 0, kind: input, shape index: {}]
  %s1 = inlined_call_operand.vmem [shape: f32[1,128], index: 1, kind: input, shape index: {}]
  %s2 = inlined_call_operand.vmem [shape: f32[1,128], index: 2, kind: input, shape index: {}]
  %s3 = inlined_call_operand.vmem [shape: bf16[512,128], index: 3, kind: input, shape index: {}]
  %s4 = inlined_call_operand.vmem [shape: f32[1,128], index: 4, kind: input, shape index: {}]
  %s5 = inlined_call_operand.vmem [shape: f32[1,128], index: 5, kind: input, shape index: {}]
  %s6 = inlined_call_operand.vmem [shape: f32[512,128], index: 6, kind: output, shape index: {}]
  %s7 = sld [smem:[#allocation0]]
  $region34: #{bottleneck_forward.9} parent=0
    _
  %s9 = ssub.s32 1, %s7
  %s10 = scalar_select 0, %s9, %s7
  // Predicated region
  $region2: #{bottleneck_forward.9} parent=0 // pred_check
    _
  $region3: #{bottleneck_forward.9} parent=0 // pred_check_branch
    %12 = sbr.rel (0) target = $region5
  $region4: #{bottleneck_forward.9} parent=0 // pred_region
    _
  $region5: #{bottleneck_forward.9} parent=0 // pred_fallthru
    _
  // Predicated region
  $region6: #{bottleneck_forward.9} parent=0 // pred_check
    _
  $region7: #{bottleneck_forward.9} parent=0 // pred_check_branch
    %14 = sbr.rel (0) target = $region9
  $region8: #{bottleneck_forward.9} parent=0 // pred_region
    _
  $region9: #{bottleneck_forward.9} parent=0 // pred_fallthru
    _
  // Predicated region
  $region10: #{bottleneck_forward.9} parent=0 // pred_check
    _
  $region11: #{bottleneck_forward.9} parent=0 // pred_check_branch
    %16 = sbr.rel (0) target = $region13
  $region12: #{bottleneck_forward.9} parent=0 // pred_region
    _
  $region13: #{bottleneck_forward.9} parent=0 // pred_fallthru
    _
  // Predicated region
  $region14: #{bottleneck_forward.9} parent=0 // pred_check
    _
  $region15: #{bottleneck_forward.9} parent=0 // pred_check_branch
    %18 = sbr.rel (0) target = $region17
  $region16: #{bottleneck_forward.9} parent=0 // pred_region
    _
  $region17: #{bottleneck_forward.9} parent=0 // pred_fallthru
    _
  // Predicated region
  $region18: #{bottleneck_forward.9} parent=0 // pred_check
    _
  $region19: #{bottleneck_forward.9} parent=0 // pred_check_branch
    %20 = sbr.rel (0) target = $region21
  $region20: #{bottleneck_forward.9} parent=0 // pred_region
    _
  $region21: #{bottleneck_forward.9} parent=0 // pred_fallthru
    _
  // Predicated region
  $region22: #{bottleneck_forward.9} parent=0 // pred_check
    _
  $region23: #{bottleneck_forward.9} parent=0 // pred_check_branch
    %22 = sbr.rel (0) target = $region25
  $region24: #{bottleneck_forward.9} parent=0 // pred_region
    _
  $region25: #{bottleneck_forward.9} parent=0 // pred_fallthru
    _
  %v23 = vld [vmem:[%s0] sm:$0xf]
  %v24 = vld [vmem:[%s0 + $0x4] sm:$0xf]
  %v25 = vld [vmem:[%s0 + $0x8] sm:$0xf]
  %v26 = vld [vmem:[%s0 + $0xc] sm:$0xf]
  %v27 = vld [vmem:[%s0 + $0x10] sm:$0xf]
  %v28 = vld [vmem:[%s0 + $0x14] sm:$0xf]
  %v29 = vld [vmem:[%s0 + $0x18] sm:$0xf]
  %v30 = vld [vmem:[%s0 + $0x1c] sm:$0xf]
  %v31 = vld [vmem:[%s0 + $0x20] sm:$0xf]
  %v32 = vld [vmem:[%s0 + $0x24] sm:$0xf]
  %v33 = vld [vmem:[%s0 + $0x28] sm:$0xf]
  %v34 = vld [vmem:[%s0 + $0x2c] sm:$0xf]
  %v35 = vld [vmem:[%s0 + $0x30] sm:$0xf]
  %v36 = vld [vmem:[%s0 + $0x34] sm:$0xf]
  %v37 = vld [vmem:[%s0 + $0x38] sm:$0xf]
  %v38 = vld [vmem:[%s0 + $0x3c] sm:$0xf]
  %v39 = vld [vmem:[%s0 + $0x40] sm:$0xf]
  %v40 = vld [vmem:[%s0 + $0x44] sm:$0xf]
  %v41 = vld [vmem:[%s0 + $0x48] sm:$0xf]
  %v42 = vld [vmem:[%s0 + $0x4c] sm:$0xf]
  %v43 = vld [vmem:[%s0 + $0x50] sm:$0xf]
  %v44 = vld [vmem:[%s0 + $0x54] sm:$0xf]
  %v45 = vld [vmem:[%s0 + $0x58] sm:$0xf]
  %v46 = vld [vmem:[%s0 + $0x5c] sm:$0xf]
  %v47 = vld [vmem:[%s0 + $0x60] sm:$0xf]
  %v48 = vld [vmem:[%s0 + $0x64] sm:$0xf]
  %v49 = vld [vmem:[%s0 + $0x68] sm:$0xf]
  %v50 = vld [vmem:[%s0 + $0x6c] sm:$0xf]
  %v51 = vld [vmem:[%s0 + $0x70] sm:$0xf]
  %v52 = vld [vmem:[%s0 + $0x74] sm:$0xf]
  %v53 = vld [vmem:[%s0 + $0x78] sm:$0xf]
  %v54 = vld [vmem:[%s0 + $0x7c] sm:$0xf]
  %v55 = vld [vmem:[%s0 + $0x80] sm:$0xf]
  %v56 = vld [vmem:[%s0 + $0x84] sm:$0xf]
  %v57 = vld [vmem:[%s0 + $0x88] sm:$0xf]
  %v58 = vld [vmem:[%s0 + $0x8c] sm:$0xf]
  %v59 = vld [vmem:[%s0 + $0x90] sm:$0xf]
  %v60 = vld [vmem:[%s0 + $0x94] sm:$0xf]
  %v61 = vld [vmem:[%s0 + $0x98] sm:$0xf]
  %v62 = vld [vmem:[%s0 + $0x9c] sm:$0xf]
  %v63 = vld [vmem:[%s0 + $0xa0] sm:$0xf]
  %v64 = vld [vmem:[%s0 + $0xa4] sm:$0xf]
  %v65 = vld [vmem:[%s0 + $0xa8] sm:$0xf]
  %v66 = vld [vmem:[%s0 + $0xac] sm:$0xf]
  %v67 = vld [vmem:[%s0 + $0xb0] sm:$0xf]
  %v68 = vld [vmem:[%s0 + $0xb4] sm:$0xf]
  %v69 = vld [vmem:[%s0 + $0xb8] sm:$0xf]
  %v70 = vld [vmem:[%s0 + $0xbc] sm:$0xf]
  %v71 = vld [vmem:[%s0 + $0xc0] sm:$0xf]
  %v72 = vld [vmem:[%s0 + $0xc4] sm:$0xf]
  %v73 = vld [vmem:[%s0 + $0xc8] sm:$0xf]
  %v74 = vld [vmem:[%s0 + $0xcc] sm:$0xf]
  %v75 = vld [vmem:[%s0 + $0xd0] sm:$0xf]
  %v76 = vld [vmem:[%s0 + $0xd4] sm:$0xf]
  %v77 = vld [vmem:[%s0 + $0xd8] sm:$0xf]
  %v78 = vld [vmem:[%s0 + $0xdc] sm:$0xf]
  %v79 = vld [vmem:[%s0 + $0xe0] sm:$0xf]
  %v80 = vld [vmem:[%s0 + $0xe4] sm:$0xf]
  %v81 = vld [vmem:[%s0 + $0xe8] sm:$0xf]
  %v82 = vld [vmem:[%s0 + $0xec] sm:$0xf]
  %v83 = vld [vmem:[%s0 + $0xf0] sm:$0xf]
  %v84 = vld [vmem:[%s0 + $0xf4] sm:$0xf]
  %v85 = vld [vmem:[%s0 + $0xf8] sm:$0xf]
  %v86 = vld [vmem:[%s0 + $0xfc] sm:$0xf]
  %v87 = vunpack.c.l.bf16 %v23
  %v88 = vunpack.c.l.bf16 %v24
  %v89 = vunpack.c.l.bf16 %v25
  %v90 = vunpack.c.l.bf16 %v26
  %v91 = vunpack.c.l.bf16 %v27
  %v92 = vunpack.c.l.bf16 %v28
  %v93 = vunpack.c.l.bf16 %v29
  %v94 = vunpack.c.l.bf16 %v30
  %v95 = vunpack.c.l.bf16 %v31
  %v96 = vunpack.c.l.bf16 %v32
  %v97 = vunpack.c.l.bf16 %v33
  %v98 = vunpack.c.l.bf16 %v34
  %v99 = vunpack.c.l.bf16 %v35
  %v100 = vunpack.c.l.bf16 %v36
  %v101 = vunpack.c.l.bf16 %v37
  %v102 = vunpack.c.l.bf16 %v38
  %v103 = vunpack.c.l.bf16 %v39
  %v104 = vunpack.c.l.bf16 %v40
  %v105 = vunpack.c.l.bf16 %v41
  %v106 = vunpack.c.l.bf16 %v42
  %v107 = vunpack.c.l.bf16 %v43
  %v108 = vunpack.c.l.bf16 %v44
  %v109 = vunpack.c.l.bf16 %v45
  %v110 = vunpack.c.l.bf16 %v46
  %v111 = vunpack.c.l.bf16 %v47
  %v112 = vunpack.c.l.bf16 %v48
  %v113 = vunpack.c.l.bf16 %v49
  %v114 = vunpack.c.l.bf16 %v50
  %v115 = vunpack.c.l.bf16 %v51
  %v116 = vunpack.c.l.bf16 %v52
  %v117 = vunpack.c.l.bf16 %v53
  %v118 = vunpack.c.l.bf16 %v54
  %v119 = vunpack.c.l.bf16 %v55
  %v120 = vunpack.c.l.bf16 %v56
  %v121 = vunpack.c.l.bf16 %v57
  %v122 = vunpack.c.l.bf16 %v58
  %v123 = vunpack.c.l.bf16 %v59
  %v124 = vunpack.c.l.bf16 %v60
  %v125 = vunpack.c.l.bf16 %v61
  %v126 = vunpack.c.l.bf16 %v62
  %v127 = vunpack.c.l.bf16 %v63
  %v128 = vunpack.c.l.bf16 %v64
  %v129 = vunpack.c.l.bf16 %v65
  %v130 = vunpack.c.l.bf16 %v66
  %v131 = vunpack.c.l.bf16 %v67
  %v132 = vunpack.c.l.bf16 %v68
  %v133 = vunpack.c.l.bf16 %v69
  %v134 = vunpack.c.l.bf16 %v70
  %v135 = vunpack.c.l.bf16 %v71
  %v136 = vunpack.c.l.bf16 %v72
  %v137 = vunpack.c.l.bf16 %v73
  %v138 = vunpack.c.l.bf16 %v74
  %v139 = vunpack.c.l.bf16 %v75
  %v140 = vunpack.c.l.bf16 %v76
  %v141 = vunpack.c.l.bf16 %v77
  %v142 = vunpack.c.l.bf16 %v78
  %v143 = vunpack.c.l.bf16 %v79
  %v144 = vunpack.c.l.bf16 %v80
  %v145 = vunpack.c.l.bf16 %v81
  %v146 = vunpack.c.l.bf16 %v82
  %v147 = vunpack.c.l.bf16 %v83
  %v148 = vunpack.c.l.bf16 %v84
  %v149 = vunpack.c.l.bf16 %v85
  %v150 = vunpack.c.l.bf16 %v86
  %v151 = vld [vmem:[%s1] sm:$0x1]
  %v153 = vlaneseq
  %v154 = vshrl.u32 %v153, 7
  %v155 = vsub.s32 0, %v154
  %v156 = vrot.slane %v151, %v155
  %v158 = vmul.f32 %v87, %v156
  %v159 = vmul.f32 %v88, %v156
  %v160 = vmul.f32 %v89, %v156
  %v161 = vmul.f32 %v90, %v156
  %v162 = vmul.f32 %v91, %v156
  %v163 = vmul.f32 %v92, %v156
  %v164 = vmul.f32 %v93, %v156
  %v165 = vmul.f32 %v94, %v156
  %v166 = vmul.f32 %v95, %v156
  %v167 = vmul.f32 %v96, %v156
  %v168 = vmul.f32 %v97, %v156
  %v169 = vmul.f32 %v98, %v156
  %v170 = vmul.f32 %v99, %v156
  %v171 = vmul.f32 %v100, %v156
  %v172 = vmul.f32 %v101, %v156
  %v173 = vmul.f32 %v102, %v156
  %v174 = vmul.f32 %v103, %v156
  %v175 = vmul.f32 %v104, %v156
  %v176 = vmul.f32 %v105, %v156
  %v177 = vmul.f32 %v106, %v156
  %v178 = vmul.f32 %v107, %v156
  %v179 = vmul.f32 %v108, %v156
  %v180 = vmul.f32 %v109, %v156
  %v181 = vmul.f32 %v110, %v156
  %v182 = vmul.f32 %v111, %v156
  %v183 = vmul.f32 %v112, %v156
  %v184 = vmul.f32 %v113, %v156
  %v185 = vmul.f32 %v114, %v156
  %v186 = vmul.f32 %v115, %v156
  %v187 = vmul.f32 %v116, %v156
  %v188 = vmul.f32 %v117, %v156
  %v189 = vmul.f32 %v118, %v156
  %v190 = vmul.f32 %v119, %v156
  %v191 = vmul.f32 %v120, %v156
  %v192 = vmul.f32 %v121, %v156
  %v193 = vmul.f32 %v122, %v156
  %v194 = vmul.f32 %v123, %v156
  %v195 = vmul.f32 %v124, %v156
  %v196 = vmul.f32 %v125, %v156
  %v197 = vmul.f32 %v126, %v156
  %v198 = vmul.f32 %v127, %v156
  %v199 = vmul.f32 %v128, %v156
  %v200 = vmul.f32 %v129, %v156
  %v201 = vmul.f32 %v130, %v156
  %v202 = vmul.f32 %v131, %v156
  %v203 = vmul.f32 %v132, %v156
  %v204 = vmul.f32 %v133, %v156
  %v205 = vmul.f32 %v134, %v156
  %v206 = vmul.f32 %v135, %v156
  %v207 = vmul.f32 %v136, %v156
  %v208 = vmul.f32 %v137, %v156
  %v209 = vmul.f32 %v138, %v156
  %v210 = vmul.f32 %v139, %v156
  %v211 = vmul.f32 %v140, %v156
  %v212 = vmul.f32 %v141, %v156
  %v213 = vmul.f32 %v142, %v156
  %v214 = vmul.f32 %v143, %v156
  %v215 = vmul.f32 %v144, %v156
  %v216 = vmul.f32 %v145, %v156
  %v217 = vmul.f32 %v146, %v156
  %v218 = vmul.f32 %v147, %v156
  %v219 = vmul.f32 %v148, %v156
  %v220 = vmul.f32 %v149, %v156
  %v221 = vmul.f32 %v150, %v156
  %v222 = vld [vmem:[%s2] sm:$0x1]
  %v224 = vlaneseq
  %v225 = vshrl.u32 %v224, 7
  %v226 = vsub.s32 0, %v225
  %v227 = vrot.slane %v222, %v226
  %v229 = vadd.f32 %v158, %v227
  %v230 = vadd.f32 %v159, %v227
  %v231 = vadd.f32 %v160, %v227
  %v232 = vadd.f32 %v161, %v227
  %v233 = vadd.f32 %v162, %v227
  %v234 = vadd.f32 %v163, %v227
  %v235 = vadd.f32 %v164, %v227
  %v236 = vadd.f32 %v165, %v227
  %v237 = vadd.f32 %v166, %v227
  %v238 = vadd.f32 %v167, %v227
  %v239 = vadd.f32 %v168, %v227
  %v240 = vadd.f32 %v169, %v227
  %v241 = vadd.f32 %v170, %v227
  %v242 = vadd.f32 %v171, %v227
  %v243 = vadd.f32 %v172, %v227
  %v244 = vadd.f32 %v173, %v227
  %v245 = vadd.f32 %v174, %v227
  %v246 = vadd.f32 %v175, %v227
  %v247 = vadd.f32 %v176, %v227
  %v248 = vadd.f32 %v177, %v227
  %v249 = vadd.f32 %v178, %v227
  %v250 = vadd.f32 %v179, %v227
  %v251 = vadd.f32 %v180, %v227
  %v252 = vadd.f32 %v181, %v227
  %v253 = vadd.f32 %v182, %v227
  %v254 = vadd.f32 %v183, %v227
  %v255 = vadd.f32 %v184, %v227
  %v256 = vadd.f32 %v185, %v227
  %v257 = vadd.f32 %v186, %v227
  %v258 = vadd.f32 %v187, %v227
  %v259 = vadd.f32 %v188, %v227
  %v260 = vadd.f32 %v189, %v227
  %v261 = vadd.f32 %v190, %v227
  %v262 = vadd.f32 %v191, %v227
  %v263 = vadd.f32 %v192, %v227
  %v264 = vadd.f32 %v193, %v227
  %v265 = vadd.f32 %v194, %v227
  %v266 = vadd.f32 %v195, %v227
  %v267 = vadd.f32 %v196, %v227
  %v268 = vadd.f32 %v197, %v227
  %v269 = vadd.f32 %v198, %v227
  %v270 = vadd.f32 %v199, %v227
  %v271 = vadd.f32 %v200, %v227
  %v272 = vadd.f32 %v201, %v227
  %v273 = vadd.f32 %v202, %v227
  %v274 = vadd.f32 %v203, %v227
  %v275 = vadd.f32 %v204, %v227
  %v276 = vadd.f32 %v205, %v227
  %v277 = vadd.f32 %v206, %v227
  %v278 = vadd.f32 %v207, %v227
  %v279 = vadd.f32 %v208, %v227
  %v280 = vadd.f32 %v209, %v227
  %v281 = vadd.f32 %v210, %v227
  %v282 = vadd.f32 %v211, %v227
  %v283 = vadd.f32 %v212, %v227
  %v284 = vadd.f32 %v213, %v227
  %v285 = vadd.f32 %v214, %v227
  %v286 = vadd.f32 %v215, %v227
  %v287 = vadd.f32 %v216, %v227
  %v288 = vadd.f32 %v217, %v227
  %v289 = vadd.f32 %v218, %v227
  %v290 = vadd.f32 %v219, %v227
  %v291 = vadd.f32 %v220, %v227
  %v292 = vadd.f32 %v221, %v227
  %v293 = vmax.f32 %v229, 0.0
  %v294 = vmax.f32 %v230, 0.0
  %v295 = vmax.f32 %v231, 0.0
  %v296 = vmax.f32 %v232, 0.0
  %v297 = vmax.f32 %v233, 0.0
  %v298 = vmax.f32 %v234, 0.0
  %v299 = vmax.f32 %v235, 0.0
  %v300 = vmax.f32 %v236, 0.0
  %v301 = vmax.f32 %v237, 0.0
  %v302 = vmax.f32 %v238, 0.0
  %v303 = vmax.f32 %v239, 0.0
  %v304 = vmax.f32 %v240, 0.0
  %v305 = vmax.f32 %v241, 0.0
  %v306 = vmax.f32 %v242, 0.0
  %v307 = vmax.f32 %v243, 0.0
  %v308 = vmax.f32 %v244, 0.0
  %v309 = vmax.f32 %v245, 0.0
  %v310 = vmax.f32 %v246, 0.0
  %v311 = vmax.f32 %v247, 0.0
  %v312 = vmax.f32 %v248, 0.0
  %v313 = vmax.f32 %v249, 0.0
  %v314 = vmax.f32 %v250, 0.0
  %v315 = vmax.f32 %v251, 0.0
  %v316 = vmax.f32 %v252, 0.0
  %v317 = vmax.f32 %v253, 0.0
  %v318 = vmax.f32 %v254, 0.0
  %v319 = vmax.f32 %v255, 0.0
  %v320 = vmax.f32 %v256, 0.0
  %v321 = vmax.f32 %v257, 0.0
  %v322 = vmax.f32 %v258, 0.0
  %v323 = vmax.f32 %v259, 0.0
  %v324 = vmax.f32 %v260, 0.0
  %v325 = vmax.f32 %v261, 0.0
  %v326 = vmax.f32 %v262, 0.0
  %v327 = vmax.f32 %v263, 0.0
  %v328 = vmax.f32 %v264, 0.0
  %v329 = vmax.f32 %v265, 0.0
  %v330 = vmax.f32 %v266, 0.0
  %v331 = vmax.f32 %v267, 0.0
  %v332 = vmax.f32 %v268, 0.0
  %v333 = vmax.f32 %v269, 0.0
  %v334 = vmax.f32 %v270, 0.0
  %v335 = vmax.f32 %v271, 0.0
  %v336 = vmax.f32 %v272, 0.0
  %v337 = vmax.f32 %v273, 0.0
  %v338 = vmax.f32 %v274, 0.0
  %v339 = vmax.f32 %v275, 0.0
  %v340 = vmax.f32 %v276, 0.0
  %v341 = vmax.f32 %v277, 0.0
  %v342 = vmax.f32 %v278, 0.0
  %v343 = vmax.f32 %v279, 0.0
  %v344 = vmax.f32 %v280, 0.0
  %v345 = vmax.f32 %v281, 0.0
  %v346 = vmax.f32 %v282, 0.0
  %v347 = vmax.f32 %v283, 0.0
  %v348 = vmax.f32 %v284, 0.0
  %v349 = vmax.f32 %v285, 0.0
  %v350 = vmax.f32 %v286, 0.0
  %v351 = vmax.f32 %v287, 0.0
  %v352 = vmax.f32 %v288, 0.0
  %v353 = vmax.f32 %v289, 0.0
  %v354 = vmax.f32 %v290, 0.0
  %v355 = vmax.f32 %v291, 0.0
  %v356 = vmax.f32 %v292, 0.0
  %v357 = vld [vmem:[%s3] sm:$0xf]
  %v358 = vld [vmem:[%s3 + $0x4] sm:$0xf]
  %v359 = vld [vmem:[%s3 + $0x8] sm:$0xf]
  %v360 = vld [vmem:[%s3 + $0xc] sm:$0xf]
  %v361 = vld [vmem:[%s3 + $0x10] sm:$0xf]
  %v362 = vld [vmem:[%s3 + $0x14] sm:$0xf]
  %v363 = vld [vmem:[%s3 + $0x18] sm:$0xf]
  %v364 = vld [vmem:[%s3 + $0x1c] sm:$0xf]
  %v365 = vld [vmem:[%s3 + $0x20] sm:$0xf]
  %v366 = vld [vmem:[%s3 + $0x24] sm:$0xf]
  %v367 = vld [vmem:[%s3 + $0x28] sm:$0xf]
  %v368 = vld [vmem:[%s3 + $0x2c] sm:$0xf]
  %v369 = vld [vmem:[%s3 + $0x30] sm:$0xf]
  %v370 = vld [vmem:[%s3 + $0x34] sm:$0xf]
  %v371 = vld [vmem:[%s3 + $0x38] sm:$0xf]
  %v372 = vld [vmem:[%s3 + $0x3c] sm:$0xf]
  %v373 = vld [vmem:[%s3 + $0x40] sm:$0xf]
  %v374 = vld [vmem:[%s3 + $0x44] sm:$0xf]
  %v375 = vld [vmem:[%s3 + $0x48] sm:$0xf]
  %v376 = vld [vmem:[%s3 + $0x4c] sm:$0xf]
  %v377 = vld [vmem:[%s3 + $0x50] sm:$0xf]
  %v378 = vld [vmem:[%s3 + $0x54] sm:$0xf]
  %v379 = vld [vmem:[%s3 + $0x58] sm:$0xf]
  %v380 = vld [vmem:[%s3 + $0x5c] sm:$0xf]
  %v381 = vld [vmem:[%s3 + $0x60] sm:$0xf]
  %v382 = vld [vmem:[%s3 + $0x64] sm:$0xf]
  %v383 = vld [vmem:[%s3 + $0x68] sm:$0xf]
  %v384 = vld [vmem:[%s3 + $0x6c] sm:$0xf]
  %v385 = vld [vmem:[%s3 + $0x70] sm:$0xf]
  %v386 = vld [vmem:[%s3 + $0x74] sm:$0xf]
  %v387 = vld [vmem:[%s3 + $0x78] sm:$0xf]
  %v388 = vld [vmem:[%s3 + $0x7c] sm:$0xf]
  %v389 = vld [vmem:[%s3 + $0x80] sm:$0xf]
  %v390 = vld [vmem:[%s3 + $0x84] sm:$0xf]
  %v391 = vld [vmem:[%s3 + $0x88] sm:$0xf]
  %v392 = vld [vmem:[%s3 + $0x8c] sm:$0xf]
  %v393 = vld [vmem:[%s3 + $0x90] sm:$0xf]
  %v394 = vld [vmem:[%s3 + $0x94] sm:$0xf]
  %v395 = vld [vmem:[%s3 + $0x98] sm:$0xf]
  %v396 = vld [vmem:[%s3 + $0x9c] sm:$0xf]
  %v397 = vld [vmem:[%s3 + $0xa0] sm:$0xf]
  %v398 = vld [vmem:[%s3 + $0xa4] sm:$0xf]
  %v399 = vld [vmem:[%s3 + $0xa8] sm:$0xf]
  %v400 = vld [vmem:[%s3 + $0xac] sm:$0xf]
  %v401 = vld [vmem:[%s3 + $0xb0] sm:$0xf]
  %v402 = vld [vmem:[%s3 + $0xb4] sm:$0xf]
  %v403 = vld [vmem:[%s3 + $0xb8] sm:$0xf]
  %v404 = vld [vmem:[%s3 + $0xbc] sm:$0xf]
  %v405 = vld [vmem:[%s3 + $0xc0] sm:$0xf]
  %v406 = vld [vmem:[%s3 + $0xc4] sm:$0xf]
  %v407 = vld [vmem:[%s3 + $0xc8] sm:$0xf]
  %v408 = vld [vmem:[%s3 + $0xcc] sm:$0xf]
  %v409 = vld [vmem:[%s3 + $0xd0] sm:$0xf]
  %v410 = vld [vmem:[%s3 + $0xd4] sm:$0xf]
  %v411 = vld [vmem:[%s3 + $0xd8] sm:$0xf]
  %v412 = vld [vmem:[%s3 + $0xdc] sm:$0xf]
  %v413 = vld [vmem:[%s3 + $0xe0] sm:$0xf]
  %v414 = vld [vmem:[%s3 + $0xe4] sm:$0xf]
  %v415 = vld [vmem:[%s3 + $0xe8] sm:$0xf]
  %v416 = vld [vmem:[%s3 + $0xec] sm:$0xf]
  %v417 = vld [vmem:[%s3 + $0xf0] sm:$0xf]
  %v418 = vld [vmem:[%s3 + $0xf4] sm:$0xf]
  %v419 = vld [vmem:[%s3 + $0xf8] sm:$0xf]
  %v420 = vld [vmem:[%s3 + $0xfc] sm:$0xf]
  %v421 = vunpack.c.l.bf16 %v357
  %v422 = vunpack.c.l.bf16 %v358
  %v423 = vunpack.c.l.bf16 %v359
  %v424 = vunpack.c.l.bf16 %v360
  %v425 = vunpack.c.l.bf16 %v361
  %v426 = vunpack.c.l.bf16 %v362
  %v427 = vunpack.c.l.bf16 %v363
  %v428 = vunpack.c.l.bf16 %v364
  %v429 = vunpack.c.l.bf16 %v365
  %v430 = vunpack.c.l.bf16 %v366
  %v431 = vunpack.c.l.bf16 %v367
  %v432 = vunpack.c.l.bf16 %v368
  %v433 = vunpack.c.l.bf16 %v369
  %v434 = vunpack.c.l.bf16 %v370
  %v435 = vunpack.c.l.bf16 %v371
  %v436 = vunpack.c.l.bf16 %v372
  %v437 = vunpack.c.l.bf16 %v373
  %v438 = vunpack.c.l.bf16 %v374
  %v439 = vunpack.c.l.bf16 %v375
  %v440 = vunpack.c.l.bf16 %v376
  %v441 = vunpack.c.l.bf16 %v377
  %v442 = vunpack.c.l.bf16 %v378
  %v443 = vunpack.c.l.bf16 %v379
  %v444 = vunpack.c.l.bf16 %v380
  %v445 = vunpack.c.l.bf16 %v381
  %v446 = vunpack.c.l.bf16 %v382
  %v447 = vunpack.c.l.bf16 %v383
  %v448 = vunpack.c.l.bf16 %v384
  %v449 = vunpack.c.l.bf16 %v385
  %v450 = vunpack.c.l.bf16 %v386
  %v451 = vunpack.c.l.bf16 %v387
  %v452 = vunpack.c.l.bf16 %v388
  %v453 = vunpack.c.l.bf16 %v389
  %v454 = vunpack.c.l.bf16 %v390
  %v455 = vunpack.c.l.bf16 %v391
  %v456 = vunpack.c.l.bf16 %v392
  %v457 = vunpack.c.l.bf16 %v393
  %v458 = vunpack.c.l.bf16 %v394
  %v459 = vunpack.c.l.bf16 %v395
  %v460 = vunpack.c.l.bf16 %v396
  %v461 = vunpack.c.l.bf16 %v397
  %v462 = vunpack.c.l.bf16 %v398
  %v463 = vunpack.c.l.bf16 %v399
  %v464 = vunpack.c.l.bf16 %v400
  %v465 = vunpack.c.l.bf16 %v401
  %v466 = vunpack.c.l.bf16 %v402
  %v467 = vunpack.c.l.bf16 %v403
  %v468 = vunpack.c.l.bf16 %v404
  %v469 = vunpack.c.l.bf16 %v405
  %v470 = vunpack.c.l.bf16 %v406
  %v471 = vunpack.c.l.bf16 %v407
  %v472 = vunpack.c.l.bf16 %v408
  %v473 = vunpack.c.l.bf16 %v409
  %v474 = vunpack.c.l.bf16 %v410
  %v475 = vunpack.c.l.bf16 %v411
  %v476 = vunpack.c.l.bf16 %v412
  %v477 = vunpack.c.l.bf16 %v413
  %v478 = vunpack.c.l.bf16 %v414
  %v479 = vunpack.c.l.bf16 %v415
  %v480 = vunpack.c.l.bf16 %v416
  %v481 = vunpack.c.l.bf16 %v417
  %v482 = vunpack.c.l.bf16 %v418
  %v483 = vunpack.c.l.bf16 %v419
  %v484 = vunpack.c.l.bf16 %v420
  %v485 = vld [vmem:[%s4] sm:$0x1]
  %v487 = vlaneseq
  %v488 = vshrl.u32 %v487, 7
  %v489 = vsub.s32 0, %v488
  %v490 = vrot.slane %v485, %v489
  %v492 = vmul.f32 %v421, %v490
  %v493 = vmul.f32 %v422, %v490
  %v494 = vmul.f32 %v423, %v490
  %v495 = vmul.f32 %v424, %v490
  %v496 = vmul.f32 %v425, %v490
  %v497 = vmul.f32 %v426, %v490
  %v498 = vmul.f32 %v427, %v490
  %v499 = vmul.f32 %v428, %v490
  %v500 = vmul.f32 %v429, %v490
  %v501 = vmul.f32 %v430, %v490
  %v502 = vmul.f32 %v431, %v490
  %v503 = vmul.f32 %v432, %v490
  %v504 = vmul.f32 %v433, %v490
  %v505 = vmul.f32 %v434, %v490
  %v506 = vmul.f32 %v435, %v490
  %v507 = vmul.f32 %v436, %v490
  %v508 = vmul.f32 %v437, %v490
  %v509 = vmul.f32 %v438, %v490
  %v510 = vmul.f32 %v439, %v490
  %v511 = vmul.f32 %v440, %v490
  %v512 = vmul.f32 %v441, %v490
  %v513 = vmul.f32 %v442, %v490
  %v514 = vmul.f32 %v443, %v490
  %v515 = vmul.f32 %v444, %v490
  %v516 = vmul.f32 %v445, %v490
  %v517 = vmul.f32 %v446, %v490
  %v518 = vmul.f32 %v447, %v490
  %v519 = vmul.f32 %v448, %v490
  %v520 = vmul.f32 %v449, %v490
  %v521 = vmul.f32 %v450, %v490
  %v522 = vmul.f32 %v451, %v490
  %v523 = vmul.f32 %v452, %v490
  %v524 = vmul.f32 %v453, %v490
  %v525 = vmul.f32 %v454, %v490
  %v526 = vmul.f32 %v455, %v490
  %v527 = vmul.f32 %v456, %v490
  %v528 = vmul.f32 %v457, %v490
  %v529 = vmul.f32 %v458, %v490
  %v530 = vmul.f32 %v459, %v490
  %v531 = vmul.f32 %v460, %v490
  %v532 = vmul.f32 %v461, %v490
  %v533 = vmul.f32 %v462, %v490
  %v534 = vmul.f32 %v463, %v490
  %v535 = vmul.f32 %v464, %v490
  %v536 = vmul.f32 %v465, %v490
  %v537 = vmul.f32 %v466, %v490
  %v538 = vmul.f32 %v467, %v490
  %v539 = vmul.f32 %v468, %v490
  %v540 = vmul.f32 %v469, %v490
  %v541 = vmul.f32 %v470, %v490
  %v542 = vmul.f32 %v471, %v490
  %v543 = vmul.f32 %v472, %v490
  %v544 = vmul.f32 %v473, %v490
  %v545 = vmul.f32 %v474, %v490
  %v546 = vmul.f32 %v475, %v490
  %v547 = vmul.f32 %v476, %v490
  %v548 = vmul.f32 %v477, %v490
  %v549 = vmul.f32 %v478, %v490
  %v550 = vmul.f32 %v479, %v490
  %v551 = vmul.f32 %v480, %v490
  %v552 = vmul.f32 %v481, %v490
  %v553 = vmul.f32 %v482, %v490
  %v554 = vmul.f32 %v483, %v490
  %v555 = vmul.f32 %v484, %v490
  %v556 = vld [vmem:[%s5] sm:$0x1]
  %v558 = vlaneseq
  %v559 = vshrl.u32 %v558, 7
  %v560 = vsub.s32 0, %v559
  %v561 = vrot.slane %v556, %v560
  %v563 = vadd.f32 %v492, %v561
  %v564 = vadd.f32 %v493, %v561
  %v565 = vadd.f32 %v494, %v561
  %v566 = vadd.f32 %v495, %v561
  %v567 = vadd.f32 %v496, %v561
  %v568 = vadd.f32 %v497, %v561
  %v569 = vadd.f32 %v498, %v561
  %v570 = vadd.f32 %v499, %v561
  %v571 = vadd.f32 %v500, %v561
  %v572 = vadd.f32 %v501, %v561
  %v573 = vadd.f32 %v502, %v561
  %v574 = vadd.f32 %v503, %v561
  %v575 = vadd.f32 %v504, %v561
  %v576 = vadd.f32 %v505, %v561
  %v577 = vadd.f32 %v506, %v561
  %v578 = vadd.f32 %v507, %v561
  %v579 = vadd.f32 %v508, %v561
  %v580 = vadd.f32 %v509, %v561
  %v581 = vadd.f32 %v510, %v561
  %v582 = vadd.f32 %v511, %v561
  %v583 = vadd.f32 %v512, %v561
  %v584 = vadd.f32 %v513, %v561
  %v585 = vadd.f32 %v514, %v561
  %v586 = vadd.f32 %v515, %v561
  %v587 = vadd.f32 %v516, %v561
  %v588 = vadd.f32 %v517, %v561
  %v589 = vadd.f32 %v518, %v561
  %v590 = vadd.f32 %v519, %v561
  %v591 = vadd.f32 %v520, %v561
  %v592 = vadd.f32 %v521, %v561
  %v593 = vadd.f32 %v522, %v561
  %v594 = vadd.f32 %v523, %v561
  %v595 = vadd.f32 %v524, %v561
  %v596 = vadd.f32 %v525, %v561
  %v597 = vadd.f32 %v526, %v561
  %v598 = vadd.f32 %v527, %v561
  %v599 = vadd.f32 %v528, %v561
  %v600 = vadd.f32 %v529, %v561
  %v601 = vadd.f32 %v530, %v561
  %v602 = vadd.f32 %v531, %v561
  %v603 = vadd.f32 %v532, %v561
  %v604 = vadd.f32 %v533, %v561
  %v605 = vadd.f32 %v534, %v561
  %v606 = vadd.f32 %v535, %v561
  %v607 = vadd.f32 %v536, %v561
  %v608 = vadd.f32 %v537, %v561
  %v609 = vadd.f32 %v538, %v561
  %v610 = vadd.f32 %v539, %v561
  %v611 = vadd.f32 %v540, %v561
  %v612 = vadd.f32 %v541, %v561
  %v613 = vadd.f32 %v542, %v561
  %v614 = vadd.f32 %v543, %v561
  %v615 = vadd.f32 %v544, %v561
  %v616 = vadd.f32 %v545, %v561
  %v617 = vadd.f32 %v546, %v561
  %v618 = vadd.f32 %v547, %v561
  %v619 = vadd.f32 %v548, %v561
  %v620 = vadd.f32 %v549, %v561
  %v621 = vadd.f32 %v550, %v561
  %v622 = vadd.f32 %v551, %v561
  %v623 = vadd.f32 %v552, %v561
  %v624 = vadd.f32 %v553, %v561
  %v625 = vadd.f32 %v554, %v561
  %v626 = vadd.f32 %v555, %v561
  %v627 = vadd.f32 %v293, %v563
  %v628 = vadd.f32 %v294, %v564
  %v629 = vadd.f32 %v295, %v565
  %v630 = vadd.f32 %v296, %v566
  %v631 = vadd.f32 %v297, %v567
  %v632 = vadd.f32 %v298, %v568
  %v633 = vadd.f32 %v299, %v569
  %v634 = vadd.f32 %v300, %v570
  %v635 = vadd.f32 %v301, %v571
  %v636 = vadd.f32 %v302, %v572
  %v637 = vadd.f32 %v303, %v573
  %v638 = vadd.f32 %v304, %v574
  %v639 = vadd.f32 %v305, %v575
  %v640 = vadd.f32 %v306, %v576
  %v641 = vadd.f32 %v307, %v577
  %v642 = vadd.f32 %v308, %v578
  %v643 = vadd.f32 %v309, %v579
  %v644 = vadd.f32 %v310, %v580
  %v645 = vadd.f32 %v311, %v581
  %v646 = vadd.f32 %v312, %v582
  %v647 = vadd.f32 %v313, %v583
  %v648 = vadd.f32 %v314, %v584
  %v649 = vadd.f32 %v315, %v585
  %v650 = vadd.f32 %v316, %v586
  %v651 = vadd.f32 %v317, %v587
  %v652 = vadd.f32 %v318, %v588
  %v653 = vadd.f32 %v319, %v589
  %v654 = vadd.f32 %v320, %v590
  %v655 = vadd.f32 %v321, %v591
  %v656 = vadd.f32 %v322, %v592
  %v657 = vadd.f32 %v323, %v593
  %v658 = vadd.f32 %v324, %v594
  %v659 = vadd.f32 %v325, %v595
  %v660 = vadd.f32 %v326, %v596
  %v661 = vadd.f32 %v327, %v597
  %v662 = vadd.f32 %v328, %v598
  %v663 = vadd.f32 %v329, %v599
  %v664 = vadd.f32 %v330, %v600
  %v665 = vadd.f32 %v331, %v601
  %v666 = vadd.f32 %v332, %v602
  %v667 = vadd.f32 %v333, %v603
  %v668 = vadd.f32 %v334, %v604
  %v669 = vadd.f32 %v335, %v605
  %v670 = vadd.f32 %v336, %v606
  %v671 = vadd.f32 %v337, %v607
  %v672 = vadd.f32 %v338, %v608
  %v673 = vadd.f32 %v339, %v609
  %v674 = vadd.f32 %v340, %v610
  %v675 = vadd.f32 %v341, %v611
  %v676 = vadd.f32 %v342, %v612
  %v677 = vadd.f32 %v343, %v613
  %v678 = vadd.f32 %v344, %v614
  %v679 = vadd.f32 %v345, %v615
  %v680 = vadd.f32 %v346, %v616
  %v681 = vadd.f32 %v347, %v617
  %v682 = vadd.f32 %v348, %v618
  %v683 = vadd.f32 %v349, %v619
  %v684 = vadd.f32 %v350, %v620
  %v685 = vadd.f32 %v351, %v621
  %v686 = vadd.f32 %v352, %v622
  %v687 = vadd.f32 %v353, %v623
  %v688 = vadd.f32 %v354, %v624
  %v689 = vadd.f32 %v355, %v625
  %v690 = vadd.f32 %v356, %v626
  %691 = vst [vmem:[%s6] sm:$0xff] %v627
  %692 = vst [vmem:[%s6 + $0x8] sm:$0xff] %v628
  %693 = vst [vmem:[%s6 + $0x10] sm:$0xff] %v629
  %694 = vst [vmem:[%s6 + $0x18] sm:$0xff] %v630
  %695 = vst [vmem:[%s6 + $0x20] sm:$0xff] %v631
  %696 = vst [vmem:[%s6 + $0x28] sm:$0xff] %v632
  %697 = vst [vmem:[%s6 + $0x30] sm:$0xff] %v633
  %698 = vst [vmem:[%s6 + $0x38] sm:$0xff] %v634
  %699 = vst [vmem:[%s6 + $0x40] sm:$0xff] %v635
  %700 = vst [vmem:[%s6 + $0x48] sm:$0xff] %v636
  %701 = vst [vmem:[%s6 + $0x50] sm:$0xff] %v637
  %702 = vst [vmem:[%s6 + $0x58] sm:$0xff] %v638
  %703 = vst [vmem:[%s6 + $0x60] sm:$0xff] %v639
  %704 = vst [vmem:[%s6 + $0x68] sm:$0xff] %v640
  %705 = vst [vmem:[%s6 + $0x70] sm:$0xff] %v641
  %706 = vst [vmem:[%s6 + $0x78] sm:$0xff] %v642
  %707 = vst [vmem:[%s6 + $0x80] sm:$0xff] %v643
  %708 = vst [vmem:[%s6 + $0x88] sm:$0xff] %v644
  %709 = vst [vmem:[%s6 + $0x90] sm:$0xff] %v645
  %710 = vst [vmem:[%s6 + $0x98] sm:$0xff] %v646
  %711 = vst [vmem:[%s6 + $0xa0] sm:$0xff] %v647
  %712 = vst [vmem:[%s6 + $0xa8] sm:$0xff] %v648
  %713 = vst [vmem:[%s6 + $0xb0] sm:$0xff] %v649
  %714 = vst [vmem:[%s6 + $0xb8] sm:$0xff] %v650
  %715 = vst [vmem:[%s6 + $0xc0] sm:$0xff] %v651
  %716 = vst [vmem:[%s6 + $0xc8] sm:$0xff] %v652
  %717 = vst [vmem:[%s6 + $0xd0] sm:$0xff] %v653
  %718 = vst [vmem:[%s6 + $0xd8] sm:$0xff] %v654
  %719 = vst [vmem:[%s6 + $0xe0] sm:$0xff] %v655
  %720 = vst [vmem:[%s6 + $0xe8] sm:$0xff] %v656
  %721 = vst [vmem:[%s6 + $0xf0] sm:$0xff] %v657
  %722 = vst [vmem:[%s6 + $0xf8] sm:$0xff] %v658
  %723 = vst [vmem:[%s6 + $0x100] sm:$0xff] %v659
  %724 = vst [vmem:[%s6 + $0x108] sm:$0xff] %v660
  %725 = vst [vmem:[%s6 + $0x110] sm:$0xff] %v661
  %726 = vst [vmem:[%s6 + $0x118] sm:$0xff] %v662
  %727 = vst [vmem:[%s6 + $0x120] sm:$0xff] %v663
  %728 = vst [vmem:[%s6 + $0x128] sm:$0xff] %v664
  %729 = vst [vmem:[%s6 + $0x130] sm:$0xff] %v665
  %730 = vst [vmem:[%s6 + $0x138] sm:$0xff] %v666
  %731 = vst [vmem:[%s6 + $0x140] sm:$0xff] %v667
  %732 = vst [vmem:[%s6 + $0x148] sm:$0xff] %v668
  %733 = vst [vmem:[%s6 + $0x150] sm:$0xff] %v669
  %734 = vst [vmem:[%s6 + $0x158] sm:$0xff] %v670
  %735 = vst [vmem:[%s6 + $0x160] sm:$0xff] %v671
  %736 = vst [vmem:[%s6 + $0x168] sm:$0xff] %v672
  %737 = vst [vmem:[%s6 + $0x170] sm:$0xff] %v673
  %738 = vst [vmem:[%s6 + $0x178] sm:$0xff] %v674
  %739 = vst [vmem:[%s6 + $0x180] sm:$0xff] %v675
  %740 = vst [vmem:[%s6 + $0x188] sm:$0xff] %v676
  %741 = vst [vmem:[%s6 + $0x190] sm:$0xff] %v677
  %742 = vst [vmem:[%s6 + $0x198] sm:$0xff] %v678
  %743 = vst [vmem:[%s6 + $0x1a0] sm:$0xff] %v679
  %744 = vst [vmem:[%s6 + $0x1a8] sm:$0xff] %v680
  %745 = vst [vmem:[%s6 + $0x1b0] sm:$0xff] %v681
  %746 = vst [vmem:[%s6 + $0x1b8] sm:$0xff] %v682
  %747 = vst [vmem:[%s6 + $0x1c0] sm:$0xff] %v683
  %748 = vst [vmem:[%s6 + $0x1c8] sm:$0xff] %v684
  %749 = vst [vmem:[%s6 + $0x1d0] sm:$0xff] %v685
  %750 = vst [vmem:[%s6 + $0x1d8] sm:$0xff] %v686
  %751 = vst [vmem:[%s6 + $0x1e0] sm:$0xff] %v687
  %752 = vst [vmem:[%s6 + $0x1e8] sm:$0xff] %v688
  %753 = vst [vmem:[%s6 + $0x1f0] sm:$0xff] %v689
  %754 = vst [vmem:[%s6 + $0x1f8] sm:$0xff] %v690
  // Predicated region
  $region26: #{bottleneck_forward.9} parent=0 // pred_check
    _
  $region27: #{bottleneck_forward.9} parent=0 // pred_check_branch
    %756 = sbr.rel (0) target = $region29
  $region28: #{bottleneck_forward.9} parent=0 // pred_region
    _
  $region29: #{bottleneck_forward.9} parent=0 // pred_fallthru
    _
  // Predicated region
  $region30: #{bottleneck_forward.9} parent=0 // pred_check
    _
  $region31: #{bottleneck_forward.9} parent=0 // pred_check_branch
    %758 = sbr.rel (0) target = $region33
  $region32: #{bottleneck_forward.9} parent=0 // pred_region
    _
  $region33: #{bottleneck_forward.9} parent=0 // pred_fallthru
    _

// kernel: bottleneck_forward.7
$region0: #{bottleneck_forward.7}
  #allocation0 [shape = 'u32[]', space=smem, size = 0x4, offset = 0x4, fixed_abs, tag = 'smem constant byte address 0x4 - core index']
  #allocation1 [shape = 'u32[144,128]{1,0:T(1,128)}', space=vmem, size = 0x12000, scoped, tag = 'internal scratch']
  %s0 = inlined_call_operand.vmem [shape: bf16[512,128], index: 0, kind: input, shape index: {}]
  %s1 = inlined_call_operand.vmem [shape: bf16[128,128], index: 1, kind: input, shape index: {}]
  %s2 = inlined_call_operand.vmem [shape: f32[1,128], index: 2, kind: input, shape index: {}]
  %s3 = inlined_call_operand.vmem [shape: f32[1,128], index: 3, kind: input, shape index: {}]
  %s4 = inlined_call_operand.vmem [shape: bf16[512,128], index: 4, kind: output, shape index: {0}]
  %s5 = inlined_call_operand.vmem [shape: f32[1,1,128], index: 5, kind: output, shape index: {1}]
  %s6 = inlined_call_operand.vmem [shape: f32[1,1,128], index: 6, kind: output, shape index: {2}]
  %7 = xla_tuple %s4, %s5, %s6
  %s8 = sld [smem:[#allocation0]]
  $region42: #{bottleneck_forward.7} parent=0
    _
  %s10 = ssub.s32 1, %s8
  %s11 = scalar_select 0, %s10, %s8
  // Predicated region
  $region2: #{bottleneck_forward.7} parent=0 // pred_check
    _
  $region3: #{bottleneck_forward.7} parent=0 // pred_check_branch
    %13 = sbr.rel (0) target = $region5
  $region4: #{bottleneck_forward.7} parent=0 // pred_region
    _
  $region5: #{bottleneck_forward.7} parent=0 // pred_fallthru
    _
  // Predicated region
  $region6: #{bottleneck_forward.7} parent=0 // pred_check
    _
  $region7: #{bottleneck_forward.7} parent=0 // pred_check_branch
    %15 = sbr.rel (0) target = $region9
  $region8: #{bottleneck_forward.7} parent=0 // pred_region
    _
  $region9: #{bottleneck_forward.7} parent=0 // pred_fallthru
    _
  // Predicated region
  $region10: #{bottleneck_forward.7} parent=0 // pred_check
    _
  $region11: #{bottleneck_forward.7} parent=0 // pred_check_branch
    %17 = sbr.rel (0) target = $region13
  $region12: #{bottleneck_forward.7} parent=0 // pred_region
    _
  $region13: #{bottleneck_forward.7} parent=0 // pred_fallthru
    _
  // Predicated region
  $region14: #{bottleneck_forward.7} parent=0 // pred_check
    _
  $region15: #{bottleneck_forward.7} parent=0 // pred_check_branch
    %19 = sbr.rel (0) target = $region17
  $region16: #{bottleneck_forward.7} parent=0 // pred_region
    _
  $region17: #{bottleneck_forward.7} parent=0 // pred_fallthru
    _
  %v21 = vld [vmem:[%s0] sm:$0xf]
  %v22 = vld [vmem:[%s0 + $0x4] sm:$0xf]
  %v23 = vld [vmem:[%s0 + $0x8] sm:$0xf]
  %v24 = vld [vmem:[%s0 + $0xc] sm:$0xf]
  %v25 = vld [vmem:[%s0 + $0x10] sm:$0xf]
  %v26 = vld [vmem:[%s0 + $0x14] sm:$0xf]
  %v27 = vld [vmem:[%s0 + $0x18] sm:$0xf]
  %v28 = vld [vmem:[%s0 + $0x1c] sm:$0xf]
  %v29 = vld [vmem:[%s0 + $0x20] sm:$0xf]
  %v30 = vld [vmem:[%s0 + $0x24] sm:$0xf]
  %v31 = vld [vmem:[%s0 + $0x28] sm:$0xf]
  %v32 = vld [vmem:[%s0 + $0x2c] sm:$0xf]
  %v33 = vld [vmem:[%s0 + $0x30] sm:$0xf]
  %v34 = vld [vmem:[%s0 + $0x34] sm:$0xf]
  %v35 = vld [vmem:[%s0 + $0x38] sm:$0xf]
  %v36 = vld [vmem:[%s0 + $0x3c] sm:$0xf]
  %v37 = vld [vmem:[%s0 + $0x40] sm:$0xf]
  %v38 = vld [vmem:[%s0 + $0x44] sm:$0xf]
  %v39 = vld [vmem:[%s0 + $0x48] sm:$0xf]
  %v40 = vld [vmem:[%s0 + $0x4c] sm:$0xf]
  %v41 = vld [vmem:[%s0 + $0x50] sm:$0xf]
  %v42 = vld [vmem:[%s0 + $0x54] sm:$0xf]
  %v43 = vld [vmem:[%s0 + $0x58] sm:$0xf]
  %v44 = vld [vmem:[%s0 + $0x5c] sm:$0xf]
  %v45 = vld [vmem:[%s0 + $0x60] sm:$0xf]
  %v46 = vld [vmem:[%s0 + $0x64] sm:$0xf]
  %v47 = vld [vmem:[%s0 + $0x68] sm:$0xf]
  %v48 = vld [vmem:[%s0 + $0x6c] sm:$0xf]
  %v49 = vld [vmem:[%s0 + $0x70] sm:$0xf]
  %v50 = vld [vmem:[%s0 + $0x74] sm:$0xf]
  %v51 = vld [vmem:[%s0 + $0x78] sm:$0xf]
  %v52 = vld [vmem:[%s0 + $0x7c] sm:$0xf]
  %v53 = vld [vmem:[%s0 + $0x80] sm:$0xf]
  %v54 = vld [vmem:[%s0 + $0x84] sm:$0xf]
  %v55 = vld [vmem:[%s0 + $0x88] sm:$0xf]
  %v56 = vld [vmem:[%s0 + $0x8c] sm:$0xf]
  %v57 = vld [vmem:[%s0 + $0x90] sm:$0xf]
  %v58 = vld [vmem:[%s0 + $0x94] sm:$0xf]
  %v59 = vld [vmem:[%s0 + $0x98] sm:$0xf]
  %v60 = vld [vmem:[%s0 + $0x9c] sm:$0xf]
  %v61 = vld [vmem:[%s0 + $0xa0] sm:$0xf]
  %v62 = vld [vmem:[%s0 + $0xa4] sm:$0xf]
  %v63 = vld [vmem:[%s0 + $0xa8] sm:$0xf]
  %v64 = vld [vmem:[%s0 + $0xac] sm:$0xf]
  %v65 = vld [vmem:[%s0 + $0xb0] sm:$0xf]
  %v66 = vld [vmem:[%s0 + $0xb4] sm:$0xf]
  %v67 = vld [vmem:[%s0 + $0xb8] sm:$0xf]
  %v68 = vld [vmem:[%s0 + $0xbc] sm:$0xf]
  %v69 = vld [vmem:[%s0 + $0xc0] sm:$0xf]
  %v70 = vld [vmem:[%s0 + $0xc4] sm:$0xf]
  %v71 = vld [vmem:[%s0 + $0xc8] sm:$0xf]
  %v72 = vld [vmem:[%s0 + $0xcc] sm:$0xf]
  %v73 = vld [vmem:[%s0 + $0xd0] sm:$0xf]
  %v74 = vld [vmem:[%s0 + $0xd4] sm:$0xf]
  %v75 = vld [vmem:[%s0 + $0xd8] sm:$0xf]
  %v76 = vld [vmem:[%s0 + $0xdc] sm:$0xf]
  %v77 = vld [vmem:[%s0 + $0xe0] sm:$0xf]
  %v78 = vld [vmem:[%s0 + $0xe4] sm:$0xf]
  %v79 = vld [vmem:[%s0 + $0xe8] sm:$0xf]
  %v80 = vld [vmem:[%s0 + $0xec] sm:$0xf]
  %v81 = vld [vmem:[%s0 + $0xf0] sm:$0xf]
  %v82 = vld [vmem:[%s0 + $0xf4] sm:$0xf]
  %v83 = vld [vmem:[%s0 + $0xf8] sm:$0xf]
  %v84 = vld [vmem:[%s0 + $0xfc] sm:$0xf]
  %v85 = vunpack.c.l.bf16 %v21
  %v86 = vunpack.c.l.bf16 %v22
  %v87 = vunpack.c.l.bf16 %v23
  %v88 = vunpack.c.l.bf16 %v24
  %v89 = vunpack.c.l.bf16 %v25
  %v90 = vunpack.c.l.bf16 %v26
  %v91 = vunpack.c.l.bf16 %v27
  %v92 = vunpack.c.l.bf16 %v28
  %v93 = vunpack.c.l.bf16 %v29
  %v94 = vunpack.c.l.bf16 %v30
  %v95 = vunpack.c.l.bf16 %v31
  %v96 = vunpack.c.l.bf16 %v32
  %v97 = vunpack.c.l.bf16 %v33
  %v98 = vunpack.c.l.bf16 %v34
  %v99 = vunpack.c.l.bf16 %v35
  %v100 = vunpack.c.l.bf16 %v36
  %v101 = vunpack.c.l.bf16 %v37
  %v102 = vunpack.c.l.bf16 %v38
  %v103 = vunpack.c.l.bf16 %v39
  %v104 = vunpack.c.l.bf16 %v40
  %v105 = vunpack.c.l.bf16 %v41
  %v106 = vunpack.c.l.bf16 %v42
  %v107 = vunpack.c.l.bf16 %v43
  %v108 = vunpack.c.l.bf16 %v44
  %v109 = vunpack.c.l.bf16 %v45
  %v110 = vunpack.c.l.bf16 %v46
  %v111 = vunpack.c.l.bf16 %v47
  %v112 = vunpack.c.l.bf16 %v48
  %v113 = vunpack.c.l.bf16 %v49
  %v114 = vunpack.c.l.bf16 %v50
  %v115 = vunpack.c.l.bf16 %v51
  %v116 = vunpack.c.l.bf16 %v52
  %v117 = vunpack.c.l.bf16 %v53
  %v118 = vunpack.c.l.bf16 %v54
  %v119 = vunpack.c.l.bf16 %v55
  %v120 = vunpack.c.l.bf16 %v56
  %v121 = vunpack.c.l.bf16 %v57
  %v122 = vunpack.c.l.bf16 %v58
  %v123 = vunpack.c.l.bf16 %v59
  %v124 = vunpack.c.l.bf16 %v60
  %v125 = vunpack.c.l.bf16 %v61
  %v126 = vunpack.c.l.bf16 %v62
  %v127 = vunpack.c.l.bf16 %v63
  %v128 = vunpack.c.l.bf16 %v64
  %v129 = vunpack.c.l.bf16 %v65
  %v130 = vunpack.c.l.bf16 %v66
  %v131 = vunpack.c.l.bf16 %v67
  %v132 = vunpack.c.l.bf16 %v68
  %v133 = vunpack.c.l.bf16 %v69
  %v134 = vunpack.c.l.bf16 %v70
  %v135 = vunpack.c.l.bf16 %v71
  %v136 = vunpack.c.l.bf16 %v72
  %v137 = vunpack.c.l.bf16 %v73
  %v138 = vunpack.c.l.bf16 %v74
  %v139 = vunpack.c.l.bf16 %v75
  %v140 = vunpack.c.l.bf16 %v76
  %v141 = vunpack.c.l.bf16 %v77
  %v142 = vunpack.c.l.bf16 %v78
  %v143 = vunpack.c.l.bf16 %v79
  %v144 = vunpack.c.l.bf16 %v80
  %v145 = vunpack.c.l.bf16 %v81
  %v146 = vunpack.c.l.bf16 %v82
  %v147 = vunpack.c.l.bf16 %v83
  %v148 = vunpack.c.l.bf16 %v84
  %v149 = vld [vmem:[%s2] sm:$0x1]
  %v151 = vlaneseq
  %v152 = vshrl.u32 %v151, 7
  %v153 = vsub.s32 0, %v152
  %v154 = vrot.slane %v149, %v153
  %v156 = vmul.f32 %v85, %v154
  %v157 = vmul.f32 %v86, %v154
  %v158 = vmul.f32 %v87, %v154
  %v159 = vmul.f32 %v88, %v154
  %v160 = vmul.f32 %v89, %v154
  %v161 = vmul.f32 %v90, %v154
  %v162 = vmul.f32 %v91, %v154
  %v163 = vmul.f32 %v92, %v154
  %v164 = vmul.f32 %v93, %v154
  %v165 = vmul.f32 %v94, %v154
  %v166 = vmul.f32 %v95, %v154
  %v167 = vmul.f32 %v96, %v154
  %v168 = vmul.f32 %v97, %v154
  %v169 = vmul.f32 %v98, %v154
  %v170 = vmul.f32 %v99, %v154
  %v171 = vmul.f32 %v100, %v154
  %v172 = vmul.f32 %v101, %v154
  %v173 = vmul.f32 %v102, %v154
  %v174 = vmul.f32 %v103, %v154
  %v175 = vmul.f32 %v104, %v154
  %v176 = vmul.f32 %v105, %v154
  %v177 = vmul.f32 %v106, %v154
  %v178 = vmul.f32 %v107, %v154
  %v179 = vmul.f32 %v108, %v154
  %v180 = vmul.f32 %v109, %v154
  %v181 = vmul.f32 %v110, %v154
  %v182 = vmul.f32 %v111, %v154
  %v183 = vmul.f32 %v112, %v154
  %v184 = vmul.f32 %v113, %v154
  %v185 = vmul.f32 %v114, %v154
  %v186 = vmul.f32 %v115, %v154
  %v187 = vmul.f32 %v116, %v154
  %v188 = vmul.f32 %v117, %v154
  %v189 = vmul.f32 %v118, %v154
  %v190 = vmul.f32 %v119, %v154
  %v191 = vmul.f32 %v120, %v154
  %v192 = vmul.f32 %v121, %v154
  %v193 = vmul.f32 %v122, %v154
  %v194 = vmul.f32 %v123, %v154
  %v195 = vmul.f32 %v124, %v154
  %v196 = vmul.f32 %v125, %v154
  %v197 = vmul.f32 %v126, %v154
  %v198 = vmul.f32 %v127, %v154
  %v199 = vmul.f32 %v128, %v154
  %v200 = vmul.f32 %v129, %v154
  %v201 = vmul.f32 %v130, %v154
  %v202 = vmul.f32 %v131, %v154
  %v203 = vmul.f32 %v132, %v154
  %v204 = vmul.f32 %v133, %v154
  %v205 = vmul.f32 %v134, %v154
  %v206 = vmul.f32 %v135, %v154
  %v207 = vmul.f32 %v136, %v154
  %v208 = vmul.f32 %v137, %v154
  %v209 = vmul.f32 %v138, %v154
  %v210 = vmul.f32 %v139, %v154
  %v211 = vmul.f32 %v140, %v154
  %v212 = vmul.f32 %v141, %v154
  %v213 = vmul.f32 %v142, %v154
  %v214 = vmul.f32 %v143, %v154
  %v215 = vmul.f32 %v144, %v154
  %v216 = vmul.f32 %v145, %v154
  %v217 = vmul.f32 %v146, %v154
  %v218 = vmul.f32 %v147, %v154
  %v219 = vmul.f32 %v148, %v154
  %v220 = vld [vmem:[%s3] sm:$0x1]
  %v222 = vlaneseq
  %v223 = vshrl.u32 %v222, 7
  %v224 = vsub.s32 0, %v223
  %v225 = vrot.slane %v220, %v224
  %v227 = vadd.f32 %v156, %v225
  %v228 = vadd.f32 %v157, %v225
  %v229 = vadd.f32 %v158, %v225
  %v230 = vadd.f32 %v159, %v225
  %v231 = vadd.f32 %v160, %v225
  %v232 = vadd.f32 %v161, %v225
  %v233 = vadd.f32 %v162, %v225
  %v234 = vadd.f32 %v163, %v225
  %v235 = vadd.f32 %v164, %v225
  %v236 = vadd.f32 %v165, %v225
  %v237 = vadd.f32 %v166, %v225
  %v238 = vadd.f32 %v167, %v225
  %v239 = vadd.f32 %v168, %v225
  %v240 = vadd.f32 %v169, %v225
  %v241 = vadd.f32 %v170, %v225
  %v242 = vadd.f32 %v171, %v225
  %v243 = vadd.f32 %v172, %v225
  %v244 = vadd.f32 %v173, %v225
  %v245 = vadd.f32 %v174, %v225
  %v246 = vadd.f32 %v175, %v225
  %v247 = vadd.f32 %v176, %v225
  %v248 = vadd.f32 %v177, %v225
  %v249 = vadd.f32 %v178, %v225
  %v250 = vadd.f32 %v179, %v225
  %v251 = vadd.f32 %v180, %v225
  %v252 = vadd.f32 %v181, %v225
  %v253 = vadd.f32 %v182, %v225
  %v254 = vadd.f32 %v183, %v225
  %v255 = vadd.f32 %v184, %v225
  %v256 = vadd.f32 %v185, %v225
  %v257 = vadd.f32 %v186, %v225
  %v258 = vadd.f32 %v187, %v225
  %v259 = vadd.f32 %v188, %v225
  %v260 = vadd.f32 %v189, %v225
  %v261 = vadd.f32 %v190, %v225
  %v262 = vadd.f32 %v191, %v225
  %v263 = vadd.f32 %v192, %v225
  %v264 = vadd.f32 %v193, %v225
  %v265 = vadd.f32 %v194, %v225
  %v266 = vadd.f32 %v195, %v225
  %v267 = vadd.f32 %v196, %v225
  %v268 = vadd.f32 %v197, %v225
  %v269 = vadd.f32 %v198, %v225
  %v270 = vadd.f32 %v199, %v225
  %v271 = vadd.f32 %v200, %v225
  %v272 = vadd.f32 %v201, %v225
  %v273 = vadd.f32 %v202, %v225
  %v274 = vadd.f32 %v203, %v225
  %v275 = vadd.f32 %v204, %v225
  %v276 = vadd.f32 %v205, %v225
  %v277 = vadd.f32 %v206, %v225
  %v278 = vadd.f32 %v207, %v225
  %v279 = vadd.f32 %v208, %v225
  %v280 = vadd.f32 %v209, %v225
  %v281 = vadd.f32 %v210, %v225
  %v282 = vadd.f32 %v211, %v225
  %v283 = vadd.f32 %v212, %v225
  %v284 = vadd.f32 %v213, %v225
  %v285 = vadd.f32 %v214, %v225
  %v286 = vadd.f32 %v215, %v225
  %v287 = vadd.f32 %v216, %v225
  %v288 = vadd.f32 %v217, %v225
  %v289 = vadd.f32 %v218, %v225
  %v290 = vadd.f32 %v219, %v225
  %v291 = vmax.f32 %v227, 0.0
  %v292 = vmax.f32 %v228, 0.0
  %v293 = vmax.f32 %v229, 0.0
  %v294 = vmax.f32 %v230, 0.0
  %v295 = vmax.f32 %v231, 0.0
  %v296 = vmax.f32 %v232, 0.0
  %v297 = vmax.f32 %v233, 0.0
  %v298 = vmax.f32 %v234, 0.0
  %v299 = vmax.f32 %v235, 0.0
  %v300 = vmax.f32 %v236, 0.0
  %v301 = vmax.f32 %v237, 0.0
  %v302 = vmax.f32 %v238, 0.0
  %v303 = vmax.f32 %v239, 0.0
  %v304 = vmax.f32 %v240, 0.0
  %v305 = vmax.f32 %v241, 0.0
  %v306 = vmax.f32 %v242, 0.0
  %v307 = vmax.f32 %v243, 0.0
  %v308 = vmax.f32 %v244, 0.0
  %v309 = vmax.f32 %v245, 0.0
  %v310 = vmax.f32 %v246, 0.0
  %v311 = vmax.f32 %v247, 0.0
  %v312 = vmax.f32 %v248, 0.0
  %v313 = vmax.f32 %v249, 0.0
  %v314 = vmax.f32 %v250, 0.0
  %v315 = vmax.f32 %v251, 0.0
  %v316 = vmax.f32 %v252, 0.0
  %v317 = vmax.f32 %v253, 0.0
  %v318 = vmax.f32 %v254, 0.0
  %v319 = vmax.f32 %v255, 0.0
  %v320 = vmax.f32 %v256, 0.0
  %v321 = vmax.f32 %v257, 0.0
  %v322 = vmax.f32 %v258, 0.0
  %v323 = vmax.f32 %v259, 0.0
  %v324 = vmax.f32 %v260, 0.0
  %v325 = vmax.f32 %v261, 0.0
  %v326 = vmax.f32 %v262, 0.0
  %v327 = vmax.f32 %v263, 0.0
  %v328 = vmax.f32 %v264, 0.0
  %v329 = vmax.f32 %v265, 0.0
  %v330 = vmax.f32 %v266, 0.0
  %v331 = vmax.f32 %v267, 0.0
  %v332 = vmax.f32 %v268, 0.0
  %v333 = vmax.f32 %v269, 0.0
  %v334 = vmax.f32 %v270, 0.0
  %v335 = vmax.f32 %v271, 0.0
  %v336 = vmax.f32 %v272, 0.0
  %v337 = vmax.f32 %v273, 0.0
  %v338 = vmax.f32 %v274, 0.0
  %v339 = vmax.f32 %v275, 0.0
  %v340 = vmax.f32 %v276, 0.0
  %v341 = vmax.f32 %v277, 0.0
  %v342 = vmax.f32 %v278, 0.0
  %v343 = vmax.f32 %v279, 0.0
  %v344 = vmax.f32 %v280, 0.0
  %v345 = vmax.f32 %v281, 0.0
  %v346 = vmax.f32 %v282, 0.0
  %v347 = vmax.f32 %v283, 0.0
  %v348 = vmax.f32 %v284, 0.0
  %v349 = vmax.f32 %v285, 0.0
  %v350 = vmax.f32 %v286, 0.0
  %v351 = vmax.f32 %v287, 0.0
  %v352 = vmax.f32 %v288, 0.0
  %v353 = vmax.f32 %v289, 0.0
  %v354 = vmax.f32 %v290, 0.0
  %s355 = smul.u32 0, 512
  %v356 = vlaneseq
  %v357 = vshrl.u32 %v356, 7
  %v358 = vadd.s32 %v357, 8
  %v359 = vadd.s32 %v357, 16
  %v360 = vadd.s32 %v357, 24
  %v361 = vadd.s32 %v357, 32
  %v362 = vadd.s32 %v357, 40
  %v363 = vadd.s32 %v357, 48
  %v364 = vadd.s32 %v357, 56
  %v365 = vadd.s32 %v357, 64
  %v366 = vadd.s32 %v357, 72
  %v367 = vadd.s32 %v357, 80
  %v368 = vadd.s32 %v357, 88
  %v369 = vadd.s32 %v357, 96
  %v370 = vadd.s32 %v357, 104
  %v371 = vadd.s32 %v357, 112
  %v372 = vadd.s32 %v357, 120
  %v373 = vadd.s32 %v357, 128
  %v374 = vadd.s32 %v357, 136
  %v375 = vadd.s32 %v357, 144
  %v376 = vadd.s32 %v357, 152
  %v377 = vadd.s32 %v357, 160
  %v378 = vadd.s32 %v357, 168
  %v379 = vadd.s32 %v357, 176
  %v380 = vadd.s32 %v357, 184
  %v381 = vadd.s32 %v357, 192
  %v382 = vadd.s32 %v357, 200
  %v383 = vadd.s32 %v357, 208
  %v384 = vadd.s32 %v357, 216
  %v385 = vadd.s32 %v357, 224
  %v386 = vadd.s32 %v357, 232
  %v387 = vadd.s32 %v357, 240
  %v388 = vadd.s32 %v357, 248
  %v389 = vadd.s32 %v357, 256
  %v390 = vadd.s32 %v357, 264
  %v391 = vadd.s32 %v357, 272
  %v392 = vadd.s32 %v357, 280
  %v393 = vadd.s32 %v357, 288
  %v394 = vadd.s32 %v357, 296
  %v395 = vadd.s32 %v357, 304
  %v396 = vadd.s32 %v357, 312
  %v397 = vadd.s32 %v357, 320
  %v398 = vadd.s32 %v357, 328
  %v399 = vadd.s32 %v357, 336
  %v400 = vadd.s32 %v357, 344
  %v401 = vadd.s32 %v357, 352
  %v402 = vadd.s32 %v357, 360
  %v403 = vadd.s32 %v357, 368
  %v404 = vadd.s32 %v357, 376
  %v405 = vadd.s32 %v357, 384
  %v406 = vadd.s32 %v357, 392
  %v407 = vadd.s32 %v357, 400
  %v408 = vadd.s32 %v357, 408
  %v409 = vadd.s32 %v357, 416
  %v410 = vadd.s32 %v357, 424
  %v411 = vadd.s32 %v357, 432
  %v412 = vadd.s32 %v357, 440
  %v413 = vadd.s32 %v357, 448
  %v414 = vadd.s32 %v357, 456
  %v415 = vadd.s32 %v357, 464
  %v416 = vadd.s32 %v357, 472
  %v417 = vadd.s32 %v357, 480
  %v418 = vadd.s32 %v357, 488
  %v419 = vadd.s32 %v357, 496
  %v420 = vadd.s32 %v357, 504
  %v421 = vstv %s355
  %v422 = vadd.s32 %v421, %v357
  %v423 = vadd.s32 %v421, %v358
  %v424 = vadd.s32 %v421, %v359
  %v425 = vadd.s32 %v421, %v360
  %v426 = vadd.s32 %v421, %v361
  %v427 = vadd.s32 %v421, %v362
  %v428 = vadd.s32 %v421, %v363
  %v429 = vadd.s32 %v421, %v364
  %v430 = vadd.s32 %v421, %v365
  %v431 = vadd.s32 %v421, %v366
  %v432 = vadd.s32 %v421, %v367
  %v433 = vadd.s32 %v421, %v368
  %v434 = vadd.s32 %v421, %v369
  %v435 = vadd.s32 %v421, %v370
  %v436 = vadd.s32 %v421, %v371
  %v437 = vadd.s32 %v421, %v372
  %v438 = vadd.s32 %v421, %v373
  %v439 = vadd.s32 %v421, %v374
  %v440 = vadd.s32 %v421, %v375
  %v441 = vadd.s32 %v421, %v376
  %v442 = vadd.s32 %v421, %v377
  %v443 = vadd.s32 %v421, %v378
  %v444 = vadd.s32 %v421, %v379
  %v445 = vadd.s32 %v421, %v380
  %v446 = vadd.s32 %v421, %v381
  %v447 = vadd.s32 %v421, %v382
  %v448 = vadd.s32 %v421, %v383
  %v449 = vadd.s32 %v421, %v384
  %v450 = vadd.s32 %v421, %v385
  %v451 = vadd.s32 %v421, %v386
  %v452 = vadd.s32 %v421, %v387
  %v453 = vadd.s32 %v421, %v388
  %v454 = vadd.s32 %v421, %v389
  %v455 = vadd.s32 %v421, %v390
  %v456 = vadd.s32 %v421, %v391
  %v457 = vadd.s32 %v421, %v392
  %v458 = vadd.s32 %v421, %v393
  %v459 = vadd.s32 %v421, %v394
  %v460 = vadd.s32 %v421, %v395
  %v461 = vadd.s32 %v421, %v396
  %v462 = vadd.s32 %v421, %v397
  %v463 = vadd.s32 %v421, %v398
  %v464 = vadd.s32 %v421, %v399
  %v465 = vadd.s32 %v421, %v400
  %v466 = vadd.s32 %v421, %v401
  %v467 = vadd.s32 %v421, %v402
  %v468 = vadd.s32 %v421, %v403
  %v469 = vadd.s32 %v421, %v404
  %v470 = vadd.s32 %v421, %v405
  %v471 = vadd.s32 %v421, %v406
  %v472 = vadd.s32 %v421, %v407
  %v473 = vadd.s32 %v421, %v408
  %v474 = vadd.s32 %v421, %v409
  %v475 = vadd.s32 %v421, %v410
  %v476 = vadd.s32 %v421, %v411
  %v477 = vadd.s32 %v421, %v412
  %v478 = vadd.s32 %v421, %v413
  %v479 = vadd.s32 %v421, %v414
  %v480 = vadd.s32 %v421, %v415
  %v481 = vadd.s32 %v421, %v416
  %v482 = vadd.s32 %v421, %v417
  %v483 = vadd.s32 %v421, %v418
  %v484 = vadd.s32 %v421, %v419
  %v485 = vadd.s32 %v421, %v420
  %vm486 = vcmp.lt.s32.totalorder %v422, 512
  %vm487 = vcmp.lt.s32.totalorder %v423, 512
  %vm488 = vcmp.lt.s32.totalorder %v424, 512
  %vm489 = vcmp.lt.s32.totalorder %v425, 512
  %vm490 = vcmp.lt.s32.totalorder %v426, 512
  %vm491 = vcmp.lt.s32.totalorder %v427, 512
  %vm492 = vcmp.lt.s32.totalorder %v428, 512
  %vm493 = vcmp.lt.s32.totalorder %v429, 512
  %vm494 = vcmp.lt.s32.totalorder %v430, 512
  %vm495 = vcmp.lt.s32.totalorder %v431, 512
  %vm496 = vcmp.lt.s32.totalorder %v432, 512
  %vm497 = vcmp.lt.s32.totalorder %v433, 512
  %vm498 = vcmp.lt.s32.totalorder %v434, 512
  %vm499 = vcmp.lt.s32.totalorder %v435, 512
  %vm500 = vcmp.lt.s32.totalorder %v436, 512
  %vm501 = vcmp.lt.s32.totalorder %v437, 512
  %vm502 = vcmp.lt.s32.totalorder %v438, 512
  %vm503 = vcmp.lt.s32.totalorder %v439, 512
  %vm504 = vcmp.lt.s32.totalorder %v440, 512
  %vm505 = vcmp.lt.s32.totalorder %v441, 512
  %vm506 = vcmp.lt.s32.totalorder %v442, 512
  %vm507 = vcmp.lt.s32.totalorder %v443, 512
  %vm508 = vcmp.lt.s32.totalorder %v444, 512
  %vm509 = vcmp.lt.s32.totalorder %v445, 512
  %vm510 = vcmp.lt.s32.totalorder %v446, 512
  %vm511 = vcmp.lt.s32.totalorder %v447, 512
  %vm512 = vcmp.lt.s32.totalorder %v448, 512
  %vm513 = vcmp.lt.s32.totalorder %v449, 512
  %vm514 = vcmp.lt.s32.totalorder %v450, 512
  %vm515 = vcmp.lt.s32.totalorder %v451, 512
  %vm516 = vcmp.lt.s32.totalorder %v452, 512
  %vm517 = vcmp.lt.s32.totalorder %v453, 512
  %vm518 = vcmp.lt.s32.totalorder %v454, 512
  %vm519 = vcmp.lt.s32.totalorder %v455, 512
  %vm520 = vcmp.lt.s32.totalorder %v456, 512
  %vm521 = vcmp.lt.s32.totalorder %v457, 512
  %vm522 = vcmp.lt.s32.totalorder %v458, 512
  %vm523 = vcmp.lt.s32.totalorder %v459, 512
  %vm524 = vcmp.lt.s32.totalorder %v460, 512
  %vm525 = vcmp.lt.s32.totalorder %v461, 512
  %vm526 = vcmp.lt.s32.totalorder %v462, 512
  %vm527 = vcmp.lt.s32.totalorder %v463, 512
  %vm528 = vcmp.lt.s32.totalorder %v464, 512
  %vm529 = vcmp.lt.s32.totalorder %v465, 512
  %vm530 = vcmp.lt.s32.totalorder %v466, 512
  %vm531 = vcmp.lt.s32.totalorder %v467, 512
  %vm532 = vcmp.lt.s32.totalorder %v468, 512
  %vm533 = vcmp.lt.s32.totalorder %v469, 512
  %vm534 = vcmp.lt.s32.totalorder %v470, 512
  %vm535 = vcmp.lt.s32.totalorder %v471, 512
  %vm536 = vcmp.lt.s32.totalorder %v472, 512
  %vm537 = vcmp.lt.s32.totalorder %v473, 512
  %vm538 = vcmp.lt.s32.totalorder %v474, 512
  %vm539 = vcmp.lt.s32.totalorder %v475, 512
  %vm540 = vcmp.lt.s32.totalorder %v476, 512
  %vm541 = vcmp.lt.s32.totalorder %v477, 512
  %vm542 = vcmp.lt.s32.totalorder %v478, 512
  %vm543 = vcmp.lt.s32.totalorder %v479, 512
  %vm544 = vcmp.lt.s32.totalorder %v480, 512
  %vm545 = vcmp.lt.s32.totalorder %v481, 512
  %vm546 = vcmp.lt.s32.totalorder %v482, 512
  %vm547 = vcmp.lt.s32.totalorder %v483, 512
  %vm548 = vcmp.lt.s32.totalorder %v484, 512
  %vm549 = vcmp.lt.s32.totalorder %v485, 512
  %v550 = vsel %vm486, 1, 0
  %v551 = vsel %vm487, 1, 0
  %v552 = vsel %vm488, 1, 0
  %v553 = vsel %vm489, 1, 0
  %v554 = vsel %vm490, 1, 0
  %v555 = vsel %vm491, 1, 0
  %v556 = vsel %vm492, 1, 0
  %v557 = vsel %vm493, 1, 0
  %v558 = vsel %vm494, 1, 0
  %v559 = vsel %vm495, 1, 0
  %v560 = vsel %vm496, 1, 0
  %v561 = vsel %vm497, 1, 0
  %v562 = vsel %vm498, 1, 0
  %v563 = vsel %vm499, 1, 0
  %v564 = vsel %vm500, 1, 0
  %v565 = vsel %vm501, 1, 0
  %v566 = vsel %vm502, 1, 0
  %v567 = vsel %vm503, 1, 0
  %v568 = vsel %vm504, 1, 0
  %v569 = vsel %vm505, 1, 0
  %v570 = vsel %vm506, 1, 0
  %v571 = vsel %vm507, 1, 0
  %v572 = vsel %vm508, 1, 0
  %v573 = vsel %vm509, 1, 0
  %v574 = vsel %vm510, 1, 0
  %v575 = vsel %vm511, 1, 0
  %v576 = vsel %vm512, 1, 0
  %v577 = vsel %vm513, 1, 0
  %v578 = vsel %vm514, 1, 0
  %v579 = vsel %vm515, 1, 0
  %v580 = vsel %vm516, 1, 0
  %v581 = vsel %vm517, 1, 0
  %v582 = vsel %vm518, 1, 0
  %v583 = vsel %vm519, 1, 0
  %v584 = vsel %vm520, 1, 0
  %v585 = vsel %vm521, 1, 0
  %v586 = vsel %vm522, 1, 0
  %v587 = vsel %vm523, 1, 0
  %v588 = vsel %vm524, 1, 0
  %v589 = vsel %vm525, 1, 0
  %v590 = vsel %vm526, 1, 0
  %v591 = vsel %vm527, 1, 0
  %v592 = vsel %vm528, 1, 0
  %v593 = vsel %vm529, 1, 0
  %v594 = vsel %vm530, 1, 0
  %v595 = vsel %vm531, 1, 0
  %v596 = vsel %vm532, 1, 0
  %v597 = vsel %vm533, 1, 0
  %v598 = vsel %vm534, 1, 0
  %v599 = vsel %vm535, 1, 0
  %v600 = vsel %vm536, 1, 0
  %v601 = vsel %vm537, 1, 0
  %v602 = vsel %vm538, 1, 0
  %v603 = vsel %vm539, 1, 0
  %v604 = vsel %vm540, 1, 0
  %v605 = vsel %vm541, 1, 0
  %v606 = vsel %vm542, 1, 0
  %v607 = vsel %vm543, 1, 0
  %v608 = vsel %vm544, 1, 0
  %v609 = vsel %vm545, 1, 0
  %v610 = vsel %vm546, 1, 0
  %v611 = vsel %vm547, 1, 0
  %v612 = vsel %vm548, 1, 0
  %v613 = vsel %vm549, 1, 0
  %vm614 = vcmp.eq.s32.totalorder %v550, 1
  %vm615 = vcmp.eq.s32.totalorder %v551, 1
  %vm616 = vcmp.eq.s32.totalorder %v552, 1
  %vm617 = vcmp.eq.s32.totalorder %v553, 1
  %vm618 = vcmp.eq.s32.totalorder %v554, 1
  %vm619 = vcmp.eq.s32.totalorder %v555, 1
  %vm620 = vcmp.eq.s32.totalorder %v556, 1
  %vm621 = vcmp.eq.s32.totalorder %v557, 1
  %vm622 = vcmp.eq.s32.totalorder %v558, 1
  %vm623 = vcmp.eq.s32.totalorder %v559, 1
  %vm624 = vcmp.eq.s32.totalorder %v560, 1
  %vm625 = vcmp.eq.s32.totalorder %v561, 1
  %vm626 = vcmp.eq.s32.totalorder %v562, 1
  %vm627 = vcmp.eq.s32.totalorder %v563, 1
  %vm628 = vcmp.eq.s32.totalorder %v564, 1
  %vm629 = vcmp.eq.s32.totalorder %v565, 1
  %vm630 = vcmp.eq.s32.totalorder %v566, 1
  %vm631 = vcmp.eq.s32.totalorder %v567, 1
  %vm632 = vcmp.eq.s32.totalorder %v568, 1
  %vm633 = vcmp.eq.s32.totalorder %v569, 1
  %vm634 = vcmp.eq.s32.totalorder %v570, 1
  %vm635 = vcmp.eq.s32.totalorder %v571, 1
  %vm636 = vcmp.eq.s32.totalorder %v572, 1
  %vm637 = vcmp.eq.s32.totalorder %v573, 1
  %vm638 = vcmp.eq.s32.totalorder %v574, 1
  %vm639 = vcmp.eq.s32.totalorder %v575, 1
  %vm640 = vcmp.eq.s32.totalorder %v576, 1
  %vm641 = vcmp.eq.s32.totalorder %v577, 1
  %vm642 = vcmp.eq.s32.totalorder %v578, 1
  %vm643 = vcmp.eq.s32.totalorder %v579, 1
  %vm644 = vcmp.eq.s32.totalorder %v580, 1
  %vm645 = vcmp.eq.s32.totalorder %v581, 1
  %vm646 = vcmp.eq.s32.totalorder %v582, 1
  %vm647 = vcmp.eq.s32.totalorder %v583, 1
  %vm648 = vcmp.eq.s32.totalorder %v584, 1
  %vm649 = vcmp.eq.s32.totalorder %v585, 1
  %vm650 = vcmp.eq.s32.totalorder %v586, 1
  %vm651 = vcmp.eq.s32.totalorder %v587, 1
  %vm652 = vcmp.eq.s32.totalorder %v588, 1
  %vm653 = vcmp.eq.s32.totalorder %v589, 1
  %vm654 = vcmp.eq.s32.totalorder %v590, 1
  %vm655 = vcmp.eq.s32.totalorder %v591, 1
  %vm656 = vcmp.eq.s32.totalorder %v592, 1
  %vm657 = vcmp.eq.s32.totalorder %v593, 1
  %vm658 = vcmp.eq.s32.totalorder %v594, 1
  %vm659 = vcmp.eq.s32.totalorder %v595, 1
  %vm660 = vcmp.eq.s32.totalorder %v596, 1
  %vm661 = vcmp.eq.s32.totalorder %v597, 1
  %vm662 = vcmp.eq.s32.totalorder %v598, 1
  %vm663 = vcmp.eq.s32.totalorder %v599, 1
  %vm664 = vcmp.eq.s32.totalorder %v600, 1
  %vm665 = vcmp.eq.s32.totalorder %v601, 1
  %vm666 = vcmp.eq.s32.totalorder %v602, 1
  %vm667 = vcmp.eq.s32.totalorder %v603, 1
  %vm668 = vcmp.eq.s32.totalorder %v604, 1
  %vm669 = vcmp.eq.s32.totalorder %v605, 1
  %vm670 = vcmp.eq.s32.totalorder %v606, 1
  %vm671 = vcmp.eq.s32.totalorder %v607, 1
  %vm672 = vcmp.eq.s32.totalorder %v608, 1
  %vm673 = vcmp.eq.s32.totalorder %v609, 1
  %vm674 = vcmp.eq.s32.totalorder %v610, 1
  %vm675 = vcmp.eq.s32.totalorder %v611, 1
  %vm676 = vcmp.eq.s32.totalorder %v612, 1
  %vm677 = vcmp.eq.s32.totalorder %v613, 1
  %v678 = vsel %vm614, %v291, 0.0
  %v679 = vsel %vm615, %v292, 0.0
  %v680 = vsel %vm616, %v293, 0.0
  %v681 = vsel %vm617, %v294, 0.0
  %v682 = vsel %vm618, %v295, 0.0
  %v683 = vsel %vm619, %v296, 0.0
  %v684 = vsel %vm620, %v297, 0.0
  %v685 = vsel %vm621, %v298, 0.0
  %v686 = vsel %vm622, %v299, 0.0
  %v687 = vsel %vm623, %v300, 0.0
  %v688 = vsel %vm624, %v301, 0.0
  %v689 = vsel %vm625, %v302, 0.0
  %v690 = vsel %vm626, %v303, 0.0
  %v691 = vsel %vm627, %v304, 0.0
  %v692 = vsel %vm628, %v305, 0.0
  %v693 = vsel %vm629, %v306, 0.0
  %v694 = vsel %vm630, %v307, 0.0
  %v695 = vsel %vm631, %v308, 0.0
  %v696 = vsel %vm632, %v309, 0.0
  %v697 = vsel %vm633, %v310, 0.0
  %v698 = vsel %vm634, %v311, 0.0
  %v699 = vsel %vm635, %v312, 0.0
  %v700 = vsel %vm636, %v313, 0.0
  %v701 = vsel %vm637, %v314, 0.0
  %v702 = vsel %vm638, %v315, 0.0
  %v703 = vsel %vm639, %v316, 0.0
  %v704 = vsel %vm640, %v317, 0.0
  %v705 = vsel %vm641, %v318, 0.0
  %v706 = vsel %vm642, %v319, 0.0
  %v707 = vsel %vm643, %v320, 0.0
  %v708 = vsel %vm644, %v321, 0.0
  %v709 = vsel %vm645, %v322, 0.0
  %v710 = vsel %vm646, %v323, 0.0
  %v711 = vsel %vm647, %v324, 0.0
  %v712 = vsel %vm648, %v325, 0.0
  %v713 = vsel %vm649, %v326, 0.0
  %v714 = vsel %vm650, %v327, 0.0
  %v715 = vsel %vm651, %v328, 0.0
  %v716 = vsel %vm652, %v329, 0.0
  %v717 = vsel %vm653, %v330, 0.0
  %v718 = vsel %vm654, %v331, 0.0
  %v719 = vsel %vm655, %v332, 0.0
  %v720 = vsel %vm656, %v333, 0.0
  %v721 = vsel %vm657, %v334, 0.0
  %v722 = vsel %vm658, %v335, 0.0
  %v723 = vsel %vm659, %v336, 0.0
  %v724 = vsel %vm660, %v337, 0.0
  %v725 = vsel %vm661, %v338, 0.0
  %v726 = vsel %vm662, %v339, 0.0
  %v727 = vsel %vm663, %v340, 0.0
  %v728 = vsel %vm664, %v341, 0.0
  %v729 = vsel %vm665, %v342, 0.0
  %v730 = vsel %vm666, %v343, 0.0
  %v731 = vsel %vm667, %v344, 0.0
  %v732 = vsel %vm668, %v345, 0.0
  %v733 = vsel %vm669, %v346, 0.0
  %v734 = vsel %vm670, %v347, 0.0
  %v735 = vsel %vm671, %v348, 0.0
  %v736 = vsel %vm672, %v349, 0.0
  %v737 = vsel %vm673, %v350, 0.0
  %v738 = vsel %vm674, %v351, 0.0
  %v739 = vsel %vm675, %v352, 0.0
  %v740 = vsel %vm676, %v353, 0.0
  %v741 = vsel %vm677, %v354, 0.0
  %v742 = vpack.c.bf16 %v679, %v678
  %v743 = vpack.c.bf16 %v681, %v680
  %v744 = vpack.c.bf16 %v683, %v682
  %v745 = vpack.c.bf16 %v685, %v684
  %v746 = vpack.c.bf16 %v687, %v686
  %v747 = vpack.c.bf16 %v689, %v688
  %v748 = vpack.c.bf16 %v691, %v690
  %v749 = vpack.c.bf16 %v693, %v692
  %v750 = vpack.c.bf16 %v695, %v694
  %v751 = vpack.c.bf16 %v697, %v696
  %v752 = vpack.c.bf16 %v699, %v698
  %v753 = vpack.c.bf16 %v701, %v700
  %v754 = vpack.c.bf16 %v703, %v702
  %v755 = vpack.c.bf16 %v705, %v704
  %v756 = vpack.c.bf16 %v707, %v706
  %v757 = vpack.c.bf16 %v709, %v708
  %v758 = vpack.c.bf16 %v711, %v710
  %v759 = vpack.c.bf16 %v713, %v712
  %v760 = vpack.c.bf16 %v715, %v714
  %v761 = vpack.c.bf16 %v717, %v716
  %v762 = vpack.c.bf16 %v719, %v718
  %v763 = vpack.c.bf16 %v721, %v720
  %v764 = vpack.c.bf16 %v723, %v722
  %v765 = vpack.c.bf16 %v725, %v724
  %v766 = vpack.c.bf16 %v727, %v726
  %v767 = vpack.c.bf16 %v729, %v728
  %v768 = vpack.c.bf16 %v731, %v730
  %v769 = vpack.c.bf16 %v733, %v732
  %v770 = vpack.c.bf16 %v735, %v734
  %v771 = vpack.c.bf16 %v737, %v736
  %v772 = vpack.c.bf16 %v739, %v738
  %v773 = vpack.c.bf16 %v741, %v740
  %v774 = vld [vmem:[%s1] sm:$0xf]
  %v775 = vld [vmem:[%s1 + $0x4] sm:$0xf]
  %v776 = vld [vmem:[%s1 + $0x8] sm:$0xf]
  %v777 = vld [vmem:[%s1 + $0xc] sm:$0xf]
  %v778 = vld [vmem:[%s1 + $0x10] sm:$0xf]
  %v779 = vld [vmem:[%s1 + $0x14] sm:$0xf]
  %v780 = vld [vmem:[%s1 + $0x18] sm:$0xf]
  %v781 = vld [vmem:[%s1 + $0x1c] sm:$0xf]
  %v782 = vld [vmem:[%s1 + $0x20] sm:$0xf]
  %v783 = vld [vmem:[%s1 + $0x24] sm:$0xf]
  %v784 = vld [vmem:[%s1 + $0x28] sm:$0xf]
  %v785 = vld [vmem:[%s1 + $0x2c] sm:$0xf]
  %v786 = vld [vmem:[%s1 + $0x30] sm:$0xf]
  %v787 = vld [vmem:[%s1 + $0x34] sm:$0xf]
  %v788 = vld [vmem:[%s1 + $0x38] sm:$0xf]
  %v789 = vld [vmem:[%s1 + $0x3c] sm:$0xf]
  %v806 = vunpack.c.l.b16 %v774
  %v807 = vunpack.c.l.b16 %v775
  %v808 = vunpack.c.l.b16 %v776
  %v809 = vunpack.c.l.b16 %v777
  %v810 = vunpack.c.l.b16 %v778
  %v811 = vunpack.c.l.b16 %v779
  %v812 = vunpack.c.l.b16 %v780
  %v813 = vunpack.c.l.b16 %v781
  %v814 = vunpack.c.l.b16 %v782
  %v815 = vunpack.c.l.b16 %v783
  %v816 = vunpack.c.l.b16 %v784
  %v817 = vunpack.c.l.b16 %v785
  %v818 = vunpack.c.l.b16 %v786
  %v819 = vunpack.c.l.b16 %v787
  %v820 = vunpack.c.l.b16 %v788
  %v821 = vunpack.c.l.b16 %v789
  %v822 = vpack.c.b16 %v807, %v806
  %v823 = vpack.c.b16 %v809, %v808
  %v824 = vpack.c.b16 %v811, %v810
  %v825 = vpack.c.b16 %v813, %v812
  %v826 = vpack.c.b16 %v815, %v814
  %v827 = vpack.c.b16 %v817, %v816
  %v828 = vpack.c.b16 %v819, %v818
  %v829 = vpack.c.b16 %v821, %v820
  %838 = vmatprep.subr.bf16.mxu0 0
  %839 = vmatpush1.bf16.msra.mxu0 %v822
  %840 = vmatprep.subr.bf16.mxu0 0
  %841 = vmatpush1.bf16.msra.mxu0 %v823
  %842 = vmatprep.subr.bf16.mxu0 0
  %843 = vmatpush1.bf16.msra.mxu0 %v824
  %844 = vmatprep.subr.bf16.mxu0 0
  %845 = vmatpush1.bf16.msra.mxu0 %v825
  %846 = vmatprep.subr.bf16.mxu0 0
  %847 = vmatpush1.bf16.msra.mxu0 %v826
  %848 = vmatprep.subr.bf16.mxu0 0
  %849 = vmatpush1.bf16.msra.mxu0 %v827
  %850 = vmatprep.subr.bf16.mxu0 0
  %851 = vmatpush1.bf16.msra.mxu0 %v828
  %852 = vmatprep.subr.bf16.mxu0 0
  %853 = vmatpush1.bf16.msra.mxu0 %v829
  %854 = vmatprep.subr.bf16.mxu0 0
  %855 = vmatpush1.bf16.msra.mxu0 0
  %856 = vmatprep.subr.bf16.mxu0 0
  %857 = vmatpush1.bf16.msra.mxu0 0
  %858 = vmatprep.subr.bf16.mxu0 0
  %859 = vmatpush1.bf16.msra.mxu0 0
  %860 = vmatprep.subr.bf16.mxu0 0
  %861 = vmatpush1.bf16.msra.mxu0 0
  %862 = vmatprep.subr.bf16.mxu0 0
  %863 = vmatpush1.bf16.msra.mxu0 0
  %864 = vmatprep.subr.bf16.mxu0 0
  %865 = vmatpush1.bf16.msra.mxu0 0
  %866 = vmatprep.subr.bf16.mxu0 0
  %867 = vmatpush1.bf16.msra.mxu0 0
  %868 = vmatprep.subr.bf16.mxu0 0
  %869 = vmatpush1.bf16.msra.mxu0 0
  %870 = vmatprep.mubr.bf16.mxu0 0
  %871 = vmatmul.mubr.bf16.gmra.mrb[0].mxu0 %v742
  %v872 = vpop.f32.mrb[0].mxu0
  %v873 = vadd.f32 0.0, %v872
  %v874 = vpop.f32.mrb[0].mxu0
  %v875 = vpop.f32.mrb[0].mxu0
  %v876 = vadd.f32 0.0, %v875
  %v877 = vpop.f32.mrb[0].mxu0
  %878 = vmatprep.mubr.bf16.mxu0 0
  %879 = vmatmul.mubr.bf16.gmra.mrb[0].mxu0 %v743
  %v880 = vpop.f32.mrb[0].mxu0
  %v881 = vadd.f32 0.0, %v880
  %v882 = vpop.f32.mrb[0].mxu0
  %v883 = vpop.f32.mrb[0].mxu0
  %v884 = vadd.f32 0.0, %v883
  %v885 = vpop.f32.mrb[0].mxu0
  %886 = vmatprep.mubr.bf16.mxu0 0
  %887 = vmatmul.mubr.bf16.gmra.mrb[0].mxu0 %v744
  %v888 = vpop.f32.mrb[0].mxu0
  %v889 = vadd.f32 0.0, %v888
  %v890 = vpop.f32.mrb[0].mxu0
  %v891 = vpop.f32.mrb[0].mxu0
  %v892 = vadd.f32 0.0, %v891
  %v893 = vpop.f32.mrb[0].mxu0
  %894 = vmatprep.mubr.bf16.mxu0 0
  %895 = vmatmul.mubr.bf16.gmra.mrb[0].mxu0 %v745
  %v896 = vpop.f32.mrb[0].mxu0
  %v897 = vadd.f32 0.0, %v896
  %v898 = vpop.f32.mrb[0].mxu0
  %v899 = vpop.f32.mrb[0].mxu0
  %v900 = vadd.f32 0.0, %v899
  %v901 = vpop.f32.mrb[0].mxu0
  %902 = vmatprep.mubr.bf16.mxu0 0
  %903 = vmatmul.mubr.bf16.gmra.mrb[0].mxu0 %v746
  %v904 = vpop.f32.mrb[0].mxu0
  %v905 = vadd.f32 0.0, %v904
  %v906 = vpop.f32.mrb[0].mxu0
  %v907 = vpop.f32.mrb[0].mxu0
  %v908 = vadd.f32 0.0, %v907
  %v909 = vpop.f32.mrb[0].mxu0
  %910 = vmatprep.mubr.bf16.mxu0 0
  %911 = vmatmul.mubr.bf16.gmra.mrb[0].mxu0 %v747
  %v912 = vpop.f32.mrb[0].mxu0
  %v913 = vadd.f32 0.0, %v912
  %v914 = vpop.f32.mrb[0].mxu0
  %v915 = vpop.f32.mrb[0].mxu0
  %v916 = vadd.f32 0.0, %v915
  %v917 = vpop.f32.mrb[0].mxu0
  %918 = vmatprep.mubr.bf16.mxu0 0
  %919 = vmatmul.mubr.bf16.gmra.mrb[0].mxu0 %v748
  %v920 = vpop.f32.mrb[0].mxu0
  %v921 = vadd.f32 0.0, %v920
  %v922 = vpop.f32.mrb[0].mxu0
  %v923 = vpop.f32.mrb[0].mxu0
  %v924 = vadd.f32 0.0, %v923
  %v925 = vpop.f32.mrb[0].mxu0
  %926 = vmatprep.mubr.bf16.mxu0 0
  %927 = vmatmul.mubr.bf16.gmra.mrb[0].mxu0 %v749
  %v928 = vpop.f32.mrb[0].mxu0
  %v929 = vadd.f32 0.0, %v928
  %v930 = vpop.f32.mrb[0].mxu0
  %v931 = vpop.f32.mrb[0].mxu0
  %v932 = vadd.f32 0.0, %v931
  %v933 = vpop.f32.mrb[0].mxu0
  %934 = vmatprep.mubr.bf16.mxu0 0
  %935 = vmatmul.mubr.bf16.gmra.mrb[0].mxu0 %v750
  %v936 = vpop.f32.mrb[0].mxu0
  %v937 = vadd.f32 0.0, %v936
  %v938 = vpop.f32.mrb[0].mxu0
  %v939 = vpop.f32.mrb[0].mxu0
  %v940 = vadd.f32 0.0, %v939
  %v941 = vpop.f32.mrb[0].mxu0
  %942 = vmatprep.mubr.bf16.mxu0 0
  %943 = vmatmul.mubr.bf16.gmra.mrb[0].mxu0 %v751
  %v944 = vpop.f32.mrb[0].mxu0
  %v945 = vadd.f32 0.0, %v944
  %v946 = vpop.f32.mrb[0].mxu0
  %v947 = vpop.f32.mrb[0].mxu0
  %v948 = vadd.f32 0.0, %v947
  %v949 = vpop.f32.mrb[0].mxu0
  %950 = vmatprep.mubr.bf16.mxu0 0
  %951 = vmatmul.mubr.bf16.gmra.mrb[0].mxu0 %v752
  %v952 = vpop.f32.mrb[0].mxu0
  %v953 = vadd.f32 0.0, %v952
  %v954 = vpop.f32.mrb[0].mxu0
  %v955 = vpop.f32.mrb[0].mxu0
  %v956 = vadd.f32 0.0, %v955
  %v957 = vpop.f32.mrb[0].mxu0
  %958 = vmatprep.mubr.bf16.mxu0 0
  %959 = vmatmul.mubr.bf16.gmra.mrb[0].mxu0 %v753
  %v960 = vpop.f32.mrb[0].mxu0
  %v961 = vadd.f32 0.0, %v960
  %v962 = vpop.f32.mrb[0].mxu0
  %v963 = vpop.f32.mrb[0].mxu0
  %v964 = vadd.f32 0.0, %v963
  %v965 = vpop.f32.mrb[0].mxu0
  %966 = vmatprep.mubr.bf16.mxu0 0
  %967 = vmatmul.mubr.bf16.gmra.mrb[0].mxu0 %v754
  %v968 = vpop.f32.mrb[0].mxu0
  %v969 = vadd.f32 0.0, %v968
  %v970 = vpop.f32.mrb[0].mxu0
  %v971 = vpop.f32.mrb[0].mxu0
  %v972 = vadd.f32 0.0, %v971
  %v973 = vpop.f32.mrb[0].mxu0
  %974 = vmatprep.mubr.bf16.mxu0 0
  %975 = vmatmul.mubr.bf16.gmra.mrb[0].mxu0 %v755
  %v976 = vpop.f32.mrb[0].mxu0
  %v977 = vadd.f32 0.0, %v976
  %v978 = vpop.f32.mrb[0].mxu0
  %v979 = vpop.f32.mrb[0].mxu0
  %v980 = vadd.f32 0.0, %v979
  %v981 = vpop.f32.mrb[0].mxu0
  %982 = vmatprep.mubr.bf16.mxu0 0
  %983 = vmatmul.mubr.bf16.gmra.mrb[0].mxu0 %v756
  %v984 = vpop.f32.mrb[0].mxu0
  %v985 = vadd.f32 0.0, %v984
  %v986 = vpop.f32.mrb[0].mxu0
  %v987 = vpop.f32.mrb[0].mxu0
  %v988 = vadd.f32 0.0, %v987
  %v989 = vpop.f32.mrb[0].mxu0
  %990 = vmatprep.mubr.bf16.mxu0 0
  %991 = vmatmul.mubr.bf16.gmra.mrb[0].mxu0 %v757
  %v992 = vpop.f32.mrb[0].mxu0
  %v993 = vadd.f32 0.0, %v992
  %v994 = vpop.f32.mrb[0].mxu0
  %v995 = vpop.f32.mrb[0].mxu0
  %v996 = vadd.f32 0.0, %v995
  %v997 = vpop.f32.mrb[0].mxu0
  %998 = vmatprep.mubr.bf16.mxu0 0
  %999 = vmatmul.mubr.bf16.gmra.mrb[0].mxu0 %v758
  %v1000 = vpop.f32.mrb[0].mxu0
  %v1001 = vadd.f32 0.0, %v1000
  %v1002 = vpop.f32.mrb[0].mxu0
  %v1003 = vpop.f32.mrb[0].mxu0
  %v1004 = vadd.f32 0.0, %v1003
  %v1005 = vpop.f32.mrb[0].mxu0
  %1006 = vmatprep.mubr.bf16.mxu0 0
  %1007 = vmatmul.mubr.bf16.gmra.mrb[0].mxu0 %v759
  %v1008 = vpop.f32.mrb[0].mxu0
  %v1009 = vadd.f32 0.0, %v1008
  %v1010 = vpop.f32.mrb[0].mxu0
  %v1011 = vpop.f32.mrb[0].mxu0
  %v1012 = vadd.f32 0.0, %v1011
  %v1013 = vpop.f32.mrb[0].mxu0
  %1014 = vmatprep.mubr.bf16.mxu0 0
  %1015 = vmatmul.mubr.bf16.gmra.mrb[0].mxu0 %v760
  %v1016 = vpop.f32.mrb[0].mxu0
  %v1017 = vadd.f32 0.0, %v1016
  %v1018 = vpop.f32.mrb[0].mxu0
  %v1019 = vpop.f32.mrb[0].mxu0
  %v1020 = vadd.f32 0.0, %v1019
  %v1021 = vpop.f32.mrb[0].mxu0
  %1022 = vmatprep.mubr.bf16.mxu0 0
  %1023 = vmatmul.mubr.bf16.gmra.mrb[0].mxu0 %v761
  %v1024 = vpop.f32.mrb[0].mxu0
  %v1025 = vadd.f32 0.0, %v1024
  %v1026 = vpop.f32.mrb[0].mxu0
  %v1027 = vpop.f32.mrb[0].mxu0
  %v1028 = vadd.f32 0.0, %v1027
  %v1029 = vpop.f32.mrb[0].mxu0
  %1030 = vmatprep.mubr.bf16.mxu0 0
  %1031 = vmatmul.mubr.bf16.gmra.mrb[0].mxu0 %v762
  %v1032 = vpop.f32.mrb[0].mxu0
  %v1033 = vadd.f32 0.0, %v1032
  %v1034 = vpop.f32.mrb[0].mxu0
  %v1035 = vpop.f32.mrb[0].mxu0
  %v1036 = vadd.f32 0.0, %v1035
  %v1037 = vpop.f32.mrb[0].mxu0
  %1038 = vmatprep.mubr.bf16.mxu0 0
  %1039 = vmatmul.mubr.bf16.gmra.mrb[0].mxu0 %v763
  %v1040 = vpop.f32.mrb[0].mxu0
  %v1041 = vadd.f32 0.0, %v1040
  %v1042 = vpop.f32.mrb[0].mxu0
  %v1043 = vpop.f32.mrb[0].mxu0
  %v1044 = vadd.f32 0.0, %v1043
  %v1045 = vpop.f32.mrb[0].mxu0
  %1046 = vmatprep.mubr.bf16.mxu0 0
  %1047 = vmatmul.mubr.bf16.gmra.mrb[0].mxu0 %v764
  %v1048 = vpop.f32.mrb[0].mxu0
  %v1049 = vadd.f32 0.0, %v1048
  %v1050 = vpop.f32.mrb[0].mxu0
  %v1051 = vpop.f32.mrb[0].mxu0
  %v1052 = vadd.f32 0.0, %v1051
  %v1053 = vpop.f32.mrb[0].mxu0
  %1054 = vmatprep.mubr.bf16.mxu0 0
  %1055 = vmatmul.mubr.bf16.gmra.mrb[0].mxu0 %v765
  %v1056 = vpop.f32.mrb[0].mxu0
  %v1057 = vadd.f32 0.0, %v1056
  %v1058 = vpop.f32.mrb[0].mxu0
  %v1059 = vpop.f32.mrb[0].mxu0
  %v1060 = vadd.f32 0.0, %v1059
  %v1061 = vpop.f32.mrb[0].mxu0
  %1062 = vmatprep.mubr.bf16.mxu0 0
  %1063 = vmatmul.mubr.bf16.gmra.mrb[0].mxu0 %v766
  %v1064 = vpop.f32.mrb[0].mxu0
  %v1065 = vadd.f32 0.0, %v1064
  %v1066 = vpop.f32.mrb[0].mxu0
  %v1067 = vpop.f32.mrb[0].mxu0
  %v1068 = vadd.f32 0.0, %v1067
  %v1069 = vpop.f32.mrb[0].mxu0
  %1070 = vmatprep.mubr.bf16.mxu0 0
  %1071 = vmatmul.mubr.bf16.gmra.mrb[0].mxu0 %v767
  %v1072 = vpop.f32.mrb[0].mxu0
  %v1073 = vadd.f32 0.0, %v1072
  %v1074 = vpop.f32.mrb[0].mxu0
  %v1075 = vpop.f32.mrb[0].mxu0
  %v1076 = vadd.f32 0.0, %v1075
  %v1077 = vpop.f32.mrb[0].mxu0
  %1078 = vmatprep.mubr.bf16.mxu0 0
  %1079 = vmatmul.mubr.bf16.gmra.mrb[0].mxu0 %v768
  %v1080 = vpop.f32.mrb[0].mxu0
  %v1081 = vadd.f32 0.0, %v1080
  %v1082 = vpop.f32.mrb[0].mxu0
  %v1083 = vpop.f32.mrb[0].mxu0
  %v1084 = vadd.f32 0.0, %v1083
  %v1085 = vpop.f32.mrb[0].mxu0
  %1086 = vmatprep.mubr.bf16.mxu0 0
  %1087 = vmatmul.mubr.bf16.gmra.mrb[0].mxu0 %v769
  %v1088 = vpop.f32.mrb[0].mxu0
  %v1089 = vadd.f32 0.0, %v1088
  %v1090 = vpop.f32.mrb[0].mxu0
  %v1091 = vpop.f32.mrb[0].mxu0
  %v1092 = vadd.f32 0.0, %v1091
  %v1093 = vpop.f32.mrb[0].mxu0
  %1094 = vmatprep.mubr.bf16.mxu0 0
  %1095 = vmatmul.mubr.bf16.gmra.mrb[0].mxu0 %v770
  %v1096 = vpop.f32.mrb[0].mxu0
  %v1097 = vadd.f32 0.0, %v1096
  %v1098 = vpop.f32.mrb[0].mxu0
  %v1099 = vpop.f32.mrb[0].mxu0
  %v1100 = vadd.f32 0.0, %v1099
  %v1101 = vpop.f32.mrb[0].mxu0
  %1102 = vmatprep.mubr.bf16.mxu0 0
  %1103 = vmatmul.mubr.bf16.gmra.mrb[0].mxu0 %v771
  %v1104 = vpop.f32.mrb[0].mxu0
  %v1105 = vadd.f32 0.0, %v1104
  %v1106 = vpop.f32.mrb[0].mxu0
  %v1107 = vpop.f32.mrb[0].mxu0
  %v1108 = vadd.f32 0.0, %v1107
  %v1109 = vpop.f32.mrb[0].mxu0
  %1110 = vmatprep.mubr.bf16.mxu0 0
  %1111 = vmatmul.mubr.bf16.gmra.mrb[0].mxu0 %v772
  %v1112 = vpop.f32.mrb[0].mxu0
  %v1113 = vadd.f32 0.0, %v1112
  %v1114 = vpop.f32.mrb[0].mxu0
  %v1115 = vpop.f32.mrb[0].mxu0
  %v1116 = vadd.f32 0.0, %v1115
  %v1117 = vpop.f32.mrb[0].mxu0
  %1118 = vmatprep.mubr.bf16.mxu0 0
  %1119 = vmatmul.mubr.bf16.gmra.mrb[0].mxu0 %v773
  %v1120 = vpop.f32.mrb[0].mxu0
  %v1121 = vadd.f32 0.0, %v1120
  %v1122 = vpop.f32.mrb[0].mxu0
  %v1123 = vpop.f32.mrb[0].mxu0
  %v1124 = vadd.f32 0.0, %v1123
  %v1125 = vpop.f32.mrb[0].mxu0
  %1126 = vdwg.mxu0
  %v1127 = vpack.c.bf16 %v876, %v873
  %v1128 = vpack.c.bf16 %v884, %v881
  %v1129 = vpack.c.bf16 %v892, %v889
  %v1130 = vpack.c.bf16 %v900, %v897
  %v1131 = vpack.c.bf16 %v908, %v905
  %v1132 = vpack.c.bf16 %v916, %v913
  %v1133 = vpack.c.bf16 %v924, %v921
  %v1134 = vpack.c.bf16 %v932, %v929
  %v1135 = vpack.c.bf16 %v940, %v937
  %v1136 = vpack.c.bf16 %v948, %v945
  %v1137 = vpack.c.bf16 %v956, %v953
  %v1138 = vpack.c.bf16 %v964, %v961
  %v1139 = vpack.c.bf16 %v972, %v969
  %v1140 = vpack.c.bf16 %v980, %v977
  %v1141 = vpack.c.bf16 %v988, %v985
  %v1142 = vpack.c.bf16 %v996, %v993
  %v1143 = vpack.c.bf16 %v1004, %v1001
  %v1144 = vpack.c.bf16 %v1012, %v1009
  %v1145 = vpack.c.bf16 %v1020, %v1017
  %v1146 = vpack.c.bf16 %v1028, %v1025
  %v1147 = vpack.c.bf16 %v1036, %v1033
  %v1148 = vpack.c.bf16 %v1044, %v1041
  %v1149 = vpack.c.bf16 %v1052, %v1049
  %v1150 = vpack.c.bf16 %v1060, %v1057
  %v1151 = vpack.c.bf16 %v1068, %v1065
  %v1152 = vpack.c.bf16 %v1076, %v1073
  %v1153 = vpack.c.bf16 %v1084, %v1081
  %v1154 = vpack.c.bf16 %v1092, %v1089
  %v1155 = vpack.c.bf16 %v1100, %v1097
  %v1156 = vpack.c.bf16 %v1108, %v1105
  %v1157 = vpack.c.bf16 %v1116, %v1113
  %v1158 = vpack.c.bf16 %v1124, %v1121
  %v1191 = vunpack.c.l.b16 %v1127
  %v1192 = vunpack.c.h.b16 %v1127
  %v1193 = vunpack.c.l.b16 %v1128
  %v1194 = vunpack.c.h.b16 %v1128
  %v1195 = vunpack.c.l.b16 %v1129
  %v1196 = vunpack.c.h.b16 %v1129
  %v1197 = vunpack.c.l.b16 %v1130
  %v1198 = vunpack.c.h.b16 %v1130
  %v1199 = vunpack.c.l.b16 %v1131
  %v1200 = vunpack.c.h.b16 %v1131
  %v1201 = vunpack.c.l.b16 %v1132
  %v1202 = vunpack.c.h.b16 %v1132
  %v1203 = vunpack.c.l.b16 %v1133
  %v1204 = vunpack.c.h.b16 %v1133
  %v1205 = vunpack.c.l.b16 %v1134
  %v1206 = vunpack.c.h.b16 %v1134
  %v1207 = vunpack.c.l.b16 %v1135
  %v1208 = vunpack.c.h.b16 %v1135
  %v1209 = vunpack.c.l.b16 %v1136
  %v1210 = vunpack.c.h.b16 %v1136
  %v1211 = vunpack.c.l.b16 %v1137
  %v1212 = vunpack.c.h.b16 %v1137
  %v1213 = vunpack.c.l.b16 %v1138
  %v1214 = vunpack.c.h.b16 %v1138
  %v1215 = vunpack.c.l.b16 %v1139
  %v1216 = vunpack.c.h.b16 %v1139
  %v1217 = vunpack.c.l.b16 %v1140
  %v1218 = vunpack.c.h.b16 %v1140
  %v1219 = vunpack.c.l.b16 %v1141
  %v1220 = vunpack.c.h.b16 %v1141
  %v1221 = vunpack.c.l.b16 %v1142
  %v1222 = vunpack.c.h.b16 %v1142
  %v1223 = vunpack.c.l.b16 %v1143
  %v1224 = vunpack.c.h.b16 %v1143
  %v1225 = vunpack.c.l.b16 %v1144
  %v1226 = vunpack.c.h.b16 %v1144
  %v1227 = vunpack.c.l.b16 %v1145
  %v1228 = vunpack.c.h.b16 %v1145
  %v1229 = vunpack.c.l.b16 %v1146
  %v1230 = vunpack.c.h.b16 %v1146
  %v1231 = vunpack.c.l.b16 %v1147
  %v1232 = vunpack.c.h.b16 %v1147
  %v1233 = vunpack.c.l.b16 %v1148
  %v1234 = vunpack.c.h.b16 %v1148
  %v1235 = vunpack.c.l.b16 %v1149
  %v1236 = vunpack.c.h.b16 %v1149
  %v1237 = vunpack.c.l.b16 %v1150
  %v1238 = vunpack.c.h.b16 %v1150
  %v1239 = vunpack.c.l.b16 %v1151
  %v1240 = vunpack.c.h.b16 %v1151
  %v1241 = vunpack.c.l.b16 %v1152
  %v1242 = vunpack.c.h.b16 %v1152
  %v1243 = vunpack.c.l.b16 %v1153
  %v1244 = vunpack.c.h.b16 %v1153
  %v1245 = vunpack.c.l.b16 %v1154
  %v1246 = vunpack.c.h.b16 %v1154
  %v1247 = vunpack.c.l.b16 %v1155
  %v1248 = vunpack.c.h.b16 %v1155
  %v1249 = vunpack.c.l.b16 %v1156
  %v1250 = vunpack.c.h.b16 %v1156
  %v1251 = vunpack.c.l.b16 %v1157
  %v1252 = vunpack.c.h.b16 %v1157
  %v1253 = vunpack.c.l.b16 %v1158
  %v1254 = vunpack.c.h.b16 %v1158
  %v1255 = vpack.c.b16 %v1191, %v1191
  %v1256 = vpack.c.b16 %v1192, %v1192
  %v1257 = vpack.c.b16 %v1193, %v1193
  %v1258 = vpack.c.b16 %v1194, %v1194
  %v1259 = vpack.c.b16 %v1195, %v1195
  %v1260 = vpack.c.b16 %v1196, %v1196
  %v1261 = vpack.c.b16 %v1197, %v1197
  %v1262 = vpack.c.b16 %v1198, %v1198
  %v1263 = vpack.c.b16 %v1199, %v1199
  %v1264 = vpack.c.b16 %v1200, %v1200
  %v1265 = vpack.c.b16 %v1201, %v1201
  %v1266 = vpack.c.b16 %v1202, %v1202
  %v1267 = vpack.c.b16 %v1203, %v1203
  %v1268 = vpack.c.b16 %v1204, %v1204
  %v1269 = vpack.c.b16 %v1205, %v1205
  %v1270 = vpack.c.b16 %v1206, %v1206
  %v1271 = vpack.c.b16 %v1207, %v1207
  %v1272 = vpack.c.b16 %v1208, %v1208
  %v1273 = vpack.c.b16 %v1209, %v1209
  %v1274 = vpack.c.b16 %v1210, %v1210
  %v1275 = vpack.c.b16 %v1211, %v1211
  %v1276 = vpack.c.b16 %v1212, %v1212
  %v1277 = vpack.c.b16 %v1213, %v1213
  %v1278 = vpack.c.b16 %v1214, %v1214
  %v1279 = vpack.c.b16 %v1215, %v1215
  %v1280 = vpack.c.b16 %v1216, %v1216
  %v1281 = vpack.c.b16 %v1217, %v1217
  %v1282 = vpack.c.b16 %v1218, %v1218
  %v1283 = vpack.c.b16 %v1219, %v1219
  %v1284 = vpack.c.b16 %v1220, %v1220
  %v1285 = vpack.c.b16 %v1221, %v1221
  %v1286 = vpack.c.b16 %v1222, %v1222
  %v1287 = vpack.c.b16 %v1223, %v1223
  %v1288 = vpack.c.b16 %v1224, %v1224
  %v1289 = vpack.c.b16 %v1225, %v1225
  %v1290 = vpack.c.b16 %v1226, %v1226
  %v1291 = vpack.c.b16 %v1227, %v1227
  %v1292 = vpack.c.b16 %v1228, %v1228
  %v1293 = vpack.c.b16 %v1229, %v1229
  %v1294 = vpack.c.b16 %v1230, %v1230
  %v1295 = vpack.c.b16 %v1231, %v1231
  %v1296 = vpack.c.b16 %v1232, %v1232
  %v1297 = vpack.c.b16 %v1233, %v1233
  %v1298 = vpack.c.b16 %v1234, %v1234
  %v1299 = vpack.c.b16 %v1235, %v1235
  %v1300 = vpack.c.b16 %v1236, %v1236
  %v1301 = vpack.c.b16 %v1237, %v1237
  %v1302 = vpack.c.b16 %v1238, %v1238
  %v1303 = vpack.c.b16 %v1239, %v1239
  %v1304 = vpack.c.b16 %v1240, %v1240
  %v1305 = vpack.c.b16 %v1241, %v1241
  %v1306 = vpack.c.b16 %v1242, %v1242
  %v1307 = vpack.c.b16 %v1243, %v1243
  %v1308 = vpack.c.b16 %v1244, %v1244
  %v1309 = vpack.c.b16 %v1245, %v1245
  %v1310 = vpack.c.b16 %v1246, %v1246
  %v1311 = vpack.c.b16 %v1247, %v1247
  %v1312 = vpack.c.b16 %v1248, %v1248
  %v1313 = vpack.c.b16 %v1249, %v1249
  %v1314 = vpack.c.b16 %v1250, %v1250
  %v1315 = vpack.c.b16 %v1251, %v1251
  %v1316 = vpack.c.b16 %v1252, %v1252
  %v1317 = vpack.c.b16 %v1253, %v1253
  %v1318 = vpack.c.b16 %v1254, %v1254
  %1383 = vst [vmem:[%s4] sm:$0xf] %v1255
  %1384 = vst [vmem:[%s4 + $0x4] sm:$0xf] %v1256
  %1385 = vst [vmem:[%s4 + $0x8] sm:$0xf] %v1257
  %1386 = vst [vmem:[%s4 + $0xc] sm:$0xf] %v1258
  %1387 = vst [vmem:[%s4 + $0x10] sm:$0xf] %v1259
  %1388 = vst [vmem:[%s4 + $0x14] sm:$0xf] %v1260
  %1389 = vst [vmem:[%s4 + $0x18] sm:$0xf] %v1261
  %1390 = vst [vmem:[%s4 + $0x1c] sm:$0xf] %v1262
  %1391 = vst [vmem:[%s4 + $0x20] sm:$0xf] %v1263
  %1392 = vst [vmem:[%s4 + $0x24] sm:$0xf] %v1264
  %1393 = vst [vmem:[%s4 + $0x28] sm:$0xf] %v1265
  %1394 = vst [vmem:[%s4 + $0x2c] sm:$0xf] %v1266
  %1395 = vst [vmem:[%s4 + $0x30] sm:$0xf] %v1267
  %1396 = vst [vmem:[%s4 + $0x34] sm:$0xf] %v1268
  %1397 = vst [vmem:[%s4 + $0x38] sm:$0xf] %v1269
  %1398 = vst [vmem:[%s4 + $0x3c] sm:$0xf] %v1270
  %1399 = vst [vmem:[%s4 + $0x40] sm:$0xf] %v1271
  %1400 = vst [vmem:[%s4 + $0x44] sm:$0xf] %v1272
  %1401 = vst [vmem:[%s4 + $0x48] sm:$0xf] %v1273
  %1402 = vst [vmem:[%s4 + $0x4c] sm:$0xf] %v1274
  %1403 = vst [vmem:[%s4 + $0x50] sm:$0xf] %v1275
  %1404 = vst [vmem:[%s4 + $0x54] sm:$0xf] %v1276
  %1405 = vst [vmem:[%s4 + $0x58] sm:$0xf] %v1277
  %1406 = vst [vmem:[%s4 + $0x5c] sm:$0xf] %v1278
  %1407 = vst [vmem:[%s4 + $0x60] sm:$0xf] %v1279
  %1408 = vst [vmem:[%s4 + $0x64] sm:$0xf] %v1280
  %1409 = vst [vmem:[%s4 + $0x68] sm:$0xf] %v1281
  %1410 = vst [vmem:[%s4 + $0x6c] sm:$0xf] %v1282
  %1411 = vst [vmem:[%s4 + $0x70] sm:$0xf] %v1283
  %1412 = vst [vmem:[%s4 + $0x74] sm:$0xf] %v1284
  %1413 = vst [vmem:[%s4 + $0x78] sm:$0xf] %v1285
  %1414 = vst [vmem:[%s4 + $0x7c] sm:$0xf] %v1286
  %1415 = vst [vmem:[%s4 + $0x80] sm:$0xf] %v1287
  %1416 = vst [vmem:[%s4 + $0x84] sm:$0xf] %v1288
  %1417 = vst [vmem:[%s4 + $0x88] sm:$0xf] %v1289
  %1418 = vst [vmem:[%s4 + $0x8c] sm:$0xf] %v1290
  %1419 = vst [vmem:[%s4 + $0x90] sm:$0xf] %v1291
  %1420 = vst [vmem:[%s4 + $0x94] sm:$0xf] %v1292
  %1421 = vst [vmem:[%s4 + $0x98] sm:$0xf] %v1293
  %1422 = vst [vmem:[%s4 + $0x9c] sm:$0xf] %v1294
  %1423 = vst [vmem:[%s4 + $0xa0] sm:$0xf] %v1295
  %1424 = vst [vmem:[%s4 + $0xa4] sm:$0xf] %v1296
  %1425 = vst [vmem:[%s4 + $0xa8] sm:$0xf] %v1297
  %1426 = vst [vmem:[%s4 + $0xac] sm:$0xf] %v1298
  %1427 = vst [vmem:[%s4 + $0xb0] sm:$0xf] %v1299
  %1428 = vst [vmem:[%s4 + $0xb4] sm:$0xf] %v1300
  %1429 = vst [vmem:[%s4 + $0xb8] sm:$0xf] %v1301
  %1430 = vst [vmem:[%s4 + $0xbc] sm:$0xf] %v1302
  %1431 = vst [vmem:[%s4 + $0xc0] sm:$0xf] %v1303
  %1432 = vst [vmem:[%s4 + $0xc4] sm:$0xf] %v1304
  %1433 = vst [vmem:[%s4 + $0xc8] sm:$0xf] %v1305
  %1434 = vst [vmem:[%s4 + $0xcc] sm:$0xf] %v1306
  %1435 = vst [vmem:[%s4 + $0xd0] sm:$0xf] %v1307
  %1436 = vst [vmem:[%s4 + $0xd4] sm:$0xf] %v1308
  %1437 = vst [vmem:[%s4 + $0xd8] sm:$0xf] %v1309
  %1438 = vst [vmem:[%s4 + $0xdc] sm:$0xf] %v1310
  %1439 = vst [vmem:[%s4 + $0xe0] sm:$0xf] %v1311
  %1440 = vst [vmem:[%s4 + $0xe4] sm:$0xf] %v1312
  %1441 = vst [vmem:[%s4 + $0xe8] sm:$0xf] %v1313
  %1442 = vst [vmem:[%s4 + $0xec] sm:$0xf] %v1314
  %1443 = vst [vmem:[%s4 + $0xf0] sm:$0xf] %v1315
  %1444 = vst [vmem:[%s4 + $0xf4] sm:$0xf] %v1316
  %1445 = vst [vmem:[%s4 + $0xf8] sm:$0xf] %v1317
  %1446 = vst [vmem:[%s4 + $0xfc] sm:$0xf] %v1318
  %v1447 = vadd.f32 %v873, %v876
  %v1448 = vadd.f32 %v1447, %v881
  %v1449 = vadd.f32 %v1448, %v884
  %v1450 = vadd.f32 %v1449, %v889
  %v1451 = vadd.f32 %v1450, %v892
  %v1452 = vadd.f32 %v1451, %v897
  %v1453 = vadd.f32 %v1452, %v900
  %v1454 = vadd.f32 %v1453, %v905
  %v1455 = vadd.f32 %v1454, %v908
  %v1456 = vadd.f32 %v1455, %v913
  %v1457 = vadd.f32 %v1456, %v916
  %v1458 = vadd.f32 %v1457, %v921
  %v1459 = vadd.f32 %v1458, %v924
  %v1460 = vadd.f32 %v1459, %v929
  %v1461 = vadd.f32 %v1460, %v932
  %v1462 = vadd.f32 %v1461, %v937
  %v1463 = vadd.f32 %v1462, %v940
  %v1464 = vadd.f32 %v1463, %v945
  %v1465 = vadd.f32 %v1464, %v948
  %v1466 = vadd.f32 %v1465, %v953
  %v1467 = vadd.f32 %v1466, %v956
  %v1468 = vadd.f32 %v1467, %v961
  %v1469 = vadd.f32 %v1468, %v964
  %v1470 = vadd.f32 %v1469, %v969
  %v1471 = vadd.f32 %v1470, %v972
  %v1472 = vadd.f32 %v1471, %v977
  %v1473 = vadd.f32 %v1472, %v980
  %v1474 = vadd.f32 %v1473, %v985
  %v1475 = vadd.f32 %v1474, %v988
  %v1476 = vadd.f32 %v1475, %v993
  %v1477 = vadd.f32 %v1476, %v996
  %v1478 = vadd.f32 %v1477, %v1001
  %v1479 = vadd.f32 %v1478, %v1004
  %v1480 = vadd.f32 %v1479, %v1009
  %v1481 = vadd.f32 %v1480, %v1012
  %v1482 = vadd.f32 %v1481, %v1017
  %v1483 = vadd.f32 %v1482, %v1020
  %v1484 = vadd.f32 %v1483, %v1025
  %v1485 = vadd.f32 %v1484, %v1028
  %v1486 = vadd.f32 %v1485, %v1033
  %v1487 = vadd.f32 %v1486, %v1036
  %v1488 = vadd.f32 %v1487, %v1041
  %v1489 = vadd.f32 %v1488, %v1044
  %v1490 = vadd.f32 %v1489, %v1049
  %v1491 = vadd.f32 %v1490, %v1052
  %v1492 = vadd.f32 %v1491, %v1057
  %v1493 = vadd.f32 %v1492, %v1060
  %v1494 = vadd.f32 %v1493, %v1065
  %v1495 = vadd.f32 %v1494, %v1068
  %v1496 = vadd.f32 %v1495, %v1073
  %v1497 = vadd.f32 %v1496, %v1076
  %v1498 = vadd.f32 %v1497, %v1081
  %v1499 = vadd.f32 %v1498, %v1084
  %v1500 = vadd.f32 %v1499, %v1089
  %v1501 = vadd.f32 %v1500, %v1092
  %v1502 = vadd.f32 %v1501, %v1097
  %v1503 = vadd.f32 %v1502, %v1100
  %v1504 = vadd.f32 %v1503, %v1105
  %v1505 = vadd.f32 %v1504, %v1108
  %v1506 = vadd.f32 %v1505, %v1113
  %v1507 = vadd.f32 %v1506, %v1116
  %v1508 = vadd.f32 %v1507, %v1121
  %v1509 = vadd.f32 %v1508, %v1124
  %v1510 = vrot.slane %v1509, 4
  %v1511 = vadd.f32 %v1509, %v1510
  %v1512 = vrot.slane %v1511, 2
  %v1513 = vadd.f32 %v1511, %v1512
  %v1514 = vrot.slane %v1513, 1
  %v1515 = vadd.f32 %v1513, %v1514
  %1516 = vst [vmem:[%s5] sm:$0x1] %v1515
  %v1517 = vmul.f32 %v873, %v873
  %v1518 = vmul.f32 %v876, %v876
  %v1519 = vmul.f32 %v881, %v881
  %v1520 = vmul.f32 %v884, %v884
  %v1521 = vmul.f32 %v889, %v889
  %v1522 = vmul.f32 %v892, %v892
  %v1523 = vmul.f32 %v897, %v897
  %v1524 = vmul.f32 %v900, %v900
  %v1525 = vmul.f32 %v905, %v905
  %v1526 = vmul.f32 %v908, %v908
  %v1527 = vmul.f32 %v913, %v913
  %v1528 = vmul.f32 %v916, %v916
  %v1529 = vmul.f32 %v921, %v921
  %v1530 = vmul.f32 %v924, %v924
  %v1531 = vmul.f32 %v929, %v929
  %v1532 = vmul.f32 %v932, %v932
  %v1533 = vmul.f32 %v937, %v937
  %v1534 = vmul.f32 %v940, %v940
  %v1535 = vmul.f32 %v945, %v945
  %v1536 = vmul.f32 %v948, %v948
  %v1537 = vmul.f32 %v953, %v953
  %v1538 = vmul.f32 %v956, %v956
  %v1539 = vmul.f32 %v961, %v961
  %v1540 = vmul.f32 %v964, %v964
  %v1541 = vmul.f32 %v969, %v969
  %v1542 = vmul.f32 %v972, %v972
  %v1543 = vmul.f32 %v977, %v977
  %v1544 = vmul.f32 %v980, %v980
  %v1545 = vmul.f32 %v985, %v985
  %v1546 = vmul.f32 %v988, %v988
  %v1547 = vmul.f32 %v993, %v993
  %v1548 = vmul.f32 %v996, %v996
  %v1549 = vmul.f32 %v1001, %v1001
  %v1550 = vmul.f32 %v1004, %v1004
  %v1551 = vmul.f32 %v1009, %v1009
  %v1552 = vmul.f32 %v1012, %v1012
  %v1553 = vmul.f32 %v1017, %v1017
  %v1554 = vmul.f32 %v1020, %v1020
  %v1555 = vmul.f32 %v1025, %v1025
  %v1556 = vmul.f32 %v1028, %v1028
  %v1557 = vmul.f32 %v1033, %v1033
  %v1558 = vmul.f32 %v1036, %v1036
  %v1559 = vmul.f32 %v1041, %v1041
  %v1560 = vmul.f32 %v1044, %v1044
  %v1561 = vmul.f32 %v1049, %v1049
  %v1562 = vmul.f32 %v1052, %v1052
  %v1563 = vmul.f32 %v1057, %v1057
  %v1564 = vmul.f32 %v1060, %v1060
  %v1565 = vmul.f32 %v1065, %v1065
  %v1566 = vmul.f32 %v1068, %v1068
  %v1567 = vmul.f32 %v1073, %v1073
  %v1568 = vmul.f32 %v1076, %v1076
  %v1569 = vmul.f32 %v1081, %v1081
  %v1570 = vmul.f32 %v1084, %v1084
  %v1571 = vmul.f32 %v1089, %v1089
  %v1572 = vmul.f32 %v1092, %v1092
  %v1573 = vmul.f32 %v1097, %v1097
  %v1574 = vmul.f32 %v1100, %v1100
  %v1575 = vmul.f32 %v1105, %v1105
  %v1576 = vmul.f32 %v1108, %v1108
  %v1577 = vmul.f32 %v1113, %v1113
  %v1578 = vmul.f32 %v1116, %v1116
  %v1579 = vmul.f32 %v1121, %v1121
  %v1580 = vmul.f32 %v1124, %v1124
  %v1581 = vadd.f32 %v1517, %v1518
  %v1582 = vadd.f32 %v1581, %v1519
  %v1583 = vadd.f32 %v1582, %v1520
  %v1584 = vadd.f32 %v1583, %v1521
  %v1585 = vadd.f32 %v1584, %v1522
  %v1586 = vadd.f32 %v1585, %v1523
  %v1587 = vadd.f32 %v1586, %v1524
  %v1588 = vadd.f32 %v1587, %v1525
  %v1589 = vadd.f32 %v1588, %v1526
  %v1590 = vadd.f32 %v1589, %v1527
  %v1591 = vadd.f32 %v1590, %v1528
  %v1592 = vadd.f32 %v1591, %v1529
  %v1593 = vadd.f32 %v1592, %v1530
  %v1594 = vadd.f32 %v1593, %v1531
  %v1595 = vadd.f32 %v1594, %v1532
  %v1596 = vadd.f32 %v1595, %v1533
  %v1597 = vadd.f32 %v1596, %v1534
  %v1598 = vadd.f32 %v1597, %v1535
  %v1599 = vadd.f32 %v1598, %v1536
  %v1600 = vadd.f32 %v1599, %v1537
  %v1601 = vadd.f32 %v1600, %v1538
  %v1602 = vadd.f32 %v1601, %v1539
  %v1603 = vadd.f32 %v1602, %v1540
  %v1604 = vadd.f32 %v1603, %v1541
  %v1605 = vadd.f32 %v1604, %v1542
  %v1606 = vadd.f32 %v1605, %v1543
  %v1607 = vadd.f32 %v1606, %v1544
  %v1608 = vadd.f32 %v1607, %v1545
  %v1609 = vadd.f32 %v1608, %v1546
  %v1610 = vadd.f32 %v1609, %v1547
  %v1611 = vadd.f32 %v1610, %v1548
  %v1612 = vadd.f32 %v1611, %v1549
  %v1613 = vadd.f32 %v1612, %v1550
  %v1614 = vadd.f32 %v1613, %v1551
  %v1615 = vadd.f32 %v1614, %v1552
  %v1616 = vadd.f32 %v1615, %v1553
  %v1617 = vadd.f32 %v1616, %v1554
  %v1618 = vadd.f32 %v1617, %v1555
  %v1619 = vadd.f32 %v1618, %v1556
  %v1620 = vadd.f32 %v1619, %v1557
  %v1621 = vadd.f32 %v1620, %v1558
  %v1622 = vadd.f32 %v1621, %v1559
  %v1623 = vadd.f32 %v1622, %v1560
  %v1624 = vadd.f32 %v1623, %v1561
  %v1625 = vadd.f32 %v1624, %v1562
  %v1626 = vadd.f32 %v1625, %v1563
  %v1627 = vadd.f32 %v1626, %v1564
  %v1628 = vadd.f32 %v1627, %v1565
  %v1629 = vadd.f32 %v1628, %v1566
  %v1630 = vadd.f32 %v1629, %v1567
  %v1631 = vadd.f32 %v1630, %v1568
  %v1632 = vadd.f32 %v1631, %v1569
  %v1633 = vadd.f32 %v1632, %v1570
  %v1634 = vadd.f32 %v1633, %v1571
  %v1635 = vadd.f32 %v1634, %v1572
  %v1636 = vadd.f32 %v1635, %v1573
  %v1637 = vadd.f32 %v1636, %v1574
  %v1638 = vadd.f32 %v1637, %v1575
  %v1639 = vadd.f32 %v1638, %v1576
  %v1640 = vadd.f32 %v1639, %v1577
  %v1641 = vadd.f32 %v1640, %v1578
  %v1642 = vadd.f32 %v1641, %v1579
  %v1643 = vadd.f32 %v1642, %v1580
  %v1644 = vrot.slane %v1643, 4
  %v1645 = vadd.f32 %v1643, %v1644
  %v1646 = vrot.slane %v1645, 2
  %v1647 = vadd.f32 %v1645, %v1646
  %v1648 = vrot.slane %v1647, 1
  %v1649 = vadd.f32 %v1647, %v1648
  %1650 = vst [vmem:[%s6] sm:$0x1] %v1649
  // Predicated region
  $region18: #{bottleneck_forward.7} parent=0 // pred_check
    _
  $region19: #{bottleneck_forward.7} parent=0 // pred_check_branch
    %1652 = sbr.rel (0) target = $region21
  $region20: #{bottleneck_forward.7} parent=0 // pred_region
    _
  $region21: #{bottleneck_forward.7} parent=0 // pred_fallthru
    _
  // Predicated region
  $region22: #{bottleneck_forward.7} parent=0 // pred_check
    _
  $region23: #{bottleneck_forward.7} parent=0 // pred_check_branch
    %1654 = sbr.rel (0) target = $region25
  $region24: #{bottleneck_forward.7} parent=0 // pred_region
    _
  $region25: #{bottleneck_forward.7} parent=0 // pred_fallthru
    _
  // Predicated region
  $region26: #{bottleneck_forward.7} parent=0 // pred_check
    _
  $region27: #{bottleneck_forward.7} parent=0 // pred_check_branch
    %1656 = sbr.rel (0) target = $region29
  $region28: #{bottleneck_forward.7} parent=0 // pred_region
    _
  $region29: #{bottleneck_forward.7} parent=0 // pred_fallthru
    _
  // Predicated region
  $region30: #{bottleneck_forward.7} parent=0 // pred_check
    _
  $region31: #{bottleneck_forward.7} parent=0 // pred_check_branch
    %1658 = sbr.rel (0) target = $region33
  $region32: #{bottleneck_forward.7} parent=0 // pred_region
    _
  $region33: #{bottleneck_forward.7} parent=0 // pred_fallthru
    _
  // Predicated region
  $region34: #{bottleneck_forward.7} parent=0 // pred_check
    _
  $region35: #{bottleneck_forward.7} parent=0 // pred_check_branch
    %1660 = sbr.rel (0) target = $region37
  $region36: #{bottleneck_forward.7} parent=0 // pred_region
    _
  $region37: #{bottleneck_forward.7} parent=0 // pred_fallthru
    _
  // Predicated region
  $region38: #{bottleneck_forward.7} parent=0 // pred_check
    _
  $region39: #{bottleneck_forward.7} parent=0 // pred_check_branch
    %1662 = sbr.rel (0) target = $region41
  $region40: #{bottleneck_forward.7} parent=0 // pred_region
    _
  $region41: #{bottleneck_forward.7} parent=0 // pred_fallthru
    _

// kernel: bottleneck_forward.6
$region0: #{bottleneck_forward.6}
  #allocation0 [shape = 'u32[]', space=smem, size = 0x4, offset = 0x4, fixed_abs, tag = 'smem constant byte address 0x4 - core index']
  #allocation1 [shape = 'u32[144,128]{1,0:T(1,128)}', space=vmem, size = 0x12000, scoped, tag = 'internal scratch']
  #allocation2 [shape = 'f32[128,128]{1,0:T(8,128)}', space=vmem, size = 0x10000, scoped, tag = 'scratch operand']
  %s0 = inlined_call_operand.vmem [shape: bf16[2,18,18,128], index: 0, kind: input, shape index: {}]
  %s1 = inlined_call_operand.vmem [shape: bf16[9,128,128], index: 1, kind: input, shape index: {}]
  %s2 = inlined_call_operand.vmem [shape: f32[1,128], index: 2, kind: input, shape index: {}]
  %s3 = inlined_call_operand.vmem [shape: f32[1,128], index: 3, kind: input, shape index: {}]
  %s4 = inlined_call_operand.vmem [shape: bf16[2,256,128], index: 4, kind: output, shape index: {0}]
  %s5 = inlined_call_operand.vmem [shape: f32[4,1,128], index: 5, kind: output, shape index: {1}]
  %s6 = inlined_call_operand.vmem [shape: f32[4,1,128], index: 6, kind: output, shape index: {2}]
  %7 = xla_tuple %s4, %s5, %s6
  %s8 = sld [smem:[#allocation0]]
  $region65: #{bottleneck_forward.6} parent=0
    _
  %s10 = ssub.s32 1, %s8
  %s11 = scalar_select 0, %s10, %s8
  loop: start=0, step=1, limit=6
  $region2: #{bottleneck_forward.6} parent=0 // loop_pre_header
    _
  $region3: #{bottleneck_forward.6} parent=0 // loop_header
    %s13 = sphi 0, %s17
    %p14 = scmp.ge.s32.totalorder %s13, 6
    %s20 = sphi 0, %s32
    %s21 = sphi 0, %s28
    %s22 = sphi 0, %s20
    %s23 = sphi 0, %s21
    %s24 = sphi 0, %s22
    %s25 = sphi 0, %s23
    %s35 = sphi 0, %s37
    %s38 = sphi 0, %s35
    %s39 = sphi 0, %s38
    %s55 = sphi 0, %s39
    %s59 = sphi 0, %s59
    %s61 = sphi 0, %s59
    %s62 = sphi 0, %s61
    %s76 = sphi 0, %s62
    %s80 = sphi 0, %s80
    %s82 = sphi 0, %s80
    %s83 = sphi 0, %s82
    %s97 = sphi 0, %s83
    %s101 = sphi 0, %s101
    %s103 = sphi 0, %s101
    %s104 = sphi 0, %s103
    %s118 = sphi 0, %s104
    %s126 = sphi 0, %s128
    %s129 = sphi 0, %s126
    %s130 = sphi 0, %s129
    %s146 = sphi 0, %s130
    %s156 = sphi 0, %s158
    %s159 = sphi 0, %s156
    %s160 = sphi 0, %s159
    %s176 = sphi 0, %s160
    %s186 = sphi 0, %s188
    %s189 = sphi 0, %s186
    %s190 = sphi 0, %s189
    %s206 = sphi 0, %s190
  $region4: #{bottleneck_forward.6} parent=0 // loop_header_branch
    %16 = sbr.rel (%p14) target = $region8
  $region5: #{bottleneck_forward.6} parent=0 // loop_body
    %s18 = ssub.s32 %s13, 1
    %s19 = ssub.s32 %s13, 2
    %s26 = sadd.s32 1, %s21
    %p27 = scmp.ge.s32.totalorder %s26, 2
    %s28 = scalar_select %p27, 0, %s26
    %s29 = sadd.s32 1, %s20
    %s30 = scalar_select %p27, %s29, %s20
    %p31 = scmp.ge.s32.totalorder %s30, 2
    %s32 = scalar_select %p31, 0, %s30
    %s33 = ssub.s32 %s20, %s32
    %p34 = scmp.eq.s32.totalorder %s33, 0
    %s36 = sadd.s32 %s35, 1
    %s37 = scalar_select %p34, %s35, %s36
    %p40 = pneg %p34
    %p41 = scmp.eq.s32.totalorder %s13, 3
    %p42 = por %p40, %p41
    %p43 = scmp.ne.s32.totalorder %s35, %s38
    %p44 = scmp.eq.s32.totalorder %s13, 0
    %p45 = por %p43, %p44
    %p46 = scmp.ne.s32.totalorder %s35, %s38
    %p47 = scmp.eq.s32.totalorder %s18, 3
    %p48 = por %p46, %p47
    %p49 = scmp.ne.s32.totalorder %s38, %s39
    %p50 = scmp.eq.s32.totalorder %s18, 0
    %p51 = por %p49, %p50
    %p52 = scmp.ne.s32.totalorder %s38, %s39
    %p53 = scmp.eq.s32.totalorder %s19, 3
    %p54 = por %p52, %p53
    %p56 = scmp.ne.s32.totalorder %s39, %s55
    %p57 = scmp.eq.s32.totalorder %s19, 0
    %p58 = por %p56, %p57
    %s60 = sadd.s32 %s59, 1
    %p63 = scmp.eq.s32.totalorder %s13, 3
    %p64 = scmp.ne.s32.totalorder %s59, %s61
    %p65 = scmp.eq.s32.totalorder %s13, 0
    %p66 = por %p64, %p65
    %p67 = scmp.ne.s32.totalorder %s59, %s61
    %p68 = scmp.eq.s32.totalorder %s18, 3
    %p69 = por %p67, %p68
    %p70 = scmp.ne.s32.totalorder %s61, %s62
    %p71 = scmp.eq.s32.totalorder %s18, 0
    %p72 = por %p70, %p71
    %p73 = scmp.ne.s32.totalorder %s61, %s62
    %p74 = scmp.eq.s32.totalorder %s19, 3
    %p75 = por %p73, %p74
    %p77 = scmp.ne.s32.totalorder %s62, %s76
    %p78 = scmp.eq.s32.totalorder %s19, 0
    %p79 = por %p77, %p78
    %s81 = sadd.s32 %s80, 1
    %p84 = scmp.eq.s32.totalorder %s13, 3
    %p85 = scmp.ne.s32.totalorder %s80, %s82
    %p86 = scmp.eq.s32.totalorder %s13, 0
    %p87 = por %p85, %p86
    %p88 = scmp.ne.s32.totalorder %s80, %s82
    %p89 = scmp.eq.s32.totalorder %s18, 3
    %p90 = por %p88, %p89
    %p91 = scmp.ne.s32.totalorder %s82, %s83
    %p92 = scmp.eq.s32.totalorder %s18, 0
    %p93 = por %p91, %p92
    %p94 = scmp.ne.s32.totalorder %s82, %s83
    %p95 = scmp.eq.s32.totalorder %s19, 3
    %p96 = por %p94, %p95
    %p98 = scmp.ne.s32.totalorder %s83, %s97
    %p99 = scmp.eq.s32.totalorder %s19, 0
    %p100 = por %p98, %p99
    %s102 = sadd.s32 %s101, 1
    %p105 = scmp.eq.s32.totalorder %s13, 3
    %p106 = scmp.ne.s32.totalorder %s101, %s103
    %p107 = scmp.eq.s32.totalorder %s13, 0
    %p108 = por %p106, %p107
    %p109 = scmp.ne.s32.totalorder %s101, %s103
    %p110 = scmp.eq.s32.totalorder %s18, 3
    %p111 = por %p109, %p110
    %p112 = scmp.ne.s32.totalorder %s103, %s104
    %p113 = scmp.eq.s32.totalorder %s18, 0
    %p114 = por %p112, %p113
    %p115 = scmp.ne.s32.totalorder %s103, %s104
    %p116 = scmp.eq.s32.totalorder %s19, 3
    %p117 = por %p115, %p116
    %p119 = scmp.ne.s32.totalorder %s104, %s118
    %p120 = scmp.eq.s32.totalorder %s19, 0
    %p121 = por %p119, %p120
    %s122 = ssub.s32 %s20, %s32
    %s123 = ssub.s32 %s21, %s28
    %s124 = sor.u32 %s122, %s123
    %p125 = scmp.eq.s32.totalorder %s124, 0
    %s127 = sadd.s32 %s126, 1
    %s128 = scalar_select %p125, %s126, %s127
    %p131 = pneg %p125
    %p132 = scmp.eq.s32.totalorder %s13, 3
    %p133 = por %p131, %p132
    %p134 = scmp.ne.s32.totalorder %s126, %s129
    %p135 = scmp.eq.s32.totalorder %s13, 0
    %p136 = por %p134, %p135
    %p137 = scmp.ne.s32.totalorder %s126, %s129
    %p138 = scmp.eq.s32.totalorder %s18, 3
    %p139 = por %p137, %p138
    %p140 = scmp.ne.s32.totalorder %s129, %s130
    %p141 = scmp.eq.s32.totalorder %s18, 0
    %p142 = por %p140, %p141
    %p143 = scmp.ne.s32.totalorder %s129, %s130
    %p144 = scmp.eq.s32.totalorder %s19, 3
    %p145 = por %p143, %p144
    %p147 = scmp.ne.s32.totalorder %s130, %s146
    %p148 = scmp.eq.s32.totalorder %s19, 0
    %p149 = por %p147, %p148
    %s150 = smul.u32 %s20, 2
    %s151 = sadd.s32 %s150, %s21
    %s152 = smul.u32 %s32, 2
    %s153 = sadd.s32 %s152, %s28
    %s154 = ssub.s32 %s151, %s153
    %p155 = scmp.eq.s32.totalorder %s154, 0
    %s157 = sadd.s32 %s156, 1
    %s158 = scalar_select %p155, %s156, %s157
    %p161 = pneg %p155
    %p162 = scmp.eq.s32.totalorder %s13, 3
    %p163 = por %p161, %p162
    %p164 = scmp.ne.s32.totalorder %s156, %s159
    %p165 = scmp.eq.s32.totalorder %s13, 0
    %p166 = por %p164, %p165
    %p167 = scmp.ne.s32.totalorder %s156, %s159
    %p168 = scmp.eq.s32.totalorder %s18, 3
    %p169 = por %p167, %p168
    %p170 = scmp.ne.s32.totalorder %s159, %s160
    %p171 = scmp.eq.s32.totalorder %s18, 0
    %p172 = por %p170, %p171
    %p173 = scmp.ne.s32.totalorder %s159, %s160
    %p174 = scmp.eq.s32.totalorder %s19, 3
    %p175 = por %p173, %p174
    %p177 = scmp.ne.s32.totalorder %s160, %s176
    %p178 = scmp.eq.s32.totalorder %s19, 0
    %p179 = por %p177, %p178
    %s180 = smul.u32 %s20, 2
    %s181 = sadd.s32 %s180, %s21
    %s182 = smul.u32 %s32, 2
    %s183 = sadd.s32 %s182, %s28
    %s184 = ssub.s32 %s181, %s183
    %p185 = scmp.eq.s32.totalorder %s184, 0
    %s187 = sadd.s32 %s186, 1
    %s188 = scalar_select %p185, %s186, %s187
    %p191 = pneg %p185
    %p192 = scmp.eq.s32.totalorder %s13, 3
    %p193 = por %p191, %p192
    %p194 = scmp.ne.s32.totalorder %s186, %s189
    %p195 = scmp.eq.s32.totalorder %s13, 0
    %p196 = por %p194, %p195
    %p197 = scmp.ne.s32.totalorder %s186, %s189
    %p198 = scmp.eq.s32.totalorder %s18, 3
    %p199 = por %p197, %p198
    %p200 = scmp.ne.s32.totalorder %s189, %s190
    %p201 = scmp.eq.s32.totalorder %s18, 0
    %p202 = por %p200, %p201
    %p203 = scmp.ne.s32.totalorder %s189, %s190
    %p204 = scmp.eq.s32.totalorder %s19, 3
    %p205 = por %p203, %p204
    %p207 = scmp.ne.s32.totalorder %s190, %s206
    %p208 = scmp.eq.s32.totalorder %s19, 0
    %p209 = por %p207, %p208
    %p210 = scmp.le.s32.totalorder 1, %s13
    %p211 = scmp.lt.s32.totalorder %s13, 5
    %p212 = pnand %p210, %p211
    %p213 = pneg %p212
    // Predicated region
    $region9: #{bottleneck_forward.6} parent=5 // pred_check
      _
    $region10: #{bottleneck_forward.6} parent=5 // pred_check_branch
      %215 = sbr.rel (%p212) target = $region12
    $region11: #{bottleneck_forward.6} parent=5 // pred_region
      %s216 = ssub.s32 %s13, 1
      // Predicated region
      $region13: #{bottleneck_forward.6} parent=11 // pred_check
        %p217 = pneg %p72
      $region14: #{bottleneck_forward.6} parent=11 // pred_check_branch
        %219 = sbr.rel (%p217) target = $region16
      $region15: #{bottleneck_forward.6} parent=11 // pred_region
        _
      $region16: #{bottleneck_forward.6} parent=11 // pred_fallthru
        _
      // Predicated region
      $region17: #{bottleneck_forward.6} parent=11 // pred_check
        %p220 = pneg %p93
      $region18: #{bottleneck_forward.6} parent=11 // pred_check_branch
        %222 = sbr.rel (%p220) target = $region20
      $region19: #{bottleneck_forward.6} parent=11 // pred_region
        _
      $region20: #{bottleneck_forward.6} parent=11 // pred_fallthru
        _
      // Predicated region
      $region21: #{bottleneck_forward.6} parent=11 // pred_check
        %p223 = pneg %p114
      $region22: #{bottleneck_forward.6} parent=11 // pred_check_branch
        %225 = sbr.rel (%p223) target = $region24
      $region23: #{bottleneck_forward.6} parent=11 // pred_region
        _
      $region24: #{bottleneck_forward.6} parent=11 // pred_fallthru
        _
    $region12: #{bottleneck_forward.6} parent=5 // pred_fallthru
      _
    %p226 = scmp.lt.s32.totalorder %s13, 4
    // Predicated region
    $region25: #{bottleneck_forward.6} parent=5 // pred_check
      %p227 = pneg %p226
    $region26: #{bottleneck_forward.6} parent=5 // pred_check_branch
      %229 = sbr.rel (%p227) target = $region28
    $region27: #{bottleneck_forward.6} parent=5 // pred_region
      // Predicated region
      $region29: #{bottleneck_forward.6} parent=27 // pred_check
        %p230 = pneg %p45
      $region30: #{bottleneck_forward.6} parent=27 // pred_check_branch
        %232 = sbr.rel (%p230) target = $region32
      $region31: #{bottleneck_forward.6} parent=27 // pred_region
        %p233 = scmp.lt.s32.totalorder %s20, 1
        %s234 = scalar_select %p233, %s20, 1
        %s235 = smul.addr %s234, 54
        %s236 = smul.addr %s235, 4
        %s237 = scalar_lea.vmem %s0, %s236
      $region32: #{bottleneck_forward.6} parent=27 // pred_fallthru
        _
    $region28: #{bottleneck_forward.6} parent=5 // pred_fallthru
      _
    %p238 = scmp.le.s32.totalorder 1, %s13
    %p239 = scmp.lt.s32.totalorder %s13, 5
    %p240 = pnand %p238, %p239
    %p241 = pneg %p240
    // Predicated region
    $region33: #{bottleneck_forward.6} parent=5 // pred_check
      _
    $region34: #{bottleneck_forward.6} parent=5 // pred_check_branch
      %243 = sbr.rel (%p240) target = $region36
    $region35: #{bottleneck_forward.6} parent=5 // pred_region
      %s244 = ssub.s32 %s13, 1
      %p245 = scmp.lt.s32.totalorder %s22, 1
      %s246 = scalar_select %p245, %s22, 1
      %s247 = smul.addr %s246, 54
      %s248 = smul.addr %s247, 4
      %s249 = scalar_lea.vmem %s0, %s248
      %p250 = pneg %p51
      %p251 = pneg %p48
      %p252 = pneg %p72
      %p253 = pneg %p69
      %p254 = pneg %p93
      %p255 = pneg %p90
      %p256 = pneg %p114
      %p257 = pneg %p111
      %p258 = pneg %p142
      %p259 = pneg %p139
      %s260 = smul.u32 16, %s23
      %p261 = scmp.lt.s32.totalorder %s22, 1
      %s262 = scalar_select %p261, %s22, 1
      %p263 = scmp.lt.s32.totalorder %s260, 31
      %s264 = scalar_select %p263, %s260, 31
      %s265 = smul.addr %s262, 32
      %s266 = sadd.s32 %s264, %s265
      %s267 = smul.addr %s266, 4
      %s268 = scalar_lea.vmem %s4, %s267
      %p269 = pneg %p172
      %p270 = pneg %p169
      %s271 = smul.u32 %s22, 2
      %s272 = sadd.s32 %s271, %s23
      %p273 = scmp.lt.s32.totalorder %s272, 3
      %s274 = scalar_select %p273, %s272, 3
      %s275 = scalar_lea.vmem %s5, %s274
      %p276 = pneg %p202
      %p277 = pneg %p199
      %s278 = smul.u32 %s22, 2
      %s279 = sadd.s32 %s278, %s23
      %p280 = scmp.lt.s32.totalorder %s279, 3
      %s281 = scalar_select %p280, %s279, 3
      %s282 = scalar_lea.vmem %s6, %s281
      %p283 = scmp.lt.s32.totalorder %s22, 1
      %s284 = scalar_select %p283, %s22, 1
      %s285 = smul.addr %s284, 54
      %s286 = smul.addr %s285, 4
      %s287 = scalar_lea.vmem %s0, %s286
      %s288 = smul.u32 16, %s23
      %p289 = scmp.lt.s32.totalorder %s22, 1
      %s290 = scalar_select %p289, %s22, 1
      %p291 = scmp.lt.s32.totalorder %s288, 31
      %s292 = scalar_select %p291, %s288, 31
      %s293 = smul.addr %s290, 32
      %s294 = sadd.s32 %s292, %s293
      %s295 = smul.addr %s294, 4
      %s296 = scalar_lea.vmem %s4, %s295
      %s297 = smul.u32 16, %s23
      %s298 = smul.u32 %s22, 2
      %s299 = sadd.s32 %s298, %s23
      %p300 = scmp.lt.s32.totalorder %s299, 3
      %s301 = scalar_select %p300, %s299, 3
      %s302 = scalar_lea.vmem %s5, %s301
      %s303 = smul.u32 %s22, 2
      %s304 = sadd.s32 %s303, %s23
      %s305 = smul.u32 %s22, 2
      %s306 = sadd.s32 %s305, %s23
      %p307 = scmp.lt.s32.totalorder %s306, 3
      %s308 = scalar_select %p307, %s306, 3
      %s309 = scalar_lea.vmem %s6, %s308
      %s310 = smul.u32 %s22, 2
      %s311 = sadd.s32 %s310, %s23
      %s313 = smul.u32 %s23, 8
      %s314 = smul.u32 %s313, 3
      %s315 = smul.addr %s314, 4
      %s316 = scalar_lea.vmem %s287, %s315
      %v317 = vld [vmem:[%s316] sm:$0xf]
      %v318 = vld [vmem:[%s316 + $0x4] sm:$0xf]
      %v319 = vld [vmem:[%s316 + $0x8] sm:$0x1]
      %v320 = vld [vmem:[%s316 + $0xc] sm:$0xf]
      %v321 = vld [vmem:[%s316 + $0x10] sm:$0xf]
      %v322 = vld [vmem:[%s316 + $0x14] sm:$0x1]
      %v323 = vld [vmem:[%s316 + $0x18] sm:$0xf]
      %v324 = vld [vmem:[%s316 + $0x1c] sm:$0xf]
      %v325 = vld [vmem:[%s316 + $0x20] sm:$0x1]
      %v326 = vld [vmem:[%s316 + $0x24] sm:$0xf]
      %v327 = vld [vmem:[%s316 + $0x28] sm:$0xf]
      %v328 = vld [vmem:[%s316 + $0x2c] sm:$0x1]
      %v329 = vld [vmem:[%s316 + $0x30] sm:$0xf]
      %v330 = vld [vmem:[%s316 + $0x34] sm:$0xf]
      %v331 = vld [vmem:[%s316 + $0x38] sm:$0x1]
      %v332 = vld [vmem:[%s316 + $0x3c] sm:$0xf]
      %v333 = vld [vmem:[%s316 + $0x40] sm:$0xf]
      %v334 = vld [vmem:[%s316 + $0x44] sm:$0x1]
      %v335 = vld [vmem:[%s316 + $0x48] sm:$0xf]
      %v336 = vld [vmem:[%s316 + $0x4c] sm:$0xf]
      %v337 = vld [vmem:[%s316 + $0x50] sm:$0x1]
      %v338 = vld [vmem:[%s316 + $0x54] sm:$0xf]
      %v339 = vld [vmem:[%s316 + $0x58] sm:$0xf]
      %v340 = vld [vmem:[%s316 + $0x5c] sm:$0x1]
      %v341 = vld [vmem:[%s316 + $0x60] sm:$0xf]
      %v342 = vld [vmem:[%s316 + $0x64] sm:$0xf]
      %v343 = vld [vmem:[%s316 + $0x68] sm:$0x1]
      %v344 = vld [vmem:[%s316 + $0x6c] sm:$0xf]
      %v345 = vld [vmem:[%s316 + $0x70] sm:$0xf]
      %v346 = vld [vmem:[%s316 + $0x74] sm:$0x1]
      %v347 = vunpack.c.l.bf16 %v317
      %v348 = vunpack.c.l.bf16 %v318
      %v349 = vunpack.c.l.bf16 %v319
      %v350 = vunpack.c.l.bf16 %v320
      %v351 = vunpack.c.l.bf16 %v321
      %v352 = vunpack.c.l.bf16 %v322
      %v353 = vunpack.c.l.bf16 %v323
      %v354 = vunpack.c.l.bf16 %v324
      %v355 = vunpack.c.l.bf16 %v325
      %v356 = vunpack.c.l.bf16 %v326
      %v357 = vunpack.c.l.bf16 %v327
      %v358 = vunpack.c.l.bf16 %v328
      %v359 = vunpack.c.l.bf16 %v329
      %v360 = vunpack.c.l.bf16 %v330
      %v361 = vunpack.c.l.bf16 %v331
      %v362 = vunpack.c.l.bf16 %v332
      %v363 = vunpack.c.l.bf16 %v333
      %v364 = vunpack.c.l.bf16 %v334
      %v365 = vunpack.c.l.bf16 %v335
      %v366 = vunpack.c.l.bf16 %v336
      %v367 = vunpack.c.l.bf16 %v337
      %v368 = vunpack.c.l.bf16 %v338
      %v369 = vunpack.c.l.bf16 %v339
      %v370 = vunpack.c.l.bf16 %v340
      %v371 = vunpack.c.l.bf16 %v341
      %v372 = vunpack.c.l.bf16 %v342
      %v373 = vunpack.c.l.bf16 %v343
      %v374 = vunpack.c.l.bf16 %v344
      %v375 = vunpack.c.l.bf16 %v345
      %v376 = vunpack.c.l.bf16 %v346
      %v377 = vld [vmem:[%s2] sm:$0x1]
      %v379 = vlaneseq
      %v380 = vshrl.u32 %v379, 7
      %v381 = vsub.s32 0, %v380
      %v382 = vrot.slane %v377, %v381
      %v384 = vmul.f32 %v347, %v382
      %v385 = vmul.f32 %v348, %v382
      %v386 = vmul.f32 %v349, %v382
      %v387 = vmul.f32 %v350, %v382
      %v388 = vmul.f32 %v351, %v382
      %v389 = vmul.f32 %v352, %v382
      %v390 = vmul.f32 %v353, %v382
      %v391 = vmul.f32 %v354, %v382
      %v392 = vmul.f32 %v355, %v382
      %v393 = vmul.f32 %v356, %v382
      %v394 = vmul.f32 %v357, %v382
      %v395 = vmul.f32 %v358, %v382
      %v396 = vmul.f32 %v359, %v382
      %v397 = vmul.f32 %v360, %v382
      %v398 = vmul.f32 %v361, %v382
      %v399 = vmul.f32 %v362, %v382
      %v400 = vmul.f32 %v363, %v382
      %v401 = vmul.f32 %v364, %v382
      %v402 = vmul.f32 %v365, %v382
      %v403 = vmul.f32 %v366, %v382
      %v404 = vmul.f32 %v367, %v382
      %v405 = vmul.f32 %v368, %v382
      %v406 = vmul.f32 %v369, %v382
      %v407 = vmul.f32 %v370, %v382
      %v408 = vmul.f32 %v371, %v382
      %v409 = vmul.f32 %v372, %v382
      %v410 = vmul.f32 %v373, %v382
      %v411 = vmul.f32 %v374, %v382
      %v412 = vmul.f32 %v375, %v382
      %v413 = vmul.f32 %v376, %v382
      %v414 = vld [vmem:[%s3] sm:$0x1]
      %v416 = vlaneseq
      %v417 = vshrl.u32 %v416, 7
      %v418 = vsub.s32 0, %v417
      %v419 = vrot.slane %v414, %v418
      %v421 = vadd.f32 %v384, %v419
      %v422 = vadd.f32 %v385, %v419
      %v423 = vadd.f32 %v386, %v419
      %v424 = vadd.f32 %v387, %v419
      %v425 = vadd.f32 %v388, %v419
      %v426 = vadd.f32 %v389, %v419
      %v427 = vadd.f32 %v390, %v419
      %v428 = vadd.f32 %v391, %v419
      %v429 = vadd.f32 %v392, %v419
      %v430 = vadd.f32 %v393, %v419
      %v431 = vadd.f32 %v394, %v419
      %v432 = vadd.f32 %v395, %v419
      %v433 = vadd.f32 %v396, %v419
      %v434 = vadd.f32 %v397, %v419
      %v435 = vadd.f32 %v398, %v419
      %v436 = vadd.f32 %v399, %v419
      %v437 = vadd.f32 %v400, %v419
      %v438 = vadd.f32 %v401, %v419
      %v439 = vadd.f32 %v402, %v419
      %v440 = vadd.f32 %v403, %v419
      %v441 = vadd.f32 %v404, %v419
      %v442 = vadd.f32 %v405, %v419
      %v443 = vadd.f32 %v406, %v419
      %v444 = vadd.f32 %v407, %v419
      %v445 = vadd.f32 %v408, %v419
      %v446 = vadd.f32 %v409, %v419
      %v447 = vadd.f32 %v410, %v419
      %v448 = vadd.f32 %v411, %v419
      %v449 = vadd.f32 %v412, %v419
      %v450 = vadd.f32 %v413, %v419
      %v451 = vmax.f32 %v421, 0.0
      %v452 = vmax.f32 %v422, 0.0
      %v453 = vmax.f32 %v423, 0.0
      %v454 = vmax.f32 %v424, 0.0
      %v455 = vmax.f32 %v425, 0.0
      %v456 = vmax.f32 %v426, 0.0
      %v457 = vmax.f32 %v427, 0.0
      %v458 = vmax.f32 %v428, 0.0
      %v459 = vmax.f32 %v429, 0.0
      %v460 = vmax.f32 %v430, 0.0
      %v461 = vmax.f32 %v431, 0.0
      %v462 = vmax.f32 %v432, 0.0
      %v463 = vmax.f32 %v433, 0.0
      %v464 = vmax.f32 %v434, 0.0
      %v465 = vmax.f32 %v435, 0.0
      %v466 = vmax.f32 %v436, 0.0
      %v467 = vmax.f32 %v437, 0.0
      %v468 = vmax.f32 %v438, 0.0
      %v469 = vmax.f32 %v439, 0.0
      %v470 = vmax.f32 %v440, 0.0
      %v471 = vmax.f32 %v441, 0.0
      %v472 = vmax.f32 %v442, 0.0
      %v473 = vmax.f32 %v443, 0.0
      %v474 = vmax.f32 %v444, 0.0
      %v475 = vmax.f32 %v445, 0.0
      %v476 = vmax.f32 %v446, 0.0
      %v477 = vmax.f32 %v447, 0.0
      %v478 = vmax.f32 %v448, 0.0
      %v479 = vmax.f32 %v449, 0.0
      %v480 = vmax.f32 %v450, 0.0
      %v481 = vstv %s313
      %v482 = vadd.s32 %v481, 1
      %v483 = vadd.s32 %v481, 2
      %v484 = vadd.s32 %v481, 3
      %v485 = vadd.s32 %v481, 4
      %v486 = vadd.s32 %v481, 5
      %v487 = vadd.s32 %v481, 6
      %v488 = vadd.s32 %v481, 7
      %v489 = vadd.s32 %v481, 8
      %v490 = vadd.s32 %v481, 9
      %v491 = vlaneseq
      %v492 = vshrl.u32 %v491, 7
      %v493 = vadd.s32 %v492, 8
      %v494 = vadd.s32 %v492, 16
      %vm495 = vcmp.ge.s32.totalorder %v481, 1
      %vm496 = vcmp.ge.s32.totalorder %v482, 1
      %vm497 = vcmp.ge.s32.totalorder %v483, 1
      %vm498 = vcmp.ge.s32.totalorder %v484, 1
      %vm499 = vcmp.ge.s32.totalorder %v485, 1
      %vm500 = vcmp.ge.s32.totalorder %v486, 1
      %vm501 = vcmp.ge.s32.totalorder %v487, 1
      %vm502 = vcmp.ge.s32.totalorder %v488, 1
      %vm503 = vcmp.ge.s32.totalorder %v489, 1
      %vm504 = vcmp.ge.s32.totalorder %v490, 1
      %vm505 = vcmp.le.s32.totalorder %v481, 16
      %vm506 = vcmp.le.s32.totalorder %v482, 16
      %vm507 = vcmp.le.s32.totalorder %v483, 16
      %vm508 = vcmp.le.s32.totalorder %v484, 16
      %vm509 = vcmp.le.s32.totalorder %v485, 16
      %vm510 = vcmp.le.s32.totalorder %v486, 16
      %vm511 = vcmp.le.s32.totalorder %v487, 16
      %vm512 = vcmp.le.s32.totalorder %v488, 16
      %vm513 = vcmp.le.s32.totalorder %v489, 16
      %vm514 = vcmp.le.s32.totalorder %v490, 16
      %vm515 = vmand %vm495, %vm505
      %vm516 = vmand %vm496, %vm506
      %vm517 = vmand %vm497, %vm507
      %vm518 = vmand %vm498, %vm508
      %vm519 = vmand %vm499, %vm509
      %vm520 = vmand %vm500, %vm510
      %vm521 = vmand %vm501, %vm511
      %vm522 = vmand %vm502, %vm512
      %vm523 = vmand %vm503, %vm513
      %vm524 = vmand %vm504, %vm514
      %vm525 = vcmp.ge.s32.totalorder %v492, 1
      %vm526 = vcmp.ge.s32.totalorder %v493, 1
      %vm527 = vcmp.ge.s32.totalorder %v494, 1
      %vm528 = vmand %vm515, %vm525
      %vm529 = vmand %vm515, %vm526
      %vm530 = vmand %vm515, %vm527
      %vm531 = vmand %vm516, %vm525
      %vm532 = vmand %vm516, %vm526
      %vm533 = vmand %vm516, %vm527
      %vm534 = vmand %vm517, %vm525
      %vm535 = vmand %vm517, %vm526
      %vm536 = vmand %vm517, %vm527
      %vm537 = vmand %vm518, %vm525
      %vm538 = vmand %vm518, %vm526
      %vm539 = vmand %vm518, %vm527
      %vm540 = vmand %vm519, %vm525
      %vm541 = vmand %vm519, %vm526
      %vm542 = vmand %vm519, %vm527
      %vm543 = vmand %vm520, %vm525
      %vm544 = vmand %vm520, %vm526
      %vm545 = vmand %vm520, %vm527
      %vm546 = vmand %vm521, %vm525
      %vm547 = vmand %vm521, %vm526
      %vm548 = vmand %vm521, %vm527
      %vm549 = vmand %vm522, %vm525
      %vm550 = vmand %vm522, %vm526
      %vm551 = vmand %vm522, %vm527
      %vm552 = vmand %vm523, %vm525
      %vm553 = vmand %vm523, %vm526
      %vm554 = vmand %vm523, %vm527
      %vm555 = vmand %vm524, %vm525
      %vm556 = vmand %vm524, %vm526
      %vm557 = vmand %vm524, %vm527
      %vm558 = vcmp.le.s32.totalorder %v492, 16
      %vm559 = vcmp.le.s32.totalorder %v493, 16
      %vm560 = vcmp.le.s32.totalorder %v494, 16
      %vm561 = vmand %vm528, %vm558
      %vm562 = vmand %vm529, %vm559
      %vm563 = vmand %vm530, %vm560
      %vm564 = vmand %vm531, %vm558
      %vm565 = vmand %vm532, %vm559
      %vm566 = vmand %vm533, %vm560
      %vm567 = vmand %vm534, %vm558
      %vm568 = vmand %vm535, %vm559
      %vm569 = vmand %vm536, %vm560
      %vm570 = vmand %vm537, %vm558
      %vm571 = vmand %vm538, %vm559
      %vm572 = vmand %vm539, %vm560
      %vm573 = vmand %vm540, %vm558
      %vm574 = vmand %vm541, %vm559
      %vm575 = vmand %vm542, %vm560
      %vm576 = vmand %vm543, %vm558
      %vm577 = vmand %vm544, %vm559
      %vm578 = vmand %vm545, %vm560
      %vm579 = vmand %vm546, %vm558
      %vm580 = vmand %vm547, %vm559
      %vm581 = vmand %vm548, %vm560
      %vm582 = vmand %vm549, %vm558
      %vm583 = vmand %vm550, %vm559
      %vm584 = vmand %vm551, %vm560
      %vm585 = vmand %vm552, %vm558
      %vm586 = vmand %vm553, %vm559
      %vm587 = vmand %vm554, %vm560
      %vm588 = vmand %vm555, %vm558
      %vm589 = vmand %vm556, %vm559
      %vm590 = vmand %vm557, %vm560
      %v591 = vsel %vm561, 1, 0
      %v592 = vsel %vm562, 1, 0
      %v593 = vsel %vm563, 1, 0
      %v594 = vsel %vm564, 1, 0
      %v595 = vsel %vm565, 1, 0
      %v596 = vsel %vm566, 1, 0
      %v597 = vsel %vm567, 1, 0
      %v598 = vsel %vm568, 1, 0
      %v599 = vsel %vm569, 1, 0
      %v600 = vsel %vm570, 1, 0
      %v601 = vsel %vm571, 1, 0
      %v602 = vsel %vm572, 1, 0
      %v603 = vsel %vm573, 1, 0
      %v604 = vsel %vm574, 1, 0
      %v605 = vsel %vm575, 1, 0
      %v606 = vsel %vm576, 1, 0
      %v607 = vsel %vm577, 1, 0
      %v608 = vsel %vm578, 1, 0
      %v609 = vsel %vm579, 1, 0
      %v610 = vsel %vm580, 1, 0
      %v611 = vsel %vm581, 1, 0
      %v612 = vsel %vm582, 1, 0
      %v613 = vsel %vm583, 1, 0
      %v614 = vsel %vm584, 1, 0
      %v615 = vsel %vm585, 1, 0
      %v616 = vsel %vm586, 1, 0
      %v617 = vsel %vm587, 1, 0
      %v618 = vsel %vm588, 1, 0
      %v619 = vsel %vm589, 1, 0
      %v620 = vsel %vm590, 1, 0
      %vm621 = vcmp.eq.s32.totalorder %v591, 1
      %vm622 = vcmp.eq.s32.totalorder %v592, 1
      %vm623 = vcmp.eq.s32.totalorder %v593, 1
      %vm624 = vcmp.eq.s32.totalorder %v594, 1
      %vm625 = vcmp.eq.s32.totalorder %v595, 1
      %vm626 = vcmp.eq.s32.totalorder %v596, 1
      %vm627 = vcmp.eq.s32.totalorder %v597, 1
      %vm628 = vcmp.eq.s32.totalorder %v598, 1
      %vm629 = vcmp.eq.s32.totalorder %v599, 1
      %vm630 = vcmp.eq.s32.totalorder %v600, 1
      %vm631 = vcmp.eq.s32.totalorder %v601, 1
      %vm632 = vcmp.eq.s32.totalorder %v602, 1
      %vm633 = vcmp.eq.s32.totalorder %v603, 1
      %vm634 = vcmp.eq.s32.totalorder %v604, 1
      %vm635 = vcmp.eq.s32.totalorder %v605, 1
      %vm636 = vcmp.eq.s32.totalorder %v606, 1
      %vm637 = vcmp.eq.s32.totalorder %v607, 1
      %vm638 = vcmp.eq.s32.totalorder %v608, 1
      %vm639 = vcmp.eq.s32.totalorder %v609, 1
      %vm640 = vcmp.eq.s32.totalorder %v610, 1
      %vm641 = vcmp.eq.s32.totalorder %v611, 1
      %vm642 = vcmp.eq.s32.totalorder %v612, 1
      %vm643 = vcmp.eq.s32.totalorder %v613, 1
      %vm644 = vcmp.eq.s32.totalorder %v614, 1
      %vm645 = vcmp.eq.s32.totalorder %v615, 1
      %vm646 = vcmp.eq.s32.totalorder %v616, 1
      %vm647 = vcmp.eq.s32.totalorder %v617, 1
      %vm648 = vcmp.eq.s32.totalorder %v618, 1
      %vm649 = vcmp.eq.s32.totalorder %v619, 1
      %vm650 = vcmp.eq.s32.totalorder %v620, 1
      %v651 = vsel %vm621, %v451, 0.0
      %v652 = vsel %vm622, %v452, 0.0
      %v653 = vsel %vm623, %v453, 0.0
      %v654 = vsel %vm624, %v454, 0.0
      %v655 = vsel %vm625, %v455, 0.0
      %v656 = vsel %vm626, %v456, 0.0
      %v657 = vsel %vm627, %v457, 0.0
      %v658 = vsel %vm628, %v458, 0.0
      %v659 = vsel %vm629, %v459, 0.0
      %v660 = vsel %vm630, %v460, 0.0
      %v661 = vsel %vm631, %v461, 0.0
      %v662 = vsel %vm632, %v462, 0.0
      %v663 = vsel %vm633, %v463, 0.0
      %v664 = vsel %vm634, %v464, 0.0
      %v665 = vsel %vm635, %v465, 0.0
      %v666 = vsel %vm636, %v466, 0.0
      %v667 = vsel %vm637, %v467, 0.0
      %v668 = vsel %vm638, %v468, 0.0
      %v669 = vsel %vm639, %v469, 0.0
      %v670 = vsel %vm640, %v470, 0.0
      %v671 = vsel %vm641, %v471, 0.0
      %v672 = vsel %vm642, %v472, 0.0
      %v673 = vsel %vm643, %v473, 0.0
      %v674 = vsel %vm644, %v474, 0.0
      %v675 = vsel %vm645, %v475, 0.0
      %v676 = vsel %vm646, %v476, 0.0
      %v677 = vsel %vm647, %v477, 0.0
      %v678 = vsel %vm648, %v478, 0.0
      %v679 = vsel %vm649, %v479, 0.0
      %v680 = vsel %vm650, %v480, 0.0
      %v681 = vpack.c.bf16 %v652, %v651
      %v682 = vpack.c.bf16 %v653, %v653
      %v683 = vpack.c.bf16 %v655, %v654
      %v684 = vpack.c.bf16 %v656, %v656
      %v685 = vpack.c.bf16 %v658, %v657
      %v686 = vpack.c.bf16 %v659, %v659
      %v687 = vpack.c.bf16 %v661, %v660
      %v688 = vpack.c.bf16 %v662, %v662
      %v689 = vpack.c.bf16 %v664, %v663
      %v690 = vpack.c.bf16 %v665, %v665
      %v691 = vpack.c.bf16 %v667, %v666
      %v692 = vpack.c.bf16 %v668, %v668
      %v693 = vpack.c.bf16 %v670, %v669
      %v694 = vpack.c.bf16 %v671, %v671
      %v695 = vpack.c.bf16 %v673, %v672
      %v696 = vpack.c.bf16 %v674, %v674
      %v697 = vpack.c.bf16 %v676, %v675
      %v698 = vpack.c.bf16 %v677, %v677
      %v699 = vpack.c.bf16 %v679, %v678
      %v700 = vpack.c.bf16 %v680, %v680
      %v701 = vld [vmem:[%s1] sm:$0xf]
      %v702 = vld [vmem:[%s1 + $0x4] sm:$0xf]
      %v703 = vld [vmem:[%s1 + $0x8] sm:$0xf]
      %v704 = vld [vmem:[%s1 + $0xc] sm:$0xf]
      %v705 = vld [vmem:[%s1 + $0x10] sm:$0xf]
      %v706 = vld [vmem:[%s1 + $0x14] sm:$0xf]
      %v707 = vld [vmem:[%s1 + $0x18] sm:$0xf]
      %v708 = vld [vmem:[%s1 + $0x1c] sm:$0xf]
      %v709 = vld [vmem:[%s1 + $0x20] sm:$0xf]
      %v710 = vld [vmem:[%s1 + $0x24] sm:$0xf]
      %v711 = vld [vmem:[%s1 + $0x28] sm:$0xf]
      %v712 = vld [vmem:[%s1 + $0x2c] sm:$0xf]
      %v713 = vld [vmem:[%s1 + $0x30] sm:$0xf]
      %v714 = vld [vmem:[%s1 + $0x34] sm:$0xf]
      %v715 = vld [vmem:[%s1 + $0x38] sm:$0xf]
      %v716 = vld [vmem:[%s1 + $0x3c] sm:$0xf]
      %v733 = vunpack.c.l.b16 %v701
      %v734 = vunpack.c.l.b16 %v702
      %v735 = vunpack.c.l.b16 %v703
      %v736 = vunpack.c.l.b16 %v704
      %v737 = vunpack.c.l.b16 %v705
      %v738 = vunpack.c.l.b16 %v706
      %v739 = vunpack.c.l.b16 %v707
      %v740 = vunpack.c.l.b16 %v708
      %v741 = vunpack.c.l.b16 %v709
      %v742 = vunpack.c.l.b16 %v710
      %v743 = vunpack.c.l.b16 %v711
      %v744 = vunpack.c.l.b16 %v712
      %v745 = vunpack.c.l.b16 %v713
      %v746 = vunpack.c.l.b16 %v714
      %v747 = vunpack.c.l.b16 %v715
      %v748 = vunpack.c.l.b16 %v716
      %v749 = vpack.c.b16 %v734, %v733
      %v750 = vpack.c.b16 %v736, %v735
      %v751 = vpack.c.b16 %v738, %v737
      %v752 = vpack.c.b16 %v740, %v739
      %v753 = vpack.c.b16 %v742, %v741
      %v754 = vpack.c.b16 %v744, %v743
      %v755 = vpack.c.b16 %v746, %v745
      %v756 = vpack.c.b16 %v748, %v747
      %765 = vmatprep.subr.bf16.mxu0 0
      %766 = vmatpush1.bf16.msra.mxu0 %v749
      %767 = vmatprep.subr.bf16.mxu0 0
      %768 = vmatpush1.bf16.msra.mxu0 %v750
      %769 = vmatprep.subr.bf16.mxu0 0
      %770 = vmatpush1.bf16.msra.mxu0 %v751
      %771 = vmatprep.subr.bf16.mxu0 0
      %772 = vmatpush1.bf16.msra.mxu0 %v752
      %773 = vmatprep.subr.bf16.mxu0 0
      %774 = vmatpush1.bf16.msra.mxu0 %v753
      %775 = vmatprep.subr.bf16.mxu0 0
      %776 = vmatpush1.bf16.msra.mxu0 %v754
      %777 = vmatprep.subr.bf16.mxu0 0
      %778 = vmatpush1.bf16.msra.mxu0 %v755
      %779 = vmatprep.subr.bf16.mxu0 0
      %780 = vmatpush1.bf16.msra.mxu0 %v756
      %781 = vmatprep.subr.bf16.mxu0 0
      %782 = vmatpush1.bf16.msra.mxu0 0
      %783 = vmatprep.subr.bf16.mxu0 0
      %784 = vmatpush1.bf16.msra.mxu0 0
      %785 = vmatprep.subr.bf16.mxu0 0
      %786 = vmatpush1.bf16.msra.mxu0 0
      %787 = vmatprep.subr.bf16.mxu0 0
      %788 = vmatpush1.bf16.msra.mxu0 0
      %789 = vmatprep.subr.bf16.mxu0 0
      %790 = vmatpush1.bf16.msra.mxu0 0
      %791 = vmatprep.subr.bf16.mxu0 0
      %792 = vmatpush1.bf16.msra.mxu0 0
      %793 = vmatprep.subr.bf16.mxu0 0
      %794 = vmatpush1.bf16.msra.mxu0 0
      %795 = vmatprep.subr.bf16.mxu0 0
      %796 = vmatpush1.bf16.msra.mxu0 0
      %797 = vmatprep.mubr.bf16.mxu0 0
      %798 = vmatmul.mubr.bf16.gmra.mrb[0].mxu0 %v681
      %v799 = vpop.f32.mrb[0].mxu0
      %v800 = vadd.f32 0.0, %v799
      %v801 = vpop.f32.mrb[0].mxu0
      %v802 = vpop.f32.mrb[0].mxu0
      %v803 = vadd.f32 0.0, %v802
      %v804 = vpop.f32.mrb[0].mxu0
      %805 = vmatprep.mubr.bf16.mxu0 0
      %806 = vmatmul.mubr.bf16.gmra.mrb[0].mxu0 %v683
      %v807 = vpop.f32.mrb[0].mxu0
      %v808 = vadd.f32 0.0, %v807
      %v809 = vpop.f32.mrb[0].mxu0
      %v810 = vpop.f32.mrb[0].mxu0
      %v811 = vadd.f32 0.0, %v810
      %v812 = vpop.f32.mrb[0].mxu0
      %813 = vmatprep.mubr.bf16.mxu0 0
      %814 = vmatmul.mubr.bf16.gmra.mrb[0].mxu0 %v685
      %v815 = vpop.f32.mrb[0].mxu0
      %v816 = vadd.f32 0.0, %v815
      %v817 = vpop.f32.mrb[0].mxu0
      %v818 = vpop.f32.mrb[0].mxu0
      %v819 = vadd.f32 0.0, %v818
      %v820 = vpop.f32.mrb[0].mxu0
      %821 = vmatprep.mubr.bf16.mxu0 0
      %822 = vmatmul.mubr.bf16.gmra.mrb[0].mxu0 %v687
      %v823 = vpop.f32.mrb[0].mxu0
      %v824 = vadd.f32 0.0, %v823
      %v825 = vpop.f32.mrb[0].mxu0
      %v826 = vpop.f32.mrb[0].mxu0
      %v827 = vadd.f32 0.0, %v826
      %v828 = vpop.f32.mrb[0].mxu0
      %829 = vmatprep.mubr.bf16.mxu0 0
      %830 = vmatmul.mubr.bf16.gmra.mrb[0].mxu0 %v689
      %v831 = vpop.f32.mrb[0].mxu0
      %v832 = vadd.f32 0.0, %v831
      %v833 = vpop.f32.mrb[0].mxu0
      %v834 = vpop.f32.mrb[0].mxu0
      %v835 = vadd.f32 0.0, %v834
      %v836 = vpop.f32.mrb[0].mxu0
      %837 = vmatprep.mubr.bf16.mxu0 0
      %838 = vmatmul.mubr.bf16.gmra.mrb[0].mxu0 %v691
      %v839 = vpop.f32.mrb[0].mxu0
      %v840 = vadd.f32 0.0, %v839
      %v841 = vpop.f32.mrb[0].mxu0
      %v842 = vpop.f32.mrb[0].mxu0
      %v843 = vadd.f32 0.0, %v842
      %v844 = vpop.f32.mrb[0].mxu0
      %845 = vmatprep.mubr.bf16.mxu0 0
      %846 = vmatmul.mubr.bf16.gmra.mrb[0].mxu0 %v693
      %v847 = vpop.f32.mrb[0].mxu0
      %v848 = vadd.f32 0.0, %v847
      %v849 = vpop.f32.mrb[0].mxu0
      %v850 = vpop.f32.mrb[0].mxu0
      %v851 = vadd.f32 0.0, %v850
      %v852 = vpop.f32.mrb[0].mxu0
      %853 = vmatprep.mubr.bf16.mxu0 0
      %854 = vmatmul.mubr.bf16.gmra.mrb[0].mxu0 %v695
      %v855 = vpop.f32.mrb[0].mxu0
      %v856 = vadd.f32 0.0, %v855
      %v857 = vpop.f32.mrb[0].mxu0
      %v858 = vpop.f32.mrb[0].mxu0
      %v859 = vadd.f32 0.0, %v858
      %v860 = vpop.f32.mrb[0].mxu0
      %861 = vdwg.mxu0
      %862 = vst [vmem:[#allocation2] sm:$0xff] %v800
      %863 = vst [vmem:[#allocation2 + $0x8] sm:$0xff] %v803
      %864 = vst [vmem:[#allocation2 + $0x10] sm:$0xff] %v808
      %865 = vst [vmem:[#allocation2 + $0x18] sm:$0xff] %v811
      %866 = vst [vmem:[#allocation2 + $0x20] sm:$0xff] %v816
      %867 = vst [vmem:[#allocation2 + $0x28] sm:$0xff] %v819
      %868 = vst [vmem:[#allocation2 + $0x30] sm:$0xff] %v824
      %869 = vst [vmem:[#allocation2 + $0x38] sm:$0xff] %v827
      %870 = vst [vmem:[#allocation2 + $0x40] sm:$0xff] %v832
      %871 = vst [vmem:[#allocation2 + $0x48] sm:$0xff] %v835
      %872 = vst [vmem:[#allocation2 + $0x50] sm:$0xff] %v840
      %873 = vst [vmem:[#allocation2 + $0x58] sm:$0xff] %v843
      %874 = vst [vmem:[#allocation2 + $0x60] sm:$0xff] %v848
      %875 = vst [vmem:[#allocation2 + $0x68] sm:$0xff] %v851
      %876 = vst [vmem:[#allocation2 + $0x70] sm:$0xff] %v856
      %877 = vst [vmem:[#allocation2 + $0x78] sm:$0xff] %v859
      %vm878 = vsmask.f32 7424
      %v880 = vshrl.u32 %v681, 16
      %v882 = vshll.u32 %v681, 16
      %v884 = vrot.slane %v882, 1
      %v885 = vor.u32 %v880, %v884
      %v887 = vshll.u32 %v682, 16
      %v889 = vrot.slane %v887, 1
      %v890 = vsel %vm878, %v885, %v889
      %v892 = vshrl.u32 %v683, 16
      %v894 = vshll.u32 %v683, 16
      %v896 = vrot.slane %v894, 1
      %v897 = vor.u32 %v892, %v896
      %v899 = vshll.u32 %v684, 16
      %v901 = vrot.slane %v899, 1
      %v902 = vsel %vm878, %v897, %v901
      %v904 = vshrl.u32 %v685, 16
      %v906 = vshll.u32 %v685, 16
      %v908 = vrot.slane %v906, 1
      %v909 = vor.u32 %v904, %v908
      %v911 = vshll.u32 %v686, 16
      %v913 = vrot.slane %v911, 1
      %v914 = vsel %vm878, %v909, %v913
      %v916 = vshrl.u32 %v687, 16
      %v918 = vshll.u32 %v687, 16
      %v920 = vrot.slane %v918, 1
      %v921 = vor.u32 %v916, %v920
      %v923 = vshll.u32 %v688, 16
      %v925 = vrot.slane %v923, 1
      %v926 = vsel %vm878, %v921, %v925
      %v928 = vshrl.u32 %v689, 16
      %v930 = vshll.u32 %v689, 16
      %v932 = vrot.slane %v930, 1
      %v933 = vor.u32 %v928, %v932
      %v935 = vshll.u32 %v690, 16
      %v937 = vrot.slane %v935, 1
      %v938 = vsel %vm878, %v933, %v937
      %v940 = vshrl.u32 %v691, 16
      %v942 = vshll.u32 %v691, 16
      %v944 = vrot.slane %v942, 1
      %v945 = vor.u32 %v940, %v944
      %v947 = vshll.u32 %v692, 16
      %v949 = vrot.slane %v947, 1
      %v950 = vsel %vm878, %v945, %v949
      %v952 = vshrl.u32 %v693, 16
      %v954 = vshll.u32 %v693, 16
      %v956 = vrot.slane %v954, 1
      %v957 = vor.u32 %v952, %v956
      %v959 = vshll.u32 %v694, 16
      %v961 = vrot.slane %v959, 1
      %v962 = vsel %vm878, %v957, %v961
      %v964 = vshrl.u32 %v695, 16
      %v966 = vshll.u32 %v695, 16
      %v968 = vrot.slane %v966, 1
      %v969 = vor.u32 %v964, %v968
      %v971 = vshll.u32 %v696, 16
      %v973 = vrot.slane %v971, 1
      %v974 = vsel %vm878, %v969, %v973
      %s983 = scalar_lea.vmem %s1, 64
      %v984 = vld [vmem:[%s983] sm:$0xf]
      %v985 = vld [vmem:[%s983 + $0x4] sm:$0xf]
      %v986 = vld [vmem:[%s983 + $0x8] sm:$0xf]
      %v987 = vld [vmem:[%s983 + $0xc] sm:$0xf]
      %v988 = vld [vmem:[%s983 + $0x10] sm:$0xf]
      %v989 = vld [vmem:[%s983 + $0x14] sm:$0xf]
      %v990 = vld [vmem:[%s983 + $0x18] sm:$0xf]
      %v991 = vld [vmem:[%s983 + $0x1c] sm:$0xf]
      %v992 = vld [vmem:[%s983 + $0x20] sm:$0xf]
      %v993 = vld [vmem:[%s983 + $0x24] sm:$0xf]
      %v994 = vld [vmem:[%s983 + $0x28] sm:$0xf]
      %v995 = vld [vmem:[%s983 + $0x2c] sm:$0xf]
      %v996 = vld [vmem:[%s983 + $0x30] sm:$0xf]
      %v997 = vld [vmem:[%s983 + $0x34] sm:$0xf]
      %v998 = vld [vmem:[%s983 + $0x38] sm:$0xf]
      %v999 = vld [vmem:[%s983 + $0x3c] sm:$0xf]
      %v1016 = vunpack.c.l.b16 %v984
      %v1017 = vunpack.c.l.b16 %v985
      %v1018 = vunpack.c.l.b16 %v986
      %v1019 = vunpack.c.l.b16 %v987
      %v1020 = vunpack.c.l.b16 %v988
      %v1021 = vunpack.c.l.b16 %v989
      %v1022 = vunpack.c.l.b16 %v990
      %v1023 = vunpack.c.l.b16 %v991
      %v1024 = vunpack.c.l.b16 %v992
      %v1025 = vunpack.c.l.b16 %v993
      %v1026 = vunpack.c.l.b16 %v994
      %v1027 = vunpack.c.l.b16 %v995
      %v1028 = vunpack.c.l.b16 %v996
      %v1029 = vunpack.c.l.b16 %v997
      %v1030 = vunpack.c.l.b16 %v998
      %v1031 = vunpack.c.l.b16 %v999
      %v1032 = vpack.c.b16 %v1017, %v1016
      %v1033 = vpack.c.b16 %v1019, %v1018
      %v1034 = vpack.c.b16 %v1021, %v1020
      %v1035 = vpack.c.b16 %v1023, %v1022
      %v1036 = vpack.c.b16 %v1025, %v1024
      %v1037 = vpack.c.b16 %v1027, %v1026
      %v1038 = vpack.c.b16 %v1029, %v1028
      %v1039 = vpack.c.b16 %v1031, %v1030
      %1048 = vmatprep.subr.bf16.mxu0 0
      %1049 = vmatpush1.bf16.msra.mxu0 %v1032
      %1050 = vmatprep.subr.bf16.mxu0 0
      %1051 = vmatpush1.bf16.msra.mxu0 %v1033
      %1052 = vmatprep.subr.bf16.mxu0 0
      %1053 = vmatpush1.bf16.msra.mxu0 %v1034
      %1054 = vmatprep.subr.bf16.mxu0 0
      %1055 = vmatpush1.bf16.msra.mxu0 %v1035
      %1056 = vmatprep.subr.bf16.mxu0 0
      %1057 = vmatpush1.bf16.msra.mxu0 %v1036
      %1058 = vmatprep.subr.bf16.mxu0 0
      %1059 = vmatpush1.bf16.msra.mxu0 %v1037
      %1060 = vmatprep.subr.bf16.mxu0 0
      %1061 = vmatpush1.bf16.msra.mxu0 %v1038
      %1062 = vmatprep.subr.bf16.mxu0 0
      %1063 = vmatpush1.bf16.msra.mxu0 %v1039
      %1064 = vmatprep.subr.bf16.mxu0 0
      %1065 = vmatpush1.bf16.msra.mxu0 0
      %1066 = vmatprep.subr.bf16.mxu0 0
      %1067 = vmatpush1.bf16.msra.mxu0 0
      %1068 = vmatprep.subr.bf16.mxu0 0
      %1069 = vmatpush1.bf16.msra.mxu0 0
      %1070 = vmatprep.subr.bf16.mxu0 0
      %1071 = vmatpush1.bf16.msra.mxu0 0
      %1072 = vmatprep.subr.bf16.mxu0 0
      %1073 = vmatpush1.bf16.msra.mxu0 0
      %1074 = vmatprep.subr.bf16.mxu0 0
      %1075 = vmatpush1.bf16.msra.mxu0 0
      %1076 = vmatprep.subr.bf16.mxu0 0
      %1077 = vmatpush1.bf16.msra.mxu0 0
      %1078 = vmatprep.subr.bf16.mxu0 0
      %1079 = vmatpush1.bf16.msra.mxu0 0
      %1080 = vmatprep.mubr.bf16.mxu0 0
      %1081 = vmatmul.mubr.bf16.gmra.mrb[0].mxu0 %v890
      %v1082 = vpop.f32.mrb[0].mxu0
      %v1083 = vadd.f32 0.0, %v1082
      %v1084 = vpop.f32.mrb[0].mxu0
      %v1085 = vpop.f32.mrb[0].mxu0
      %v1086 = vadd.f32 0.0, %v1085
      %v1087 = vpop.f32.mrb[0].mxu0
      %1088 = vmatprep.mubr.bf16.mxu0 0
      %1089 = vmatmul.mubr.bf16.gmra.mrb[0].mxu0 %v902
      %v1090 = vpop.f32.mrb[0].mxu0
      %v1091 = vadd.f32 0.0, %v1090
      %v1092 = vpop.f32.mrb[0].mxu0
      %v1093 = vpop.f32.mrb[0].mxu0
      %v1094 = vadd.f32 0.0, %v1093
      %v1095 = vpop.f32.mrb[0].mxu0
      %1096 = vmatprep.mubr.bf16.mxu0 0
      %1097 = vmatmul.mubr.bf16.gmra.mrb[0].mxu0 %v914
      %v1098 = vpop.f32.mrb[0].mxu0
      %v1099 = vadd.f32 0.0, %v1098
      %v1100 = vpop.f32.mrb[0].mxu0
      %v1101 = vpop.f32.mrb[0].mxu0
      %v1102 = vadd.f32 0.0, %v1101
      %v1103 = vpop.f32.mrb[0].mxu0
      %1104 = vmatprep.mubr.bf16.mxu0 0
      %1105 = vmatmul.mubr.bf16.gmra.mrb[0].mxu0 %v926
      %v1106 = vpop.f32.mrb[0].mxu0
      %v1107 = vadd.f32 0.0, %v1106
      %v1108 = vpop.f32.mrb[0].mxu0
      %v1109 = vpop.f32.mrb[0].mxu0
      %v1110 = vadd.f32 0.0, %v1109
      %v1111 = vpop.f32.mrb[0].mxu0
      %1112 = vmatprep.mubr.bf16.mxu0 0
      %1113 = vmatmul.mubr.bf16.gmra.mrb[0].mxu0 %v938
      %v1114 = vpop.f32.mrb[0].mxu0
      %v1115 = vadd.f32 0.0, %v1114
      %v1116 = vpop.f32.mrb[0].mxu0
      %v1117 = vpop.f32.mrb[0].mxu0
      %v1118 = vadd.f32 0.0, %v1117
      %v1119 = vpop.f32.mrb[0].mxu0
      %1120 = vmatprep.mubr.bf16.mxu0 0
      %1121 = vmatmul.mubr.bf16.gmra.mrb[0].mxu0 %v950
      %v1122 = vpop.f32.mrb[0].mxu0
      %v1123 = vadd.f32 0.0, %v1122
      %v1124 = vpop.f32.mrb[0].mxu0
      %v1125 = vpop.f32.mrb[0].mxu0
      %v1126 = vadd.f32 0.0, %v1125
      %v1127 = vpop.f32.mrb[0].mxu0
      %1128 = vmatprep.mubr.bf16.mxu0 0
      %1129 = vmatmul.mubr.bf16.gmra.mrb[0].mxu0 %v962
      %v1130 = vpop.f32.mrb[0].mxu0
      %v1131 = vadd.f32 0.0, %v1130
      %v1132 = vpop.f32.mrb[0].mxu0
      %v1133 = vpop.f32.mrb[0].mxu0
      %v1134 = vadd.f32 0.0, %v1133
      %v1135 = vpop.f32.mrb[0].mxu0
      %1136 = vmatprep.mubr.bf16.mxu0 0
      %1137 = vmatmul.mubr.bf16.gmra.mrb[0].mxu0 %v974
      %v1138 = vpop.f32.mrb[0].mxu0
      %v1139 = vadd.f32 0.0, %v1138
      %v1140 = vpop.f32.mrb[0].mxu0
      %v1141 = vpop.f32.mrb[0].mxu0
      %v1142 = vadd.f32 0.0, %v1141
      %v1143 = vpop.f32.mrb[0].mxu0
      %1144 = vdwg.mxu0
      %v1145 = vld [vmem:[#allocation2] sm:$0xff]
      %v1146 = vld [vmem:[#allocation2 + $0x8] sm:$0xff]
      %v1147 = vld [vmem:[#allocation2 + $0x10] sm:$0xff]
      %v1148 = vld [vmem:[#allocation2 + $0x18] sm:$0xff]
      %v1149 = vld [vmem:[#allocation2 + $0x20] sm:$0xff]
      %v1150 = vld [vmem:[#allocation2 + $0x28] sm:$0xff]
      %v1151 = vld [vmem:[#allocation2 + $0x30] sm:$0xff]
      %v1152 = vld [vmem:[#allocation2 + $0x38] sm:$0xff]
      %v1153 = vld [vmem:[#allocation2 + $0x40] sm:$0xff]
      %v1154 = vld [vmem:[#allocation2 + $0x48] sm:$0xff]
      %v1155 = vld [vmem:[#allocation2 + $0x50] sm:$0xff]
      %v1156 = vld [vmem:[#allocation2 + $0x58] sm:$0xff]
      %v1157 = vld [vmem:[#allocation2 + $0x60] sm:$0xff]
      %v1158 = vld [vmem:[#allocation2 + $0x68] sm:$0xff]
      %v1159 = vld [vmem:[#allocation2 + $0x70] sm:$0xff]
      %v1160 = vld [vmem:[#allocation2 + $0x78] sm:$0xff]
      %v1161 = vadd.f32 %v1145, %v1083
      %v1162 = vadd.f32 %v1146, %v1086
      %v1163 = vadd.f32 %v1147, %v1091
      %v1164 = vadd.f32 %v1148, %v1094
      %v1165 = vadd.f32 %v1149, %v1099
      %v1166 = vadd.f32 %v1150, %v1102
      %v1167 = vadd.f32 %v1151, %v1107
      %v1168 = vadd.f32 %v1152, %v1110
      %v1169 = vadd.f32 %v1153, %v1115
      %v1170 = vadd.f32 %v1154, %v1118
      %v1171 = vadd.f32 %v1155, %v1123
      %v1172 = vadd.f32 %v1156, %v1126
      %v1173 = vadd.f32 %v1157, %v1131
      %v1174 = vadd.f32 %v1158, %v1134
      %v1175 = vadd.f32 %v1159, %v1139
      %v1176 = vadd.f32 %v1160, %v1142
      %1177 = vst [vmem:[#allocation2] sm:$0xff] %v1161
      %1178 = vst [vmem:[#allocation2 + $0x8] sm:$0xff] %v1162
      %1179 = vst [vmem:[#allocation2 + $0x10] sm:$0xff] %v1163
      %1180 = vst [vmem:[#allocation2 + $0x18] sm:$0xff] %v1164
      %1181 = vst [vmem:[#allocation2 + $0x20] sm:$0xff] %v1165
      %1182 = vst [vmem:[#allocation2 + $0x28] sm:$0xff] %v1166
      %1183 = vst [vmem:[#allocation2 + $0x30] sm:$0xff] %v1167
      %1184 = vst [vmem:[#allocation2 + $0x38] sm:$0xff] %v1168
      %1185 = vst [vmem:[#allocation2 + $0x40] sm:$0xff] %v1169
      %1186 = vst [vmem:[#allocation2 + $0x48] sm:$0xff] %v1170
      %1187 = vst [vmem:[#allocation2 + $0x50] sm:$0xff] %v1171
      %1188 = vst [vmem:[#allocation2 + $0x58] sm:$0xff] %v1172
      %1189 = vst [vmem:[#allocation2 + $0x60] sm:$0xff] %v1173
      %1190 = vst [vmem:[#allocation2 + $0x68] sm:$0xff] %v1174
      %1191 = vst [vmem:[#allocation2 + $0x70] sm:$0xff] %v1175
      %1192 = vst [vmem:[#allocation2 + $0x78] sm:$0xff] %v1176
      %vm1209 = vcmask 1046528
      %v1210 = vrot.slane %v681, 1
      %v1211 = vrot.slane %v682, 1
      %v1212 = vsel %vm1209, %v1210, %v1211
      %v1213 = vrot.slane %v683, 1
      %v1214 = vrot.slane %v684, 1
      %v1215 = vsel %vm1209, %v1213, %v1214
      %v1216 = vrot.slane %v685, 1
      %v1217 = vrot.slane %v686, 1
      %v1218 = vsel %vm1209, %v1216, %v1217
      %v1219 = vrot.slane %v687, 1
      %v1220 = vrot.slane %v688, 1
      %v1221 = vsel %vm1209, %v1219, %v1220
      %v1222 = vrot.slane %v689, 1
      %v1223 = vrot.slane %v690, 1
      %v1224 = vsel %vm1209, %v1222, %v1223
      %v1225 = vrot.slane %v691, 1
      %v1226 = vrot.slane %v692, 1
      %v1227 = vsel %vm1209, %v1225, %v1226
      %v1228 = vrot.slane %v693, 1
      %v1229 = vrot.slane %v694, 1
      %v1230 = vsel %vm1209, %v1228, %v1229
      %v1231 = vrot.slane %v695, 1
      %v1232 = vrot.slane %v696, 1
      %v1233 = vsel %vm1209, %v1231, %v1232
      %s1242 = scalar_lea.vmem %s1, 128
      %v1243 = vld [vmem:[%s1242] sm:$0xf]
      %v1244 = vld [vmem:[%s1242 + $0x4] sm:$0xf]
      %v1245 = vld [vmem:[%s1242 + $0x8] sm:$0xf]
      %v1246 = vld [vmem:[%s1242 + $0xc] sm:$0xf]
      %v1247 = vld [vmem:[%s1242 + $0x10] sm:$0xf]
      %v1248 = vld [vmem:[%s1242 + $0x14] sm:$0xf]
      %v1249 = vld [vmem:[%s1242 + $0x18] sm:$0xf]
      %v1250 = vld [vmem:[%s1242 + $0x1c] sm:$0xf]
      %v1251 = vld [vmem:[%s1242 + $0x20] sm:$0xf]
      %v1252 = vld [vmem:[%s1242 + $0x24] sm:$0xf]
      %v1253 = vld [vmem:[%s1242 + $0x28] sm:$0xf]
      %v1254 = vld [vmem:[%s1242 + $0x2c] sm:$0xf]
      %v1255 = vld [vmem:[%s1242 + $0x30] sm:$0xf]
      %v1256 = vld [vmem:[%s1242 + $0x34] sm:$0xf]
      %v1257 = vld [vmem:[%s1242 + $0x38] sm:$0xf]
      %v1258 = vld [vmem:[%s1242 + $0x3c] sm:$0xf]
      %v1275 = vunpack.c.l.b16 %v1243
      %v1276 = vunpack.c.l.b16 %v1244
      %v1277 = vunpack.c.l.b16 %v1245
      %v1278 = vunpack.c.l.b16 %v1246
      %v1279 = vunpack.c.l.b16 %v1247
      %v1280 = vunpack.c.l.b16 %v1248
      %v1281 = vunpack.c.l.b16 %v1249
      %v1282 = vunpack.c.l.b16 %v1250
      %v1283 = vunpack.c.l.b16 %v1251
      %v1284 = vunpack.c.l.b16 %v1252
      %v1285 = vunpack.c.l.b16 %v1253
      %v1286 = vunpack.c.l.b16 %v1254
      %v1287 = vunpack.c.l.b16 %v1255
      %v1288 = vunpack.c.l.b16 %v1256
      %v1289 = vunpack.c.l.b16 %v1257
      %v1290 = vunpack.c.l.b16 %v1258
      %v1291 = vpack.c.b16 %v1276, %v1275
      %v1292 = vpack.c.b16 %v1278, %v1277
      %v1293 = vpack.c.b16 %v1280, %v1279
      %v1294 = vpack.c.b16 %v1282, %v1281
      %v1295 = vpack.c.b16 %v1284, %v1283
      %v1296 = vpack.c.b16 %v1286, %v1285
      %v1297 = vpack.c.b16 %v1288, %v1287
      %v1298 = vpack.c.b16 %v1290, %v1289
      %1307 = vmatprep.subr.bf16.mxu0 0
      %1308 = vmatpush1.bf16.msra.mxu0 %v1291
      %1309 = vmatprep.subr.bf16.mxu0 0
      %1310 = vmatpush1.bf16.msra.mxu0 %v1292
      %1311 = vmatprep.subr.bf16.mxu0 0
      %1312 = vmatpush1.bf16.msra.mxu0 %v1293
      %1313 = vmatprep.subr.bf16.mxu0 0
      %1314 = vmatpush1.bf16.msra.mxu0 %v1294
      %1315 = vmatprep.subr.bf16.mxu0 0
      %1316 = vmatpush1.bf16.msra.mxu0 %v1295
      %1317 = vmatprep.subr.bf16.mxu0 0
      %1318 = vmatpush1.bf16.msra.mxu0 %v1296
      %1319 = vmatprep.subr.bf16.mxu0 0
      %1320 = vmatpush1.bf16.msra.mxu0 %v1297
      %1321 = vmatprep.subr.bf16.mxu0 0
      %1322 = vmatpush1.bf16.msra.mxu0 %v1298
      %1323 = vmatprep.subr.bf16.mxu0 0
      %1324 = vmatpush1.bf16.msra.mxu0 0
      %1325 = vmatprep.subr.bf16.mxu0 0
      %1326 = vmatpush1.bf16.msra.mxu0 0
      %1327 = vmatprep.subr.bf16.mxu0 0
      %1328 = vmatpush1.bf16.msra.mxu0 0
      %1329 = vmatprep.subr.bf16.mxu0 0
      %1330 = vmatpush1.bf16.msra.mxu0 0
      %1331 = vmatprep.subr.bf16.mxu0 0
      %1332 = vmatpush1.bf16.msra.mxu0 0
      %1333 = vmatprep.subr.bf16.mxu0 0
      %1334 = vmatpush1.bf16.msra.mxu0 0
      %1335 = vmatprep.subr.bf16.mxu0 0
      %1336 = vmatpush1.bf16.msra.mxu0 0
      %1337 = vmatprep.subr.bf16.mxu0 0
      %1338 = vmatpush1.bf16.msra.mxu0 0
      %1339 = vmatprep.mubr.bf16.mxu0 0
      %1340 = vmatmul.mubr.bf16.gmra.mrb[0].mxu0 %v1212
      %v1341 = vpop.f32.mrb[0].mxu0
      %v1342 = vadd.f32 0.0, %v1341
      %v1343 = vpop.f32.mrb[0].mxu0
      %v1344 = vpop.f32.mrb[0].mxu0
      %v1345 = vadd.f32 0.0, %v1344
      %v1346 = vpop.f32.mrb[0].mxu0
      %1347 = vmatprep.mubr.bf16.mxu0 0
      %1348 = vmatmul.mubr.bf16.gmra.mrb[0].mxu0 %v1215
      %v1349 = vpop.f32.mrb[0].mxu0
      %v1350 = vadd.f32 0.0, %v1349
      %v1351 = vpop.f32.mrb[0].mxu0
      %v1352 = vpop.f32.mrb[0].mxu0
      %v1353 = vadd.f32 0.0, %v1352
      %v1354 = vpop.f32.mrb[0].mxu0
      %1355 = vmatprep.mubr.bf16.mxu0 0
      %1356 = vmatmul.mubr.bf16.gmra.mrb[0].mxu0 %v1218
      %v1357 = vpop.f32.mrb[0].mxu0
      %v1358 = vadd.f32 0.0, %v1357
      %v1359 = vpop.f32.mrb[0].mxu0
      %v1360 = vpop.f32.mrb[0].mxu0
      %v1361 = vadd.f32 0.0, %v1360
      %v1362 = vpop.f32.mrb[0].mxu0
      %1363 = vmatprep.mubr.bf16.mxu0 0
      %1364 = vmatmul.mubr.bf16.gmra.mrb[0].mxu0 %v1221
      %v1365 = vpop.f32.mrb[0].mxu0
      %v1366 = vadd.f32 0.0, %v1365
      %v1367 = vpop.f32.mrb[0].mxu0
      %v1368 = vpop.f32.mrb[0].mxu0
      %v1369 = vadd.f32 0.0, %v1368
      %v1370 = vpop.f32.mrb[0].mxu0
      %1371 = vmatprep.mubr.bf16.mxu0 0
      %1372 = vmatmul.mubr.bf16.gmra.mrb[0].mxu0 %v1224
      %v1373 = vpop.f32.mrb[0].mxu0
      %v1374 = vadd.f32 0.0, %v1373
      %v1375 = vpop.f32.mrb[0].mxu0
      %v1376 = vpop.f32.mrb[0].mxu0
      %v1377 = vadd.f32 0.0, %v1376
      %v1378 = vpop.f32.mrb[0].mxu0
      %1379 = vmatprep.mubr.bf16.mxu0 0
      %1380 = vmatmul.mubr.bf16.gmra.mrb[0].mxu0 %v1227
      %v1381 = vpop.f32.mrb[0].mxu0
      %v1382 = vadd.f32 0.0, %v1381
      %v1383 = vpop.f32.mrb[0].mxu0
      %v1384 = vpop.f32.mrb[0].mxu0
      %v1385 = vadd.f32 0.0, %v1384
      %v1386 = vpop.f32.mrb[0].mxu0
      %1387 = vmatprep.mubr.bf16.mxu0 0
      %1388 = vmatmul.mubr.bf16.gmra.mrb[0].mxu0 %v1230
      %v1389 = vpop.f32.mrb[0].mxu0
      %v1390 = vadd.f32 0.0, %v1389
      %v1391 = vpop.f32.mrb[0].mxu0
      %v1392 = vpop.f32.mrb[0].mxu0
      %v1393 = vadd.f32 0.0, %v1392
      %v1394 = vpop.f32.mrb[0].mxu0
      %1395 = vmatprep.mubr.bf16.mxu0 0
      %1396 = vmatmul.mubr.bf16.gmra.mrb[0].mxu0 %v1233
      %v1397 = vpop.f32.mrb[0].mxu0
      %v1398 = vadd.f32 0.0, %v1397
      %v1399 = vpop.f32.mrb[0].mxu0
      %v1400 = vpop.f32.mrb[0].mxu0
      %v1401 = vadd.f32 0.0, %v1400
      %v1402 = vpop.f32.mrb[0].mxu0
      %1403 = vdwg.mxu0
      %v1404 = vld [vmem:[#allocation2] sm:$0xff]
      %v1405 = vld [vmem:[#allocation2 + $0x8] sm:$0xff]
      %v1406 = vld [vmem:[#allocation2 + $0x10] sm:$0xff]
      %v1407 = vld [vmem:[#allocation2 + $0x18] sm:$0xff]
      %v1408 = vld [vmem:[#allocation2 + $0x20] sm:$0xff]
      %v1409 = vld [vmem:[#allocation2 + $0x28] sm:$0xff]
      %v1410 = vld [vmem:[#allocation2 + $0x30] sm:$0xff]
      %v1411 = vld [vmem:[#allocation2 + $0x38] sm:$0xff]
      %v1412 = vld [vmem:[#allocation2 + $0x40] sm:$0xff]
      %v1413 = vld [vmem:[#allocation2 + $0x48] sm:$0xff]
      %v1414 = vld [vmem:[#allocation2 + $0x50] sm:$0xff]
      %v1415 = vld [vmem:[#allocation2 + $0x58] sm:$0xff]
      %v1416 = vld [vmem:[#allocation2 + $0x60] sm:$0xff]
      %v1417 = vld [vmem:[#allocation2 + $0x68] sm:$0xff]
      %v1418 = vld [vmem:[#allocation2 + $0x70] sm:$0xff]
      %v1419 = vld [vmem:[#allocation2 + $0x78] sm:$0xff]
      %v1420 = vadd.f32 %v1404, %v1342
      %v1421 = vadd.f32 %v1405, %v1345
      %v1422 = vadd.f32 %v1406, %v1350
      %v1423 = vadd.f32 %v1407, %v1353
      %v1424 = vadd.f32 %v1408, %v1358
      %v1425 = vadd.f32 %v1409, %v1361
      %v1426 = vadd.f32 %v1410, %v1366
      %v1427 = vadd.f32 %v1411, %v1369
      %v1428 = vadd.f32 %v1412, %v1374
      %v1429 = vadd.f32 %v1413, %v1377
      %v1430 = vadd.f32 %v1414, %v1382
      %v1431 = vadd.f32 %v1415, %v1385
      %v1432 = vadd.f32 %v1416, %v1390
      %v1433 = vadd.f32 %v1417, %v1393
      %v1434 = vadd.f32 %v1418, %v1398
      %v1435 = vadd.f32 %v1419, %v1401
      %1436 = vst [vmem:[#allocation2] sm:$0xff] %v1420
      %1437 = vst [vmem:[#allocation2 + $0x8] sm:$0xff] %v1421
      %1438 = vst [vmem:[#allocation2 + $0x10] sm:$0xff] %v1422
      %1439 = vst [vmem:[#allocation2 + $0x18] sm:$0xff] %v1423
      %1440 = vst [vmem:[#allocation2 + $0x20] sm:$0xff] %v1424
      %1441 = vst [vmem:[#allocation2 + $0x28] sm:$0xff] %v1425
      %1442 = vst [vmem:[#allocation2 + $0x30] sm:$0xff] %v1426
      %1443 = vst [vmem:[#allocation2 + $0x38] sm:$0xff] %v1427
      %1444 = vst [vmem:[#allocation2 + $0x40] sm:$0xff] %v1428
      %1445 = vst [vmem:[#allocation2 + $0x48] sm:$0xff] %v1429
      %1446 = vst [vmem:[#allocation2 + $0x50] sm:$0xff] %v1430
      %1447 = vst [vmem:[#allocation2 + $0x58] sm:$0xff] %v1431
      %1448 = vst [vmem:[#allocation2 + $0x60] sm:$0xff] %v1432
      %1449 = vst [vmem:[#allocation2 + $0x68] sm:$0xff] %v1433
      %1450 = vst [vmem:[#allocation2 + $0x70] sm:$0xff] %v1434
      %1451 = vst [vmem:[#allocation2 + $0x78] sm:$0xff] %v1435
      %s1452 = scalar_lea.vmem %s1, 192
      %v1453 = vld [vmem:[%s1452] sm:$0xf]
      %v1454 = vld [vmem:[%s1452 + $0x4] sm:$0xf]
      %v1455 = vld [vmem:[%s1452 + $0x8] sm:$0xf]
      %v1456 = vld [vmem:[%s1452 + $0xc] sm:$0xf]
      %v1457 = vld [vmem:[%s1452 + $0x10] sm:$0xf]
      %v1458 = vld [vmem:[%s1452 + $0x14] sm:$0xf]
      %v1459 = vld [vmem:[%s1452 + $0x18] sm:$0xf]
      %v1460 = vld [vmem:[%s1452 + $0x1c] sm:$0xf]
      %v1461 = vld [vmem:[%s1452 + $0x20] sm:$0xf]
      %v1462 = vld [vmem:[%s1452 + $0x24] sm:$0xf]
      %v1463 = vld [vmem:[%s1452 + $0x28] sm:$0xf]
      %v1464 = vld [vmem:[%s1452 + $0x2c] sm:$0xf]
      %v1465 = vld [vmem:[%s1452 + $0x30] sm:$0xf]
      %v1466 = vld [vmem:[%s1452 + $0x34] sm:$0xf]
      %v1467 = vld [vmem:[%s1452 + $0x38] sm:$0xf]
      %v1468 = vld [vmem:[%s1452 + $0x3c] sm:$0xf]
      %v1485 = vunpack.c.l.b16 %v1453
      %v1486 = vunpack.c.l.b16 %v1454
      %v1487 = vunpack.c.l.b16 %v1455
      %v1488 = vunpack.c.l.b16 %v1456
      %v1489 = vunpack.c.l.b16 %v1457
      %v1490 = vunpack.c.l.b16 %v1458
      %v1491 = vunpack.c.l.b16 %v1459
      %v1492 = vunpack.c.l.b16 %v1460
      %v1493 = vunpack.c.l.b16 %v1461
      %v1494 = vunpack.c.l.b16 %v1462
      %v1495 = vunpack.c.l.b16 %v1463
      %v1496 = vunpack.c.l.b16 %v1464
      %v1497 = vunpack.c.l.b16 %v1465
      %v1498 = vunpack.c.l.b16 %v1466
      %v1499 = vunpack.c.l.b16 %v1467
      %v1500 = vunpack.c.l.b16 %v1468
      %v1501 = vpack.c.b16 %v1486, %v1485
      %v1502 = vpack.c.b16 %v1488, %v1487
      %v1503 = vpack.c.b16 %v1490, %v1489
      %v1504 = vpack.c.b16 %v1492, %v1491
      %v1505 = vpack.c.b16 %v1494, %v1493
      %v1506 = vpack.c.b16 %v1496, %v1495
      %v1507 = vpack.c.b16 %v1498, %v1497
      %v1508 = vpack.c.b16 %v1500, %v1499
      %1517 = vmatprep.subr.bf16.mxu0 0
      %1518 = vmatpush1.bf16.msra.mxu0 %v1501
      %1519 = vmatprep.subr.bf16.mxu0 0
      %1520 = vmatpush1.bf16.msra.mxu0 %v1502
      %1521 = vmatprep.subr.bf16.mxu0 0
      %1522 = vmatpush1.bf16.msra.mxu0 %v1503
      %1523 = vmatprep.subr.bf16.mxu0 0
      %1524 = vmatpush1.bf16.msra.mxu0 %v1504
      %1525 = vmatprep.subr.bf16.mxu0 0
      %1526 = vmatpush1.bf16.msra.mxu0 %v1505
      %1527 = vmatprep.subr.bf16.mxu0 0
      %1528 = vmatpush1.bf16.msra.mxu0 %v1506
      %1529 = vmatprep.subr.bf16.mxu0 0
      %1530 = vmatpush1.bf16.msra.mxu0 %v1507
      %1531 = vmatprep.subr.bf16.mxu0 0
      %1532 = vmatpush1.bf16.msra.mxu0 %v1508
      %1533 = vmatprep.subr.bf16.mxu0 0
      %1534 = vmatpush1.bf16.msra.mxu0 0
      %1535 = vmatprep.subr.bf16.mxu0 0
      %1536 = vmatpush1.bf16.msra.mxu0 0
      %1537 = vmatprep.subr.bf16.mxu0 0
      %1538 = vmatpush1.bf16.msra.mxu0 0
      %1539 = vmatprep.subr.bf16.mxu0 0
      %1540 = vmatpush1.bf16.msra.mxu0 0
      %1541 = vmatprep.subr.bf16.mxu0 0
      %1542 = vmatpush1.bf16.msra.mxu0 0
      %1543 = vmatprep.subr.bf16.mxu0 0
      %1544 = vmatpush1.bf16.msra.mxu0 0
      %1545 = vmatprep.subr.bf16.mxu0 0
      %1546 = vmatpush1.bf16.msra.mxu0 0
      %1547 = vmatprep.subr.bf16.mxu0 0
      %1548 = vmatpush1.bf16.msra.mxu0 0
      %1549 = vmatprep.mubr.bf16.mxu0 0
      %1550 = vmatmul.mubr.bf16.gmra.mrb[0].mxu0 %v683
      %v1551 = vpop.f32.mrb[0].mxu0
      %v1552 = vadd.f32 0.0, %v1551
      %v1553 = vpop.f32.mrb[0].mxu0
      %v1554 = vpop.f32.mrb[0].mxu0
      %v1555 = vadd.f32 0.0, %v1554
      %v1556 = vpop.f32.mrb[0].mxu0
      %1557 = vmatprep.mubr.bf16.mxu0 0
      %1558 = vmatmul.mubr.bf16.gmra.mrb[0].mxu0 %v685
      %v1559 = vpop.f32.mrb[0].mxu0
      %v1560 = vadd.f32 0.0, %v1559
      %v1561 = vpop.f32.mrb[0].mxu0
      %v1562 = vpop.f32.mrb[0].mxu0
      %v1563 = vadd.f32 0.0, %v1562
      %v1564 = vpop.f32.mrb[0].mxu0
      %1565 = vmatprep.mubr.bf16.mxu0 0
      %1566 = vmatmul.mubr.bf16.gmra.mrb[0].mxu0 %v687
      %v1567 = vpop.f32.mrb[0].mxu0
      %v1568 = vadd.f32 0.0, %v1567
      %v1569 = vpop.f32.mrb[0].mxu0
      %v1570 = vpop.f32.mrb[0].mxu0
      %v1571 = vadd.f32 0.0, %v1570
      %v1572 = vpop.f32.mrb[0].mxu0
      %1573 = vmatprep.mubr.bf16.mxu0 0
      %1574 = vmatmul.mubr.bf16.gmra.mrb[0].mxu0 %v689
      %v1575 = vpop.f32.mrb[0].mxu0
      %v1576 = vadd.f32 0.0, %v1575
      %v1577 = vpop.f32.mrb[0].mxu0
      %v1578 = vpop.f32.mrb[0].mxu0
      %v1579 = vadd.f32 0.0, %v1578
      %v1580 = vpop.f32.mrb[0].mxu0
      %1581 = vmatprep.mubr.bf16.mxu0 0
      %1582 = vmatmul.mubr.bf16.gmra.mrb[0].mxu0 %v691
      %v1583 = vpop.f32.mrb[0].mxu0
      %v1584 = vadd.f32 0.0, %v1583
      %v1585 = vpop.f32.mrb[0].mxu0
      %v1586 = vpop.f32.mrb[0].mxu0
      %v1587 = vadd.f32 0.0, %v1586
      %v1588 = vpop.f32.mrb[0].mxu0
      %1589 = vmatprep.mubr.bf16.mxu0 0
      %1590 = vmatmul.mubr.bf16.gmra.mrb[0].mxu0 %v693
      %v1591 = vpop.f32.mrb[0].mxu0
      %v1592 = vadd.f32 0.0, %v1591
      %v1593 = vpop.f32.mrb[0].mxu0
      %v1594 = vpop.f32.mrb[0].mxu0
      %v1595 = vadd.f32 0.0, %v1594
      %v1596 = vpop.f32.mrb[0].mxu0
      %1597 = vmatprep.mubr.bf16.mxu0 0
      %1598 = vmatmul.mubr.bf16.gmra.mrb[0].mxu0 %v695
      %v1599 = vpop.f32.mrb[0].mxu0
      %v1600 = vadd.f32 0.0, %v1599
      %v1601 = vpop.f32.mrb[0].mxu0
      %v1602 = vpop.f32.mrb[0].mxu0
      %v1603 = vadd.f32 0.0, %v1602
      %v1604 = vpop.f32.mrb[0].mxu0
      %1605 = vmatprep.mubr.bf16.mxu0 0
      %1606 = vmatmul.mubr.bf16.gmra.mrb[0].mxu0 %v697
      %v1607 = vpop.f32.mrb[0].mxu0
      %v1608 = vadd.f32 0.0, %v1607
      %v1609 = vpop.f32.mrb[0].mxu0
      %v1610 = vpop.f32.mrb[0].mxu0
      %v1611 = vadd.f32 0.0, %v1610
      %v1612 = vpop.f32.mrb[0].mxu0
      %1613 = vdwg.mxu0
      %v1614 = vld [vmem:[#allocation2] sm:$0xff]
      %v1615 = vld [vmem:[#allocation2 + $0x8] sm:$0xff]
      %v1616 = vld [vmem:[#allocation2 + $0x10] sm:$0xff]
      %v1617 = vld [vmem:[#allocation2 + $0x18] sm:$0xff]
      %v1618 = vld [vmem:[#allocation2 + $0x20] sm:$0xff]
      %v1619 = vld [vmem:[#allocation2 + $0x28] sm:$0xff]
      %v1620 = vld [vmem:[#allocation2 + $0x30] sm:$0xff]
      %v1621 = vld [vmem:[#allocation2 + $0x38] sm:$0xff]
      %v1622 = vld [vmem:[#allocation2 + $0x40] sm:$0xff]
      %v1623 = vld [vmem:[#allocation2 + $0x48] sm:$0xff]
      %v1624 = vld [vmem:[#allocation2 + $0x50] sm:$0xff]
      %v1625 = vld [vmem:[#allocation2 + $0x58] sm:$0xff]
      %v1626 = vld [vmem:[#allocation2 + $0x60] sm:$0xff]
      %v1627 = vld [vmem:[#allocation2 + $0x68] sm:$0xff]
      %v1628 = vld [vmem:[#allocation2 + $0x70] sm:$0xff]
      %v1629 = vld [vmem:[#allocation2 + $0x78] sm:$0xff]
      %v1630 = vadd.f32 %v1614, %v1552
      %v1631 = vadd.f32 %v1615, %v1555
      %v1632 = vadd.f32 %v1616, %v1560
      %v1633 = vadd.f32 %v1617, %v1563
      %v1634 = vadd.f32 %v1618, %v1568
      %v1635 = vadd.f32 %v1619, %v1571
      %v1636 = vadd.f32 %v1620, %v1576
      %v1637 = vadd.f32 %v1621, %v1579
      %v1638 = vadd.f32 %v1622, %v1584
      %v1639 = vadd.f32 %v1623, %v1587
      %v1640 = vadd.f32 %v1624, %v1592
      %v1641 = vadd.f32 %v1625, %v1595
      %v1642 = vadd.f32 %v1626, %v1600
      %v1643 = vadd.f32 %v1627, %v1603
      %v1644 = vadd.f32 %v1628, %v1608
      %v1645 = vadd.f32 %v1629, %v1611
      %1646 = vst [vmem:[#allocation2] sm:$0xff] %v1630
      %1647 = vst [vmem:[#allocation2 + $0x8] sm:$0xff] %v1631
      %1648 = vst [vmem:[#allocation2 + $0x10] sm:$0xff] %v1632
      %1649 = vst [vmem:[#allocation2 + $0x18] sm:$0xff] %v1633
      %1650 = vst [vmem:[#allocation2 + $0x20] sm:$0xff] %v1634
      %1651 = vst [vmem:[#allocation2 + $0x28] sm:$0xff] %v1635
      %1652 = vst [vmem:[#allocation2 + $0x30] sm:$0xff] %v1636
      %1653 = vst [vmem:[#allocation2 + $0x38] sm:$0xff] %v1637
      %1654 = vst [vmem:[#allocation2 + $0x40] sm:$0xff] %v1638
      %1655 = vst [vmem:[#allocation2 + $0x48] sm:$0xff] %v1639
      %1656 = vst [vmem:[#allocation2 + $0x50] sm:$0xff] %v1640
      %1657 = vst [vmem:[#allocation2 + $0x58] sm:$0xff] %v1641
      %1658 = vst [vmem:[#allocation2 + $0x60] sm:$0xff] %v1642
      %1659 = vst [vmem:[#allocation2 + $0x68] sm:$0xff] %v1643
      %1660 = vst [vmem:[#allocation2 + $0x70] sm:$0xff] %v1644
      %1661 = vst [vmem:[#allocation2 + $0x78] sm:$0xff] %v1645
      %v1663 = vshrl.u32 %v697, 16
      %v1665 = vshll.u32 %v697, 16
      %v1667 = vrot.slane %v1665, 1
      %v1668 = vor.u32 %v1663, %v1667
      %v1670 = vshll.u32 %v698, 16
      %v1672 = vrot.slane %v1670, 1
      %v1673 = vsel %vm878, %v1668, %v1672
      %s1675 = scalar_lea.vmem %s1, 256
      %v1676 = vld [vmem:[%s1675] sm:$0xf]
      %v1677 = vld [vmem:[%s1675 + $0x4] sm:$0xf]
      %v1678 = vld [vmem:[%s1675 + $0x8] sm:$0xf]
      %v1679 = vld [vmem:[%s1675 + $0xc] sm:$0xf]
      %v1680 = vld [vmem:[%s1675 + $0x10] sm:$0xf]
      %v1681 = vld [vmem:[%s1675 + $0x14] sm:$0xf]
      %v1682 = vld [vmem:[%s1675 + $0x18] sm:$0xf]
      %v1683 = vld [vmem:[%s1675 + $0x1c] sm:$0xf]
      %v1684 = vld [vmem:[%s1675 + $0x20] sm:$0xf]
      %v1685 = vld [vmem:[%s1675 + $0x24] sm:$0xf]
      %v1686 = vld [vmem:[%s1675 + $0x28] sm:$0xf]
      %v1687 = vld [vmem:[%s1675 + $0x2c] sm:$0xf]
      %v1688 = vld [vmem:[%s1675 + $0x30] sm:$0xf]
      %v1689 = vld [vmem:[%s1675 + $0x34] sm:$0xf]
      %v1690 = vld [vmem:[%s1675 + $0x38] sm:$0xf]
      %v1691 = vld [vmem:[%s1675 + $0x3c] sm:$0xf]
      %v1708 = vunpack.c.l.b16 %v1676
      %v1709 = vunpack.c.l.b16 %v1677
      %v1710 = vunpack.c.l.b16 %v1678
      %v1711 = vunpack.c.l.b16 %v1679
      %v1712 = vunpack.c.l.b16 %v1680
      %v1713 = vunpack.c.l.b16 %v1681
      %v1714 = vunpack.c.l.b16 %v1682
      %v1715 = vunpack.c.l.b16 %v1683
      %v1716 = vunpack.c.l.b16 %v1684
      %v1717 = vunpack.c.l.b16 %v1685
      %v1718 = vunpack.c.l.b16 %v1686
      %v1719 = vunpack.c.l.b16 %v1687
      %v1720 = vunpack.c.l.b16 %v1688
      %v1721 = vunpack.c.l.b16 %v1689
      %v1722 = vunpack.c.l.b16 %v1690
      %v1723 = vunpack.c.l.b16 %v1691
      %v1724 = vpack.c.b16 %v1709, %v1708
      %v1725 = vpack.c.b16 %v1711, %v1710
      %v1726 = vpack.c.b16 %v1713, %v1712
      %v1727 = vpack.c.b16 %v1715, %v1714
      %v1728 = vpack.c.b16 %v1717, %v1716
      %v1729 = vpack.c.b16 %v1719, %v1718
      %v1730 = vpack.c.b16 %v1721, %v1720
      %v1731 = vpack.c.b16 %v1723, %v1722
      %1740 = vmatprep.subr.bf16.mxu0 0
      %1741 = vmatpush1.bf16.msra.mxu0 %v1724
      %1742 = vmatprep.subr.bf16.mxu0 0
      %1743 = vmatpush1.bf16.msra.mxu0 %v1725
      %1744 = vmatprep.subr.bf16.mxu0 0
      %1745 = vmatpush1.bf16.msra.mxu0 %v1726
      %1746 = vmatprep.subr.bf16.mxu0 0
      %1747 = vmatpush1.bf16.msra.mxu0 %v1727
      %1748 = vmatprep.subr.bf16.mxu0 0
      %1749 = vmatpush1.bf16.msra.mxu0 %v1728
      %1750 = vmatprep.subr.bf16.mxu0 0
      %1751 = vmatpush1.bf16.msra.mxu0 %v1729
      %1752 = vmatprep.subr.bf16.mxu0 0
      %1753 = vmatpush1.bf16.msra.mxu0 %v1730
      %1754 = vmatprep.subr.bf16.mxu0 0
      %1755 = vmatpush1.bf16.msra.mxu0 %v1731
      %1756 = vmatprep.subr.bf16.mxu0 0
      %1757 = vmatpush1.bf16.msra.mxu0 0
      %1758 = vmatprep.subr.bf16.mxu0 0
      %1759 = vmatpush1.bf16.msra.mxu0 0
      %1760 = vmatprep.subr.bf16.mxu0 0
      %1761 = vmatpush1.bf16.msra.mxu0 0
      %1762 = vmatprep.subr.bf16.mxu0 0
      %1763 = vmatpush1.bf16.msra.mxu0 0
      %1764 = vmatprep.subr.bf16.mxu0 0
      %1765 = vmatpush1.bf16.msra.mxu0 0
      %1766 = vmatprep.subr.bf16.mxu0 0
      %1767 = vmatpush1.bf16.msra.mxu0 0
      %1768 = vmatprep.subr.bf16.mxu0 0
      %1769 = vmatpush1.bf16.msra.mxu0 0
      %1770 = vmatprep.subr.bf16.mxu0 0
      %1771 = vmatpush1.bf16.msra.mxu0 0
      %1772 = vmatprep.mubr.bf16.mxu0 0
      %1773 = vmatmul.mubr.bf16.gmra.mrb[0].mxu0 %v902
      %v1774 = vpop.f32.mrb[0].mxu0
      %v1775 = vadd.f32 0.0, %v1774
      %v1776 = vpop.f32.mrb[0].mxu0
      %v1777 = vpop.f32.mrb[0].mxu0
      %v1778 = vadd.f32 0.0, %v1777
      %v1779 = vpop.f32.mrb[0].mxu0
      %1780 = vmatprep.mubr.bf16.mxu0 0
      %1781 = vmatmul.mubr.bf16.gmra.mrb[0].mxu0 %v914
      %v1782 = vpop.f32.mrb[0].mxu0
      %v1783 = vadd.f32 0.0, %v1782
      %v1784 = vpop.f32.mrb[0].mxu0
      %v1785 = vpop.f32.mrb[0].mxu0
      %v1786 = vadd.f32 0.0, %v1785
      %v1787 = vpop.f32.mrb[0].mxu0
      %1788 = vmatprep.mubr.bf16.mxu0 0
      %1789 = vmatmul.mubr.bf16.gmra.mrb[0].mxu0 %v926
      %v1790 = vpop.f32.mrb[0].mxu0
      %v1791 = vadd.f32 0.0, %v1790
      %v1792 = vpop.f32.mrb[0].mxu0
      %v1793 = vpop.f32.mrb[0].mxu0
      %v1794 = vadd.f32 0.0, %v1793
      %v1795 = vpop.f32.mrb[0].mxu0
      %1796 = vmatprep.mubr.bf16.mxu0 0
      %1797 = vmatmul.mubr.bf16.gmra.mrb[0].mxu0 %v938
      %v1798 = vpop.f32.mrb[0].mxu0
      %v1799 = vadd.f32 0.0, %v1798
      %v1800 = vpop.f32.mrb[0].mxu0
      %v1801 = vpop.f32.mrb[0].mxu0
      %v1802 = vadd.f32 0.0, %v1801
      %v1803 = vpop.f32.mrb[0].mxu0
      %1804 = vmatprep.mubr.bf16.mxu0 0
      %1805 = vmatmul.mubr.bf16.gmra.mrb[0].mxu0 %v950
      %v1806 = vpop.f32.mrb[0].mxu0
      %v1807 = vadd.f32 0.0, %v1806
      %v1808 = vpop.f32.mrb[0].mxu0
      %v1809 = vpop.f32.mrb[0].mxu0
      %v1810 = vadd.f32 0.0, %v1809
      %v1811 = vpop.f32.mrb[0].mxu0
      %1812 = vmatprep.mubr.bf16.mxu0 0
      %1813 = vmatmul.mubr.bf16.gmra.mrb[0].mxu0 %v962
      %v1814 = vpop.f32.mrb[0].mxu0
      %v1815 = vadd.f32 0.0, %v1814
      %v1816 = vpop.f32.mrb[0].mxu0
      %v1817 = vpop.f32.mrb[0].mxu0
      %v1818 = vadd.f32 0.0, %v1817
      %v1819 = vpop.f32.mrb[0].mxu0
      %1820 = vmatprep.mubr.bf16.mxu0 0
      %1821 = vmatmul.mubr.bf16.gmra.mrb[0].mxu0 %v974
      %v1822 = vpop.f32.mrb[0].mxu0
      %v1823 = vadd.f32 0.0, %v1822
      %v1824 = vpop.f32.mrb[0].mxu0
      %v1825 = vpop.f32.mrb[0].mxu0
      %v1826 = vadd.f32 0.0, %v1825
      %v1827 = vpop.f32.mrb[0].mxu0
      %1828 = vmatprep.mubr.bf16.mxu0 0
      %1829 = vmatmul.mubr.bf16.gmra.mrb[0].mxu0 %v1673
      %v1830 = vpop.f32.mrb[0].mxu0
      %v1831 = vadd.f32 0.0, %v1830
      %v1832 = vpop.f32.mrb[0].mxu0
      %v1833 = vpop.f32.mrb[0].mxu0
      %v1834 = vadd.f32 0.0, %v1833
      %v1835 = vpop.f32.mrb[0].mxu0
      %1836 = vdwg.mxu0
      %v1837 = vld [vmem:[#allocation2] sm:$0xff]
      %v1838 = vld [vmem:[#allocation2 + $0x8] sm:$0xff]
      %v1839 = vld [vmem:[#allocation2 + $0x10] sm:$0xff]
      %v1840 = vld [vmem:[#allocation2 + $0x18] sm:$0xff]
      %v1841 = vld [vmem:[#allocation2 + $0x20] sm:$0xff]
      %v1842 = vld [vmem:[#allocation2 + $0x28] sm:$0xff]
      %v1843 = vld [vmem:[#allocation2 + $0x30] sm:$0xff]
      %v1844 = vld [vmem:[#allocation2 + $0x38] sm:$0xff]
      %v1845 = vld [vmem:[#allocation2 + $0x40] sm:$0xff]
      %v1846 = vld [vmem:[#allocation2 + $0x48] sm:$0xff]
      %v1847 = vld [vmem:[#allocation2 + $0x50] sm:$0xff]
      %v1848 = vld [vmem:[#allocation2 + $0x58] sm:$0xff]
      %v1849 = vld [vmem:[#allocation2 + $0x60] sm:$0xff]
      %v1850 = vld [vmem:[#allocation2 + $0x68] sm:$0xff]
      %v1851 = vld [vmem:[#allocation2 + $0x70] sm:$0xff]
      %v1852 = vld [vmem:[#allocation2 + $0x78] sm:$0xff]
      %v1853 = vadd.f32 %v1837, %v1775
      %v1854 = vadd.f32 %v1838, %v1778
      %v1855 = vadd.f32 %v1839, %v1783
      %v1856 = vadd.f32 %v1840, %v1786
      %v1857 = vadd.f32 %v1841, %v1791
      %v1858 = vadd.f32 %v1842, %v1794
      %v1859 = vadd.f32 %v1843, %v1799
      %v1860 = vadd.f32 %v1844, %v1802
      %v1861 = vadd.f32 %v1845, %v1807
      %v1862 = vadd.f32 %v1846, %v1810
      %v1863 = vadd.f32 %v1847, %v1815
      %v1864 = vadd.f32 %v1848, %v1818
      %v1865 = vadd.f32 %v1849, %v1823
      %v1866 = vadd.f32 %v1850, %v1826
      %v1867 = vadd.f32 %v1851, %v1831
      %v1868 = vadd.f32 %v1852, %v1834
      %1869 = vst [vmem:[#allocation2] sm:$0xff] %v1853
      %1870 = vst [vmem:[#allocation2 + $0x8] sm:$0xff] %v1854
      %1871 = vst [vmem:[#allocation2 + $0x10] sm:$0xff] %v1855
      %1872 = vst [vmem:[#allocation2 + $0x18] sm:$0xff] %v1856
      %1873 = vst [vmem:[#allocation2 + $0x20] sm:$0xff] %v1857
      %1874 = vst [vmem:[#allocation2 + $0x28] sm:$0xff] %v1858
      %1875 = vst [vmem:[#allocation2 + $0x30] sm:$0xff] %v1859
      %1876 = vst [vmem:[#allocation2 + $0x38] sm:$0xff] %v1860
      %1877 = vst [vmem:[#allocation2 + $0x40] sm:$0xff] %v1861
      %1878 = vst [vmem:[#allocation2 + $0x48] sm:$0xff] %v1862
      %1879 = vst [vmem:[#allocation2 + $0x50] sm:$0xff] %v1863
      %1880 = vst [vmem:[#allocation2 + $0x58] sm:$0xff] %v1864
      %1881 = vst [vmem:[#allocation2 + $0x60] sm:$0xff] %v1865
      %1882 = vst [vmem:[#allocation2 + $0x68] sm:$0xff] %v1866
      %1883 = vst [vmem:[#allocation2 + $0x70] sm:$0xff] %v1867
      %1884 = vst [vmem:[#allocation2 + $0x78] sm:$0xff] %v1868
      %v1887 = vrot.slane %v697, 1
      %v1888 = vrot.slane %v698, 1
      %v1889 = vsel %vm1209, %v1887, %v1888
      %s1891 = scalar_lea.vmem %s1, 320
      %v1892 = vld [vmem:[%s1891] sm:$0xf]
      %v1893 = vld [vmem:[%s1891 + $0x4] sm:$0xf]
      %v1894 = vld [vmem:[%s1891 + $0x8] sm:$0xf]
      %v1895 = vld [vmem:[%s1891 + $0xc] sm:$0xf]
      %v1896 = vld [vmem:[%s1891 + $0x10] sm:$0xf]
      %v1897 = vld [vmem:[%s1891 + $0x14] sm:$0xf]
      %v1898 = vld [vmem:[%s1891 + $0x18] sm:$0xf]
      %v1899 = vld [vmem:[%s1891 + $0x1c] sm:$0xf]
      %v1900 = vld [vmem:[%s1891 + $0x20] sm:$0xf]
      %v1901 = vld [vmem:[%s1891 + $0x24] sm:$0xf]
      %v1902 = vld [vmem:[%s1891 + $0x28] sm:$0xf]
      %v1903 = vld [vmem:[%s1891 + $0x2c] sm:$0xf]
      %v1904 = vld [vmem:[%s1891 + $0x30] sm:$0xf]
      %v1905 = vld [vmem:[%s1891 + $0x34] sm:$0xf]
      %v1906 = vld [vmem:[%s1891 + $0x38] sm:$0xf]
      %v1907 = vld [vmem:[%s1891 + $0x3c] sm:$0xf]
      %v1924 = vunpack.c.l.b16 %v1892
      %v1925 = vunpack.c.l.b16 %v1893
      %v1926 = vunpack.c.l.b16 %v1894
      %v1927 = vunpack.c.l.b16 %v1895
      %v1928 = vunpack.c.l.b16 %v1896
      %v1929 = vunpack.c.l.b16 %v1897
      %v1930 = vunpack.c.l.b16 %v1898
      %v1931 = vunpack.c.l.b16 %v1899
      %v1932 = vunpack.c.l.b16 %v1900
      %v1933 = vunpack.c.l.b16 %v1901
      %v1934 = vunpack.c.l.b16 %v1902
      %v1935 = vunpack.c.l.b16 %v1903
      %v1936 = vunpack.c.l.b16 %v1904
      %v1937 = vunpack.c.l.b16 %v1905
      %v1938 = vunpack.c.l.b16 %v1906
      %v1939 = vunpack.c.l.b16 %v1907
      %v1940 = vpack.c.b16 %v1925, %v1924
      %v1941 = vpack.c.b16 %v1927, %v1926
      %v1942 = vpack.c.b16 %v1929, %v1928
      %v1943 = vpack.c.b16 %v1931, %v1930
      %v1944 = vpack.c.b16 %v1933, %v1932
      %v1945 = vpack.c.b16 %v1935, %v1934
      %v1946 = vpack.c.b16 %v1937, %v1936
      %v1947 = vpack.c.b16 %v1939, %v1938
      %1956 = vmatprep.subr.bf16.mxu0 0
      %1957 = vmatpush1.bf16.msra.mxu0 %v1940
      %1958 = vmatprep.subr.bf16.mxu0 0
      %1959 = vmatpush1.bf16.msra.mxu0 %v1941
      %1960 = vmatprep.subr.bf16.mxu0 0
      %1961 = vmatpush1.bf16.msra.mxu0 %v1942
      %1962 = vmatprep.subr.bf16.mxu0 0
      %1963 = vmatpush1.bf16.msra.mxu0 %v1943
      %1964 = vmatprep.subr.bf16.mxu0 0
      %1965 = vmatpush1.bf16.msra.mxu0 %v1944
      %1966 = vmatprep.subr.bf16.mxu0 0
      %1967 = vmatpush1.bf16.msra.mxu0 %v1945
      %1968 = vmatprep.subr.bf16.mxu0 0
      %1969 = vmatpush1.bf16.msra.mxu0 %v1946
      %1970 = vmatprep.subr.bf16.mxu0 0
      %1971 = vmatpush1.bf16.msra.mxu0 %v1947
      %1972 = vmatprep.subr.bf16.mxu0 0
      %1973 = vmatpush1.bf16.msra.mxu0 0
      %1974 = vmatprep.subr.bf16.mxu0 0
      %1975 = vmatpush1.bf16.msra.mxu0 0
      %1976 = vmatprep.subr.bf16.mxu0 0
      %1977 = vmatpush1.bf16.msra.mxu0 0
      %1978 = vmatprep.subr.bf16.mxu0 0
      %1979 = vmatpush1.bf16.msra.mxu0 0
      %1980 = vmatprep.subr.bf16.mxu0 0
      %1981 = vmatpush1.bf16.msra.mxu0 0
      %1982 = vmatprep.subr.bf16.mxu0 0
      %1983 = vmatpush1.bf16.msra.mxu0 0
      %1984 = vmatprep.subr.bf16.mxu0 0
      %1985 = vmatpush1.bf16.msra.mxu0 0
      %1986 = vmatprep.subr.bf16.mxu0 0
      %1987 = vmatpush1.bf16.msra.mxu0 0
      %1988 = vmatprep.mubr.bf16.mxu0 0
      %1989 = vmatmul.mubr.bf16.gmra.mrb[0].mxu0 %v1215
      %v1990 = vpop.f32.mrb[0].mxu0
      %v1991 = vadd.f32 0.0, %v1990
      %v1992 = vpop.f32.mrb[0].mxu0
      %v1993 = vpop.f32.mrb[0].mxu0
      %v1994 = vadd.f32 0.0, %v1993
      %v1995 = vpop.f32.mrb[0].mxu0
      %1996 = vmatprep.mubr.bf16.mxu0 0
      %1997 = vmatmul.mubr.bf16.gmra.mrb[0].mxu0 %v1218
      %v1998 = vpop.f32.mrb[0].mxu0
      %v1999 = vadd.f32 0.0, %v1998
      %v2000 = vpop.f32.mrb[0].mxu0
      %v2001 = vpop.f32.mrb[0].mxu0
      %v2002 = vadd.f32 0.0, %v2001
      %v2003 = vpop.f32.mrb[0].mxu0
      %2004 = vmatprep.mubr.bf16.mxu0 0
      %2005 = vmatmul.mubr.bf16.gmra.mrb[0].mxu0 %v1221
      %v2006 = vpop.f32.mrb[0].mxu0
      %v2007 = vadd.f32 0.0, %v2006
      %v2008 = vpop.f32.mrb[0].mxu0
      %v2009 = vpop.f32.mrb[0].mxu0
      %v2010 = vadd.f32 0.0, %v2009
      %v2011 = vpop.f32.mrb[0].mxu0
      %2012 = vmatprep.mubr.bf16.mxu0 0
      %2013 = vmatmul.mubr.bf16.gmra.mrb[0].mxu0 %v1224
      %v2014 = vpop.f32.mrb[0].mxu0
      %v2015 = vadd.f32 0.0, %v2014
      %v2016 = vpop.f32.mrb[0].mxu0
      %v2017 = vpop.f32.mrb[0].mxu0
      %v2018 = vadd.f32 0.0, %v2017
      %v2019 = vpop.f32.mrb[0].mxu0
      %2020 = vmatprep.mubr.bf16.mxu0 0
      %2021 = vmatmul.mubr.bf16.gmra.mrb[0].mxu0 %v1227
      %v2022 = vpop.f32.mrb[0].mxu0
      %v2023 = vadd.f32 0.0, %v2022
      %v2024 = vpop.f32.mrb[0].mxu0
      %v2025 = vpop.f32.mrb[0].mxu0
      %v2026 = vadd.f32 0.0, %v2025
      %v2027 = vpop.f32.mrb[0].mxu0
      %2028 = vmatprep.mubr.bf16.mxu0 0
      %2029 = vmatmul.mubr.bf16.gmra.mrb[0].mxu0 %v1230
      %v2030 = vpop.f32.mrb[0].mxu0
      %v2031 = vadd.f32 0.0, %v2030
      %v2032 = vpop.f32.mrb[0].mxu0
      %v2033 = vpop.f32.mrb[0].mxu0
      %v2034 = vadd.f32 0.0, %v2033
      %v2035 = vpop.f32.mrb[0].mxu0
      %2036 = vmatprep.mubr.bf16.mxu0 0
      %2037 = vmatmul.mubr.bf16.gmra.mrb[0].mxu0 %v1233
      %v2038 = vpop.f32.mrb[0].mxu0
      %v2039 = vadd.f32 0.0, %v2038
      %v2040 = vpop.f32.mrb[0].mxu0
      %v2041 = vpop.f32.mrb[0].mxu0
      %v2042 = vadd.f32 0.0, %v2041
      %v2043 = vpop.f32.mrb[0].mxu0
      %2044 = vmatprep.mubr.bf16.mxu0 0
      %2045 = vmatmul.mubr.bf16.gmra.mrb[0].mxu0 %v1889
      %v2046 = vpop.f32.mrb[0].mxu0
      %v2047 = vadd.f32 0.0, %v2046
      %v2048 = vpop.f32.mrb[0].mxu0
      %v2049 = vpop.f32.mrb[0].mxu0
      %v2050 = vadd.f32 0.0, %v2049
      %v2051 = vpop.f32.mrb[0].mxu0
      %2052 = vdwg.mxu0
      %v2053 = vld [vmem:[#allocation2] sm:$0xff]
      %v2054 = vld [vmem:[#allocation2 + $0x8] sm:$0xff]
      %v2055 = vld [vmem:[#allocation2 + $0x10] sm:$0xff]
      %v2056 = vld [vmem:[#allocation2 + $0x18] sm:$0xff]
      %v2057 = vld [vmem:[#allocation2 + $0x20] sm:$0xff]
      %v2058 = vld [vmem:[#allocation2 + $0x28] sm:$0xff]
      %v2059 = vld [vmem:[#allocation2 + $0x30] sm:$0xff]
      %v2060 = vld [vmem:[#allocation2 + $0x38] sm:$0xff]
      %v2061 = vld [vmem:[#allocation2 + $0x40] sm:$0xff]
      %v2062 = vld [vmem:[#allocation2 + $0x48] sm:$0xff]
      %v2063 = vld [vmem:[#allocation2 + $0x50] sm:$0xff]
      %v2064 = vld [vmem:[#allocation2 + $0x58] sm:$0xff]
      %v2065 = vld [vmem:[#allocation2 + $0x60] sm:$0xff]
      %v2066 = vld [vmem:[#allocation2 + $0x68] sm:$0xff]
      %v2067 = vld [vmem:[#allocation2 + $0x70] sm:$0xff]
      %v2068 = vld [vmem:[#allocation2 + $0x78] sm:$0xff]
      %v2069 = vadd.f32 %v2053, %v1991
      %v2070 = vadd.f32 %v2054, %v1994
      %v2071 = vadd.f32 %v2055, %v1999
      %v2072 = vadd.f32 %v2056, %v2002
      %v2073 = vadd.f32 %v2057, %v2007
      %v2074 = vadd.f32 %v2058, %v2010
      %v2075 = vadd.f32 %v2059, %v2015
      %v2076 = vadd.f32 %v2060, %v2018
      %v2077 = vadd.f32 %v2061, %v2023
      %v2078 = vadd.f32 %v2062, %v2026
      %v2079 = vadd.f32 %v2063, %v2031
      %v2080 = vadd.f32 %v2064, %v2034
      %v2081 = vadd.f32 %v2065, %v2039
      %v2082 = vadd.f32 %v2066, %v2042
      %v2083 = vadd.f32 %v2067, %v2047
      %v2084 = vadd.f32 %v2068, %v2050
      %2085 = vst [vmem:[#allocation2] sm:$0xff] %v2069
      %2086 = vst [vmem:[#allocation2 + $0x8] sm:$0xff] %v2070
      %2087 = vst [vmem:[#allocation2 + $0x10] sm:$0xff] %v2071
      %2088 = vst [vmem:[#allocation2 + $0x18] sm:$0xff] %v2072
      %2089 = vst [vmem:[#allocation2 + $0x20] sm:$0xff] %v2073
      %2090 = vst [vmem:[#allocation2 + $0x28] sm:$0xff] %v2074
      %2091 = vst [vmem:[#allocation2 + $0x30] sm:$0xff] %v2075
      %2092 = vst [vmem:[#allocation2 + $0x38] sm:$0xff] %v2076
      %2093 = vst [vmem:[#allocation2 + $0x40] sm:$0xff] %v2077
      %2094 = vst [vmem:[#allocation2 + $0x48] sm:$0xff] %v2078
      %2095 = vst [vmem:[#allocation2 + $0x50] sm:$0xff] %v2079
      %2096 = vst [vmem:[#allocation2 + $0x58] sm:$0xff] %v2080
      %2097 = vst [vmem:[#allocation2 + $0x60] sm:$0xff] %v2081
      %2098 = vst [vmem:[#allocation2 + $0x68] sm:$0xff] %v2082
      %2099 = vst [vmem:[#allocation2 + $0x70] sm:$0xff] %v2083
      %2100 = vst [vmem:[#allocation2 + $0x78] sm:$0xff] %v2084
      %s2101 = scalar_lea.vmem %s1, 384
      %v2102 = vld [vmem:[%s2101] sm:$0xf]
      %v2103 = vld [vmem:[%s2101 + $0x4] sm:$0xf]
      %v2104 = vld [vmem:[%s2101 + $0x8] sm:$0xf]
      %v2105 = vld [vmem:[%s2101 + $0xc] sm:$0xf]
      %v2106 = vld [vmem:[%s2101 + $0x10] sm:$0xf]
      %v2107 = vld [vmem:[%s2101 + $0x14] sm:$0xf]
      %v2108 = vld [vmem:[%s2101 + $0x18] sm:$0xf]
      %v2109 = vld [vmem:[%s2101 + $0x1c] sm:$0xf]
      %v2110 = vld [vmem:[%s2101 + $0x20] sm:$0xf]
      %v2111 = vld [vmem:[%s2101 + $0x24] sm:$0xf]
      %v2112 = vld [vmem:[%s2101 + $0x28] sm:$0xf]
      %v2113 = vld [vmem:[%s2101 + $0x2c] sm:$0xf]
      %v2114 = vld [vmem:[%s2101 + $0x30] sm:$0xf]
      %v2115 = vld [vmem:[%s2101 + $0x34] sm:$0xf]
      %v2116 = vld [vmem:[%s2101 + $0x38] sm:$0xf]
      %v2117 = vld [vmem:[%s2101 + $0x3c] sm:$0xf]
      %v2134 = vunpack.c.l.b16 %v2102
      %v2135 = vunpack.c.l.b16 %v2103
      %v2136 = vunpack.c.l.b16 %v2104
      %v2137 = vunpack.c.l.b16 %v2105
      %v2138 = vunpack.c.l.b16 %v2106
      %v2139 = vunpack.c.l.b16 %v2107
      %v2140 = vunpack.c.l.b16 %v2108
      %v2141 = vunpack.c.l.b16 %v2109
      %v2142 = vunpack.c.l.b16 %v2110
      %v2143 = vunpack.c.l.b16 %v2111
      %v2144 = vunpack.c.l.b16 %v2112
      %v2145 = vunpack.c.l.b16 %v2113
      %v2146 = vunpack.c.l.b16 %v2114
      %v2147 = vunpack.c.l.b16 %v2115
      %v2148 = vunpack.c.l.b16 %v2116
      %v2149 = vunpack.c.l.b16 %v2117
      %v2150 = vpack.c.b16 %v2135, %v2134
      %v2151 = vpack.c.b16 %v2137, %v2136
      %v2152 = vpack.c.b16 %v2139, %v2138
      %v2153 = vpack.c.b16 %v2141, %v2140
      %v2154 = vpack.c.b16 %v2143, %v2142
      %v2155 = vpack.c.b16 %v2145, %v2144
      %v2156 = vpack.c.b16 %v2147, %v2146
      %v2157 = vpack.c.b16 %v2149, %v2148
      %2166 = vmatprep.subr.bf16.mxu0 0
      %2167 = vmatpush1.bf16.msra.mxu0 %v2150
      %2168 = vmatprep.subr.bf16.mxu0 0
      %2169 = vmatpush1.bf16.msra.mxu0 %v2151
      %2170 = vmatprep.subr.bf16.mxu0 0
      %2171 = vmatpush1.bf16.msra.mxu0 %v2152
      %2172 = vmatprep.subr.bf16.mxu0 0
      %2173 = vmatpush1.bf16.msra.mxu0 %v2153
      %2174 = vmatprep.subr.bf16.mxu0 0
      %2175 = vmatpush1.bf16.msra.mxu0 %v2154
      %2176 = vmatprep.subr.bf16.mxu0 0
      %2177 = vmatpush1.bf16.msra.mxu0 %v2155
      %2178 = vmatprep.subr.bf16.mxu0 0
      %2179 = vmatpush1.bf16.msra.mxu0 %v2156
      %2180 = vmatprep.subr.bf16.mxu0 0
      %2181 = vmatpush1.bf16.msra.mxu0 %v2157
      %2182 = vmatprep.subr.bf16.mxu0 0
      %2183 = vmatpush1.bf16.msra.mxu0 0
      %2184 = vmatprep.subr.bf16.mxu0 0
      %2185 = vmatpush1.bf16.msra.mxu0 0
      %2186 = vmatprep.subr.bf16.mxu0 0
      %2187 = vmatpush1.bf16.msra.mxu0 0
      %2188 = vmatprep.subr.bf16.mxu0 0
      %2189 = vmatpush1.bf16.msra.mxu0 0
      %2190 = vmatprep.subr.bf16.mxu0 0
      %2191 = vmatpush1.bf16.msra.mxu0 0
      %2192 = vmatprep.subr.bf16.mxu0 0
      %2193 = vmatpush1.bf16.msra.mxu0 0
      %2194 = vmatprep.subr.bf16.mxu0 0
      %2195 = vmatpush1.bf16.msra.mxu0 0
      %2196 = vmatprep.subr.bf16.mxu0 0
      %2197 = vmatpush1.bf16.msra.mxu0 0
      %2198 = vmatprep.mubr.bf16.mxu0 0
      %2199 = vmatmul.mubr.bf16.gmra.mrb[0].mxu0 %v685
      %v2200 = vpop.f32.mrb[0].mxu0
      %v2201 = vadd.f32 0.0, %v2200
      %v2202 = vpop.f32.mrb[0].mxu0
      %v2203 = vpop.f32.mrb[0].mxu0
      %v2204 = vadd.f32 0.0, %v2203
      %v2205 = vpop.f32.mrb[0].mxu0
      %2206 = vmatprep.mubr.bf16.mxu0 0
      %2207 = vmatmul.mubr.bf16.gmra.mrb[0].mxu0 %v687
      %v2208 = vpop.f32.mrb[0].mxu0
      %v2209 = vadd.f32 0.0, %v2208
      %v2210 = vpop.f32.mrb[0].mxu0
      %v2211 = vpop.f32.mrb[0].mxu0
      %v2212 = vadd.f32 0.0, %v2211
      %v2213 = vpop.f32.mrb[0].mxu0
      %2214 = vmatprep.mubr.bf16.mxu0 0
      %2215 = vmatmul.mubr.bf16.gmra.mrb[0].mxu0 %v689
      %v2216 = vpop.f32.mrb[0].mxu0
      %v2217 = vadd.f32 0.0, %v2216
      %v2218 = vpop.f32.mrb[0].mxu0
      %v2219 = vpop.f32.mrb[0].mxu0
      %v2220 = vadd.f32 0.0, %v2219
      %v2221 = vpop.f32.mrb[0].mxu0
      %2222 = vmatprep.mubr.bf16.mxu0 0
      %2223 = vmatmul.mubr.bf16.gmra.mrb[0].mxu0 %v691
      %v2224 = vpop.f32.mrb[0].mxu0
      %v2225 = vadd.f32 0.0, %v2224
      %v2226 = vpop.f32.mrb[0].mxu0
      %v2227 = vpop.f32.mrb[0].mxu0
      %v2228 = vadd.f32 0.0, %v2227
      %v2229 = vpop.f32.mrb[0].mxu0
      %2230 = vmatprep.mubr.bf16.mxu0 0
      %2231 = vmatmul.mubr.bf16.gmra.mrb[0].mxu0 %v693
      %v2232 = vpop.f32.mrb[0].mxu0
      %v2233 = vadd.f32 0.0, %v2232
      %v2234 = vpop.f32.mrb[0].mxu0
      %v2235 = vpop.f32.mrb[0].mxu0
      %v2236 = vadd.f32 0.0, %v2235
      %v2237 = vpop.f32.mrb[0].mxu0
      %2238 = vmatprep.mubr.bf16.mxu0 0
      %2239 = vmatmul.mubr.bf16.gmra.mrb[0].mxu0 %v695
      %v2240 = vpop.f32.mrb[0].mxu0
      %v2241 = vadd.f32 0.0, %v2240
      %v2242 = vpop.f32.mrb[0].mxu0
      %v2243 = vpop.f32.mrb[0].mxu0
      %v2244 = vadd.f32 0.0, %v2243
      %v2245 = vpop.f32.mrb[0].mxu0
      %2246 = vmatprep.mubr.bf16.mxu0 0
      %2247 = vmatmul.mubr.bf16.gmra.mrb[0].mxu0 %v697
      %v2248 = vpop.f32.mrb[0].mxu0
      %v2249 = vadd.f32 0.0, %v2248
      %v2250 = vpop.f32.mrb[0].mxu0
      %v2251 = vpop.f32.mrb[0].mxu0
      %v2252 = vadd.f32 0.0, %v2251
      %v2253 = vpop.f32.mrb[0].mxu0
      %2254 = vmatprep.mubr.bf16.mxu0 0
      %2255 = vmatmul.mubr.bf16.gmra.mrb[0].mxu0 %v699
      %v2256 = vpop.f32.mrb[0].mxu0
      %v2257 = vadd.f32 0.0, %v2256
      %v2258 = vpop.f32.mrb[0].mxu0
      %v2259 = vpop.f32.mrb[0].mxu0
      %v2260 = vadd.f32 0.0, %v2259
      %v2261 = vpop.f32.mrb[0].mxu0
      %2262 = vdwg.mxu0
      %v2263 = vld [vmem:[#allocation2] sm:$0xff]
      %v2264 = vld [vmem:[#allocation2 + $0x8] sm:$0xff]
      %v2265 = vld [vmem:[#allocation2 + $0x10] sm:$0xff]
      %v2266 = vld [vmem:[#allocation2 + $0x18] sm:$0xff]
      %v2267 = vld [vmem:[#allocation2 + $0x20] sm:$0xff]
      %v2268 = vld [vmem:[#allocation2 + $0x28] sm:$0xff]
      %v2269 = vld [vmem:[#allocation2 + $0x30] sm:$0xff]
      %v2270 = vld [vmem:[#allocation2 + $0x38] sm:$0xff]
      %v2271 = vld [vmem:[#allocation2 + $0x40] sm:$0xff]
      %v2272 = vld [vmem:[#allocation2 + $0x48] sm:$0xff]
      %v2273 = vld [vmem:[#allocation2 + $0x50] sm:$0xff]
      %v2274 = vld [vmem:[#allocation2 + $0x58] sm:$0xff]
      %v2275 = vld [vmem:[#allocation2 + $0x60] sm:$0xff]
      %v2276 = vld [vmem:[#allocation2 + $0x68] sm:$0xff]
      %v2277 = vld [vmem:[#allocation2 + $0x70] sm:$0xff]
      %v2278 = vld [vmem:[#allocation2 + $0x78] sm:$0xff]
      %v2279 = vadd.f32 %v2263, %v2201
      %v2280 = vadd.f32 %v2264, %v2204
      %v2281 = vadd.f32 %v2265, %v2209
      %v2282 = vadd.f32 %v2266, %v2212
      %v2283 = vadd.f32 %v2267, %v2217
      %v2284 = vadd.f32 %v2268, %v2220
      %v2285 = vadd.f32 %v2269, %v2225
      %v2286 = vadd.f32 %v2270, %v2228
      %v2287 = vadd.f32 %v2271, %v2233
      %v2288 = vadd.f32 %v2272, %v2236
      %v2289 = vadd.f32 %v2273, %v2241
      %v2290 = vadd.f32 %v2274, %v2244
      %v2291 = vadd.f32 %v2275, %v2249
      %v2292 = vadd.f32 %v2276, %v2252
      %v2293 = vadd.f32 %v2277, %v2257
      %v2294 = vadd.f32 %v2278, %v2260
      %2295 = vst [vmem:[#allocation2] sm:$0xff] %v2279
      %2296 = vst [vmem:[#allocation2 + $0x8] sm:$0xff] %v2280
      %2297 = vst [vmem:[#allocation2 + $0x10] sm:$0xff] %v2281
      %2298 = vst [vmem:[#allocation2 + $0x18] sm:$0xff] %v2282
      %2299 = vst [vmem:[#allocation2 + $0x20] sm:$0xff] %v2283
      %2300 = vst [vmem:[#allocation2 + $0x28] sm:$0xff] %v2284
      %2301 = vst [vmem:[#allocation2 + $0x30] sm:$0xff] %v2285
      %2302 = vst [vmem:[#allocation2 + $0x38] sm:$0xff] %v2286
      %2303 = vst [vmem:[#allocation2 + $0x40] sm:$0xff] %v2287
      %2304 = vst [vmem:[#allocation2 + $0x48] sm:$0xff] %v2288
      %2305 = vst [vmem:[#allocation2 + $0x50] sm:$0xff] %v2289
      %2306 = vst [vmem:[#allocation2 + $0x58] sm:$0xff] %v2290
      %2307 = vst [vmem:[#allocation2 + $0x60] sm:$0xff] %v2291
      %2308 = vst [vmem:[#allocation2 + $0x68] sm:$0xff] %v2292
      %2309 = vst [vmem:[#allocation2 + $0x70] sm:$0xff] %v2293
      %2310 = vst [vmem:[#allocation2 + $0x78] sm:$0xff] %v2294
      %v2312 = vshrl.u32 %v699, 16
      %v2314 = vshll.u32 %v699, 16
      %v2316 = vrot.slane %v2314, 1
      %v2317 = vor.u32 %v2312, %v2316
      %v2319 = vshll.u32 %v700, 16
      %v2321 = vrot.slane %v2319, 1
      %v2322 = vsel %vm878, %v2317, %v2321
      %s2324 = scalar_lea.vmem %s1, 448
      %v2325 = vld [vmem:[%s2324] sm:$0xf]
      %v2326 = vld [vmem:[%s2324 + $0x4] sm:$0xf]
      %v2327 = vld [vmem:[%s2324 + $0x8] sm:$0xf]
      %v2328 = vld [vmem:[%s2324 + $0xc] sm:$0xf]
      %v2329 = vld [vmem:[%s2324 + $0x10] sm:$0xf]
      %v2330 = vld [vmem:[%s2324 + $0x14] sm:$0xf]
      %v2331 = vld [vmem:[%s2324 + $0x18] sm:$0xf]
      %v2332 = vld [vmem:[%s2324 + $0x1c] sm:$0xf]
      %v2333 = vld [vmem:[%s2324 + $0x20] sm:$0xf]
      %v2334 = vld [vmem:[%s2324 + $0x24] sm:$0xf]
      %v2335 = vld [vmem:[%s2324 + $0x28] sm:$0xf]
      %v2336 = vld [vmem:[%s2324 + $0x2c] sm:$0xf]
      %v2337 = vld [vmem:[%s2324 + $0x30] sm:$0xf]
      %v2338 = vld [vmem:[%s2324 + $0x34] sm:$0xf]
      %v2339 = vld [vmem:[%s2324 + $0x38] sm:$0xf]
      %v2340 = vld [vmem:[%s2324 + $0x3c] sm:$0xf]
      %v2357 = vunpack.c.l.b16 %v2325
      %v2358 = vunpack.c.l.b16 %v2326
      %v2359 = vunpack.c.l.b16 %v2327
      %v2360 = vunpack.c.l.b16 %v2328
      %v2361 = vunpack.c.l.b16 %v2329
      %v2362 = vunpack.c.l.b16 %v2330
      %v2363 = vunpack.c.l.b16 %v2331
      %v2364 = vunpack.c.l.b16 %v2332
      %v2365 = vunpack.c.l.b16 %v2333
      %v2366 = vunpack.c.l.b16 %v2334
      %v2367 = vunpack.c.l.b16 %v2335
      %v2368 = vunpack.c.l.b16 %v2336
      %v2369 = vunpack.c.l.b16 %v2337
      %v2370 = vunpack.c.l.b16 %v2338
      %v2371 = vunpack.c.l.b16 %v2339
      %v2372 = vunpack.c.l.b16 %v2340
      %v2373 = vpack.c.b16 %v2358, %v2357
      %v2374 = vpack.c.b16 %v2360, %v2359
      %v2375 = vpack.c.b16 %v2362, %v2361
      %v2376 = vpack.c.b16 %v2364, %v2363
      %v2377 = vpack.c.b16 %v2366, %v2365
      %v2378 = vpack.c.b16 %v2368, %v2367
      %v2379 = vpack.c.b16 %v2370, %v2369
      %v2380 = vpack.c.b16 %v2372, %v2371
      %2389 = vmatprep.subr.bf16.mxu0 0
      %2390 = vmatpush1.bf16.msra.mxu0 %v2373
      %2391 = vmatprep.subr.bf16.mxu0 0
      %2392 = vmatpush1.bf16.msra.mxu0 %v2374
      %2393 = vmatprep.subr.bf16.mxu0 0
      %2394 = vmatpush1.bf16.msra.mxu0 %v2375
      %2395 = vmatprep.subr.bf16.mxu0 0
      %2396 = vmatpush1.bf16.msra.mxu0 %v2376
      %2397 = vmatprep.subr.bf16.mxu0 0
      %2398 = vmatpush1.bf16.msra.mxu0 %v2377
      %2399 = vmatprep.subr.bf16.mxu0 0
      %2400 = vmatpush1.bf16.msra.mxu0 %v2378
      %2401 = vmatprep.subr.bf16.mxu0 0
      %2402 = vmatpush1.bf16.msra.mxu0 %v2379
      %2403 = vmatprep.subr.bf16.mxu0 0
      %2404 = vmatpush1.bf16.msra.mxu0 %v2380
      %2405 = vmatprep.subr.bf16.mxu0 0
      %2406 = vmatpush1.bf16.msra.mxu0 0
      %2407 = vmatprep.subr.bf16.mxu0 0
      %2408 = vmatpush1.bf16.msra.mxu0 0
      %2409 = vmatprep.subr.bf16.mxu0 0
      %2410 = vmatpush1.bf16.msra.mxu0 0
      %2411 = vmatprep.subr.bf16.mxu0 0
      %2412 = vmatpush1.bf16.msra.mxu0 0
      %2413 = vmatprep.subr.bf16.mxu0 0
      %2414 = vmatpush1.bf16.msra.mxu0 0
      %2415 = vmatprep.subr.bf16.mxu0 0
      %2416 = vmatpush1.bf16.msra.mxu0 0
      %2417 = vmatprep.subr.bf16.mxu0 0
      %2418 = vmatpush1.bf16.msra.mxu0 0
      %2419 = vmatprep.subr.bf16.mxu0 0
      %2420 = vmatpush1.bf16.msra.mxu0 0
      %2421 = vmatprep.mubr.bf16.mxu0 0
      %2422 = vmatmul.mubr.bf16.gmra.mrb[0].mxu0 %v914
      %v2423 = vpop.f32.mrb[0].mxu0
      %v2424 = vadd.f32 0.0, %v2423
      %v2425 = vpop.f32.mrb[0].mxu0
      %v2426 = vpop.f32.mrb[0].mxu0
      %v2427 = vadd.f32 0.0, %v2426
      %v2428 = vpop.f32.mrb[0].mxu0
      %2429 = vmatprep.mubr.bf16.mxu0 0
      %2430 = vmatmul.mubr.bf16.gmra.mrb[0].mxu0 %v926
      %v2431 = vpop.f32.mrb[0].mxu0
      %v2432 = vadd.f32 0.0, %v2431
      %v2433 = vpop.f32.mrb[0].mxu0
      %v2434 = vpop.f32.mrb[0].mxu0
      %v2435 = vadd.f32 0.0, %v2434
      %v2436 = vpop.f32.mrb[0].mxu0
      %2437 = vmatprep.mubr.bf16.mxu0 0
      %2438 = vmatmul.mubr.bf16.gmra.mrb[0].mxu0 %v938
      %v2439 = vpop.f32.mrb[0].mxu0
      %v2440 = vadd.f32 0.0, %v2439
      %v2441 = vpop.f32.mrb[0].mxu0
      %v2442 = vpop.f32.mrb[0].mxu0
      %v2443 = vadd.f32 0.0, %v2442
      %v2444 = vpop.f32.mrb[0].mxu0
      %2445 = vmatprep.mubr.bf16.mxu0 0
      %2446 = vmatmul.mubr.bf16.gmra.mrb[0].mxu0 %v950
      %v2447 = vpop.f32.mrb[0].mxu0
      %v2448 = vadd.f32 0.0, %v2447
      %v2449 = vpop.f32.mrb[0].mxu0
      %v2450 = vpop.f32.mrb[0].mxu0
      %v2451 = vadd.f32 0.0, %v2450
      %v2452 = vpop.f32.mrb[0].mxu0
      %2453 = vmatprep.mubr.bf16.mxu0 0
      %2454 = vmatmul.mubr.bf16.gmra.mrb[0].mxu0 %v962
      %v2455 = vpop.f32.mrb[0].mxu0
      %v2456 = vadd.f32 0.0, %v2455
      %v2457 = vpop.f32.mrb[0].mxu0
      %v2458 = vpop.f32.mrb[0].mxu0
      %v2459 = vadd.f32 0.0, %v2458
      %v2460 = vpop.f32.mrb[0].mxu0
      %2461 = vmatprep.mubr.bf16.mxu0 0
      %2462 = vmatmul.mubr.bf16.gmra.mrb[0].mxu0 %v974
      %v2463 = vpop.f32.mrb[0].mxu0
      %v2464 = vadd.f32 0.0, %v2463
      %v2465 = vpop.f32.mrb[0].mxu0
      %v2466 = vpop.f32.mrb[0].mxu0
      %v2467 = vadd.f32 0.0, %v2466
      %v2468 = vpop.f32.mrb[0].mxu0
      %2469 = vmatprep.mubr.bf16.mxu0 0
      %2470 = vmatmul.mubr.bf16.gmra.mrb[0].mxu0 %v1673
      %v2471 = vpop.f32.mrb[0].mxu0
      %v2472 = vadd.f32 0.0, %v2471
      %v2473 = vpop.f32.mrb[0].mxu0
      %v2474 = vpop.f32.mrb[0].mxu0
      %v2475 = vadd.f32 0.0, %v2474
      %v2476 = vpop.f32.mrb[0].mxu0
      %2477 = vmatprep.mubr.bf16.mxu0 0
      %2478 = vmatmul.mubr.bf16.gmra.mrb[0].mxu0 %v2322
      %v2479 = vpop.f32.mrb[0].mxu0
      %v2480 = vadd.f32 0.0, %v2479
      %v2481 = vpop.f32.mrb[0].mxu0
      %v2482 = vpop.f32.mrb[0].mxu0
      %v2483 = vadd.f32 0.0, %v2482
      %v2484 = vpop.f32.mrb[0].mxu0
      %2485 = vdwg.mxu0
      %v2486 = vld [vmem:[#allocation2] sm:$0xff]
      %v2487 = vld [vmem:[#allocation2 + $0x8] sm:$0xff]
      %v2488 = vld [vmem:[#allocation2 + $0x10] sm:$0xff]
      %v2489 = vld [vmem:[#allocation2 + $0x18] sm:$0xff]
      %v2490 = vld [vmem:[#allocation2 + $0x20] sm:$0xff]
      %v2491 = vld [vmem:[#allocation2 + $0x28] sm:$0xff]
      %v2492 = vld [vmem:[#allocation2 + $0x30] sm:$0xff]
      %v2493 = vld [vmem:[#allocation2 + $0x38] sm:$0xff]
      %v2494 = vld [vmem:[#allocation2 + $0x40] sm:$0xff]
      %v2495 = vld [vmem:[#allocation2 + $0x48] sm:$0xff]
      %v2496 = vld [vmem:[#allocation2 + $0x50] sm:$0xff]
      %v2497 = vld [vmem:[#allocation2 + $0x58] sm:$0xff]
      %v2498 = vld [vmem:[#allocation2 + $0x60] sm:$0xff]
      %v2499 = vld [vmem:[#allocation2 + $0x68] sm:$0xff]
      %v2500 = vld [vmem:[#allocation2 + $0x70] sm:$0xff]
      %v2501 = vld [vmem:[#allocation2 + $0x78] sm:$0xff]
      %v2502 = vadd.f32 %v2486, %v2424
      %v2503 = vadd.f32 %v2487, %v2427
      %v2504 = vadd.f32 %v2488, %v2432
      %v2505 = vadd.f32 %v2489, %v2435
      %v2506 = vadd.f32 %v2490, %v2440
      %v2507 = vadd.f32 %v2491, %v2443
      %v2508 = vadd.f32 %v2492, %v2448
      %v2509 = vadd.f32 %v2493, %v2451
      %v2510 = vadd.f32 %v2494, %v2456
      %v2511 = vadd.f32 %v2495, %v2459
      %v2512 = vadd.f32 %v2496, %v2464
      %v2513 = vadd.f32 %v2497, %v2467
      %v2514 = vadd.f32 %v2498, %v2472
      %v2515 = vadd.f32 %v2499, %v2475
      %v2516 = vadd.f32 %v2500, %v2480
      %v2517 = vadd.f32 %v2501, %v2483
      %2518 = vst [vmem:[#allocation2] sm:$0xff] %v2502
      %2519 = vst [vmem:[#allocation2 + $0x8] sm:$0xff] %v2503
      %2520 = vst [vmem:[#allocation2 + $0x10] sm:$0xff] %v2504
      %2521 = vst [vmem:[#allocation2 + $0x18] sm:$0xff] %v2505
      %2522 = vst [vmem:[#allocation2 + $0x20] sm:$0xff] %v2506
      %2523 = vst [vmem:[#allocation2 + $0x28] sm:$0xff] %v2507
      %2524 = vst [vmem:[#allocation2 + $0x30] sm:$0xff] %v2508
      %2525 = vst [vmem:[#allocation2 + $0x38] sm:$0xff] %v2509
      %2526 = vst [vmem:[#allocation2 + $0x40] sm:$0xff] %v2510
      %2527 = vst [vmem:[#allocation2 + $0x48] sm:$0xff] %v2511
      %2528 = vst [vmem:[#allocation2 + $0x50] sm:$0xff] %v2512
      %2529 = vst [vmem:[#allocation2 + $0x58] sm:$0xff] %v2513
      %2530 = vst [vmem:[#allocation2 + $0x60] sm:$0xff] %v2514
      %2531 = vst [vmem:[#allocation2 + $0x68] sm:$0xff] %v2515
      %2532 = vst [vmem:[#allocation2 + $0x70] sm:$0xff] %v2516
      %2533 = vst [vmem:[#allocation2 + $0x78] sm:$0xff] %v2517
      %v2536 = vrot.slane %v699, 1
      %v2537 = vrot.slane %v700, 1
      %v2538 = vsel %vm1209, %v2536, %v2537
      %s2540 = scalar_lea.vmem %s1, 512
      %v2541 = vld [vmem:[%s2540] sm:$0xf]
      %v2542 = vld [vmem:[%s2540 + $0x4] sm:$0xf]
      %v2543 = vld [vmem:[%s2540 + $0x8] sm:$0xf]
      %v2544 = vld [vmem:[%s2540 + $0xc] sm:$0xf]
      %v2545 = vld [vmem:[%s2540 + $0x10] sm:$0xf]
      %v2546 = vld [vmem:[%s2540 + $0x14] sm:$0xf]
      %v2547 = vld [vmem:[%s2540 + $0x18] sm:$0xf]
      %v2548 = vld [vmem:[%s2540 + $0x1c] sm:$0xf]
      %v2549 = vld [vmem:[%s2540 + $0x20] sm:$0xf]
      %v2550 = vld [vmem:[%s2540 + $0x24] sm:$0xf]
      %v2551 = vld [vmem:[%s2540 + $0x28] sm:$0xf]
      %v2552 = vld [vmem:[%s2540 + $0x2c] sm:$0xf]
      %v2553 = vld [vmem:[%s2540 + $0x30] sm:$0xf]
      %v2554 = vld [vmem:[%s2540 + $0x34] sm:$0xf]
      %v2555 = vld [vmem:[%s2540 + $0x38] sm:$0xf]
      %v2556 = vld [vmem:[%s2540 + $0x3c] sm:$0xf]
      %v2573 = vunpack.c.l.b16 %v2541
      %v2574 = vunpack.c.l.b16 %v2542
      %v2575 = vunpack.c.l.b16 %v2543
      %v2576 = vunpack.c.l.b16 %v2544
      %v2577 = vunpack.c.l.b16 %v2545
      %v2578 = vunpack.c.l.b16 %v2546
      %v2579 = vunpack.c.l.b16 %v2547
      %v2580 = vunpack.c.l.b16 %v2548
      %v2581 = vunpack.c.l.b16 %v2549
      %v2582 = vunpack.c.l.b16 %v2550
      %v2583 = vunpack.c.l.b16 %v2551
      %v2584 = vunpack.c.l.b16 %v2552
      %v2585 = vunpack.c.l.b16 %v2553
      %v2586 = vunpack.c.l.b16 %v2554
      %v2587 = vunpack.c.l.b16 %v2555
      %v2588 = vunpack.c.l.b16 %v2556
      %v2589 = vpack.c.b16 %v2574, %v2573
      %v2590 = vpack.c.b16 %v2576, %v2575
      %v2591 = vpack.c.b16 %v2578, %v2577
      %v2592 = vpack.c.b16 %v2580, %v2579
      %v2593 = vpack.c.b16 %v2582, %v2581
      %v2594 = vpack.c.b16 %v2584, %v2583
      %v2595 = vpack.c.b16 %v2586, %v2585
      %v2596 = vpack.c.b16 %v2588, %v2587
      %2605 = vmatprep.subr.bf16.mxu0 0
      %2606 = vmatpush1.bf16.msra.mxu0 %v2589
      %2607 = vmatprep.subr.bf16.mxu0 0
      %2608 = vmatpush1.bf16.msra.mxu0 %v2590
      %2609 = vmatprep.subr.bf16.mxu0 0
      %2610 = vmatpush1.bf16.msra.mxu0 %v2591
      %2611 = vmatprep.subr.bf16.mxu0 0
      %2612 = vmatpush1.bf16.msra.mxu0 %v2592
      %2613 = vmatprep.subr.bf16.mxu0 0
      %2614 = vmatpush1.bf16.msra.mxu0 %v2593
      %2615 = vmatprep.subr.bf16.mxu0 0
      %2616 = vmatpush1.bf16.msra.mxu0 %v2594
      %2617 = vmatprep.subr.bf16.mxu0 0
      %2618 = vmatpush1.bf16.msra.mxu0 %v2595
      %2619 = vmatprep.subr.bf16.mxu0 0
      %2620 = vmatpush1.bf16.msra.mxu0 %v2596
      %2621 = vmatprep.subr.bf16.mxu0 0
      %2622 = vmatpush1.bf16.msra.mxu0 0
      %2623 = vmatprep.subr.bf16.mxu0 0
      %2624 = vmatpush1.bf16.msra.mxu0 0
      %2625 = vmatprep.subr.bf16.mxu0 0
      %2626 = vmatpush1.bf16.msra.mxu0 0
      %2627 = vmatprep.subr.bf16.mxu0 0
      %2628 = vmatpush1.bf16.msra.mxu0 0
      %2629 = vmatprep.subr.bf16.mxu0 0
      %2630 = vmatpush1.bf16.msra.mxu0 0
      %2631 = vmatprep.subr.bf16.mxu0 0
      %2632 = vmatpush1.bf16.msra.mxu0 0
      %2633 = vmatprep.subr.bf16.mxu0 0
      %2634 = vmatpush1.bf16.msra.mxu0 0
      %2635 = vmatprep.subr.bf16.mxu0 0
      %2636 = vmatpush1.bf16.msra.mxu0 0
      %2637 = vmatprep.mubr.bf16.mxu0 0
      %2638 = vmatmul.mubr.bf16.gmra.mrb[0].mxu0 %v1218
      %v2639 = vpop.f32.mrb[0].mxu0
      %v2640 = vadd.f32 0.0, %v2639
      %v2641 = vpop.f32.mrb[0].mxu0
      %v2642 = vpop.f32.mrb[0].mxu0
      %v2643 = vadd.f32 0.0, %v2642
      %v2644 = vpop.f32.mrb[0].mxu0
      %2645 = vmatprep.mubr.bf16.mxu0 0
      %2646 = vmatmul.mubr.bf16.gmra.mrb[0].mxu0 %v1221
      %v2647 = vpop.f32.mrb[0].mxu0
      %v2648 = vadd.f32 0.0, %v2647
      %v2649 = vpop.f32.mrb[0].mxu0
      %v2650 = vpop.f32.mrb[0].mxu0
      %v2651 = vadd.f32 0.0, %v2650
      %v2652 = vpop.f32.mrb[0].mxu0
      %2653 = vmatprep.mubr.bf16.mxu0 0
      %2654 = vmatmul.mubr.bf16.gmra.mrb[0].mxu0 %v1224
      %v2655 = vpop.f32.mrb[0].mxu0
      %v2656 = vadd.f32 0.0, %v2655
      %v2657 = vpop.f32.mrb[0].mxu0
      %v2658 = vpop.f32.mrb[0].mxu0
      %v2659 = vadd.f32 0.0, %v2658
      %v2660 = vpop.f32.mrb[0].mxu0
      %2661 = vmatprep.mubr.bf16.mxu0 0
      %2662 = vmatmul.mubr.bf16.gmra.mrb[0].mxu0 %v1227
      %v2663 = vpop.f32.mrb[0].mxu0
      %v2664 = vadd.f32 0.0, %v2663
      %v2665 = vpop.f32.mrb[0].mxu0
      %v2666 = vpop.f32.mrb[0].mxu0
      %v2667 = vadd.f32 0.0, %v2666
      %v2668 = vpop.f32.mrb[0].mxu0
      %2669 = vmatprep.mubr.bf16.mxu0 0
      %2670 = vmatmul.mubr.bf16.gmra.mrb[0].mxu0 %v1230
      %v2671 = vpop.f32.mrb[0].mxu0
      %v2672 = vadd.f32 0.0, %v2671
      %v2673 = vpop.f32.mrb[0].mxu0
      %v2674 = vpop.f32.mrb[0].mxu0
      %v2675 = vadd.f32 0.0, %v2674
      %v2676 = vpop.f32.mrb[0].mxu0
      %2677 = vmatprep.mubr.bf16.mxu0 0
      %2678 = vmatmul.mubr.bf16.gmra.mrb[0].mxu0 %v1233
      %v2679 = vpop.f32.mrb[0].mxu0
      %v2680 = vadd.f32 0.0, %v2679
      %v2681 = vpop.f32.mrb[0].mxu0
      %v2682 = vpop.f32.mrb[0].mxu0
      %v2683 = vadd.f32 0.0, %v2682
      %v2684 = vpop.f32.mrb[0].mxu0
      %2685 = vmatprep.mubr.bf16.mxu0 0
      %2686 = vmatmul.mubr.bf16.gmra.mrb[0].mxu0 %v1889
      %v2687 = vpop.f32.mrb[0].mxu0
      %v2688 = vadd.f32 0.0, %v2687
      %v2689 = vpop.f32.mrb[0].mxu0
      %v2690 = vpop.f32.mrb[0].mxu0
      %v2691 = vadd.f32 0.0, %v2690
      %v2692 = vpop.f32.mrb[0].mxu0
      %2693 = vmatprep.mubr.bf16.mxu0 0
      %2694 = vmatmul.mubr.bf16.gmra.mrb[0].mxu0 %v2538
      %v2695 = vpop.f32.mrb[0].mxu0
      %v2696 = vadd.f32 0.0, %v2695
      %v2697 = vpop.f32.mrb[0].mxu0
      %v2698 = vpop.f32.mrb[0].mxu0
      %v2699 = vadd.f32 0.0, %v2698
      %v2700 = vpop.f32.mrb[0].mxu0
      %2701 = vdwg.mxu0
      %v2702 = vld [vmem:[#allocation2] sm:$0xff]
      %v2703 = vld [vmem:[#allocation2 + $0x8] sm:$0xff]
      %v2704 = vld [vmem:[#allocation2 + $0x10] sm:$0xff]
      %v2705 = vld [vmem:[#allocation2 + $0x18] sm:$0xff]
      %v2706 = vld [vmem:[#allocation2 + $0x20] sm:$0xff]
      %v2707 = vld [vmem:[#allocation2 + $0x28] sm:$0xff]
      %v2708 = vld [vmem:[#allocation2 + $0x30] sm:$0xff]
      %v2709 = vld [vmem:[#allocation2 + $0x38] sm:$0xff]
      %v2710 = vld [vmem:[#allocation2 + $0x40] sm:$0xff]
      %v2711 = vld [vmem:[#allocation2 + $0x48] sm:$0xff]
      %v2712 = vld [vmem:[#allocation2 + $0x50] sm:$0xff]
      %v2713 = vld [vmem:[#allocation2 + $0x58] sm:$0xff]
      %v2714 = vld [vmem:[#allocation2 + $0x60] sm:$0xff]
      %v2715 = vld [vmem:[#allocation2 + $0x68] sm:$0xff]
      %v2716 = vld [vmem:[#allocation2 + $0x70] sm:$0xff]
      %v2717 = vld [vmem:[#allocation2 + $0x78] sm:$0xff]
      %v2718 = vadd.f32 %v2702, %v2640
      %v2719 = vadd.f32 %v2703, %v2643
      %v2720 = vadd.f32 %v2704, %v2648
      %v2721 = vadd.f32 %v2705, %v2651
      %v2722 = vadd.f32 %v2706, %v2656
      %v2723 = vadd.f32 %v2707, %v2659
      %v2724 = vadd.f32 %v2708, %v2664
      %v2725 = vadd.f32 %v2709, %v2667
      %v2726 = vadd.f32 %v2710, %v2672
      %v2727 = vadd.f32 %v2711, %v2675
      %v2728 = vadd.f32 %v2712, %v2680
      %v2729 = vadd.f32 %v2713, %v2683
      %v2730 = vadd.f32 %v2714, %v2688
      %v2731 = vadd.f32 %v2715, %v2691
      %v2732 = vadd.f32 %v2716, %v2696
      %v2733 = vadd.f32 %v2717, %v2699
      %2734 = vst [vmem:[#allocation2] sm:$0xff] %v2718
      %2735 = vst [vmem:[#allocation2 + $0x8] sm:$0xff] %v2719
      %2736 = vst [vmem:[#allocation2 + $0x10] sm:$0xff] %v2720
      %2737 = vst [vmem:[#allocation2 + $0x18] sm:$0xff] %v2721
      %2738 = vst [vmem:[#allocation2 + $0x20] sm:$0xff] %v2722
      %2739 = vst [vmem:[#allocation2 + $0x28] sm:$0xff] %v2723
      %2740 = vst [vmem:[#allocation2 + $0x30] sm:$0xff] %v2724
      %2741 = vst [vmem:[#allocation2 + $0x38] sm:$0xff] %v2725
      %2742 = vst [vmem:[#allocation2 + $0x40] sm:$0xff] %v2726
      %2743 = vst [vmem:[#allocation2 + $0x48] sm:$0xff] %v2727
      %2744 = vst [vmem:[#allocation2 + $0x50] sm:$0xff] %v2728
      %2745 = vst [vmem:[#allocation2 + $0x58] sm:$0xff] %v2729
      %2746 = vst [vmem:[#allocation2 + $0x60] sm:$0xff] %v2730
      %2747 = vst [vmem:[#allocation2 + $0x68] sm:$0xff] %v2731
      %2748 = vst [vmem:[#allocation2 + $0x70] sm:$0xff] %v2732
      %2749 = vst [vmem:[#allocation2 + $0x78] sm:$0xff] %v2733
      %v2750 = vld [vmem:[#allocation2] sm:$0xff]
      %v2751 = vld [vmem:[#allocation2 + $0x8] sm:$0xff]
      %v2752 = vld [vmem:[#allocation2 + $0x10] sm:$0xff]
      %v2753 = vld [vmem:[#allocation2 + $0x18] sm:$0xff]
      %v2754 = vld [vmem:[#allocation2 + $0x20] sm:$0xff]
      %v2755 = vld [vmem:[#allocation2 + $0x28] sm:$0xff]
      %v2756 = vld [vmem:[#allocation2 + $0x30] sm:$0xff]
      %v2757 = vld [vmem:[#allocation2 + $0x38] sm:$0xff]
      %v2758 = vld [vmem:[#allocation2 + $0x40] sm:$0xff]
      %v2759 = vld [vmem:[#allocation2 + $0x48] sm:$0xff]
      %v2760 = vld [vmem:[#allocation2 + $0x50] sm:$0xff]
      %v2761 = vld [vmem:[#allocation2 + $0x58] sm:$0xff]
      %v2762 = vld [vmem:[#allocation2 + $0x60] sm:$0xff]
      %v2763 = vld [vmem:[#allocation2 + $0x68] sm:$0xff]
      %v2764 = vld [vmem:[#allocation2 + $0x70] sm:$0xff]
      %v2765 = vld [vmem:[#allocation2 + $0x78] sm:$0xff]
      %v2766 = vpack.c.bf16 %v2751, %v2750
      %v2767 = vpack.c.bf16 %v2753, %v2752
      %v2768 = vpack.c.bf16 %v2755, %v2754
      %v2769 = vpack.c.bf16 %v2757, %v2756
      %v2770 = vpack.c.bf16 %v2759, %v2758
      %v2771 = vpack.c.bf16 %v2761, %v2760
      %v2772 = vpack.c.bf16 %v2763, %v2762
      %v2773 = vpack.c.bf16 %v2765, %v2764
      %v2782 = vunpack.c.l.b16 %v2766
      %v2783 = vunpack.c.h.b16 %v2766
      %v2784 = vunpack.c.l.b16 %v2767
      %v2785 = vunpack.c.h.b16 %v2767
      %v2786 = vunpack.c.l.b16 %v2768
      %v2787 = vunpack.c.h.b16 %v2768
      %v2788 = vunpack.c.l.b16 %v2769
      %v2789 = vunpack.c.h.b16 %v2769
      %v2790 = vunpack.c.l.b16 %v2770
      %v2791 = vunpack.c.h.b16 %v2770
      %v2792 = vunpack.c.l.b16 %v2771
      %v2793 = vunpack.c.h.b16 %v2771
      %v2794 = vunpack.c.l.b16 %v2772
      %v2795 = vunpack.c.h.b16 %v2772
      %v2796 = vunpack.c.l.b16 %v2773
      %v2797 = vunpack.c.h.b16 %v2773
      %v2798 = vpack.c.b16 %v2782, %v2782
      %v2799 = vpack.c.b16 %v2783, %v2783
      %v2800 = vpack.c.b16 %v2784, %v2784
      %v2801 = vpack.c.b16 %v2785, %v2785
      %v2802 = vpack.c.b16 %v2786, %v2786
      %v2803 = vpack.c.b16 %v2787, %v2787
      %v2804 = vpack.c.b16 %v2788, %v2788
      %v2805 = vpack.c.b16 %v2789, %v2789
      %v2806 = vpack.c.b16 %v2790, %v2790
      %v2807 = vpack.c.b16 %v2791, %v2791
      %v2808 = vpack.c.b16 %v2792, %v2792
      %v2809 = vpack.c.b16 %v2793, %v2793
      %v2810 = vpack.c.b16 %v2794, %v2794
      %v2811 = vpack.c.b16 %v2795, %v2795
      %v2812 = vpack.c.b16 %v2796, %v2796
      %v2813 = vpack.c.b16 %v2797, %v2797
      %2830 = vst [vmem:[%s296] sm:$0xf] %v2798
      %2831 = vst [vmem:[%s296 + $0x4] sm:$0xf] %v2799
      %2832 = vst [vmem:[%s296 + $0x8] sm:$0xf] %v2800
      %2833 = vst [vmem:[%s296 + $0xc] sm:$0xf] %v2801
      %2834 = vst [vmem:[%s296 + $0x10] sm:$0xf] %v2802
      %2835 = vst [vmem:[%s296 + $0x14] sm:$0xf] %v2803
      %2836 = vst [vmem:[%s296 + $0x18] sm:$0xf] %v2804
      %2837 = vst [vmem:[%s296 + $0x1c] sm:$0xf] %v2805
      %2838 = vst [vmem:[%s296 + $0x20] sm:$0xf] %v2806
      %2839 = vst [vmem:[%s296 + $0x24] sm:$0xf] %v2807
      %2840 = vst [vmem:[%s296 + $0x28] sm:$0xf] %v2808
      %2841 = vst [vmem:[%s296 + $0x2c] sm:$0xf] %v2809
      %2842 = vst [vmem:[%s296 + $0x30] sm:$0xf] %v2810
      %2843 = vst [vmem:[%s296 + $0x34] sm:$0xf] %v2811
      %2844 = vst [vmem:[%s296 + $0x38] sm:$0xf] %v2812
      %2845 = vst [vmem:[%s296 + $0x3c] sm:$0xf] %v2813
      %v2846 = vadd.f32 %v2750, %v2751
      %v2847 = vadd.f32 %v2846, %v2752
      %v2848 = vadd.f32 %v2847, %v2753
      %v2849 = vadd.f32 %v2848, %v2754
      %v2850 = vadd.f32 %v2849, %v2755
      %v2851 = vadd.f32 %v2850, %v2756
      %v2852 = vadd.f32 %v2851, %v2757
      %v2853 = vadd.f32 %v2852, %v2758
      %v2854 = vadd.f32 %v2853, %v2759
      %v2855 = vadd.f32 %v2854, %v2760
      %v2856 = vadd.f32 %v2855, %v2761
      %v2857 = vadd.f32 %v2856, %v2762
      %v2858 = vadd.f32 %v2857, %v2763
      %v2859 = vadd.f32 %v2858, %v2764
      %v2860 = vadd.f32 %v2859, %v2765
      %v2861 = vrot.slane %v2860, 4
      %v2862 = vadd.f32 %v2860, %v2861
      %v2863 = vrot.slane %v2862, 2
      %v2864 = vadd.f32 %v2862, %v2863
      %v2865 = vrot.slane %v2864, 1
      %v2866 = vadd.f32 %v2864, %v2865
      %2867 = vst [vmem:[%s302] sm:$0x1] %v2866
      %v2868 = vmul.f32 %v2750, %v2750
      %v2869 = vmul.f32 %v2751, %v2751
      %v2870 = vmul.f32 %v2752, %v2752
      %v2871 = vmul.f32 %v2753, %v2753
      %v2872 = vmul.f32 %v2754, %v2754
      %v2873 = vmul.f32 %v2755, %v2755
      %v2874 = vmul.f32 %v2756, %v2756
      %v2875 = vmul.f32 %v2757, %v2757
      %v2876 = vmul.f32 %v2758, %v2758
      %v2877 = vmul.f32 %v2759, %v2759
      %v2878 = vmul.f32 %v2760, %v2760
      %v2879 = vmul.f32 %v2761, %v2761
      %v2880 = vmul.f32 %v2762, %v2762
      %v2881 = vmul.f32 %v2763, %v2763
      %v2882 = vmul.f32 %v2764, %v2764
      %v2883 = vmul.f32 %v2765, %v2765
      %v2884 = vadd.f32 %v2868, %v2869
      %v2885 = vadd.f32 %v2884, %v2870
      %v2886 = vadd.f32 %v2885, %v2871
      %v2887 = vadd.f32 %v2886, %v2872
      %v2888 = vadd.f32 %v2887, %v2873
      %v2889 = vadd.f32 %v2888, %v2874
      %v2890 = vadd.f32 %v2889, %v2875
      %v2891 = vadd.f32 %v2890, %v2876
      %v2892 = vadd.f32 %v2891, %v2877
      %v2893 = vadd.f32 %v2892, %v2878
      %v2894 = vadd.f32 %v2893, %v2879
      %v2895 = vadd.f32 %v2894, %v2880
      %v2896 = vadd.f32 %v2895, %v2881
      %v2897 = vadd.f32 %v2896, %v2882
      %v2898 = vadd.f32 %v2897, %v2883
      %v2899 = vrot.slane %v2898, 4
      %v2900 = vadd.f32 %v2898, %v2899
      %v2901 = vrot.slane %v2900, 2
      %v2902 = vadd.f32 %v2900, %v2901
      %v2903 = vrot.slane %v2902, 1
      %v2904 = vadd.f32 %v2902, %v2903
      %2905 = vst [vmem:[%s309] sm:$0x1] %v2904
      %s2906 = smul.u32 16, %s23
      %p2907 = scmp.lt.s32.totalorder %s22, 1
      %s2908 = scalar_select %p2907, %s22, 1
      %p2909 = scmp.lt.s32.totalorder %s2906, 31
      %s2910 = scalar_select %p2909, %s2906, 31
      %s2911 = smul.addr %s2908, 32
      %s2912 = sadd.s32 %s2910, %s2911
      %s2913 = smul.addr %s2912, 4
      %s2914 = scalar_lea.vmem %s4, %s2913
      %s2915 = smul.u32 %s22, 2
      %s2916 = sadd.s32 %s2915, %s23
      %p2917 = scmp.lt.s32.totalorder %s2916, 3
      %s2918 = scalar_select %p2917, %s2916, 3
      %s2919 = scalar_lea.vmem %s5, %s2918
      %s2920 = smul.u32 %s22, 2
      %s2921 = sadd.s32 %s2920, %s23
      %p2922 = scmp.lt.s32.totalorder %s2921, 3
      %s2923 = scalar_select %p2922, %s2921, 3
      %s2924 = scalar_lea.vmem %s6, %s2923
      // Predicated region
      $region37: #{bottleneck_forward.6} parent=35 // pred_check
        %p2925 = pneg %p139
      $region38: #{bottleneck_forward.6} parent=35 // pred_check_branch
        %2927 = sbr.rel (%p2925) target = $region40
      $region39: #{bottleneck_forward.6} parent=35 // pred_region
        %s2928 = smul.u32 16, %s23
      $region40: #{bottleneck_forward.6} parent=35 // pred_fallthru
        _
      // Predicated region
      $region41: #{bottleneck_forward.6} parent=35 // pred_check
        %p2929 = pneg %p169
      $region42: #{bottleneck_forward.6} parent=35 // pred_check_branch
        %2931 = sbr.rel (%p2929) target = $region44
      $region43: #{bottleneck_forward.6} parent=35 // pred_region
        %s2932 = smul.u32 %s22, 2
        %s2933 = sadd.s32 %s2932, %s23
      $region44: #{bottleneck_forward.6} parent=35 // pred_fallthru
        _
      // Predicated region
      $region45: #{bottleneck_forward.6} parent=35 // pred_check
        %p2934 = pneg %p199
      $region46: #{bottleneck_forward.6} parent=35 // pred_check_branch
        %2936 = sbr.rel (%p2934) target = $region48
      $region47: #{bottleneck_forward.6} parent=35 // pred_region
        %s2937 = smul.u32 %s22, 2
        %s2938 = sadd.s32 %s2937, %s23
      $region48: #{bottleneck_forward.6} parent=35 // pred_fallthru
        _
    $region36: #{bottleneck_forward.6} parent=5 // pred_fallthru
      _
    %p2939 = scmp.le.s32.totalorder 2, %s13
    // Predicated region
    $region49: #{bottleneck_forward.6} parent=5 // pred_check
      %p2940 = pneg %p2939
    $region50: #{bottleneck_forward.6} parent=5 // pred_check_branch
      %2942 = sbr.rel (%p2940) target = $region52
    $region51: #{bottleneck_forward.6} parent=5 // pred_region
      %s2943 = ssub.s32 %s13, 2
      // Predicated region
      $region53: #{bottleneck_forward.6} parent=51 // pred_check
        %p2944 = pneg %p145
      $region54: #{bottleneck_forward.6} parent=51 // pred_check_branch
        %2946 = sbr.rel (%p2944) target = $region56
      $region55: #{bottleneck_forward.6} parent=51 // pred_region
        %s2947 = smul.u32 16, %s25
        %p2948 = scmp.lt.s32.totalorder %s24, 1
        %s2949 = scalar_select %p2948, %s24, 1
        %p2950 = scmp.lt.s32.totalorder %s2947, 31
        %s2951 = scalar_select %p2950, %s2947, 31
        %s2952 = smul.addr %s2949, 32
        %s2953 = sadd.s32 %s2951, %s2952
        %s2954 = smul.addr %s2953, 4
        %s2955 = scalar_lea.vmem %s4, %s2954
      $region56: #{bottleneck_forward.6} parent=51 // pred_fallthru
        _
      // Predicated region
      $region57: #{bottleneck_forward.6} parent=51 // pred_check
        %p2956 = pneg %p175
      $region58: #{bottleneck_forward.6} parent=51 // pred_check_branch
        %2958 = sbr.rel (%p2956) target = $region60
      $region59: #{bottleneck_forward.6} parent=51 // pred_region
        %s2959 = smul.u32 %s24, 2
        %s2960 = sadd.s32 %s2959, %s25
        %p2961 = scmp.lt.s32.totalorder %s2960, 3
        %s2962 = scalar_select %p2961, %s2960, 3
        %s2963 = scalar_lea.vmem %s5, %s2962
      $region60: #{bottleneck_forward.6} parent=51 // pred_fallthru
        _
      // Predicated region
      $region61: #{bottleneck_forward.6} parent=51 // pred_check
        %p2964 = pneg %p205
      $region62: #{bottleneck_forward.6} parent=51 // pred_check_branch
        %2966 = sbr.rel (%p2964) target = $region64
      $region63: #{bottleneck_forward.6} parent=51 // pred_region
        %s2967 = smul.u32 %s24, 2
        %s2968 = sadd.s32 %s2967, %s25
        %p2969 = scmp.lt.s32.totalorder %s2968, 3
        %s2970 = scalar_select %p2969, %s2968, 3
        %s2971 = scalar_lea.vmem %s6, %s2970
      $region64: #{bottleneck_forward.6} parent=51 // pred_fallthru
        _
    $region52: #{bottleneck_forward.6} parent=5 // pred_fallthru
      _
  $region6: #{bottleneck_forward.6} parent=0 // loop_footer
    %s17 = sadd.s32 1, %s13
  $region7: #{bottleneck_forward.6} parent=0 // loop_footer_branch
    %12 = sbr.rel target = $region3
  $region8: #{bottleneck_forward.6} parent=0 // loop_exit
    _

</llo_original>
